<compile_context>
chip_gen: v7x
topology: tpu7x:2x2x1
jax: 0.10.0
libtpu: 0.0.40
codegen_flags: <defaults>
</compile_context>

<pallas_src>
import functools

import numpy as np
import jax
import jax.numpy as jnp
from jax.experimental import pallas as pl
from jax.experimental.pallas import tpu as pltpu

ROW = 32            # flat row stride  (input image width)
IMG = 32 * 32       # flat per-batch-element stride
SLAB = 529          # per-(batch, channel) slab width holding the 5x5 pool2 output
FLATW = 16 * SLAB   # lane width of the (zero-padded) fc1 input


# ---------------------------------------------------------------------------
# Fused kernel: conv1 + pool1 + conv2 + pool2 + fc1 + fc2 + fc3
# ---------------------------------------------------------------------------
def _lenet_kernel(x_ref, w1_ref, b1_ref, w2_ref, b2_ref,
                  fw1_ref, fb1_ref, fw2_ref, fb2_ref, fw3_ref, fb3_ref,
                  out_ref,
                  cols1_ref, cols2_ref, flat_ref,
                  *, batch, w1_width, w2_width):
    W1 = w1_width            # conv1 flat output width (un-compacted)
    WP1 = W1 - 33            # pool1 width
    W2 = w2_width            # conv2 flat output width
    WP2 = W2 - 66            # pool2 width
    f32 = jnp.float32
    bf16 = jnp.bfloat16

    x = x_ref[...]                                              # (3, B*1024) f32

    # ---- conv1: in-kernel im2col (25 contiguous strips) + one MXU matmul ----
    for kh in range(5):
        for kw in range(5):
            t = kh * 5 + kw
            off = kh * ROW + kw
            cols1_ref[t * 3:(t + 1) * 3, :] = x[:, off:off + W1]
    a1 = jnp.dot(w1_ref[...], cols1_ref[...].astype(bf16),
                 preferred_element_type=f32)
    a1 = jnp.maximum(a1 + b1_ref[...], 0.0)                     # (6, W1)

    # ---- 2x2 max-pool #1 (wide space, window corners at offsets 0,1,32,33) --
    p1 = jnp.maximum(jnp.maximum(a1[:, 0:WP1], a1[:, 1:WP1 + 1]),
                     jnp.maximum(a1[:, ROW:WP1 + ROW],
                                 a1[:, ROW + 1:WP1 + ROW + 1]))  # (6, WP1)

    # ---- conv2: taps live at stride 2 in the wide space ----------------------
    for kh in range(5):
        for kw in range(5):
            t = kh * 5 + kw
            off = 2 * kh * ROW + 2 * kw
            cols2_ref[t * 6:(t + 1) * 6, :] = p1[:, off:off + W2]
    a2 = jnp.dot(w2_ref[...], cols2_ref[...].astype(bf16),
                 preferred_element_type=f32)
    a2 = jnp.maximum(a2 + b2_ref[...], 0.0)                     # (16, W2)

    # ---- 2x2 max-pool #2 (window corners at offsets 0, 2, 64, 66) ------------
    p2 = jnp.maximum(jnp.maximum(a2[:, 0:WP2], a2[:, 2:WP2 + 2]),
                     jnp.maximum(a2[:, 64:WP2 + 64],
                                 a2[:, 66:WP2 + 66]))            # (16, WP2)

    # ---- flatten: one wide slab per (batch, channel); garbage lanes are
    #      multiplied by zero rows of the padded fc1 weight --------------------
    for b in range(batch):
        for c in range(16):
            flat_ref[b:b + 1, c * SLAB:(c + 1) * SLAB] = \
                p2[c:c + 1, b * IMG:b * IMG + SLAB]

    # ---- fc1 -> fc2 -> fc3 ----------------------------------------------------
    h = flat_ref[...].astype(bf16)                              # (B, FLATW)
    h = jnp.dot(h, fw1_ref[...], preferred_element_type=f32) + fb1_ref[...]
    h = jnp.maximum(h, 0.0).astype(bf16)                        # (B, 120)
    h = jnp.dot(h, fw2_ref[...], preferred_element_type=f32) + fb2_ref[...]
    h = jnp.maximum(h, 0.0).astype(bf16)                        # (B, 84)
    out = jnp.dot(h, fw3_ref[...], preferred_element_type=f32) + fb3_ref[...]
    out_ref[...] = out.astype(out_ref.dtype)                    # (B, 10)


# ---------------------------------------------------------------------------
# pallas_call builder
# ---------------------------------------------------------------------------
def _build_forward(batch):
    W1 = (batch - 1) * IMG + 27 * ROW + 27 + 1      # conv1 flat width
    W2 = (batch - 1) * IMG + 18 * ROW + 18 + 1      # conv2 flat width

    kernel = functools.partial(_lenet_kernel, batch=batch,
                               w1_width=W1, w2_width=W2)

    def spec(shape):
        return pl.BlockSpec(shape, lambda i: (0, 0))

    in_shapes = [
        (3, batch * IMG),        # x (flat, channel-major)
        (6, 75), (6, 1),         # conv1 weight / bias
        (16, 150), (16, 1),      # conv2 weight / bias
        (FLATW, 120), (1, 120),  # fc1 (zero-padded to wide layout)
        (120, 84), (1, 84),      # fc2
        (84, 10), (1, 10),       # fc3
    ]

    return pl.pallas_call(
        kernel,
        out_shape=jax.ShapeDtypeStruct((batch, 10), jnp.float32),
        grid=(1,),
        in_specs=[spec(s) for s in in_shapes],
        out_specs=spec((batch, 10)),
        scratch_shapes=[
            pltpu.VMEM((75, W1), jnp.float32),       # conv1 im2col
            pltpu.VMEM((150, W2), jnp.float32),      # conv2 im2col
            pltpu.VMEM((batch, FLATW), jnp.float32),  # fc1 input
        ],
    )


# ---------------------------------------------------------------------------
# Model: parameters + forward
# ---------------------------------------------------------------------------
def init_params(key):
    """Deterministic init, PyTorch-default-style uniform(-1/sqrt(fan_in), +)."""
    def uni(k, shape, fan_in):
        bound = 1.0 / jnp.sqrt(fan_in)
        return jax.random.uniform(k, shape, jnp.float32, -bound, bound)

    ks = jax.random.split(key, 10)
    p = {}
    p["w1"] = uni(ks[0], (6, 3, 5, 5), 3 * 5 * 5)
    p["b1"] = uni(ks[1], (6,), 3 * 5 * 5)
    p["w2"] = uni(ks[2], (16, 6, 5, 5), 6 * 5 * 5)
    p["b2"] = uni(ks[3], (16,), 6 * 5 * 5)
    p["fw1"] = uni(ks[4], (400, 120), 400)   # stored (in, out)
    p["fb1"] = uni(ks[5], (120,), 400)
    p["fw2"] = uni(ks[6], (120, 84), 120)
    p["fb2"] = uni(ks[7], (84,), 120)
    p["fw3"] = uni(ks[8], (84, 10), 84)
    p["fb3"] = uni(ks[9], (10,), 84)
    return p


def net_forward(params, x):
    # x: (B, 3, 32, 32) NCHW fp32 (the fc1 size 16*5*5 implies 32x32 input)
    B = x.shape[0]
    assert x.shape[1:] == (3, 32, 32)
    f32, bf16 = jnp.float32, jnp.bfloat16

    # ---- wrapper-side layout prep (pure XLA on tiny arrays) ----
    x2d = x.astype(f32).transpose(1, 0, 2, 3).reshape(3, B * IMG)

    w1f = params["w1"].transpose(0, 2, 3, 1).reshape(6, 75).astype(bf16)
    b1c = params["b1"].reshape(6, 1).astype(f32)
    w2f = params["w2"].transpose(0, 2, 3, 1).reshape(16, 150).astype(bf16)
    b2c = params["b2"].reshape(16, 1).astype(f32)

    # pool2 output (c, h, w) lives at flat lane c*SLAB + 128*h + 4*w; scatter
    # the fc1 weight rows there (zeros elsewhere kill the garbage lanes).
    pos = (np.arange(16)[:, None, None] * SLAB
           + np.arange(5)[None, :, None] * (4 * ROW)
           + np.arange(5)[None, None, :] * 4).reshape(-1)
    fw1w = jnp.zeros((FLATW, 120), bf16).at[pos].set(params["fw1"].astype(bf16))
    fb1 = params["fb1"].reshape(1, 120).astype(f32)
    fw2 = params["fw2"].astype(bf16)
    fb2 = params["fb2"].reshape(1, 84).astype(f32)
    fw3 = params["fw3"].astype(bf16)
    fb3 = params["fb3"].reshape(1, 10).astype(f32)

    fwd = _build_forward(B)
    return fwd(x2d, w1f, b1c, w2f, b2c, fw1w, fb1, fw2, fb2, fw3, fb3)


# ---------------------------------------------------------------------------
if __name__ == "__main__":
    key = jax.random.PRNGKey(0)
    pkey, xkey = jax.random.split(key)
    params = init_params(pkey)

    x = jax.random.normal(xkey, (2, 3, 32, 32), jnp.float32)

    out = jax.jit(net_forward)(params, x)
    out = jax.block_until_ready(out)
    assert out.shape == (2, 10) and out.dtype == jnp.float32
    assert bool(jnp.all(jnp.isfinite(out)))
    print("KERNEL_OK")
</pallas_src>

<mosaic_0001>
module attributes {stable_mosaic.version = 11 : i64} {
  func.func @_lenet_kernel(%arg0: i32, %arg1: memref<3x2048xf32, #tpu.memory_space<vmem>>, %arg2: memref<6x75xbf16, #tpu.memory_space<vmem>>, %arg3: memref<6x1xf32, #tpu.memory_space<vmem>>, %arg4: memref<16x150xbf16, #tpu.memory_space<vmem>>, %arg5: memref<16x1xf32, #tpu.memory_space<vmem>>, %arg6: memref<8464x120xbf16, #tpu.memory_space<vmem>>, %arg7: memref<1x120xf32, #tpu.memory_space<vmem>>, %arg8: memref<120x84xbf16, #tpu.memory_space<vmem>>, %arg9: memref<1x84xf32, #tpu.memory_space<vmem>>, %arg10: memref<84x10xbf16, #tpu.memory_space<vmem>>, %arg11: memref<1x10xf32, #tpu.memory_space<vmem>>, %arg12: memref<2x10xf32, #tpu.memory_space<vmem>>, %arg13: memref<75x1916xf32, #tpu.memory_space<vmem>>, %arg14: memref<150x1619xf32, #tpu.memory_space<vmem>>, %arg15: memref<2x8464xf32, #tpu.memory_space<vmem>>) attributes {dimension_semantics = [#tpu.dimension_semantics<arbitrary>], iteration_bounds = array<i64: 1>, scalar_prefetch = 0 : i64, scratch_operands = 3 : i64, tpu.core_type = #tpu.core_type<tc>, window_params = [{pipeline_mode = #tpu.pipeline_mode<synchronous>, transform_indices = @transform_0, window_bounds = array<i64: 3, 2048>}, {pipeline_mode = #tpu.pipeline_mode<synchronous>, transform_indices = @transform_1, window_bounds = array<i64: 6, 75>}, {pipeline_mode = #tpu.pipeline_mode<synchronous>, transform_indices = @transform_2, window_bounds = array<i64: 6, 1>}, {pipeline_mode = #tpu.pipeline_mode<synchronous>, transform_indices = @transform_3, window_bounds = array<i64: 16, 150>}, {pipeline_mode = #tpu.pipeline_mode<synchronous>, transform_indices = @transform_4, window_bounds = array<i64: 16, 1>}, {pipeline_mode = #tpu.pipeline_mode<synchronous>, transform_indices = @transform_5, window_bounds = array<i64: 8464, 120>}, {pipeline_mode = #tpu.pipeline_mode<synchronous>, transform_indices = @transform_6, window_bounds = array<i64: 1, 120>}, {pipeline_mode = #tpu.pipeline_mode<synchronous>, transform_indices = @transform_7, window_bounds = array<i64: 120, 84>}, {pipeline_mode = #tpu.pipeline_mode<synchronous>, transform_indices = @transform_8, window_bounds = array<i64: 1, 84>}, {pipeline_mode = #tpu.pipeline_mode<synchronous>, transform_indices = @transform_9, window_bounds = array<i64: 84, 10>}, {pipeline_mode = #tpu.pipeline_mode<synchronous>, transform_indices = @transform_10, window_bounds = array<i64: 1, 10>}, {pipeline_mode = #tpu.pipeline_mode<synchronous>, transform_indices = @transform_11, window_bounds = array<i64: 2, 10>}]} {
    %c0 = arith.constant 0 : index
    %c0_0 = arith.constant 0 : index
    %0 = vector.load %arg1[%c0, %c0_0] : memref<3x2048xf32, #tpu.memory_space<vmem>>, vector<3x2048xf32>
    %1 = vector.extract_strided_slice %0 {offsets = [0, 0], sizes = [3, 1916], strides = [1, 1]} : vector<3x2048xf32> to vector<3x1916xf32>
    %c0_1 = arith.constant 0 : index
    %c0_2 = arith.constant 0 : index
    %2 = vector.load %arg13[%c0_1, %c0_2] : memref<75x1916xf32, #tpu.memory_space<vmem>>, vector<3x1916xf32>
    tpu.vector_store %arg13[%c0_1, %c0_2], %1 {strides = array<i32>} : memref<75x1916xf32, #tpu.memory_space<vmem>>, vector<3x1916xf32>,
    %3 = vector.extract_strided_slice %0 {offsets = [0, 1], sizes = [3, 1916], strides = [1, 1]} : vector<3x2048xf32> to vector<3x1916xf32>
    %c3 = arith.constant 3 : index
    %c0_3 = arith.constant 0 : index
    %4 = vector.load %arg13[%c3, %c0_3] : memref<75x1916xf32, #tpu.memory_space<vmem>>, vector<3x1916xf32>
    tpu.vector_store %arg13[%c3, %c0_3], %3 {strides = array<i32>} : memref<75x1916xf32, #tpu.memory_space<vmem>>, vector<3x1916xf32>,
    %5 = vector.extract_strided_slice %0 {offsets = [0, 2], sizes = [3, 1916], strides = [1, 1]} : vector<3x2048xf32> to vector<3x1916xf32>
    %c6 = arith.constant 6 : index
    %c0_4 = arith.constant 0 : index
    %6 = vector.load %arg13[%c6, %c0_4] : memref<75x1916xf32, #tpu.memory_space<vmem>>, vector<3x1916xf32>
    tpu.vector_store %arg13[%c6, %c0_4], %5 {strides = array<i32>} : memref<75x1916xf32, #tpu.memory_space<vmem>>, vector<3x1916xf32>,
    %7 = vector.extract_strided_slice %0 {offsets = [0, 3], sizes = [3, 1916], strides = [1, 1]} : vector<3x2048xf32> to vector<3x1916xf32>
    %c9 = arith.constant 9 : index
    %c0_5 = arith.constant 0 : index
    %8 = vector.load %arg13[%c9, %c0_5] : memref<75x1916xf32, #tpu.memory_space<vmem>>, vector<3x1916xf32>
    tpu.vector_store %arg13[%c9, %c0_5], %7 {strides = array<i32>} : memref<75x1916xf32, #tpu.memory_space<vmem>>, vector<3x1916xf32>,
    %9 = vector.extract_strided_slice %0 {offsets = [0, 4], sizes = [3, 1916], strides = [1, 1]} : vector<3x2048xf32> to vector<3x1916xf32>
    %c12 = arith.constant 12 : index
    %c0_6 = arith.constant 0 : index
    %10 = vector.load %arg13[%c12, %c0_6] : memref<75x1916xf32, #tpu.memory_space<vmem>>, vector<3x1916xf32>
    tpu.vector_store %arg13[%c12, %c0_6], %9 {strides = array<i32>} : memref<75x1916xf32, #tpu.memory_space<vmem>>, vector<3x1916xf32>,
    %11 = vector.extract_strided_slice %0 {offsets = [0, 32], sizes = [3, 1916], strides = [1, 1]} : vector<3x2048xf32> to vector<3x1916xf32>
    %c15 = arith.constant 15 : index
    %c0_7 = arith.constant 0 : index
    %12 = vector.load %arg13[%c15, %c0_7] : memref<75x1916xf32, #tpu.memory_space<vmem>>, vector<3x1916xf32>
    tpu.vector_store %arg13[%c15, %c0_7], %11 {strides = array<i32>} : memref<75x1916xf32, #tpu.memory_space<vmem>>, vector<3x1916xf32>,
    %13 = vector.extract_strided_slice %0 {offsets = [0, 33], sizes = [3, 1916], strides = [1, 1]} : vector<3x2048xf32> to vector<3x1916xf32>
    %c18 = arith.constant 18 : index
    %c0_8 = arith.constant 0 : index
    %14 = vector.load %arg13[%c18, %c0_8] : memref<75x1916xf32, #tpu.memory_space<vmem>>, vector<3x1916xf32>
    tpu.vector_store %arg13[%c18, %c0_8], %13 {strides = array<i32>} : memref<75x1916xf32, #tpu.memory_space<vmem>>, vector<3x1916xf32>,
    %15 = vector.extract_strided_slice %0 {offsets = [0, 34], sizes = [3, 1916], strides = [1, 1]} : vector<3x2048xf32> to vector<3x1916xf32>
    %c21 = arith.constant 21 : index
    %c0_9 = arith.constant 0 : index
    %16 = vector.load %arg13[%c21, %c0_9] : memref<75x1916xf32, #tpu.memory_space<vmem>>, vector<3x1916xf32>
    tpu.vector_store %arg13[%c21, %c0_9], %15 {strides = array<i32>} : memref<75x1916xf32, #tpu.memory_space<vmem>>, vector<3x1916xf32>,
    %17 = vector.extract_strided_slice %0 {offsets = [0, 35], sizes = [3, 1916], strides = [1, 1]} : vector<3x2048xf32> to vector<3x1916xf32>
    %c24 = arith.constant 24 : index
    %c0_10 = arith.constant 0 : index
    %18 = vector.load %arg13[%c24, %c0_10] : memref<75x1916xf32, #tpu.memory_space<vmem>>, vector<3x1916xf32>
    tpu.vector_store %arg13[%c24, %c0_10], %17 {strides = array<i32>} : memref<75x1916xf32, #tpu.memory_space<vmem>>, vector<3x1916xf32>,
    %19 = vector.extract_strided_slice %0 {offsets = [0, 36], sizes = [3, 1916], strides = [1, 1]} : vector<3x2048xf32> to vector<3x1916xf32>
    %c27 = arith.constant 27 : index
    %c0_11 = arith.constant 0 : index
    %20 = vector.load %arg13[%c27, %c0_11] : memref<75x1916xf32, #tpu.memory_space<vmem>>, vector<3x1916xf32>
    tpu.vector_store %arg13[%c27, %c0_11], %19 {strides = array<i32>} : memref<75x1916xf32, #tpu.memory_space<vmem>>, vector<3x1916xf32>,
    %21 = vector.extract_strided_slice %0 {offsets = [0, 64], sizes = [3, 1916], strides = [1, 1]} : vector<3x2048xf32> to vector<3x1916xf32>
    %c30 = arith.constant 30 : index
    %c0_12 = arith.constant 0 : index
    %22 = vector.load %arg13[%c30, %c0_12] : memref<75x1916xf32, #tpu.memory_space<vmem>>, vector<3x1916xf32>
    tpu.vector_store %arg13[%c30, %c0_12], %21 {strides = array<i32>} : memref<75x1916xf32, #tpu.memory_space<vmem>>, vector<3x1916xf32>,
    %23 = vector.extract_strided_slice %0 {offsets = [0, 65], sizes = [3, 1916], strides = [1, 1]} : vector<3x2048xf32> to vector<3x1916xf32>
    %c33 = arith.constant 33 : index
    %c0_13 = arith.constant 0 : index
    %24 = vector.load %arg13[%c33, %c0_13] : memref<75x1916xf32, #tpu.memory_space<vmem>>, vector<3x1916xf32>
    tpu.vector_store %arg13[%c33, %c0_13], %23 {strides = array<i32>} : memref<75x1916xf32, #tpu.memory_space<vmem>>, vector<3x1916xf32>,
    %25 = vector.extract_strided_slice %0 {offsets = [0, 66], sizes = [3, 1916], strides = [1, 1]} : vector<3x2048xf32> to vector<3x1916xf32>
    %c36 = arith.constant 36 : index
    %c0_14 = arith.constant 0 : index
    %26 = vector.load %arg13[%c36, %c0_14] : memref<75x1916xf32, #tpu.memory_space<vmem>>, vector<3x1916xf32>
    tpu.vector_store %arg13[%c36, %c0_14], %25 {strides = array<i32>} : memref<75x1916xf32, #tpu.memory_space<vmem>>, vector<3x1916xf32>,
    %27 = vector.extract_strided_slice %0 {offsets = [0, 67], sizes = [3, 1916], strides = [1, 1]} : vector<3x2048xf32> to vector<3x1916xf32>
    %c39 = arith.constant 39 : index
    %c0_15 = arith.constant 0 : index
    %28 = vector.load %arg13[%c39, %c0_15] : memref<75x1916xf32, #tpu.memory_space<vmem>>, vector<3x1916xf32>
    tpu.vector_store %arg13[%c39, %c0_15], %27 {strides = array<i32>} : memref<75x1916xf32, #tpu.memory_space<vmem>>, vector<3x1916xf32>,
    %29 = vector.extract_strided_slice %0 {offsets = [0, 68], sizes = [3, 1916], strides = [1, 1]} : vector<3x2048xf32> to vector<3x1916xf32>
    %c42 = arith.constant 42 : index
    %c0_16 = arith.constant 0 : index
    %30 = vector.load %arg13[%c42, %c0_16] : memref<75x1916xf32, #tpu.memory_space<vmem>>, vector<3x1916xf32>
    tpu.vector_store %arg13[%c42, %c0_16], %29 {strides = array<i32>} : memref<75x1916xf32, #tpu.memory_space<vmem>>, vector<3x1916xf32>,
    %31 = vector.extract_strided_slice %0 {offsets = [0, 96], sizes = [3, 1916], strides = [1, 1]} : vector<3x2048xf32> to vector<3x1916xf32>
    %c45 = arith.constant 45 : index
    %c0_17 = arith.constant 0 : index
    %32 = vector.load %arg13[%c45, %c0_17] : memref<75x1916xf32, #tpu.memory_space<vmem>>, vector<3x1916xf32>
    tpu.vector_store %arg13[%c45, %c0_17], %31 {strides = array<i32>} : memref<75x1916xf32, #tpu.memory_space<vmem>>, vector<3x1916xf32>,
    %33 = vector.extract_strided_slice %0 {offsets = [0, 97], sizes = [3, 1916], strides = [1, 1]} : vector<3x2048xf32> to vector<3x1916xf32>
    %c48 = arith.constant 48 : index
    %c0_18 = arith.constant 0 : index
    %34 = vector.load %arg13[%c48, %c0_18] : memref<75x1916xf32, #tpu.memory_space<vmem>>, vector<3x1916xf32>
    tpu.vector_store %arg13[%c48, %c0_18], %33 {strides = array<i32>} : memref<75x1916xf32, #tpu.memory_space<vmem>>, vector<3x1916xf32>,
    %35 = vector.extract_strided_slice %0 {offsets = [0, 98], sizes = [3, 1916], strides = [1, 1]} : vector<3x2048xf32> to vector<3x1916xf32>
    %c51 = arith.constant 51 : index
    %c0_19 = arith.constant 0 : index
    %36 = vector.load %arg13[%c51, %c0_19] : memref<75x1916xf32, #tpu.memory_space<vmem>>, vector<3x1916xf32>
    tpu.vector_store %arg13[%c51, %c0_19], %35 {strides = array<i32>} : memref<75x1916xf32, #tpu.memory_space<vmem>>, vector<3x1916xf32>,
    %37 = vector.extract_strided_slice %0 {offsets = [0, 99], sizes = [3, 1916], strides = [1, 1]} : vector<3x2048xf32> to vector<3x1916xf32>
    %c54 = arith.constant 54 : index
    %c0_20 = arith.constant 0 : index
    %38 = vector.load %arg13[%c54, %c0_20] : memref<75x1916xf32, #tpu.memory_space<vmem>>, vector<3x1916xf32>
    tpu.vector_store %arg13[%c54, %c0_20], %37 {strides = array<i32>} : memref<75x1916xf32, #tpu.memory_space<vmem>>, vector<3x1916xf32>,
    %39 = vector.extract_strided_slice %0 {offsets = [0, 100], sizes = [3, 1916], strides = [1, 1]} : vector<3x2048xf32> to vector<3x1916xf32>
    %c57 = arith.constant 57 : index
    %c0_21 = arith.constant 0 : index
    %40 = vector.load %arg13[%c57, %c0_21] : memref<75x1916xf32, #tpu.memory_space<vmem>>, vector<3x1916xf32>
    tpu.vector_store %arg13[%c57, %c0_21], %39 {strides = array<i32>} : memref<75x1916xf32, #tpu.memory_space<vmem>>, vector<3x1916xf32>,
    %41 = vector.extract_strided_slice %0 {offsets = [0, 128], sizes = [3, 1916], strides = [1, 1]} : vector<3x2048xf32> to vector<3x1916xf32>
    %c60 = arith.constant 60 : index
    %c0_22 = arith.constant 0 : index
    %42 = vector.load %arg13[%c60, %c0_22] : memref<75x1916xf32, #tpu.memory_space<vmem>>, vector<3x1916xf32>
    tpu.vector_store %arg13[%c60, %c0_22], %41 {strides = array<i32>} : memref<75x1916xf32, #tpu.memory_space<vmem>>, vector<3x1916xf32>,
    %43 = vector.extract_strided_slice %0 {offsets = [0, 129], sizes = [3, 1916], strides = [1, 1]} : vector<3x2048xf32> to vector<3x1916xf32>
    %c63 = arith.constant 63 : index
    %c0_23 = arith.constant 0 : index
    %44 = vector.load %arg13[%c63, %c0_23] : memref<75x1916xf32, #tpu.memory_space<vmem>>, vector<3x1916xf32>
    tpu.vector_store %arg13[%c63, %c0_23], %43 {strides = array<i32>} : memref<75x1916xf32, #tpu.memory_space<vmem>>, vector<3x1916xf32>,
    %45 = vector.extract_strided_slice %0 {offsets = [0, 130], sizes = [3, 1916], strides = [1, 1]} : vector<3x2048xf32> to vector<3x1916xf32>
    %c66 = arith.constant 66 : index
    %c0_24 = arith.constant 0 : index
    %46 = vector.load %arg13[%c66, %c0_24] : memref<75x1916xf32, #tpu.memory_space<vmem>>, vector<3x1916xf32>
    tpu.vector_store %arg13[%c66, %c0_24], %45 {strides = array<i32>} : memref<75x1916xf32, #tpu.memory_space<vmem>>, vector<3x1916xf32>,
    %47 = vector.extract_strided_slice %0 {offsets = [0, 131], sizes = [3, 1916], strides = [1, 1]} : vector<3x2048xf32> to vector<3x1916xf32>
    %c69 = arith.constant 69 : index
    %c0_25 = arith.constant 0 : index
    %48 = vector.load %arg13[%c69, %c0_25] : memref<75x1916xf32, #tpu.memory_space<vmem>>, vector<3x1916xf32>
    tpu.vector_store %arg13[%c69, %c0_25], %47 {strides = array<i32>} : memref<75x1916xf32, #tpu.memory_space<vmem>>, vector<3x1916xf32>,
    %49 = vector.extract_strided_slice %0 {offsets = [0, 132], sizes = [3, 1916], strides = [1, 1]} : vector<3x2048xf32> to vector<3x1916xf32>
    %c72 = arith.constant 72 : index
    %c0_26 = arith.constant 0 : index
    %50 = vector.load %arg13[%c72, %c0_26] : memref<75x1916xf32, #tpu.memory_space<vmem>>, vector<3x1916xf32>
    tpu.vector_store %arg13[%c72, %c0_26], %49 {strides = array<i32>} : memref<75x1916xf32, #tpu.memory_space<vmem>>, vector<3x1916xf32>,
    %c0_27 = arith.constant 0 : index
    %c0_28 = arith.constant 0 : index
    %51 = vector.load %arg2[%c0_27, %c0_28] : memref<6x75xbf16, #tpu.memory_space<vmem>>, vector<6x75xbf16>
    %c0_29 = arith.constant 0 : index
    %c0_30 = arith.constant 0 : index
    %52 = vector.load %arg13[%c0_29, %c0_30] : memref<75x1916xf32, #tpu.memory_space<vmem>>, vector<75x1916xf32>
    %53 = arith.truncf %52 : vector<75x1916xf32> to vector<75x1916xbf16>
    %cst = arith.constant dense<0.000000e+00> : vector<6x1916xf32>
    %54 = tpu.matmul %51, %53, %cst {dimension_numbers = #tpu.dot_dimension_numbers<[1], [0], [0], [1], [0, 0, 1, 1], [], []>} : vector<6x75xbf16>, vector<75x1916xbf16>, vector<6x1916xf32> -> vector<6x1916xf32>
    %c0_31 = arith.constant 0 : index
    %c0_32 = arith.constant 0 : index
    %55 = vector.load %arg3[%c0_31, %c0_32] : memref<6x1xf32, #tpu.memory_space<vmem>>, vector<6x1xf32>
    %56 = vector.broadcast %55 : vector<6x1xf32> to vector<6x1916xf32>
    %57 = arith.addf %54, %56 : vector<6x1916xf32>
    %cst_33 = arith.constant 0.000000e+00 : f32
    %58 = vector.broadcast %cst_33 : f32 to vector<6x1916xf32>
    %59 = arith.maximumf %57, %58 : vector<6x1916xf32>
    %60 = vector.extract_strided_slice %59 {offsets = [0, 0], sizes = [6, 1883], strides = [1, 1]} : vector<6x1916xf32> to vector<6x1883xf32>
    %61 = vector.extract_strided_slice %59 {offsets = [0, 1], sizes = [6, 1883], strides = [1, 1]} : vector<6x1916xf32> to vector<6x1883xf32>
    %62 = arith.maximumf %60, %61 : vector<6x1883xf32>
    %63 = vector.extract_strided_slice %59 {offsets = [0, 32], sizes = [6, 1883], strides = [1, 1]} : vector<6x1916xf32> to vector<6x1883xf32>
    %64 = vector.extract_strided_slice %59 {offsets = [0, 33], sizes = [6, 1883], strides = [1, 1]} : vector<6x1916xf32> to vector<6x1883xf32>
    %65 = arith.maximumf %63, %64 : vector<6x1883xf32>
    %66 = arith.maximumf %62, %65 : vector<6x1883xf32>
    %67 = vector.extract_strided_slice %66 {offsets = [0, 0], sizes = [6, 1619], strides = [1, 1]} : vector<6x1883xf32> to vector<6x1619xf32>
    %c0_34 = arith.constant 0 : index
    %c0_35 = arith.constant 0 : index
    %68 = vector.load %arg14[%c0_34, %c0_35] : memref<150x1619xf32, #tpu.memory_space<vmem>>, vector<6x1619xf32>
    tpu.vector_store %arg14[%c0_34, %c0_35], %67 {strides = array<i32>} : memref<150x1619xf32, #tpu.memory_space<vmem>>, vector<6x1619xf32>,
    %69 = vector.extract_strided_slice %66 {offsets = [0, 2], sizes = [6, 1619], strides = [1, 1]} : vector<6x1883xf32> to vector<6x1619xf32>
    %c6_36 = arith.constant 6 : index
    %c0_37 = arith.constant 0 : index
    %70 = vector.load %arg14[%c6_36, %c0_37] : memref<150x1619xf32, #tpu.memory_space<vmem>>, vector<6x1619xf32>
    tpu.vector_store %arg14[%c6_36, %c0_37], %69 {strides = array<i32>} : memref<150x1619xf32, #tpu.memory_space<vmem>>, vector<6x1619xf32>,
    %71 = vector.extract_strided_slice %66 {offsets = [0, 4], sizes = [6, 1619], strides = [1, 1]} : vector<6x1883xf32> to vector<6x1619xf32>
    %c12_38 = arith.constant 12 : index
    %c0_39 = arith.constant 0 : index
    %72 = vector.load %arg14[%c12_38, %c0_39] : memref<150x1619xf32, #tpu.memory_space<vmem>>, vector<6x1619xf32>
    tpu.vector_store %arg14[%c12_38, %c0_39], %71 {strides = array<i32>} : memref<150x1619xf32, #tpu.memory_space<vmem>>, vector<6x1619xf32>,
    %73 = vector.extract_strided_slice %66 {offsets = [0, 6], sizes = [6, 1619], strides = [1, 1]} : vector<6x1883xf32> to vector<6x1619xf32>
    %c18_40 = arith.constant 18 : index
    %c0_41 = arith.constant 0 : index
    %74 = vector.load %arg14[%c18_40, %c0_41] : memref<150x1619xf32, #tpu.memory_space<vmem>>, vector<6x1619xf32>
    tpu.vector_store %arg14[%c18_40, %c0_41], %73 {strides = array<i32>} : memref<150x1619xf32, #tpu.memory_space<vmem>>, vector<6x1619xf32>,
    %75 = vector.extract_strided_slice %66 {offsets = [0, 8], sizes = [6, 1619], strides = [1, 1]} : vector<6x1883xf32> to vector<6x1619xf32>
    %c24_42 = arith.constant 24 : index
    %c0_43 = arith.constant 0 : index
    %76 = vector.load %arg14[%c24_42, %c0_43] : memref<150x1619xf32, #tpu.memory_space<vmem>>, vector<6x1619xf32>
    tpu.vector_store %arg14[%c24_42, %c0_43], %75 {strides = array<i32>} : memref<150x1619xf32, #tpu.memory_space<vmem>>, vector<6x1619xf32>,
    %77 = vector.extract_strided_slice %66 {offsets = [0, 64], sizes = [6, 1619], strides = [1, 1]} : vector<6x1883xf32> to vector<6x1619xf32>
    %c30_44 = arith.constant 30 : index
    %c0_45 = arith.constant 0 : index
    %78 = vector.load %arg14[%c30_44, %c0_45] : memref<150x1619xf32, #tpu.memory_space<vmem>>, vector<6x1619xf32>
    tpu.vector_store %arg14[%c30_44, %c0_45], %77 {strides = array<i32>} : memref<150x1619xf32, #tpu.memory_space<vmem>>, vector<6x1619xf32>,
    %79 = vector.extract_strided_slice %66 {offsets = [0, 66], sizes = [6, 1619], strides = [1, 1]} : vector<6x1883xf32> to vector<6x1619xf32>
    %c36_46 = arith.constant 36 : index
    %c0_47 = arith.constant 0 : index
    %80 = vector.load %arg14[%c36_46, %c0_47] : memref<150x1619xf32, #tpu.memory_space<vmem>>, vector<6x1619xf32>
    tpu.vector_store %arg14[%c36_46, %c0_47], %79 {strides = array<i32>} : memref<150x1619xf32, #tpu.memory_space<vmem>>, vector<6x1619xf32>,
    %81 = vector.extract_strided_slice %66 {offsets = [0, 68], sizes = [6, 1619], strides = [1, 1]} : vector<6x1883xf32> to vector<6x1619xf32>
    %c42_48 = arith.constant 42 : index
    %c0_49 = arith.constant 0 : index
    %82 = vector.load %arg14[%c42_48, %c0_49] : memref<150x1619xf32, #tpu.memory_space<vmem>>, vector<6x1619xf32>
    tpu.vector_store %arg14[%c42_48, %c0_49], %81 {strides = array<i32>} : memref<150x1619xf32, #tpu.memory_space<vmem>>, vector<6x1619xf32>,
    %83 = vector.extract_strided_slice %66 {offsets = [0, 70], sizes = [6, 1619], strides = [1, 1]} : vector<6x1883xf32> to vector<6x1619xf32>
    %c48_50 = arith.constant 48 : index
    %c0_51 = arith.constant 0 : index
    %84 = vector.load %arg14[%c48_50, %c0_51] : memref<150x1619xf32, #tpu.memory_space<vmem>>, vector<6x1619xf32>
    tpu.vector_store %arg14[%c48_50, %c0_51], %83 {strides = array<i32>} : memref<150x1619xf32, #tpu.memory_space<vmem>>, vector<6x1619xf32>,
    %85 = vector.extract_strided_slice %66 {offsets = [0, 72], sizes = [6, 1619], strides = [1, 1]} : vector<6x1883xf32> to vector<6x1619xf32>
    %c54_52 = arith.constant 54 : index
    %c0_53 = arith.constant 0 : index
    %86 = vector.load %arg14[%c54_52, %c0_53] : memref<150x1619xf32, #tpu.memory_space<vmem>>, vector<6x1619xf32>
    tpu.vector_store %arg14[%c54_52, %c0_53], %85 {strides = array<i32>} : memref<150x1619xf32, #tpu.memory_space<vmem>>, vector<6x1619xf32>,
    %87 = vector.extract_strided_slice %66 {offsets = [0, 128], sizes = [6, 1619], strides = [1, 1]} : vector<6x1883xf32> to vector<6x1619xf32>
    %c60_54 = arith.constant 60 : index
    %c0_55 = arith.constant 0 : index
    %88 = vector.load %arg14[%c60_54, %c0_55] : memref<150x1619xf32, #tpu.memory_space<vmem>>, vector<6x1619xf32>
    tpu.vector_store %arg14[%c60_54, %c0_55], %87 {strides = array<i32>} : memref<150x1619xf32, #tpu.memory_space<vmem>>, vector<6x1619xf32>,
    %89 = vector.extract_strided_slice %66 {offsets = [0, 130], sizes = [6, 1619], strides = [1, 1]} : vector<6x1883xf32> to vector<6x1619xf32>
    %c66_56 = arith.constant 66 : index
    %c0_57 = arith.constant 0 : index
    %90 = vector.load %arg14[%c66_56, %c0_57] : memref<150x1619xf32, #tpu.memory_space<vmem>>, vector<6x1619xf32>
    tpu.vector_store %arg14[%c66_56, %c0_57], %89 {strides = array<i32>} : memref<150x1619xf32, #tpu.memory_space<vmem>>, vector<6x1619xf32>,
    %91 = vector.extract_strided_slice %66 {offsets = [0, 132], sizes = [6, 1619], strides = [1, 1]} : vector<6x1883xf32> to vector<6x1619xf32>
    %c72_58 = arith.constant 72 : index
    %c0_59 = arith.constant 0 : index
    %92 = vector.load %arg14[%c72_58, %c0_59] : memref<150x1619xf32, #tpu.memory_space<vmem>>, vector<6x1619xf32>
    tpu.vector_store %arg14[%c72_58, %c0_59], %91 {strides = array<i32>} : memref<150x1619xf32, #tpu.memory_space<vmem>>, vector<6x1619xf32>,
    %93 = vector.extract_strided_slice %66 {offsets = [0, 134], sizes = [6, 1619], strides = [1, 1]} : vector<6x1883xf32> to vector<6x1619xf32>
    %c78 = arith.constant 78 : index
    %c0_60 = arith.constant 0 : index
    %94 = vector.load %arg14[%c78, %c0_60] : memref<150x1619xf32, #tpu.memory_space<vmem>>, vector<6x1619xf32>
    tpu.vector_store %arg14[%c78, %c0_60], %93 {strides = array<i32>} : memref<150x1619xf32, #tpu.memory_space<vmem>>, vector<6x1619xf32>,
    %95 = vector.extract_strided_slice %66 {offsets = [0, 136], sizes = [6, 1619], strides = [1, 1]} : vector<6x1883xf32> to vector<6x1619xf32>
    %c84 = arith.constant 84 : index
    %c0_61 = arith.constant 0 : index
    %96 = vector.load %arg14[%c84, %c0_61] : memref<150x1619xf32, #tpu.memory_space<vmem>>, vector<6x1619xf32>
    tpu.vector_store %arg14[%c84, %c0_61], %95 {strides = array<i32>} : memref<150x1619xf32, #tpu.memory_space<vmem>>, vector<6x1619xf32>,
    %97 = vector.extract_strided_slice %66 {offsets = [0, 192], sizes = [6, 1619], strides = [1, 1]} : vector<6x1883xf32> to vector<6x1619xf32>
    %c90 = arith.constant 90 : index
    %c0_62 = arith.constant 0 : index
    %98 = vector.load %arg14[%c90, %c0_62] : memref<150x1619xf32, #tpu.memory_space<vmem>>, vector<6x1619xf32>
    tpu.vector_store %arg14[%c90, %c0_62], %97 {strides = array<i32>} : memref<150x1619xf32, #tpu.memory_space<vmem>>, vector<6x1619xf32>,
    %99 = vector.extract_strided_slice %66 {offsets = [0, 194], sizes = [6, 1619], strides = [1, 1]} : vector<6x1883xf32> to vector<6x1619xf32>
    %c96 = arith.constant 96 : index
    %c0_63 = arith.constant 0 : index
    %100 = vector.load %arg14[%c96, %c0_63] : memref<150x1619xf32, #tpu.memory_space<vmem>>, vector<6x1619xf32>
    tpu.vector_store %arg14[%c96, %c0_63], %99 {strides = array<i32>} : memref<150x1619xf32, #tpu.memory_space<vmem>>, vector<6x1619xf32>,
    %101 = vector.extract_strided_slice %66 {offsets = [0, 196], sizes = [6, 1619], strides = [1, 1]} : vector<6x1883xf32> to vector<6x1619xf32>
    %c102 = arith.constant 102 : index
    %c0_64 = arith.constant 0 : index
    %102 = vector.load %arg14[%c102, %c0_64] : memref<150x1619xf32, #tpu.memory_space<vmem>>, vector<6x1619xf32>
    tpu.vector_store %arg14[%c102, %c0_64], %101 {strides = array<i32>} : memref<150x1619xf32, #tpu.memory_space<vmem>>, vector<6x1619xf32>,
    %103 = vector.extract_strided_slice %66 {offsets = [0, 198], sizes = [6, 1619], strides = [1, 1]} : vector<6x1883xf32> to vector<6x1619xf32>
    %c108 = arith.constant 108 : index
    %c0_65 = arith.constant 0 : index
    %104 = vector.load %arg14[%c108, %c0_65] : memref<150x1619xf32, #tpu.memory_space<vmem>>, vector<6x1619xf32>
    tpu.vector_store %arg14[%c108, %c0_65], %103 {strides = array<i32>} : memref<150x1619xf32, #tpu.memory_space<vmem>>, vector<6x1619xf32>,
    %105 = vector.extract_strided_slice %66 {offsets = [0, 200], sizes = [6, 1619], strides = [1, 1]} : vector<6x1883xf32> to vector<6x1619xf32>
    %c114 = arith.constant 114 : index
    %c0_66 = arith.constant 0 : index
    %106 = vector.load %arg14[%c114, %c0_66] : memref<150x1619xf32, #tpu.memory_space<vmem>>, vector<6x1619xf32>
    tpu.vector_store %arg14[%c114, %c0_66], %105 {strides = array<i32>} : memref<150x1619xf32, #tpu.memory_space<vmem>>, vector<6x1619xf32>,
    %107 = vector.extract_strided_slice %66 {offsets = [0, 256], sizes = [6, 1619], strides = [1, 1]} : vector<6x1883xf32> to vector<6x1619xf32>
    %c120 = arith.constant 120 : index
    %c0_67 = arith.constant 0 : index
    %108 = vector.load %arg14[%c120, %c0_67] : memref<150x1619xf32, #tpu.memory_space<vmem>>, vector<6x1619xf32>
    tpu.vector_store %arg14[%c120, %c0_67], %107 {strides = array<i32>} : memref<150x1619xf32, #tpu.memory_space<vmem>>, vector<6x1619xf32>,
    %109 = vector.extract_strided_slice %66 {offsets = [0, 258], sizes = [6, 1619], strides = [1, 1]} : vector<6x1883xf32> to vector<6x1619xf32>
    %c126 = arith.constant 126 : index
    %c0_68 = arith.constant 0 : index
    %110 = vector.load %arg14[%c126, %c0_68] : memref<150x1619xf32, #tpu.memory_space<vmem>>, vector<6x1619xf32>
    tpu.vector_store %arg14[%c126, %c0_68], %109 {strides = array<i32>} : memref<150x1619xf32, #tpu.memory_space<vmem>>, vector<6x1619xf32>,
    %111 = vector.extract_strided_slice %66 {offsets = [0, 260], sizes = [6, 1619], strides = [1, 1]} : vector<6x1883xf32> to vector<6x1619xf32>
    %c132 = arith.constant 132 : index
    %c0_69 = arith.constant 0 : index
    %112 = vector.load %arg14[%c132, %c0_69] : memref<150x1619xf32, #tpu.memory_space<vmem>>, vector<6x1619xf32>
    tpu.vector_store %arg14[%c132, %c0_69], %111 {strides = array<i32>} : memref<150x1619xf32, #tpu.memory_space<vmem>>, vector<6x1619xf32>,
    %113 = vector.extract_strided_slice %66 {offsets = [0, 262], sizes = [6, 1619], strides = [1, 1]} : vector<6x1883xf32> to vector<6x1619xf32>
    %c138 = arith.constant 138 : index
    %c0_70 = arith.constant 0 : index
    %114 = vector.load %arg14[%c138, %c0_70] : memref<150x1619xf32, #tpu.memory_space<vmem>>, vector<6x1619xf32>
    tpu.vector_store %arg14[%c138, %c0_70], %113 {strides = array<i32>} : memref<150x1619xf32, #tpu.memory_space<vmem>>, vector<6x1619xf32>,
    %115 = vector.extract_strided_slice %66 {offsets = [0, 264], sizes = [6, 1619], strides = [1, 1]} : vector<6x1883xf32> to vector<6x1619xf32>
    %c144 = arith.constant 144 : index
    %c0_71 = arith.constant 0 : index
    %116 = vector.load %arg14[%c144, %c0_71] : memref<150x1619xf32, #tpu.memory_space<vmem>>, vector<6x1619xf32>
    tpu.vector_store %arg14[%c144, %c0_71], %115 {strides = array<i32>} : memref<150x1619xf32, #tpu.memory_space<vmem>>, vector<6x1619xf32>,
    %c0_72 = arith.constant 0 : index
    %c0_73 = arith.constant 0 : index
    %117 = vector.load %arg4[%c0_72, %c0_73] : memref<16x150xbf16, #tpu.memory_space<vmem>>, vector<16x150xbf16>
    %c0_74 = arith.constant 0 : index
    %c0_75 = arith.constant 0 : index
    %118 = vector.load %arg14[%c0_74, %c0_75] : memref<150x1619xf32, #tpu.memory_space<vmem>>, vector<150x1619xf32>
    %119 = arith.truncf %118 : vector<150x1619xf32> to vector<150x1619xbf16>
    %cst_76 = arith.constant dense<0.000000e+00> : vector<16x1619xf32>
    %120 = tpu.matmul %117, %119, %cst_76 {dimension_numbers = #tpu.dot_dimension_numbers<[1], [0], [0], [1], [0, 0, 1, 1], [], []>} : vector<16x150xbf16>, vector<150x1619xbf16>, vector<16x1619xf32> -> vector<16x1619xf32>
    %c0_77 = arith.constant 0 : index
    %c0_78 = arith.constant 0 : index
    %121 = vector.load %arg5[%c0_77, %c0_78] : memref<16x1xf32, #tpu.memory_space<vmem>>, vector<16x1xf32>
    %122 = vector.broadcast %121 : vector<16x1xf32> to vector<16x1619xf32>
    %123 = arith.addf %120, %122 : vector<16x1619xf32>
    %cst_79 = arith.constant 0.000000e+00 : f32
    %124 = vector.broadcast %cst_79 : f32 to vector<16x1619xf32>
    %125 = arith.maximumf %123, %124 : vector<16x1619xf32>
    %126 = vector.extract_strided_slice %125 {offsets = [0, 0], sizes = [16, 1553], strides = [1, 1]} : vector<16x1619xf32> to vector<16x1553xf32>
    %127 = vector.extract_strided_slice %125 {offsets = [0, 2], sizes = [16, 1553], strides = [1, 1]} : vector<16x1619xf32> to vector<16x1553xf32>
    %128 = arith.maximumf %126, %127 : vector<16x1553xf32>
    %129 = vector.extract_strided_slice %125 {offsets = [0, 64], sizes = [16, 1553], strides = [1, 1]} : vector<16x1619xf32> to vector<16x1553xf32>
    %130 = vector.extract_strided_slice %125 {offsets = [0, 66], sizes = [16, 1553], strides = [1, 1]} : vector<16x1619xf32> to vector<16x1553xf32>
    %131 = arith.maximumf %129, %130 : vector<16x1553xf32>
    %132 = arith.maximumf %128, %131 : vector<16x1553xf32>
    %133 = vector.extract_strided_slice %132 {offsets = [0, 0], sizes = [1, 529], strides = [1, 1]} : vector<16x1553xf32> to vector<1x529xf32>
    %c0_80 = arith.constant 0 : index
    %c0_81 = arith.constant 0 : index
    %134 = vector.load %arg15[%c0_80, %c0_81] : memref<2x8464xf32, #tpu.memory_space<vmem>>, vector<1x529xf32>
    tpu.vector_store %arg15[%c0_80, %c0_81], %133 {strides = array<i32>} : memref<2x8464xf32, #tpu.memory_space<vmem>>, vector<1x529xf32>,
    %135 = vector.extract_strided_slice %132 {offsets = [1, 0], sizes = [1, 529], strides = [1, 1]} : vector<16x1553xf32> to vector<1x529xf32>
    %c0_82 = arith.constant 0 : index
    %c529 = arith.constant 529 : index
    %136 = vector.load %arg15[%c0_82, %c529] : memref<2x8464xf32, #tpu.memory_space<vmem>>, vector<1x529xf32>
    tpu.vector_store %arg15[%c0_82, %c529], %135 {strides = array<i32>} : memref<2x8464xf32, #tpu.memory_space<vmem>>, vector<1x529xf32>,
    %137 = vector.extract_strided_slice %132 {offsets = [2, 0], sizes = [1, 529], strides = [1, 1]} : vector<16x1553xf32> to vector<1x529xf32>
    %c0_83 = arith.constant 0 : index
    %c1058 = arith.constant 1058 : index
    %138 = vector.load %arg15[%c0_83, %c1058] : memref<2x8464xf32, #tpu.memory_space<vmem>>, vector<1x529xf32>
    tpu.vector_store %arg15[%c0_83, %c1058], %137 {strides = array<i32>} : memref<2x8464xf32, #tpu.memory_space<vmem>>, vector<1x529xf32>,
    %139 = vector.extract_strided_slice %132 {offsets = [3, 0], sizes = [1, 529], strides = [1, 1]} : vector<16x1553xf32> to vector<1x529xf32>
    %c0_84 = arith.constant 0 : index
    %c1587 = arith.constant 1587 : index
    %140 = vector.load %arg15[%c0_84, %c1587] : memref<2x8464xf32, #tpu.memory_space<vmem>>, vector<1x529xf32>
    tpu.vector_store %arg15[%c0_84, %c1587], %139 {strides = array<i32>} : memref<2x8464xf32, #tpu.memory_space<vmem>>, vector<1x529xf32>,
    %141 = vector.extract_strided_slice %132 {offsets = [4, 0], sizes = [1, 529], strides = [1, 1]} : vector<16x1553xf32> to vector<1x529xf32>
    %c0_85 = arith.constant 0 : index
    %c2116 = arith.constant 2116 : index
    %142 = vector.load %arg15[%c0_85, %c2116] : memref<2x8464xf32, #tpu.memory_space<vmem>>, vector<1x529xf32>
    tpu.vector_store %arg15[%c0_85, %c2116], %141 {strides = array<i32>} : memref<2x8464xf32, #tpu.memory_space<vmem>>, vector<1x529xf32>,
    %143 = vector.extract_strided_slice %132 {offsets = [5, 0], sizes = [1, 529], strides = [1, 1]} : vector<16x1553xf32> to vector<1x529xf32>
    %c0_86 = arith.constant 0 : index
    %c2645 = arith.constant 2645 : index
    %144 = vector.load %arg15[%c0_86, %c2645] : memref<2x8464xf32, #tpu.memory_space<vmem>>, vector<1x529xf32>
    tpu.vector_store %arg15[%c0_86, %c2645], %143 {strides = array<i32>} : memref<2x8464xf32, #tpu.memory_space<vmem>>, vector<1x529xf32>,
    %145 = vector.extract_strided_slice %132 {offsets = [6, 0], sizes = [1, 529], strides = [1, 1]} : vector<16x1553xf32> to vector<1x529xf32>
    %c0_87 = arith.constant 0 : index
    %c3174 = arith.constant 3174 : index
    %146 = vector.load %arg15[%c0_87, %c3174] : memref<2x8464xf32, #tpu.memory_space<vmem>>, vector<1x529xf32>
    tpu.vector_store %arg15[%c0_87, %c3174], %145 {strides = array<i32>} : memref<2x8464xf32, #tpu.memory_space<vmem>>, vector<1x529xf32>,
    %147 = vector.extract_strided_slice %132 {offsets = [7, 0], sizes = [1, 529], strides = [1, 1]} : vector<16x1553xf32> to vector<1x529xf32>
    %c0_88 = arith.constant 0 : index
    %c3703 = arith.constant 3703 : index
    %148 = vector.load %arg15[%c0_88, %c3703] : memref<2x8464xf32, #tpu.memory_space<vmem>>, vector<1x529xf32>
    tpu.vector_store %arg15[%c0_88, %c3703], %147 {strides = array<i32>} : memref<2x8464xf32, #tpu.memory_space<vmem>>, vector<1x529xf32>,
    %149 = vector.extract_strided_slice %132 {offsets = [8, 0], sizes = [1, 529], strides = [1, 1]} : vector<16x1553xf32> to vector<1x529xf32>
    %c0_89 = arith.constant 0 : index
    %c4232 = arith.constant 4232 : index
    %150 = vector.load %arg15[%c0_89, %c4232] : memref<2x8464xf32, #tpu.memory_space<vmem>>, vector<1x529xf32>
    tpu.vector_store %arg15[%c0_89, %c4232], %149 {strides = array<i32>} : memref<2x8464xf32, #tpu.memory_space<vmem>>, vector<1x529xf32>,
    %151 = vector.extract_strided_slice %132 {offsets = [9, 0], sizes = [1, 529], strides = [1, 1]} : vector<16x1553xf32> to vector<1x529xf32>
    %c0_90 = arith.constant 0 : index
    %c4761 = arith.constant 4761 : index
    %152 = vector.load %arg15[%c0_90, %c4761] : memref<2x8464xf32, #tpu.memory_space<vmem>>, vector<1x529xf32>
    tpu.vector_store %arg15[%c0_90, %c4761], %151 {strides = array<i32>} : memref<2x8464xf32, #tpu.memory_space<vmem>>, vector<1x529xf32>,
    %153 = vector.extract_strided_slice %132 {offsets = [10, 0], sizes = [1, 529], strides = [1, 1]} : vector<16x1553xf32> to vector<1x529xf32>
    %c0_91 = arith.constant 0 : index
    %c5290 = arith.constant 5290 : index
    %154 = vector.load %arg15[%c0_91, %c5290] : memref<2x8464xf32, #tpu.memory_space<vmem>>, vector<1x529xf32>
    tpu.vector_store %arg15[%c0_91, %c5290], %153 {strides = array<i32>} : memref<2x8464xf32, #tpu.memory_space<vmem>>, vector<1x529xf32>,
    %155 = vector.extract_strided_slice %132 {offsets = [11, 0], sizes = [1, 529], strides = [1, 1]} : vector<16x1553xf32> to vector<1x529xf32>
    %c0_92 = arith.constant 0 : index
    %c5819 = arith.constant 5819 : index
    %156 = vector.load %arg15[%c0_92, %c5819] : memref<2x8464xf32, #tpu.memory_space<vmem>>, vector<1x529xf32>
    tpu.vector_store %arg15[%c0_92, %c5819], %155 {strides = array<i32>} : memref<2x8464xf32, #tpu.memory_space<vmem>>, vector<1x529xf32>,
    %157 = vector.extract_strided_slice %132 {offsets = [12, 0], sizes = [1, 529], strides = [1, 1]} : vector<16x1553xf32> to vector<1x529xf32>
    %c0_93 = arith.constant 0 : index
    %c6348 = arith.constant 6348 : index
    %158 = vector.load %arg15[%c0_93, %c6348] : memref<2x8464xf32, #tpu.memory_space<vmem>>, vector<1x529xf32>
    tpu.vector_store %arg15[%c0_93, %c6348], %157 {strides = array<i32>} : memref<2x8464xf32, #tpu.memory_space<vmem>>, vector<1x529xf32>,
    %159 = vector.extract_strided_slice %132 {offsets = [13, 0], sizes = [1, 529], strides = [1, 1]} : vector<16x1553xf32> to vector<1x529xf32>
    %c0_94 = arith.constant 0 : index
    %c6877 = arith.constant 6877 : index
    %160 = vector.load %arg15[%c0_94, %c6877] : memref<2x8464xf32, #tpu.memory_space<vmem>>, vector<1x529xf32>
    tpu.vector_store %arg15[%c0_94, %c6877], %159 {strides = array<i32>} : memref<2x8464xf32, #tpu.memory_space<vmem>>, vector<1x529xf32>,
    %161 = vector.extract_strided_slice %132 {offsets = [14, 0], sizes = [1, 529], strides = [1, 1]} : vector<16x1553xf32> to vector<1x529xf32>
    %c0_95 = arith.constant 0 : index
    %c7406 = arith.constant 7406 : index
    %162 = vector.load %arg15[%c0_95, %c7406] : memref<2x8464xf32, #tpu.memory_space<vmem>>, vector<1x529xf32>
    tpu.vector_store %arg15[%c0_95, %c7406], %161 {strides = array<i32>} : memref<2x8464xf32, #tpu.memory_space<vmem>>, vector<1x529xf32>,
    %163 = vector.extract_strided_slice %132 {offsets = [15, 0], sizes = [1, 529], strides = [1, 1]} : vector<16x1553xf32> to vector<1x529xf32>
    %c0_96 = arith.constant 0 : index
    %c7935 = arith.constant 7935 : index
    %164 = vector.load %arg15[%c0_96, %c7935] : memref<2x8464xf32, #tpu.memory_space<vmem>>, vector<1x529xf32>
    tpu.vector_store %arg15[%c0_96, %c7935], %163 {strides = array<i32>} : memref<2x8464xf32, #tpu.memory_space<vmem>>, vector<1x529xf32>,
    %165 = vector.extract_strided_slice %132 {offsets = [0, 1024], sizes = [1, 529], strides = [1, 1]} : vector<16x1553xf32> to vector<1x529xf32>
    %c1 = arith.constant 1 : index
    %c0_97 = arith.constant 0 : index
    %166 = vector.load %arg15[%c1, %c0_97] : memref<2x8464xf32, #tpu.memory_space<vmem>>, vector<1x529xf32>
    tpu.vector_store %arg15[%c1, %c0_97], %165 {strides = array<i32>} : memref<2x8464xf32, #tpu.memory_space<vmem>>, vector<1x529xf32>,
    %167 = vector.extract_strided_slice %132 {offsets = [1, 1024], sizes = [1, 529], strides = [1, 1]} : vector<16x1553xf32> to vector<1x529xf32>
    %c1_98 = arith.constant 1 : index
    %c529_99 = arith.constant 529 : index
    %168 = vector.load %arg15[%c1_98, %c529_99] : memref<2x8464xf32, #tpu.memory_space<vmem>>, vector<1x529xf32>
    tpu.vector_store %arg15[%c1_98, %c529_99], %167 {strides = array<i32>} : memref<2x8464xf32, #tpu.memory_space<vmem>>, vector<1x529xf32>,
    %169 = vector.extract_strided_slice %132 {offsets = [2, 1024], sizes = [1, 529], strides = [1, 1]} : vector<16x1553xf32> to vector<1x529xf32>
    %c1_100 = arith.constant 1 : index
    %c1058_101 = arith.constant 1058 : index
    %170 = vector.load %arg15[%c1_100, %c1058_101] : memref<2x8464xf32, #tpu.memory_space<vmem>>, vector<1x529xf32>
    tpu.vector_store %arg15[%c1_100, %c1058_101], %169 {strides = array<i32>} : memref<2x8464xf32, #tpu.memory_space<vmem>>, vector<1x529xf32>,
    %171 = vector.extract_strided_slice %132 {offsets = [3, 1024], sizes = [1, 529], strides = [1, 1]} : vector<16x1553xf32> to vector<1x529xf32>
    %c1_102 = arith.constant 1 : index
    %c1587_103 = arith.constant 1587 : index
    %172 = vector.load %arg15[%c1_102, %c1587_103] : memref<2x8464xf32, #tpu.memory_space<vmem>>, vector<1x529xf32>
    tpu.vector_store %arg15[%c1_102, %c1587_103], %171 {strides = array<i32>} : memref<2x8464xf32, #tpu.memory_space<vmem>>, vector<1x529xf32>,
    %173 = vector.extract_strided_slice %132 {offsets = [4, 1024], sizes = [1, 529], strides = [1, 1]} : vector<16x1553xf32> to vector<1x529xf32>
    %c1_104 = arith.constant 1 : index
    %c2116_105 = arith.constant 2116 : index
    %174 = vector.load %arg15[%c1_104, %c2116_105] : memref<2x8464xf32, #tpu.memory_space<vmem>>, vector<1x529xf32>
    tpu.vector_store %arg15[%c1_104, %c2116_105], %173 {strides = array<i32>} : memref<2x8464xf32, #tpu.memory_space<vmem>>, vector<1x529xf32>,
    %175 = vector.extract_strided_slice %132 {offsets = [5, 1024], sizes = [1, 529], strides = [1, 1]} : vector<16x1553xf32> to vector<1x529xf32>
    %c1_106 = arith.constant 1 : index
    %c2645_107 = arith.constant 2645 : index
    %176 = vector.load %arg15[%c1_106, %c2645_107] : memref<2x8464xf32, #tpu.memory_space<vmem>>, vector<1x529xf32>
    tpu.vector_store %arg15[%c1_106, %c2645_107], %175 {strides = array<i32>} : memref<2x8464xf32, #tpu.memory_space<vmem>>, vector<1x529xf32>,
    %177 = vector.extract_strided_slice %132 {offsets = [6, 1024], sizes = [1, 529], strides = [1, 1]} : vector<16x1553xf32> to vector<1x529xf32>
    %c1_108 = arith.constant 1 : index
    %c3174_109 = arith.constant 3174 : index
    %178 = vector.load %arg15[%c1_108, %c3174_109] : memref<2x8464xf32, #tpu.memory_space<vmem>>, vector<1x529xf32>
    tpu.vector_store %arg15[%c1_108, %c3174_109], %177 {strides = array<i32>} : memref<2x8464xf32, #tpu.memory_space<vmem>>, vector<1x529xf32>,
    %179 = vector.extract_strided_slice %132 {offsets = [7, 1024], sizes = [1, 529], strides = [1, 1]} : vector<16x1553xf32> to vector<1x529xf32>
    %c1_110 = arith.constant 1 : index
    %c3703_111 = arith.constant 3703 : index
    %180 = vector.load %arg15[%c1_110, %c3703_111] : memref<2x8464xf32, #tpu.memory_space<vmem>>, vector<1x529xf32>
    tpu.vector_store %arg15[%c1_110, %c3703_111], %179 {strides = array<i32>} : memref<2x8464xf32, #tpu.memory_space<vmem>>, vector<1x529xf32>,
    %181 = vector.extract_strided_slice %132 {offsets = [8, 1024], sizes = [1, 529], strides = [1, 1]} : vector<16x1553xf32> to vector<1x529xf32>
    %c1_112 = arith.constant 1 : index
    %c4232_113 = arith.constant 4232 : index
    %182 = vector.load %arg15[%c1_112, %c4232_113] : memref<2x8464xf32, #tpu.memory_space<vmem>>, vector<1x529xf32>
    tpu.vector_store %arg15[%c1_112, %c4232_113], %181 {strides = array<i32>} : memref<2x8464xf32, #tpu.memory_space<vmem>>, vector<1x529xf32>,
    %183 = vector.extract_strided_slice %132 {offsets = [9, 1024], sizes = [1, 529], strides = [1, 1]} : vector<16x1553xf32> to vector<1x529xf32>
    %c1_114 = arith.constant 1 : index
    %c4761_115 = arith.constant 4761 : index
    %184 = vector.load %arg15[%c1_114, %c4761_115] : memref<2x8464xf32, #tpu.memory_space<vmem>>, vector<1x529xf32>
    tpu.vector_store %arg15[%c1_114, %c4761_115], %183 {strides = array<i32>} : memref<2x8464xf32, #tpu.memory_space<vmem>>, vector<1x529xf32>,
    %185 = vector.extract_strided_slice %132 {offsets = [10, 1024], sizes = [1, 529], strides = [1, 1]} : vector<16x1553xf32> to vector<1x529xf32>
    %c1_116 = arith.constant 1 : index
    %c5290_117 = arith.constant 5290 : index
    %186 = vector.load %arg15[%c1_116, %c5290_117] : memref<2x8464xf32, #tpu.memory_space<vmem>>, vector<1x529xf32>
    tpu.vector_store %arg15[%c1_116, %c5290_117], %185 {strides = array<i32>} : memref<2x8464xf32, #tpu.memory_space<vmem>>, vector<1x529xf32>,
    %187 = vector.extract_strided_slice %132 {offsets = [11, 1024], sizes = [1, 529], strides = [1, 1]} : vector<16x1553xf32> to vector<1x529xf32>
    %c1_118 = arith.constant 1 : index
    %c5819_119 = arith.constant 5819 : index
    %188 = vector.load %arg15[%c1_118, %c5819_119] : memref<2x8464xf32, #tpu.memory_space<vmem>>, vector<1x529xf32>
    tpu.vector_store %arg15[%c1_118, %c5819_119], %187 {strides = array<i32>} : memref<2x8464xf32, #tpu.memory_space<vmem>>, vector<1x529xf32>,
    %189 = vector.extract_strided_slice %132 {offsets = [12, 1024], sizes = [1, 529], strides = [1, 1]} : vector<16x1553xf32> to vector<1x529xf32>
    %c1_120 = arith.constant 1 : index
    %c6348_121 = arith.constant 6348 : index
    %190 = vector.load %arg15[%c1_120, %c6348_121] : memref<2x8464xf32, #tpu.memory_space<vmem>>, vector<1x529xf32>
    tpu.vector_store %arg15[%c1_120, %c6348_121], %189 {strides = array<i32>} : memref<2x8464xf32, #tpu.memory_space<vmem>>, vector<1x529xf32>,
    %191 = vector.extract_strided_slice %132 {offsets = [13, 1024], sizes = [1, 529], strides = [1, 1]} : vector<16x1553xf32> to vector<1x529xf32>
    %c1_122 = arith.constant 1 : index
    %c6877_123 = arith.constant 6877 : index
    %192 = vector.load %arg15[%c1_122, %c6877_123] : memref<2x8464xf32, #tpu.memory_space<vmem>>, vector<1x529xf32>
    tpu.vector_store %arg15[%c1_122, %c6877_123], %191 {strides = array<i32>} : memref<2x8464xf32, #tpu.memory_space<vmem>>, vector<1x529xf32>,
    %193 = vector.extract_strided_slice %132 {offsets = [14, 1024], sizes = [1, 529], strides = [1, 1]} : vector<16x1553xf32> to vector<1x529xf32>
    %c1_124 = arith.constant 1 : index
    %c7406_125 = arith.constant 7406 : index
    %194 = vector.load %arg15[%c1_124, %c7406_125] : memref<2x8464xf32, #tpu.memory_space<vmem>>, vector<1x529xf32>
    tpu.vector_store %arg15[%c1_124, %c7406_125], %193 {strides = array<i32>} : memref<2x8464xf32, #tpu.memory_space<vmem>>, vector<1x529xf32>,
    %195 = vector.extract_strided_slice %132 {offsets = [15, 1024], sizes = [1, 529], strides = [1, 1]} : vector<16x1553xf32> to vector<1x529xf32>
    %c1_126 = arith.constant 1 : index
    %c7935_127 = arith.constant 7935 : index
    %196 = vector.load %arg15[%c1_126, %c7935_127] : memref<2x8464xf32, #tpu.memory_space<vmem>>, vector<1x529xf32>
    tpu.vector_store %arg15[%c1_126, %c7935_127], %195 {strides = array<i32>} : memref<2x8464xf32, #tpu.memory_space<vmem>>, vector<1x529xf32>,
    %c0_128 = arith.constant 0 : index
    %c0_129 = arith.constant 0 : index
    %197 = vector.load %arg15[%c0_128, %c0_129] : memref<2x8464xf32, #tpu.memory_space<vmem>>, vector<2x8464xf32>
    %198 = arith.truncf %197 : vector<2x8464xf32> to vector<2x8464xbf16>
    %c0_130 = arith.constant 0 : index
    %c0_131 = arith.constant 0 : index
    %199 = vector.load %arg6[%c0_130, %c0_131] : memref<8464x120xbf16, #tpu.memory_space<vmem>>, vector<8464x120xbf16>
    %cst_132 = arith.constant dense<0.000000e+00> : vector<2x120xf32>
    %200 = tpu.matmul %198, %199, %cst_132 {dimension_numbers = #tpu.dot_dimension_numbers<[1], [0], [0], [1], [0, 0, 1, 1], [], []>} : vector<2x8464xbf16>, vector<8464x120xbf16>, vector<2x120xf32> -> vector<2x120xf32>
    %c0_133 = arith.constant 0 : index
    %c0_134 = arith.constant 0 : index
    %201 = vector.load %arg7[%c0_133, %c0_134] : memref<1x120xf32, #tpu.memory_space<vmem>>, vector<1x120xf32>
    %202 = vector.broadcast %201 : vector<1x120xf32> to vector<2x120xf32>
    %203 = arith.addf %200, %202 : vector<2x120xf32>
    %cst_135 = arith.constant 0.000000e+00 : f32
    %204 = vector.broadcast %cst_135 : f32 to vector<2x120xf32>
    %205 = arith.maximumf %203, %204 : vector<2x120xf32>
    %206 = arith.truncf %205 : vector<2x120xf32> to vector<2x120xbf16>
    %c0_136 = arith.constant 0 : index
    %c0_137 = arith.constant 0 : index
    %207 = vector.load %arg8[%c0_136, %c0_137] : memref<120x84xbf16, #tpu.memory_space<vmem>>, vector<120x84xbf16>
    %cst_138 = arith.constant dense<0.000000e+00> : vector<2x84xf32>
    %208 = tpu.matmul %206, %207, %cst_138 {dimension_numbers = #tpu.dot_dimension_numbers<[1], [0], [0], [1], [0, 0, 1, 1], [], []>} : vector<2x120xbf16>, vector<120x84xbf16>, vector<2x84xf32> -> vector<2x84xf32>
    %c0_139 = arith.constant 0 : index
    %c0_140 = arith.constant 0 : index
    %209 = vector.load %arg9[%c0_139, %c0_140] : memref<1x84xf32, #tpu.memory_space<vmem>>, vector<1x84xf32>
    %210 = vector.broadcast %209 : vector<1x84xf32> to vector<2x84xf32>
    %211 = arith.addf %208, %210 : vector<2x84xf32>
    %cst_141 = arith.constant 0.000000e+00 : f32
    %212 = vector.broadcast %cst_141 : f32 to vector<2x84xf32>
    %213 = arith.maximumf %211, %212 : vector<2x84xf32>
    %214 = arith.truncf %213 : vector<2x84xf32> to vector<2x84xbf16>
    %c0_142 = arith.constant 0 : index
    %c0_143 = arith.constant 0 : index
    %215 = vector.load %arg10[%c0_142, %c0_143] : memref<84x10xbf16, #tpu.memory_space<vmem>>, vector<84x10xbf16>
    %cst_144 = arith.constant dense<0.000000e+00> : vector<2x10xf32>
    %216 = tpu.matmul %214, %215, %cst_144 {dimension_numbers = #tpu.dot_dimension_numbers<[1], [0], [0], [1], [0, 0, 1, 1], [], []>} : vector<2x84xbf16>, vector<84x10xbf16>, vector<2x10xf32> -> vector<2x10xf32>
    %c0_145 = arith.constant 0 : index
    %c0_146 = arith.constant 0 : index
    %217 = vector.load %arg11[%c0_145, %c0_146] : memref<1x10xf32, #tpu.memory_space<vmem>>, vector<1x10xf32>
    %218 = vector.broadcast %217 : vector<1x10xf32> to vector<2x10xf32>
    %219 = arith.addf %216, %218 : vector<2x10xf32>
    %c0_147 = arith.constant 0 : index
    %c0_148 = arith.constant 0 : index
    %220 = vector.load %arg12[%c0_147, %c0_148] : memref<2x10xf32, #tpu.memory_space<vmem>>, vector<2x10xf32>
    tpu.vector_store %arg12[%c0_147, %c0_148], %219 {strides = array<i32>} : memref<2x10xf32, #tpu.memory_space<vmem>>, vector<2x10xf32>,
    return
  }
  func.func @transform_0(%arg0: i32) -> (i32, i32) {
    %c0_i32 = arith.constant 0 : i32
    %c0_i32_0 = arith.constant 0 : i32
    %c0_i32_1 = arith.constant 0 : i32
    return %c0_i32, %c0_i32_0 : i32, i32
  }
  func.func @transform_1(%arg0: i32) -> (i32, i32) {
    %c0_i32 = arith.constant 0 : i32
    %c0_i32_0 = arith.constant 0 : i32
    %c0_i32_1 = arith.constant 0 : i32
    return %c0_i32, %c0_i32_0 : i32, i32
  }
  func.func @transform_2(%arg0: i32) -> (i32, i32) {
    %c0_i32 = arith.constant 0 : i32
    %c0_i32_0 = arith.constant 0 : i32
    %c0_i32_1 = arith.constant 0 : i32
    return %c0_i32, %c0_i32_0 : i32, i32
  }
  func.func @transform_3(%arg0: i32) -> (i32, i32) {
    %c0_i32 = arith.constant 0 : i32
    %c0_i32_0 = arith.constant 0 : i32
    %c0_i32_1 = arith.constant 0 : i32
    return %c0_i32, %c0_i32_0 : i32, i32
  }
  func.func @transform_4(%arg0: i32) -> (i32, i32) {
    %c0_i32 = arith.constant 0 : i32
    %c0_i32_0 = arith.constant 0 : i32
    %c0_i32_1 = arith.constant 0 : i32
    return %c0_i32, %c0_i32_0 : i32, i32
  }
  func.func @transform_5(%arg0: i32) -> (i32, i32) {
    %c0_i32 = arith.constant 0 : i32
    %c0_i32_0 = arith.constant 0 : i32
    %c0_i32_1 = arith.constant 0 : i32
    return %c0_i32, %c0_i32_0 : i32, i32
  }
  func.func @transform_6(%arg0: i32) -> (i32, i32) {
    %c0_i32 = arith.constant 0 : i32
    %c0_i32_0 = arith.constant 0 : i32
    %c0_i32_1 = arith.constant 0 : i32
    return %c0_i32, %c0_i32_0 : i32, i32
  }
  func.func @transform_7(%arg0: i32) -> (i32, i32) {
    %c0_i32 = arith.constant 0 : i32
    %c0_i32_0 = arith.constant 0 : i32
    %c0_i32_1 = arith.constant 0 : i32
    return %c0_i32, %c0_i32_0 : i32, i32
  }
  func.func @transform_8(%arg0: i32) -> (i32, i32) {
    %c0_i32 = arith.constant 0 : i32
    %c0_i32_0 = arith.constant 0 : i32
    %c0_i32_1 = arith.constant 0 : i32
    return %c0_i32, %c0_i32_0 : i32, i32
  }
  func.func @transform_9(%arg0: i32) -> (i32, i32) {
    %c0_i32 = arith.constant 0 : i32
    %c0_i32_0 = arith.constant 0 : i32
    %c0_i32_1 = arith.constant 0 : i32
    return %c0_i32, %c0_i32_0 : i32, i32
  }
  func.func @transform_10(%arg0: i32) -> (i32, i32) {
    %c0_i32 = arith.constant 0 : i32
    %c0_i32_0 = arith.constant 0 : i32
    %c0_i32_1 = arith.constant 0 : i32
    return %c0_i32, %c0_i32_0 : i32, i32
  }
  func.func @transform_11(%arg0: i32) -> (i32, i32) {
    %c0_i32 = arith.constant 0 : i32
    %c0_i32_0 = arith.constant 0 : i32
    %c0_i32_1 = arith.constant 0 : i32
    return %c0_i32, %c0_i32_0 : i32, i32
  }
}

</mosaic_0001>

<llo_original>
// kernel: net_forward.1
$region0: #{net_forward.1}
  #allocation0 [shape = 'u32[]', space=smem, size = 0x4, offset = 0x4, fixed_abs, tag = 'smem constant byte address 0x4 - core index']
  #allocation1 [shape = 'u32[144,128]{1,0:T(1,128)}', space=vmem, size = 0x12000, scoped, tag = 'internal scratch']
  #allocation2 [shape = 'f32[75,1916]{1,0:T(8,128)}', space=vmem, size = 0x96000, scoped, tag = 'scratch operand']
  #allocation3 [shape = 'f32[150,1619]{1,0:T(8,128)}', space=vmem, size = 0xf7000, scoped, tag = 'scratch operand']
  #allocation4 [shape = 'f32[2,8464]{1,0:T(2,128)}', space=vmem, size = 0x10c00, scoped, tag = 'scratch operand']
  %s0 = inlined_call_operand.vmem [shape: f32[3,2048], index: 0, kind: input, shape index: {}]
  %s1 = inlined_call_operand.vmem [shape: bf16[6,75], index: 1, kind: input, shape index: {}]
  %s2 = inlined_call_operand.vmem [shape: f32[6,1], index: 2, kind: input, shape index: {}]
  %s3 = inlined_call_operand.vmem [shape: bf16[16,150], index: 3, kind: input, shape index: {}]
  %s4 = inlined_call_operand.vmem [shape: f32[16,1], index: 4, kind: input, shape index: {}]
  %s5 = inlined_call_operand.vmem [shape: bf16[8464,120], index: 5, kind: input, shape index: {}]
  %s6 = inlined_call_operand.vmem [shape: f32[1,120], index: 6, kind: input, shape index: {}]
  %s7 = inlined_call_operand.vmem [shape: bf16[120,84], index: 7, kind: input, shape index: {}]
  %s8 = inlined_call_operand.vmem [shape: f32[1,84], index: 8, kind: input, shape index: {}]
  %s9 = inlined_call_operand.vmem [shape: bf16[84,10], index: 9, kind: input, shape index: {}]
  %s10 = inlined_call_operand.vmem [shape: f32[1,10], index: 10, kind: input, shape index: {}]
  %s11 = inlined_call_operand.hbm [shape: f32[2,10], index: 11, kind: output, shape index: {}]
  %s12 = sld [smem:[#allocation0]]
  $region54: #{net_forward.1} parent=0
    _
  %s14 = ssub.s32 1, %s12
  %s15 = scalar_select 0, %s14, %s12
  $region1: #{net_forward.1} parent=0
    #allocation5 [shape = 'u8[1024]{0}', space=vmem, size = 0x400, scoped, tag = 'output window, operand 0, single buffered']
    #allocation6 [shape = 's32[1]{0}', space=sflag, size = 0x4, scoped, tag = 'scoped memory for net_forward.1']
    %16 = vsyncpa [#allocation6], 0
    // Predicated region
    $region2: #{net_forward.1} parent=1 // pred_check
      _
    $region3: #{net_forward.1} parent=1 // pred_check_branch
      %18 = sbr.rel (0) target = $region5
    $region4: #{net_forward.1} parent=1 // pred_region
      _
    $region5: #{net_forward.1} parent=1 // pred_fallthru
      _
    // Predicated region
    $region6: #{net_forward.1} parent=1 // pred_check
      _
    $region7: #{net_forward.1} parent=1 // pred_check_branch
      %20 = sbr.rel (0) target = $region9
    $region8: #{net_forward.1} parent=1 // pred_region
      _
    $region9: #{net_forward.1} parent=1 // pred_fallthru
      _
    // Predicated region
    $region10: #{net_forward.1} parent=1 // pred_check
      _
    $region11: #{net_forward.1} parent=1 // pred_check_branch
      %22 = sbr.rel (0) target = $region13
    $region12: #{net_forward.1} parent=1 // pred_region
      _
    $region13: #{net_forward.1} parent=1 // pred_fallthru
      _
    // Predicated region
    $region14: #{net_forward.1} parent=1 // pred_check
      _
    $region15: #{net_forward.1} parent=1 // pred_check_branch
      %24 = sbr.rel (0) target = $region17
    $region16: #{net_forward.1} parent=1 // pred_region
      _
    $region17: #{net_forward.1} parent=1 // pred_fallthru
      _
    // Predicated region
    $region18: #{net_forward.1} parent=1 // pred_check
      _
    $region19: #{net_forward.1} parent=1 // pred_check_branch
      %26 = sbr.rel (0) target = $region21
    $region20: #{net_forward.1} parent=1 // pred_region
      _
    $region21: #{net_forward.1} parent=1 // pred_fallthru
      _
    // Predicated region
    $region22: #{net_forward.1} parent=1 // pred_check
      _
    $region23: #{net_forward.1} parent=1 // pred_check_branch
      %28 = sbr.rel (0) target = $region25
    $region24: #{net_forward.1} parent=1 // pred_region
      _
    $region25: #{net_forward.1} parent=1 // pred_fallthru
      _
    // Predicated region
    $region26: #{net_forward.1} parent=1 // pred_check
      _
    $region27: #{net_forward.1} parent=1 // pred_check_branch
      %30 = sbr.rel (0) target = $region29
    $region28: #{net_forward.1} parent=1 // pred_region
      _
    $region29: #{net_forward.1} parent=1 // pred_fallthru
      _
    // Predicated region
    $region30: #{net_forward.1} parent=1 // pred_check
      _
    $region31: #{net_forward.1} parent=1 // pred_check_branch
      %32 = sbr.rel (0) target = $region33
    $region32: #{net_forward.1} parent=1 // pred_region
      _
    $region33: #{net_forward.1} parent=1 // pred_fallthru
      _
    // Predicated region
    $region34: #{net_forward.1} parent=1 // pred_check
      _
    $region35: #{net_forward.1} parent=1 // pred_check_branch
      %34 = sbr.rel (0) target = $region37
    $region36: #{net_forward.1} parent=1 // pred_region
      _
    $region37: #{net_forward.1} parent=1 // pred_fallthru
      _
    // Predicated region
    $region38: #{net_forward.1} parent=1 // pred_check
      _
    $region39: #{net_forward.1} parent=1 // pred_check_branch
      %36 = sbr.rel (0) target = $region41
    $region40: #{net_forward.1} parent=1 // pred_region
      _
    $region41: #{net_forward.1} parent=1 // pred_fallthru
      _
    // Predicated region
    $region42: #{net_forward.1} parent=1 // pred_check
      _
    $region43: #{net_forward.1} parent=1 // pred_check_branch
      %38 = sbr.rel (0) target = $region45
    $region44: #{net_forward.1} parent=1 // pred_region
      _
    $region45: #{net_forward.1} parent=1 // pred_fallthru
      _
    %v40 = vld [vmem:[%s0] sm:$0x77]
    %v41 = vld [vmem:[%s0 + $0x8] sm:$0x77]
    %v42 = vld [vmem:[%s0 + $0x10] sm:$0x77]
    %v43 = vld [vmem:[%s0 + $0x18] sm:$0x77]
    %v44 = vld [vmem:[%s0 + $0x20] sm:$0x77]
    %v45 = vld [vmem:[%s0 + $0x28] sm:$0x77]
    %v46 = vld [vmem:[%s0 + $0x30] sm:$0x77]
    %v47 = vld [vmem:[%s0 + $0x38] sm:$0x77]
    %v56 = vcombine.high %v40, %v40
    %v57 = vcombine.high %v41, %v41
    %v58 = vcombine.high %v42, %v42
    %v59 = vcombine.high %v43, %v43
    %v60 = vcombine.high %v44, %v44
    %v61 = vcombine.high %v45, %v45
    %v62 = vcombine.high %v46, %v46
    %70 = vst [vmem:[#allocation2] sm:$0x7] %v40
    %71 = vst [vmem:[#allocation2 + $0x8] sm:$0x7] %v56
    %72 = vst [vmem:[#allocation2 + $0x10] sm:$0x7] %v41
    %73 = vst [vmem:[#allocation2 + $0x18] sm:$0x7] %v57
    %74 = vst [vmem:[#allocation2 + $0x20] sm:$0x7] %v42
    %75 = vst [vmem:[#allocation2 + $0x28] sm:$0x7] %v58
    %76 = vst [vmem:[#allocation2 + $0x30] sm:$0x7] %v43
    %77 = vst [vmem:[#allocation2 + $0x38] sm:$0x7] %v59
    %78 = vst [vmem:[#allocation2 + $0x40] sm:$0x7] %v44
    %79 = vst [vmem:[#allocation2 + $0x48] sm:$0x7] %v60
    %80 = vst [vmem:[#allocation2 + $0x50] sm:$0x7] %v45
    %81 = vst [vmem:[#allocation2 + $0x58] sm:$0x7] %v61
    %82 = vst [vmem:[#allocation2 + $0x60] sm:$0x7] %v46
    %83 = vst [vmem:[#allocation2 + $0x68] sm:$0x7] %v62
    %vm84 = vcmask 1009664
    %85 = vst.msk [vmem:[#allocation2 + $0x70] sm:$0x7] %vm84, %v47
    %v86 = vrot.slane %v40, 5
    %v87 = vrot.slane %v56, 5
    %v88 = vrot.slane %v41, 5
    %v89 = vrot.slane %v57, 5
    %v90 = vrot.slane %v42, 5
    %v91 = vrot.slane %v58, 5
    %v92 = vrot.slane %v43, 5
    %v93 = vrot.slane %v59, 5
    %v94 = vrot.slane %v44, 5
    %v95 = vrot.slane %v60, 5
    %v96 = vrot.slane %v45, 5
    %v97 = vrot.slane %v61, 5
    %v98 = vrot.slane %v46, 5
    %v99 = vrot.slane %v62, 5
    %v100 = vrot.slane %v47, 5
    %101 = vrot.lane.b32.xlu0 %v86, 127
    %v102 = vpop.permute.xlu0 %101
    %103 = vrot.lane.b32.xlu0 %v87, 127
    %v104 = vpop.permute.xlu0 %103
    %105 = vrot.lane.b32.xlu0 %v88, 127
    %v106 = vpop.permute.xlu0 %105
    %107 = vrot.lane.b32.xlu0 %v89, 127
    %v108 = vpop.permute.xlu0 %107
    %109 = vrot.lane.b32.xlu0 %v90, 127
    %v110 = vpop.permute.xlu0 %109
    %111 = vrot.lane.b32.xlu0 %v91, 127
    %v112 = vpop.permute.xlu0 %111
    %113 = vrot.lane.b32.xlu0 %v92, 127
    %v114 = vpop.permute.xlu0 %113
    %115 = vrot.lane.b32.xlu0 %v93, 127
    %v116 = vpop.permute.xlu0 %115
    %117 = vrot.lane.b32.xlu0 %v94, 127
    %v118 = vpop.permute.xlu0 %117
    %119 = vrot.lane.b32.xlu0 %v95, 127
    %v120 = vpop.permute.xlu0 %119
    %121 = vrot.lane.b32.xlu0 %v96, 127
    %v122 = vpop.permute.xlu0 %121
    %123 = vrot.lane.b32.xlu0 %v97, 127
    %v124 = vpop.permute.xlu0 %123
    %125 = vrot.lane.b32.xlu0 %v98, 127
    %v126 = vpop.permute.xlu0 %125
    %127 = vrot.lane.b32.xlu0 %v99, 127
    %v128 = vpop.permute.xlu0 %127
    %129 = vrot.lane.b32.xlu0 %v100, 127
    %v130 = vpop.permute.xlu0 %129
    %vm131 = vcmask 1039360
    %v132 = vsel %vm131, %v102, %v104
    %v133 = vsel %vm131, %v104, %v106
    %v134 = vsel %vm131, %v106, %v108
    %v135 = vsel %vm131, %v108, %v110
    %v136 = vsel %vm131, %v110, %v112
    %v137 = vsel %vm131, %v112, %v114
    %v138 = vsel %vm131, %v114, %v116
    %v139 = vsel %vm131, %v116, %v118
    %v140 = vsel %vm131, %v118, %v120
    %v141 = vsel %vm131, %v120, %v122
    %v142 = vsel %vm131, %v122, %v124
    %v143 = vsel %vm131, %v124, %v126
    %v144 = vsel %vm131, %v126, %v128
    %v145 = vsel %vm131, %v128, %v130
    %161 = vst [vmem:[#allocation2] sm:$0x38] %v132
    %162 = vst [vmem:[#allocation2 + $0x8] sm:$0x38] %v133
    %163 = vst [vmem:[#allocation2 + $0x10] sm:$0x38] %v134
    %164 = vst [vmem:[#allocation2 + $0x18] sm:$0x38] %v135
    %165 = vst [vmem:[#allocation2 + $0x20] sm:$0x38] %v136
    %166 = vst [vmem:[#allocation2 + $0x28] sm:$0x38] %v137
    %167 = vst [vmem:[#allocation2 + $0x30] sm:$0x38] %v138
    %168 = vst [vmem:[#allocation2 + $0x38] sm:$0x38] %v139
    %169 = vst [vmem:[#allocation2 + $0x40] sm:$0x38] %v140
    %170 = vst [vmem:[#allocation2 + $0x48] sm:$0x38] %v141
    %171 = vst [vmem:[#allocation2 + $0x50] sm:$0x38] %v142
    %172 = vst [vmem:[#allocation2 + $0x58] sm:$0x38] %v143
    %173 = vst [vmem:[#allocation2 + $0x60] sm:$0x38] %v144
    %174 = vst [vmem:[#allocation2 + $0x68] sm:$0x38] %v145
    %vm175 = vcmask 1012739
    %176 = vst.msk [vmem:[#allocation2 + $0x70] sm:$0x38] %vm175, %v130
    %v177 = vrot.slane %v40, 2
    %v178 = vrot.slane %v56, 2
    %v179 = vrot.slane %v41, 2
    %v180 = vrot.slane %v57, 2
    %v181 = vrot.slane %v42, 2
    %v182 = vrot.slane %v58, 2
    %v183 = vrot.slane %v43, 2
    %v184 = vrot.slane %v59, 2
    %v185 = vrot.slane %v44, 2
    %v186 = vrot.slane %v60, 2
    %v187 = vrot.slane %v45, 2
    %v188 = vrot.slane %v61, 2
    %v189 = vrot.slane %v46, 2
    %v190 = vrot.slane %v62, 2
    %v191 = vrot.slane %v47, 2
    %192 = vrot.lane.b32.xlu0 %v177, 126
    %v193 = vpop.permute.xlu0 %192
    %194 = vrot.lane.b32.xlu0 %v178, 126
    %v195 = vpop.permute.xlu0 %194
    %196 = vrot.lane.b32.xlu0 %v179, 126
    %v197 = vpop.permute.xlu0 %196
    %198 = vrot.lane.b32.xlu0 %v180, 126
    %v199 = vpop.permute.xlu0 %198
    %200 = vrot.lane.b32.xlu0 %v181, 126
    %v201 = vpop.permute.xlu0 %200
    %202 = vrot.lane.b32.xlu0 %v182, 126
    %v203 = vpop.permute.xlu0 %202
    %204 = vrot.lane.b32.xlu0 %v183, 126
    %v205 = vpop.permute.xlu0 %204
    %206 = vrot.lane.b32.xlu0 %v184, 126
    %v207 = vpop.permute.xlu0 %206
    %208 = vrot.lane.b32.xlu0 %v185, 126
    %v209 = vpop.permute.xlu0 %208
    %210 = vrot.lane.b32.xlu0 %v186, 126
    %v211 = vpop.permute.xlu0 %210
    %212 = vrot.lane.b32.xlu0 %v187, 126
    %v213 = vpop.permute.xlu0 %212
    %214 = vrot.lane.b32.xlu0 %v188, 126
    %v215 = vpop.permute.xlu0 %214
    %216 = vrot.lane.b32.xlu0 %v189, 126
    %v217 = vpop.permute.xlu0 %216
    %218 = vrot.lane.b32.xlu0 %v190, 126
    %v219 = vpop.permute.xlu0 %218
    %220 = vrot.lane.b32.xlu0 %v191, 126
    %v221 = vpop.permute.xlu0 %220
    %vm222 = vcmask 1031168
    %v223 = vsel %vm222, %v193, %v195
    %v224 = vsel %vm222, %v195, %v197
    %v225 = vsel %vm222, %v197, %v199
    %v226 = vsel %vm222, %v199, %v201
    %v227 = vsel %vm222, %v201, %v203
    %v228 = vsel %vm222, %v203, %v205
    %v229 = vsel %vm222, %v205, %v207
    %v230 = vsel %vm222, %v207, %v209
    %v231 = vsel %vm222, %v209, %v211
    %v232 = vsel %vm222, %v211, %v213
    %v233 = vsel %vm222, %v213, %v215
    %v234 = vsel %vm222, %v215, %v217
    %v235 = vsel %vm222, %v217, %v219
    %v236 = vsel %vm222, %v219, %v221
    %252 = vst [vmem:[#allocation2] sm:$0xc0] %v223
    %253 = vst [vmem:[#allocation2 + $0x8] sm:$0xc0] %v224
    %254 = vst [vmem:[#allocation2 + $0x10] sm:$0xc0] %v225
    %255 = vst [vmem:[#allocation2 + $0x18] sm:$0xc0] %v226
    %256 = vst [vmem:[#allocation2 + $0x20] sm:$0xc0] %v227
    %257 = vst [vmem:[#allocation2 + $0x28] sm:$0xc0] %v228
    %258 = vst [vmem:[#allocation2 + $0x30] sm:$0xc0] %v229
    %259 = vst [vmem:[#allocation2 + $0x38] sm:$0xc0] %v230
    %260 = vst [vmem:[#allocation2 + $0x40] sm:$0xc0] %v231
    %261 = vst [vmem:[#allocation2 + $0x48] sm:$0xc0] %v232
    %262 = vst [vmem:[#allocation2 + $0x50] sm:$0xc0] %v233
    %263 = vst [vmem:[#allocation2 + $0x58] sm:$0xc0] %v234
    %264 = vst [vmem:[#allocation2 + $0x60] sm:$0xc0] %v235
    %265 = vst [vmem:[#allocation2 + $0x68] sm:$0xc0] %v236
    %vm266 = vcmask 1014790
    %267 = vst.msk [vmem:[#allocation2 + $0x70] sm:$0xc0] %vm266, %v221
    %268 = vst [vmem:[#allocation2 + $0x78] sm:$0x1] %v223
    %269 = vst [vmem:[#allocation2 + $0x80] sm:$0x1] %v224
    %270 = vst [vmem:[#allocation2 + $0x88] sm:$0x1] %v225
    %271 = vst [vmem:[#allocation2 + $0x90] sm:$0x1] %v226
    %272 = vst [vmem:[#allocation2 + $0x98] sm:$0x1] %v227
    %273 = vst [vmem:[#allocation2 + $0xa0] sm:$0x1] %v228
    %274 = vst [vmem:[#allocation2 + $0xa8] sm:$0x1] %v229
    %275 = vst [vmem:[#allocation2 + $0xb0] sm:$0x1] %v230
    %276 = vst [vmem:[#allocation2 + $0xb8] sm:$0x1] %v231
    %277 = vst [vmem:[#allocation2 + $0xc0] sm:$0x1] %v232
    %278 = vst [vmem:[#allocation2 + $0xc8] sm:$0x1] %v233
    %279 = vst [vmem:[#allocation2 + $0xd0] sm:$0x1] %v234
    %280 = vst [vmem:[#allocation2 + $0xd8] sm:$0x1] %v235
    %281 = vst [vmem:[#allocation2 + $0xe0] sm:$0x1] %v236
    %vm282 = vcmask 1007616
    %283 = vst.msk [vmem:[#allocation2 + $0xe8] sm:$0x1] %vm282, %v221
    %v284 = vrot.slane %v40, 7
    %v285 = vrot.slane %v56, 7
    %v286 = vrot.slane %v41, 7
    %v287 = vrot.slane %v57, 7
    %v288 = vrot.slane %v42, 7
    %v289 = vrot.slane %v58, 7
    %v290 = vrot.slane %v43, 7
    %v291 = vrot.slane %v59, 7
    %v292 = vrot.slane %v44, 7
    %v293 = vrot.slane %v60, 7
    %v294 = vrot.slane %v45, 7
    %v295 = vrot.slane %v61, 7
    %v296 = vrot.slane %v46, 7
    %v297 = vrot.slane %v62, 7
    %v298 = vrot.slane %v47, 7
    %299 = vrot.lane.b32.xlu0 %v284, 125
    %v300 = vpop.permute.xlu0 %299
    %301 = vrot.lane.b32.xlu0 %v285, 125
    %v302 = vpop.permute.xlu0 %301
    %303 = vrot.lane.b32.xlu0 %v286, 125
    %v304 = vpop.permute.xlu0 %303
    %305 = vrot.lane.b32.xlu0 %v287, 125
    %v306 = vpop.permute.xlu0 %305
    %307 = vrot.lane.b32.xlu0 %v288, 125
    %v308 = vpop.permute.xlu0 %307
    %309 = vrot.lane.b32.xlu0 %v289, 125
    %v310 = vpop.permute.xlu0 %309
    %311 = vrot.lane.b32.xlu0 %v290, 125
    %v312 = vpop.permute.xlu0 %311
    %313 = vrot.lane.b32.xlu0 %v291, 125
    %v314 = vpop.permute.xlu0 %313
    %315 = vrot.lane.b32.xlu0 %v292, 125
    %v316 = vpop.permute.xlu0 %315
    %317 = vrot.lane.b32.xlu0 %v293, 125
    %v318 = vpop.permute.xlu0 %317
    %319 = vrot.lane.b32.xlu0 %v294, 125
    %v320 = vpop.permute.xlu0 %319
    %321 = vrot.lane.b32.xlu0 %v295, 125
    %v322 = vpop.permute.xlu0 %321
    %323 = vrot.lane.b32.xlu0 %v296, 125
    %v324 = vpop.permute.xlu0 %323
    %325 = vrot.lane.b32.xlu0 %v297, 125
    %v326 = vpop.permute.xlu0 %325
    %327 = vrot.lane.b32.xlu0 %v298, 125
    %v328 = vpop.permute.xlu0 %327
    %vm329 = vcmask 1022976
    %v330 = vsel %vm329, %v300, %v302
    %v331 = vsel %vm329, %v302, %v304
    %v332 = vsel %vm329, %v304, %v306
    %v333 = vsel %vm329, %v306, %v308
    %v334 = vsel %vm329, %v308, %v310
    %v335 = vsel %vm329, %v310, %v312
    %v336 = vsel %vm329, %v312, %v314
    %v337 = vsel %vm329, %v314, %v316
    %v338 = vsel %vm329, %v316, %v318
    %v339 = vsel %vm329, %v318, %v320
    %v340 = vsel %vm329, %v320, %v322
    %v341 = vsel %vm329, %v322, %v324
    %v342 = vsel %vm329, %v324, %v326
    %v343 = vsel %vm329, %v326, %v328
    %359 = vst [vmem:[#allocation2 + $0x78] sm:$0xe] %v330
    %360 = vst [vmem:[#allocation2 + $0x80] sm:$0xe] %v331
    %361 = vst [vmem:[#allocation2 + $0x88] sm:$0xe] %v332
    %362 = vst [vmem:[#allocation2 + $0x90] sm:$0xe] %v333
    %363 = vst [vmem:[#allocation2 + $0x98] sm:$0xe] %v334
    %364 = vst [vmem:[#allocation2 + $0xa0] sm:$0xe] %v335
    %365 = vst [vmem:[#allocation2 + $0xa8] sm:$0xe] %v336
    %366 = vst [vmem:[#allocation2 + $0xb0] sm:$0xe] %v337
    %367 = vst [vmem:[#allocation2 + $0xb8] sm:$0xe] %v338
    %368 = vst [vmem:[#allocation2 + $0xc0] sm:$0xe] %v339
    %369 = vst [vmem:[#allocation2 + $0xc8] sm:$0xe] %v340
    %370 = vst [vmem:[#allocation2 + $0xd0] sm:$0xe] %v341
    %371 = vst [vmem:[#allocation2 + $0xd8] sm:$0xe] %v342
    %372 = vst [vmem:[#allocation2 + $0xe0] sm:$0xe] %v343
    %vm373 = vcmask 1010689
    %374 = vst.msk [vmem:[#allocation2 + $0xe8] sm:$0xe] %vm373, %v328
    %v375 = vcombine.low %v40, %v40
    %v376 = vcombine.low %v41, %v41
    %v377 = vcombine.low %v42, %v42
    %v378 = vcombine.low %v43, %v43
    %v379 = vcombine.low %v44, %v44
    %v380 = vcombine.low %v45, %v45
    %v381 = vcombine.low %v46, %v46
    %v382 = vcombine.low %v47, %v47
    %383 = vrot.lane.b32.xlu0 %v375, 124
    %v384 = vpop.permute.xlu0 %383
    %385 = vrot.lane.b32.xlu0 %v40, 124
    %v386 = vpop.permute.xlu0 %385
    %387 = vrot.lane.b32.xlu0 %v376, 124
    %v388 = vpop.permute.xlu0 %387
    %389 = vrot.lane.b32.xlu0 %v41, 124
    %v390 = vpop.permute.xlu0 %389
    %391 = vrot.lane.b32.xlu0 %v377, 124
    %v392 = vpop.permute.xlu0 %391
    %393 = vrot.lane.b32.xlu0 %v42, 124
    %v394 = vpop.permute.xlu0 %393
    %395 = vrot.lane.b32.xlu0 %v378, 124
    %v396 = vpop.permute.xlu0 %395
    %397 = vrot.lane.b32.xlu0 %v43, 124
    %v398 = vpop.permute.xlu0 %397
    %399 = vrot.lane.b32.xlu0 %v379, 124
    %v400 = vpop.permute.xlu0 %399
    %401 = vrot.lane.b32.xlu0 %v44, 124
    %v402 = vpop.permute.xlu0 %401
    %403 = vrot.lane.b32.xlu0 %v380, 124
    %v404 = vpop.permute.xlu0 %403
    %405 = vrot.lane.b32.xlu0 %v45, 124
    %v406 = vpop.permute.xlu0 %405
    %407 = vrot.lane.b32.xlu0 %v381, 124
    %v408 = vpop.permute.xlu0 %407
    %409 = vrot.lane.b32.xlu0 %v46, 124
    %v410 = vpop.permute.xlu0 %409
    %411 = vrot.lane.b32.xlu0 %v382, 124
    %v412 = vpop.permute.xlu0 %411
    %vm413 = vcmask 1014784
    %v414 = vsel %vm413, %v384, %v386
    %v415 = vsel %vm413, %v386, %v388
    %v416 = vsel %vm413, %v388, %v390
    %v417 = vsel %vm413, %v390, %v392
    %v418 = vsel %vm413, %v392, %v394
    %v419 = vsel %vm413, %v394, %v396
    %v420 = vsel %vm413, %v396, %v398
    %v421 = vsel %vm413, %v398, %v400
    %v422 = vsel %vm413, %v400, %v402
    %v423 = vsel %vm413, %v402, %v404
    %v424 = vsel %vm413, %v404, %v406
    %v425 = vsel %vm413, %v406, %v408
    %v426 = vsel %vm413, %v408, %v410
    %v427 = vsel %vm413, %v410, %v412
    %443 = vst [vmem:[#allocation2 + $0x78] sm:$0x70] %v414
    %444 = vst [vmem:[#allocation2 + $0x80] sm:$0x70] %v415
    %445 = vst [vmem:[#allocation2 + $0x88] sm:$0x70] %v416
    %446 = vst [vmem:[#allocation2 + $0x90] sm:$0x70] %v417
    %447 = vst [vmem:[#allocation2 + $0x98] sm:$0x70] %v418
    %448 = vst [vmem:[#allocation2 + $0xa0] sm:$0x70] %v419
    %449 = vst [vmem:[#allocation2 + $0xa8] sm:$0x70] %v420
    %450 = vst [vmem:[#allocation2 + $0xb0] sm:$0x70] %v421
    %451 = vst [vmem:[#allocation2 + $0xb8] sm:$0x70] %v422
    %452 = vst [vmem:[#allocation2 + $0xc0] sm:$0x70] %v423
    %453 = vst [vmem:[#allocation2 + $0xc8] sm:$0x70] %v424
    %454 = vst [vmem:[#allocation2 + $0xd0] sm:$0x70] %v425
    %455 = vst [vmem:[#allocation2 + $0xd8] sm:$0x70] %v426
    %456 = vst [vmem:[#allocation2 + $0xe0] sm:$0x70] %v427
    %vm457 = vcmask 1013764
    %458 = vst.msk [vmem:[#allocation2 + $0xe8] sm:$0x70] %vm457, %v412
    %v459 = vcombine.high %v47, %v47
    %v460 = vrot.slane %v40, 1
    %v461 = vrot.slane %v56, 1
    %v462 = vrot.slane %v41, 1
    %v463 = vrot.slane %v57, 1
    %v464 = vrot.slane %v42, 1
    %v465 = vrot.slane %v58, 1
    %v466 = vrot.slane %v43, 1
    %v467 = vrot.slane %v59, 1
    %v468 = vrot.slane %v44, 1
    %v469 = vrot.slane %v60, 1
    %v470 = vrot.slane %v45, 1
    %v471 = vrot.slane %v61, 1
    %v472 = vrot.slane %v46, 1
    %v473 = vrot.slane %v62, 1
    %v474 = vrot.slane %v47, 1
    %v475 = vrot.slane %v459, 1
    %476 = vrot.lane.b32.xlu0 %v460, 96
    %v477 = vpop.permute.xlu0 %476
    %478 = vrot.lane.b32.xlu0 %v461, 96
    %v479 = vpop.permute.xlu0 %478
    %480 = vrot.lane.b32.xlu0 %v462, 96
    %v481 = vpop.permute.xlu0 %480
    %482 = vrot.lane.b32.xlu0 %v463, 96
    %v483 = vpop.permute.xlu0 %482
    %484 = vrot.lane.b32.xlu0 %v464, 96
    %v485 = vpop.permute.xlu0 %484
    %486 = vrot.lane.b32.xlu0 %v465, 96
    %v487 = vpop.permute.xlu0 %486
    %488 = vrot.lane.b32.xlu0 %v466, 96
    %v489 = vpop.permute.xlu0 %488
    %490 = vrot.lane.b32.xlu0 %v467, 96
    %v491 = vpop.permute.xlu0 %490
    %492 = vrot.lane.b32.xlu0 %v468, 96
    %v493 = vpop.permute.xlu0 %492
    %494 = vrot.lane.b32.xlu0 %v469, 96
    %v495 = vpop.permute.xlu0 %494
    %496 = vrot.lane.b32.xlu0 %v470, 96
    %v497 = vpop.permute.xlu0 %496
    %498 = vrot.lane.b32.xlu0 %v471, 96
    %v499 = vpop.permute.xlu0 %498
    %500 = vrot.lane.b32.xlu0 %v472, 96
    %v501 = vpop.permute.xlu0 %500
    %502 = vrot.lane.b32.xlu0 %v473, 96
    %v503 = vpop.permute.xlu0 %502
    %504 = vrot.lane.b32.xlu0 %v474, 96
    %v505 = vpop.permute.xlu0 %504
    %506 = vrot.lane.b32.xlu0 %v475, 96
    %v507 = vpop.permute.xlu0 %506
    %vm508 = vcmask 785408
    %v509 = vsel %vm508, %v477, %v479
    %v510 = vsel %vm508, %v479, %v481
    %v511 = vsel %vm508, %v481, %v483
    %v512 = vsel %vm508, %v483, %v485
    %v513 = vsel %vm508, %v485, %v487
    %v514 = vsel %vm508, %v487, %v489
    %v515 = vsel %vm508, %v489, %v491
    %v516 = vsel %vm508, %v491, %v493
    %v517 = vsel %vm508, %v493, %v495
    %v518 = vsel %vm508, %v495, %v497
    %v519 = vsel %vm508, %v497, %v499
    %v520 = vsel %vm508, %v499, %v501
    %v521 = vsel %vm508, %v501, %v503
    %v522 = vsel %vm508, %v503, %v505
    %v523 = vsel %vm508, %v505, %v507
    %539 = vst [vmem:[#allocation2 + $0x78] sm:$0x80] %v509
    %540 = vst [vmem:[#allocation2 + $0x80] sm:$0x80] %v510
    %541 = vst [vmem:[#allocation2 + $0x88] sm:$0x80] %v511
    %542 = vst [vmem:[#allocation2 + $0x90] sm:$0x80] %v512
    %543 = vst [vmem:[#allocation2 + $0x98] sm:$0x80] %v513
    %544 = vst [vmem:[#allocation2 + $0xa0] sm:$0x80] %v514
    %545 = vst [vmem:[#allocation2 + $0xa8] sm:$0x80] %v515
    %546 = vst [vmem:[#allocation2 + $0xb0] sm:$0x80] %v516
    %547 = vst [vmem:[#allocation2 + $0xb8] sm:$0x80] %v517
    %548 = vst [vmem:[#allocation2 + $0xc0] sm:$0x80] %v518
    %549 = vst [vmem:[#allocation2 + $0xc8] sm:$0x80] %v519
    %550 = vst [vmem:[#allocation2 + $0xd0] sm:$0x80] %v520
    %551 = vst [vmem:[#allocation2 + $0xd8] sm:$0x80] %v521
    %552 = vst [vmem:[#allocation2 + $0xe0] sm:$0x80] %v522
    %vm553 = vcmask 1014791
    %554 = vst.msk [vmem:[#allocation2 + $0xe8] sm:$0x80] %vm553, %v523
    %555 = vst [vmem:[#allocation2 + $0xf0] sm:$0x3] %v509
    %556 = vst [vmem:[#allocation2 + $0xf8] sm:$0x3] %v510
    %557 = vst [vmem:[#allocation2 + $0x100] sm:$0x3] %v511
    %558 = vst [vmem:[#allocation2 + $0x108] sm:$0x3] %v512
    %559 = vst [vmem:[#allocation2 + $0x110] sm:$0x3] %v513
    %560 = vst [vmem:[#allocation2 + $0x118] sm:$0x3] %v514
    %561 = vst [vmem:[#allocation2 + $0x120] sm:$0x3] %v515
    %562 = vst [vmem:[#allocation2 + $0x128] sm:$0x3] %v516
    %563 = vst [vmem:[#allocation2 + $0x130] sm:$0x3] %v517
    %564 = vst [vmem:[#allocation2 + $0x138] sm:$0x3] %v518
    %565 = vst [vmem:[#allocation2 + $0x140] sm:$0x3] %v519
    %566 = vst [vmem:[#allocation2 + $0x148] sm:$0x3] %v520
    %567 = vst [vmem:[#allocation2 + $0x150] sm:$0x3] %v521
    %568 = vst [vmem:[#allocation2 + $0x158] sm:$0x3] %v522
    %vm569 = vcmask 1008640
    %570 = vst.msk [vmem:[#allocation2 + $0x160] sm:$0x3] %vm569, %v523
    %v571 = vrot.slane %v40, 6
    %v572 = vrot.slane %v56, 6
    %v573 = vrot.slane %v41, 6
    %v574 = vrot.slane %v57, 6
    %v575 = vrot.slane %v42, 6
    %v576 = vrot.slane %v58, 6
    %v577 = vrot.slane %v43, 6
    %v578 = vrot.slane %v59, 6
    %v579 = vrot.slane %v44, 6
    %v580 = vrot.slane %v60, 6
    %v581 = vrot.slane %v45, 6
    %v582 = vrot.slane %v61, 6
    %v583 = vrot.slane %v46, 6
    %v584 = vrot.slane %v62, 6
    %v585 = vrot.slane %v47, 6
    %v586 = vrot.slane %v459, 6
    %587 = vrot.lane.b32.xlu0 %v571, 95
    %v588 = vpop.permute.xlu0 %587
    %589 = vrot.lane.b32.xlu0 %v572, 95
    %v590 = vpop.permute.xlu0 %589
    %591 = vrot.lane.b32.xlu0 %v573, 95
    %v592 = vpop.permute.xlu0 %591
    %593 = vrot.lane.b32.xlu0 %v574, 95
    %v594 = vpop.permute.xlu0 %593
    %595 = vrot.lane.b32.xlu0 %v575, 95
    %v596 = vpop.permute.xlu0 %595
    %597 = vrot.lane.b32.xlu0 %v576, 95
    %v598 = vpop.permute.xlu0 %597
    %599 = vrot.lane.b32.xlu0 %v577, 95
    %v600 = vpop.permute.xlu0 %599
    %601 = vrot.lane.b32.xlu0 %v578, 95
    %v602 = vpop.permute.xlu0 %601
    %603 = vrot.lane.b32.xlu0 %v579, 95
    %v604 = vpop.permute.xlu0 %603
    %605 = vrot.lane.b32.xlu0 %v580, 95
    %v606 = vpop.permute.xlu0 %605
    %607 = vrot.lane.b32.xlu0 %v581, 95
    %v608 = vpop.permute.xlu0 %607
    %609 = vrot.lane.b32.xlu0 %v582, 95
    %v610 = vpop.permute.xlu0 %609
    %611 = vrot.lane.b32.xlu0 %v583, 95
    %v612 = vpop.permute.xlu0 %611
    %613 = vrot.lane.b32.xlu0 %v584, 95
    %v614 = vpop.permute.xlu0 %613
    %615 = vrot.lane.b32.xlu0 %v585, 95
    %v616 = vpop.permute.xlu0 %615
    %617 = vrot.lane.b32.xlu0 %v586, 95
    %v618 = vpop.permute.xlu0 %617
    %vm619 = vcmask 777216
    %v620 = vsel %vm619, %v588, %v590
    %v621 = vsel %vm619, %v590, %v592
    %v622 = vsel %vm619, %v592, %v594
    %v623 = vsel %vm619, %v594, %v596
    %v624 = vsel %vm619, %v596, %v598
    %v625 = vsel %vm619, %v598, %v600
    %v626 = vsel %vm619, %v600, %v602
    %v627 = vsel %vm619, %v602, %v604
    %v628 = vsel %vm619, %v604, %v606
    %v629 = vsel %vm619, %v606, %v608
    %v630 = vsel %vm619, %v608, %v610
    %v631 = vsel %vm619, %v610, %v612
    %v632 = vsel %vm619, %v612, %v614
    %v633 = vsel %vm619, %v614, %v616
    %v634 = vsel %vm619, %v616, %v618
    %650 = vst [vmem:[#allocation2 + $0xf0] sm:$0x1c] %v620
    %651 = vst [vmem:[#allocation2 + $0xf8] sm:$0x1c] %v621
    %652 = vst [vmem:[#allocation2 + $0x100] sm:$0x1c] %v622
    %653 = vst [vmem:[#allocation2 + $0x108] sm:$0x1c] %v623
    %654 = vst [vmem:[#allocation2 + $0x110] sm:$0x1c] %v624
    %655 = vst [vmem:[#allocation2 + $0x118] sm:$0x1c] %v625
    %656 = vst [vmem:[#allocation2 + $0x120] sm:$0x1c] %v626
    %657 = vst [vmem:[#allocation2 + $0x128] sm:$0x1c] %v627
    %658 = vst [vmem:[#allocation2 + $0x130] sm:$0x1c] %v628
    %659 = vst [vmem:[#allocation2 + $0x138] sm:$0x1c] %v629
    %660 = vst [vmem:[#allocation2 + $0x140] sm:$0x1c] %v630
    %661 = vst [vmem:[#allocation2 + $0x148] sm:$0x1c] %v631
    %662 = vst [vmem:[#allocation2 + $0x150] sm:$0x1c] %v632
    %663 = vst [vmem:[#allocation2 + $0x158] sm:$0x1c] %v633
    %vm664 = vcmask 1011714
    %665 = vst.msk [vmem:[#allocation2 + $0x160] sm:$0x1c] %vm664, %v634
    %v666 = vrot.slane %v40, 3
    %v667 = vrot.slane %v56, 3
    %v668 = vrot.slane %v41, 3
    %v669 = vrot.slane %v57, 3
    %v670 = vrot.slane %v42, 3
    %v671 = vrot.slane %v58, 3
    %v672 = vrot.slane %v43, 3
    %v673 = vrot.slane %v59, 3
    %v674 = vrot.slane %v44, 3
    %v675 = vrot.slane %v60, 3
    %v676 = vrot.slane %v45, 3
    %v677 = vrot.slane %v61, 3
    %v678 = vrot.slane %v46, 3
    %v679 = vrot.slane %v62, 3
    %v680 = vrot.slane %v47, 3
    %v681 = vrot.slane %v459, 3
    %682 = vrot.lane.b32.xlu0 %v666, 94
    %v683 = vpop.permute.xlu0 %682
    %684 = vrot.lane.b32.xlu0 %v667, 94
    %v685 = vpop.permute.xlu0 %684
    %686 = vrot.lane.b32.xlu0 %v668, 94
    %v687 = vpop.permute.xlu0 %686
    %688 = vrot.lane.b32.xlu0 %v669, 94
    %v689 = vpop.permute.xlu0 %688
    %690 = vrot.lane.b32.xlu0 %v670, 94
    %v691 = vpop.permute.xlu0 %690
    %692 = vrot.lane.b32.xlu0 %v671, 94
    %v693 = vpop.permute.xlu0 %692
    %694 = vrot.lane.b32.xlu0 %v672, 94
    %v695 = vpop.permute.xlu0 %694
    %696 = vrot.lane.b32.xlu0 %v673, 94
    %v697 = vpop.permute.xlu0 %696
    %698 = vrot.lane.b32.xlu0 %v674, 94
    %v699 = vpop.permute.xlu0 %698
    %700 = vrot.lane.b32.xlu0 %v675, 94
    %v701 = vpop.permute.xlu0 %700
    %702 = vrot.lane.b32.xlu0 %v676, 94
    %v703 = vpop.permute.xlu0 %702
    %704 = vrot.lane.b32.xlu0 %v677, 94
    %v705 = vpop.permute.xlu0 %704
    %706 = vrot.lane.b32.xlu0 %v678, 94
    %v707 = vpop.permute.xlu0 %706
    %708 = vrot.lane.b32.xlu0 %v679, 94
    %v709 = vpop.permute.xlu0 %708
    %710 = vrot.lane.b32.xlu0 %v680, 94
    %v711 = vpop.permute.xlu0 %710
    %712 = vrot.lane.b32.xlu0 %v681, 94
    %v713 = vpop.permute.xlu0 %712
    %vm714 = vcmask 769024
    %v715 = vsel %vm714, %v683, %v685
    %v716 = vsel %vm714, %v685, %v687
    %v717 = vsel %vm714, %v687, %v689
    %v718 = vsel %vm714, %v689, %v691
    %v719 = vsel %vm714, %v691, %v693
    %v720 = vsel %vm714, %v693, %v695
    %v721 = vsel %vm714, %v695, %v697
    %v722 = vsel %vm714, %v697, %v699
    %v723 = vsel %vm714, %v699, %v701
    %v724 = vsel %vm714, %v701, %v703
    %v725 = vsel %vm714, %v703, %v705
    %v726 = vsel %vm714, %v705, %v707
    %v727 = vsel %vm714, %v707, %v709
    %v728 = vsel %vm714, %v709, %v711
    %v729 = vsel %vm714, %v711, %v713
    %745 = vst [vmem:[#allocation2 + $0xf0] sm:$0xe0] %v715
    %746 = vst [vmem:[#allocation2 + $0xf8] sm:$0xe0] %v716
    %747 = vst [vmem:[#allocation2 + $0x100] sm:$0xe0] %v717
    %748 = vst [vmem:[#allocation2 + $0x108] sm:$0xe0] %v718
    %749 = vst [vmem:[#allocation2 + $0x110] sm:$0xe0] %v719
    %750 = vst [vmem:[#allocation2 + $0x118] sm:$0xe0] %v720
    %751 = vst [vmem:[#allocation2 + $0x120] sm:$0xe0] %v721
    %752 = vst [vmem:[#allocation2 + $0x128] sm:$0xe0] %v722
    %753 = vst [vmem:[#allocation2 + $0x130] sm:$0xe0] %v723
    %754 = vst [vmem:[#allocation2 + $0x138] sm:$0xe0] %v724
    %755 = vst [vmem:[#allocation2 + $0x140] sm:$0xe0] %v725
    %756 = vst [vmem:[#allocation2 + $0x148] sm:$0xe0] %v726
    %757 = vst [vmem:[#allocation2 + $0x150] sm:$0xe0] %v727
    %758 = vst [vmem:[#allocation2 + $0x158] sm:$0xe0] %v728
    %vm759 = vcmask 1014789
    %760 = vst.msk [vmem:[#allocation2 + $0x160] sm:$0xe0] %vm759, %v729
    %761 = vrot.lane.b32.xlu0 %v40, 93
    %v762 = vpop.permute.xlu0 %761
    %763 = vrot.lane.b32.xlu0 %v56, 93
    %v764 = vpop.permute.xlu0 %763
    %765 = vrot.lane.b32.xlu0 %v41, 93
    %v766 = vpop.permute.xlu0 %765
    %767 = vrot.lane.b32.xlu0 %v57, 93
    %v768 = vpop.permute.xlu0 %767
    %769 = vrot.lane.b32.xlu0 %v42, 93
    %v770 = vpop.permute.xlu0 %769
    %771 = vrot.lane.b32.xlu0 %v58, 93
    %v772 = vpop.permute.xlu0 %771
    %773 = vrot.lane.b32.xlu0 %v43, 93
    %v774 = vpop.permute.xlu0 %773
    %775 = vrot.lane.b32.xlu0 %v59, 93
    %v776 = vpop.permute.xlu0 %775
    %777 = vrot.lane.b32.xlu0 %v44, 93
    %v778 = vpop.permute.xlu0 %777
    %779 = vrot.lane.b32.xlu0 %v60, 93
    %v780 = vpop.permute.xlu0 %779
    %781 = vrot.lane.b32.xlu0 %v45, 93
    %v782 = vpop.permute.xlu0 %781
    %783 = vrot.lane.b32.xlu0 %v61, 93
    %v784 = vpop.permute.xlu0 %783
    %785 = vrot.lane.b32.xlu0 %v46, 93
    %v786 = vpop.permute.xlu0 %785
    %787 = vrot.lane.b32.xlu0 %v62, 93
    %v788 = vpop.permute.xlu0 %787
    %789 = vrot.lane.b32.xlu0 %v47, 93
    %v790 = vpop.permute.xlu0 %789
    %791 = vrot.lane.b32.xlu0 %v459, 93
    %v792 = vpop.permute.xlu0 %791
    %vm793 = vcmask 760832
    %v794 = vsel %vm793, %v762, %v764
    %v795 = vsel %vm793, %v764, %v766
    %v796 = vsel %vm793, %v766, %v768
    %v797 = vsel %vm793, %v768, %v770
    %v798 = vsel %vm793, %v770, %v772
    %v799 = vsel %vm793, %v772, %v774
    %v800 = vsel %vm793, %v774, %v776
    %v801 = vsel %vm793, %v776, %v778
    %v802 = vsel %vm793, %v778, %v780
    %v803 = vsel %vm793, %v780, %v782
    %v804 = vsel %vm793, %v782, %v784
    %v805 = vsel %vm793, %v784, %v786
    %v806 = vsel %vm793, %v786, %v788
    %v807 = vsel %vm793, %v788, %v790
    %v808 = vsel %vm793, %v790, %v792
    %824 = vst [vmem:[#allocation2 + $0x168] sm:$0x7] %v794
    %825 = vst [vmem:[#allocation2 + $0x170] sm:$0x7] %v795
    %826 = vst [vmem:[#allocation2 + $0x178] sm:$0x7] %v796
    %827 = vst [vmem:[#allocation2 + $0x180] sm:$0x7] %v797
    %828 = vst [vmem:[#allocation2 + $0x188] sm:$0x7] %v798
    %829 = vst [vmem:[#allocation2 + $0x190] sm:$0x7] %v799
    %830 = vst [vmem:[#allocation2 + $0x198] sm:$0x7] %v800
    %831 = vst [vmem:[#allocation2 + $0x1a0] sm:$0x7] %v801
    %832 = vst [vmem:[#allocation2 + $0x1a8] sm:$0x7] %v802
    %833 = vst [vmem:[#allocation2 + $0x1b0] sm:$0x7] %v803
    %834 = vst [vmem:[#allocation2 + $0x1b8] sm:$0x7] %v804
    %835 = vst [vmem:[#allocation2 + $0x1c0] sm:$0x7] %v805
    %836 = vst [vmem:[#allocation2 + $0x1c8] sm:$0x7] %v806
    %837 = vst [vmem:[#allocation2 + $0x1d0] sm:$0x7] %v807
    %838 = vst.msk [vmem:[#allocation2 + $0x1d8] sm:$0x7] %vm84, %v808
    %v839 = vrot.slane %v459, 5
    %840 = vrot.lane.b32.xlu0 %v86, 92
    %v841 = vpop.permute.xlu0 %840
    %842 = vrot.lane.b32.xlu0 %v87, 92
    %v843 = vpop.permute.xlu0 %842
    %844 = vrot.lane.b32.xlu0 %v88, 92
    %v845 = vpop.permute.xlu0 %844
    %846 = vrot.lane.b32.xlu0 %v89, 92
    %v847 = vpop.permute.xlu0 %846
    %848 = vrot.lane.b32.xlu0 %v90, 92
    %v849 = vpop.permute.xlu0 %848
    %850 = vrot.lane.b32.xlu0 %v91, 92
    %v851 = vpop.permute.xlu0 %850
    %852 = vrot.lane.b32.xlu0 %v92, 92
    %v853 = vpop.permute.xlu0 %852
    %854 = vrot.lane.b32.xlu0 %v93, 92
    %v855 = vpop.permute.xlu0 %854
    %856 = vrot.lane.b32.xlu0 %v94, 92
    %v857 = vpop.permute.xlu0 %856
    %858 = vrot.lane.b32.xlu0 %v95, 92
    %v859 = vpop.permute.xlu0 %858
    %860 = vrot.lane.b32.xlu0 %v96, 92
    %v861 = vpop.permute.xlu0 %860
    %862 = vrot.lane.b32.xlu0 %v97, 92
    %v863 = vpop.permute.xlu0 %862
    %864 = vrot.lane.b32.xlu0 %v98, 92
    %v865 = vpop.permute.xlu0 %864
    %866 = vrot.lane.b32.xlu0 %v99, 92
    %v867 = vpop.permute.xlu0 %866
    %868 = vrot.lane.b32.xlu0 %v100, 92
    %v869 = vpop.permute.xlu0 %868
    %870 = vrot.lane.b32.xlu0 %v839, 92
    %v871 = vpop.permute.xlu0 %870
    %vm872 = vcmask 752640
    %v873 = vsel %vm872, %v841, %v843
    %v874 = vsel %vm872, %v843, %v845
    %v875 = vsel %vm872, %v845, %v847
    %v876 = vsel %vm872, %v847, %v849
    %v877 = vsel %vm872, %v849, %v851
    %v878 = vsel %vm872, %v851, %v853
    %v879 = vsel %vm872, %v853, %v855
    %v880 = vsel %vm872, %v855, %v857
    %v881 = vsel %vm872, %v857, %v859
    %v882 = vsel %vm872, %v859, %v861
    %v883 = vsel %vm872, %v861, %v863
    %v884 = vsel %vm872, %v863, %v865
    %v885 = vsel %vm872, %v865, %v867
    %v886 = vsel %vm872, %v867, %v869
    %v887 = vsel %vm872, %v869, %v871
    %903 = vst [vmem:[#allocation2 + $0x168] sm:$0x38] %v873
    %904 = vst [vmem:[#allocation2 + $0x170] sm:$0x38] %v874
    %905 = vst [vmem:[#allocation2 + $0x178] sm:$0x38] %v875
    %906 = vst [vmem:[#allocation2 + $0x180] sm:$0x38] %v876
    %907 = vst [vmem:[#allocation2 + $0x188] sm:$0x38] %v877
    %908 = vst [vmem:[#allocation2 + $0x190] sm:$0x38] %v878
    %909 = vst [vmem:[#allocation2 + $0x198] sm:$0x38] %v879
    %910 = vst [vmem:[#allocation2 + $0x1a0] sm:$0x38] %v880
    %911 = vst [vmem:[#allocation2 + $0x1a8] sm:$0x38] %v881
    %912 = vst [vmem:[#allocation2 + $0x1b0] sm:$0x38] %v882
    %913 = vst [vmem:[#allocation2 + $0x1b8] sm:$0x38] %v883
    %914 = vst [vmem:[#allocation2 + $0x1c0] sm:$0x38] %v884
    %915 = vst [vmem:[#allocation2 + $0x1c8] sm:$0x38] %v885
    %916 = vst [vmem:[#allocation2 + $0x1d0] sm:$0x38] %v886
    %917 = vst.msk [vmem:[#allocation2 + $0x1d8] sm:$0x38] %vm175, %v887
    %v918 = vrot.slane %v459, 2
    %919 = vrot.lane.b32.xlu0 %v177, 64
    %v920 = vpop.permute.xlu0 %919
    %921 = vrot.lane.b32.xlu0 %v178, 64
    %v922 = vpop.permute.xlu0 %921
    %923 = vrot.lane.b32.xlu0 %v179, 64
    %v924 = vpop.permute.xlu0 %923
    %925 = vrot.lane.b32.xlu0 %v180, 64
    %v926 = vpop.permute.xlu0 %925
    %927 = vrot.lane.b32.xlu0 %v181, 64
    %v928 = vpop.permute.xlu0 %927
    %929 = vrot.lane.b32.xlu0 %v182, 64
    %v930 = vpop.permute.xlu0 %929
    %931 = vrot.lane.b32.xlu0 %v183, 64
    %v932 = vpop.permute.xlu0 %931
    %933 = vrot.lane.b32.xlu0 %v184, 64
    %v934 = vpop.permute.xlu0 %933
    %935 = vrot.lane.b32.xlu0 %v185, 64
    %v936 = vpop.permute.xlu0 %935
    %937 = vrot.lane.b32.xlu0 %v186, 64
    %v938 = vpop.permute.xlu0 %937
    %939 = vrot.lane.b32.xlu0 %v187, 64
    %v940 = vpop.permute.xlu0 %939
    %941 = vrot.lane.b32.xlu0 %v188, 64
    %v942 = vpop.permute.xlu0 %941
    %943 = vrot.lane.b32.xlu0 %v189, 64
    %v944 = vpop.permute.xlu0 %943
    %945 = vrot.lane.b32.xlu0 %v190, 64
    %v946 = vpop.permute.xlu0 %945
    %947 = vrot.lane.b32.xlu0 %v191, 64
    %v948 = vpop.permute.xlu0 %947
    %949 = vrot.lane.b32.xlu0 %v918, 64
    %v950 = vpop.permute.xlu0 %949
    %vm951 = vcmask 523264
    %v952 = vsel %vm951, %v920, %v922
    %v953 = vsel %vm951, %v922, %v924
    %v954 = vsel %vm951, %v924, %v926
    %v955 = vsel %vm951, %v926, %v928
    %v956 = vsel %vm951, %v928, %v930
    %v957 = vsel %vm951, %v930, %v932
    %v958 = vsel %vm951, %v932, %v934
    %v959 = vsel %vm951, %v934, %v936
    %v960 = vsel %vm951, %v936, %v938
    %v961 = vsel %vm951, %v938, %v940
    %v962 = vsel %vm951, %v940, %v942
    %v963 = vsel %vm951, %v942, %v944
    %v964 = vsel %vm951, %v944, %v946
    %v965 = vsel %vm951, %v946, %v948
    %v966 = vsel %vm951, %v948, %v950
    %982 = vst [vmem:[#allocation2 + $0x168] sm:$0xc0] %v952
    %983 = vst [vmem:[#allocation2 + $0x170] sm:$0xc0] %v953
    %984 = vst [vmem:[#allocation2 + $0x178] sm:$0xc0] %v954
    %985 = vst [vmem:[#allocation2 + $0x180] sm:$0xc0] %v955
    %986 = vst [vmem:[#allocation2 + $0x188] sm:$0xc0] %v956
    %987 = vst [vmem:[#allocation2 + $0x190] sm:$0xc0] %v957
    %988 = vst [vmem:[#allocation2 + $0x198] sm:$0xc0] %v958
    %989 = vst [vmem:[#allocation2 + $0x1a0] sm:$0xc0] %v959
    %990 = vst [vmem:[#allocation2 + $0x1a8] sm:$0xc0] %v960
    %991 = vst [vmem:[#allocation2 + $0x1b0] sm:$0xc0] %v961
    %992 = vst [vmem:[#allocation2 + $0x1b8] sm:$0xc0] %v962
    %993 = vst [vmem:[#allocation2 + $0x1c0] sm:$0xc0] %v963
    %994 = vst [vmem:[#allocation2 + $0x1c8] sm:$0xc0] %v964
    %995 = vst [vmem:[#allocation2 + $0x1d0] sm:$0xc0] %v965
    %996 = vst.msk [vmem:[#allocation2 + $0x1d8] sm:$0xc0] %vm266, %v966
    %997 = vst [vmem:[#allocation2 + $0x1e0] sm:$0x1] %v952
    %998 = vst [vmem:[#allocation2 + $0x1e8] sm:$0x1] %v953
    %999 = vst [vmem:[#allocation2 + $0x1f0] sm:$0x1] %v954
    %1000 = vst [vmem:[#allocation2 + $0x1f8] sm:$0x1] %v955
    %1001 = vst [vmem:[#allocation2 + $0x200] sm:$0x1] %v956
    %1002 = vst [vmem:[#allocation2 + $0x208] sm:$0x1] %v957
    %1003 = vst [vmem:[#allocation2 + $0x210] sm:$0x1] %v958
    %1004 = vst [vmem:[#allocation2 + $0x218] sm:$0x1] %v959
    %1005 = vst [vmem:[#allocation2 + $0x220] sm:$0x1] %v960
    %1006 = vst [vmem:[#allocation2 + $0x228] sm:$0x1] %v961
    %1007 = vst [vmem:[#allocation2 + $0x230] sm:$0x1] %v962
    %1008 = vst [vmem:[#allocation2 + $0x238] sm:$0x1] %v963
    %1009 = vst [vmem:[#allocation2 + $0x240] sm:$0x1] %v964
    %1010 = vst [vmem:[#allocation2 + $0x248] sm:$0x1] %v965
    %1011 = vst.msk [vmem:[#allocation2 + $0x250] sm:$0x1] %vm282, %v966
    %v1012 = vrot.slane %v459, 7
    %1013 = vrot.lane.b32.xlu0 %v284, 63
    %v1014 = vpop.permute.xlu0 %1013
    %1015 = vrot.lane.b32.xlu0 %v285, 63
    %v1016 = vpop.permute.xlu0 %1015
    %1017 = vrot.lane.b32.xlu0 %v286, 63
    %v1018 = vpop.permute.xlu0 %1017
    %1019 = vrot.lane.b32.xlu0 %v287, 63
    %v1020 = vpop.permute.xlu0 %1019
    %1021 = vrot.lane.b32.xlu0 %v288, 63
    %v1022 = vpop.permute.xlu0 %1021
    %1023 = vrot.lane.b32.xlu0 %v289, 63
    %v1024 = vpop.permute.xlu0 %1023
    %1025 = vrot.lane.b32.xlu0 %v290, 63
    %v1026 = vpop.permute.xlu0 %1025
    %1027 = vrot.lane.b32.xlu0 %v291, 63
    %v1028 = vpop.permute.xlu0 %1027
    %1029 = vrot.lane.b32.xlu0 %v292, 63
    %v1030 = vpop.permute.xlu0 %1029
    %1031 = vrot.lane.b32.xlu0 %v293, 63
    %v1032 = vpop.permute.xlu0 %1031
    %1033 = vrot.lane.b32.xlu0 %v294, 63
    %v1034 = vpop.permute.xlu0 %1033
    %1035 = vrot.lane.b32.xlu0 %v295, 63
    %v1036 = vpop.permute.xlu0 %1035
    %1037 = vrot.lane.b32.xlu0 %v296, 63
    %v1038 = vpop.permute.xlu0 %1037
    %1039 = vrot.lane.b32.xlu0 %v297, 63
    %v1040 = vpop.permute.xlu0 %1039
    %1041 = vrot.lane.b32.xlu0 %v298, 63
    %v1042 = vpop.permute.xlu0 %1041
    %1043 = vrot.lane.b32.xlu0 %v1012, 63
    %v1044 = vpop.permute.xlu0 %1043
    %vm1045 = vcmask 515072
    %v1046 = vsel %vm1045, %v1014, %v1016
    %v1047 = vsel %vm1045, %v1016, %v1018
    %v1048 = vsel %vm1045, %v1018, %v1020
    %v1049 = vsel %vm1045, %v1020, %v1022
    %v1050 = vsel %vm1045, %v1022, %v1024
    %v1051 = vsel %vm1045, %v1024, %v1026
    %v1052 = vsel %vm1045, %v1026, %v1028
    %v1053 = vsel %vm1045, %v1028, %v1030
    %v1054 = vsel %vm1045, %v1030, %v1032
    %v1055 = vsel %vm1045, %v1032, %v1034
    %v1056 = vsel %vm1045, %v1034, %v1036
    %v1057 = vsel %vm1045, %v1036, %v1038
    %v1058 = vsel %vm1045, %v1038, %v1040
    %v1059 = vsel %vm1045, %v1040, %v1042
    %v1060 = vsel %vm1045, %v1042, %v1044
    %1076 = vst [vmem:[#allocation2 + $0x1e0] sm:$0xe] %v1046
    %1077 = vst [vmem:[#allocation2 + $0x1e8] sm:$0xe] %v1047
    %1078 = vst [vmem:[#allocation2 + $0x1f0] sm:$0xe] %v1048
    %1079 = vst [vmem:[#allocation2 + $0x1f8] sm:$0xe] %v1049
    %1080 = vst [vmem:[#allocation2 + $0x200] sm:$0xe] %v1050
    %1081 = vst [vmem:[#allocation2 + $0x208] sm:$0xe] %v1051
    %1082 = vst [vmem:[#allocation2 + $0x210] sm:$0xe] %v1052
    %1083 = vst [vmem:[#allocation2 + $0x218] sm:$0xe] %v1053
    %1084 = vst [vmem:[#allocation2 + $0x220] sm:$0xe] %v1054
    %1085 = vst [vmem:[#allocation2 + $0x228] sm:$0xe] %v1055
    %1086 = vst [vmem:[#allocation2 + $0x230] sm:$0xe] %v1056
    %1087 = vst [vmem:[#allocation2 + $0x238] sm:$0xe] %v1057
    %1088 = vst [vmem:[#allocation2 + $0x240] sm:$0xe] %v1058
    %1089 = vst [vmem:[#allocation2 + $0x248] sm:$0xe] %v1059
    %1090 = vst.msk [vmem:[#allocation2 + $0x250] sm:$0xe] %vm373, %v1060
    %1091 = vrot.lane.b32.xlu0 %v375, 62
    %v1092 = vpop.permute.xlu0 %1091
    %1093 = vrot.lane.b32.xlu0 %v40, 62
    %v1094 = vpop.permute.xlu0 %1093
    %1095 = vrot.lane.b32.xlu0 %v376, 62
    %v1096 = vpop.permute.xlu0 %1095
    %1097 = vrot.lane.b32.xlu0 %v41, 62
    %v1098 = vpop.permute.xlu0 %1097
    %1099 = vrot.lane.b32.xlu0 %v377, 62
    %v1100 = vpop.permute.xlu0 %1099
    %1101 = vrot.lane.b32.xlu0 %v42, 62
    %v1102 = vpop.permute.xlu0 %1101
    %1103 = vrot.lane.b32.xlu0 %v378, 62
    %v1104 = vpop.permute.xlu0 %1103
    %1105 = vrot.lane.b32.xlu0 %v43, 62
    %v1106 = vpop.permute.xlu0 %1105
    %1107 = vrot.lane.b32.xlu0 %v379, 62
    %v1108 = vpop.permute.xlu0 %1107
    %1109 = vrot.lane.b32.xlu0 %v44, 62
    %v1110 = vpop.permute.xlu0 %1109
    %1111 = vrot.lane.b32.xlu0 %v380, 62
    %v1112 = vpop.permute.xlu0 %1111
    %1113 = vrot.lane.b32.xlu0 %v45, 62
    %v1114 = vpop.permute.xlu0 %1113
    %1115 = vrot.lane.b32.xlu0 %v381, 62
    %v1116 = vpop.permute.xlu0 %1115
    %1117 = vrot.lane.b32.xlu0 %v46, 62
    %v1118 = vpop.permute.xlu0 %1117
    %1119 = vrot.lane.b32.xlu0 %v382, 62
    %v1120 = vpop.permute.xlu0 %1119
    %1121 = vrot.lane.b32.xlu0 %v47, 62
    %v1122 = vpop.permute.xlu0 %1121
    %vm1123 = vcmask 506880
    %v1124 = vsel %vm1123, %v1092, %v1094
    %v1125 = vsel %vm1123, %v1094, %v1096
    %v1126 = vsel %vm1123, %v1096, %v1098
    %v1127 = vsel %vm1123, %v1098, %v1100
    %v1128 = vsel %vm1123, %v1100, %v1102
    %v1129 = vsel %vm1123, %v1102, %v1104
    %v1130 = vsel %vm1123, %v1104, %v1106
    %v1131 = vsel %vm1123, %v1106, %v1108
    %v1132 = vsel %vm1123, %v1108, %v1110
    %v1133 = vsel %vm1123, %v1110, %v1112
    %v1134 = vsel %vm1123, %v1112, %v1114
    %v1135 = vsel %vm1123, %v1114, %v1116
    %v1136 = vsel %vm1123, %v1116, %v1118
    %v1137 = vsel %vm1123, %v1118, %v1120
    %v1138 = vsel %vm1123, %v1120, %v1122
    %1154 = vst [vmem:[#allocation2 + $0x1e0] sm:$0x70] %v1124
    %1155 = vst [vmem:[#allocation2 + $0x1e8] sm:$0x70] %v1125
    %1156 = vst [vmem:[#allocation2 + $0x1f0] sm:$0x70] %v1126
    %1157 = vst [vmem:[#allocation2 + $0x1f8] sm:$0x70] %v1127
    %1158 = vst [vmem:[#allocation2 + $0x200] sm:$0x70] %v1128
    %1159 = vst [vmem:[#allocation2 + $0x208] sm:$0x70] %v1129
    %1160 = vst [vmem:[#allocation2 + $0x210] sm:$0x70] %v1130
    %1161 = vst [vmem:[#allocation2 + $0x218] sm:$0x70] %v1131
    %1162 = vst [vmem:[#allocation2 + $0x220] sm:$0x70] %v1132
    %1163 = vst [vmem:[#allocation2 + $0x228] sm:$0x70] %v1133
    %1164 = vst [vmem:[#allocation2 + $0x230] sm:$0x70] %v1134
    %1165 = vst [vmem:[#allocation2 + $0x238] sm:$0x70] %v1135
    %1166 = vst [vmem:[#allocation2 + $0x240] sm:$0x70] %v1136
    %1167 = vst [vmem:[#allocation2 + $0x248] sm:$0x70] %v1137
    %1168 = vst.msk [vmem:[#allocation2 + $0x250] sm:$0x70] %vm457, %v1138
    %1169 = vrot.lane.b32.xlu0 %v460, 61
    %v1170 = vpop.permute.xlu0 %1169
    %1171 = vrot.lane.b32.xlu0 %v461, 61
    %v1172 = vpop.permute.xlu0 %1171
    %1173 = vrot.lane.b32.xlu0 %v462, 61
    %v1174 = vpop.permute.xlu0 %1173
    %1175 = vrot.lane.b32.xlu0 %v463, 61
    %v1176 = vpop.permute.xlu0 %1175
    %1177 = vrot.lane.b32.xlu0 %v464, 61
    %v1178 = vpop.permute.xlu0 %1177
    %1179 = vrot.lane.b32.xlu0 %v465, 61
    %v1180 = vpop.permute.xlu0 %1179
    %1181 = vrot.lane.b32.xlu0 %v466, 61
    %v1182 = vpop.permute.xlu0 %1181
    %1183 = vrot.lane.b32.xlu0 %v467, 61
    %v1184 = vpop.permute.xlu0 %1183
    %1185 = vrot.lane.b32.xlu0 %v468, 61
    %v1186 = vpop.permute.xlu0 %1185
    %1187 = vrot.lane.b32.xlu0 %v469, 61
    %v1188 = vpop.permute.xlu0 %1187
    %1189 = vrot.lane.b32.xlu0 %v470, 61
    %v1190 = vpop.permute.xlu0 %1189
    %1191 = vrot.lane.b32.xlu0 %v471, 61
    %v1192 = vpop.permute.xlu0 %1191
    %1193 = vrot.lane.b32.xlu0 %v472, 61
    %v1194 = vpop.permute.xlu0 %1193
    %1195 = vrot.lane.b32.xlu0 %v473, 61
    %v1196 = vpop.permute.xlu0 %1195
    %1197 = vrot.lane.b32.xlu0 %v474, 61
    %v1198 = vpop.permute.xlu0 %1197
    %1199 = vrot.lane.b32.xlu0 %v475, 61
    %v1200 = vpop.permute.xlu0 %1199
    %vm1201 = vcmask 498688
    %v1202 = vsel %vm1201, %v1170, %v1172
    %v1203 = vsel %vm1201, %v1172, %v1174
    %v1204 = vsel %vm1201, %v1174, %v1176
    %v1205 = vsel %vm1201, %v1176, %v1178
    %v1206 = vsel %vm1201, %v1178, %v1180
    %v1207 = vsel %vm1201, %v1180, %v1182
    %v1208 = vsel %vm1201, %v1182, %v1184
    %v1209 = vsel %vm1201, %v1184, %v1186
    %v1210 = vsel %vm1201, %v1186, %v1188
    %v1211 = vsel %vm1201, %v1188, %v1190
    %v1212 = vsel %vm1201, %v1190, %v1192
    %v1213 = vsel %vm1201, %v1192, %v1194
    %v1214 = vsel %vm1201, %v1194, %v1196
    %v1215 = vsel %vm1201, %v1196, %v1198
    %v1216 = vsel %vm1201, %v1198, %v1200
    %1232 = vst [vmem:[#allocation2 + $0x1e0] sm:$0x80] %v1202
    %1233 = vst [vmem:[#allocation2 + $0x1e8] sm:$0x80] %v1203
    %1234 = vst [vmem:[#allocation2 + $0x1f0] sm:$0x80] %v1204
    %1235 = vst [vmem:[#allocation2 + $0x1f8] sm:$0x80] %v1205
    %1236 = vst [vmem:[#allocation2 + $0x200] sm:$0x80] %v1206
    %1237 = vst [vmem:[#allocation2 + $0x208] sm:$0x80] %v1207
    %1238 = vst [vmem:[#allocation2 + $0x210] sm:$0x80] %v1208
    %1239 = vst [vmem:[#allocation2 + $0x218] sm:$0x80] %v1209
    %1240 = vst [vmem:[#allocation2 + $0x220] sm:$0x80] %v1210
    %1241 = vst [vmem:[#allocation2 + $0x228] sm:$0x80] %v1211
    %1242 = vst [vmem:[#allocation2 + $0x230] sm:$0x80] %v1212
    %1243 = vst [vmem:[#allocation2 + $0x238] sm:$0x80] %v1213
    %1244 = vst [vmem:[#allocation2 + $0x240] sm:$0x80] %v1214
    %1245 = vst [vmem:[#allocation2 + $0x248] sm:$0x80] %v1215
    %1246 = vst.msk [vmem:[#allocation2 + $0x250] sm:$0x80] %vm553, %v1216
    %1247 = vst [vmem:[#allocation2 + $0x258] sm:$0x3] %v1202
    %1248 = vst [vmem:[#allocation2 + $0x260] sm:$0x3] %v1203
    %1249 = vst [vmem:[#allocation2 + $0x268] sm:$0x3] %v1204
    %1250 = vst [vmem:[#allocation2 + $0x270] sm:$0x3] %v1205
    %1251 = vst [vmem:[#allocation2 + $0x278] sm:$0x3] %v1206
    %1252 = vst [vmem:[#allocation2 + $0x280] sm:$0x3] %v1207
    %1253 = vst [vmem:[#allocation2 + $0x288] sm:$0x3] %v1208
    %1254 = vst [vmem:[#allocation2 + $0x290] sm:$0x3] %v1209
    %1255 = vst [vmem:[#allocation2 + $0x298] sm:$0x3] %v1210
    %1256 = vst [vmem:[#allocation2 + $0x2a0] sm:$0x3] %v1211
    %1257 = vst [vmem:[#allocation2 + $0x2a8] sm:$0x3] %v1212
    %1258 = vst [vmem:[#allocation2 + $0x2b0] sm:$0x3] %v1213
    %1259 = vst [vmem:[#allocation2 + $0x2b8] sm:$0x3] %v1214
    %1260 = vst [vmem:[#allocation2 + $0x2c0] sm:$0x3] %v1215
    %1261 = vst.msk [vmem:[#allocation2 + $0x2c8] sm:$0x3] %vm569, %v1216
    %1262 = vrot.lane.b32.xlu0 %v571, 60
    %v1263 = vpop.permute.xlu0 %1262
    %1264 = vrot.lane.b32.xlu0 %v572, 60
    %v1265 = vpop.permute.xlu0 %1264
    %1266 = vrot.lane.b32.xlu0 %v573, 60
    %v1267 = vpop.permute.xlu0 %1266
    %1268 = vrot.lane.b32.xlu0 %v574, 60
    %v1269 = vpop.permute.xlu0 %1268
    %1270 = vrot.lane.b32.xlu0 %v575, 60
    %v1271 = vpop.permute.xlu0 %1270
    %1272 = vrot.lane.b32.xlu0 %v576, 60
    %v1273 = vpop.permute.xlu0 %1272
    %1274 = vrot.lane.b32.xlu0 %v577, 60
    %v1275 = vpop.permute.xlu0 %1274
    %1276 = vrot.lane.b32.xlu0 %v578, 60
    %v1277 = vpop.permute.xlu0 %1276
    %1278 = vrot.lane.b32.xlu0 %v579, 60
    %v1279 = vpop.permute.xlu0 %1278
    %1280 = vrot.lane.b32.xlu0 %v580, 60
    %v1281 = vpop.permute.xlu0 %1280
    %1282 = vrot.lane.b32.xlu0 %v581, 60
    %v1283 = vpop.permute.xlu0 %1282
    %1284 = vrot.lane.b32.xlu0 %v582, 60
    %v1285 = vpop.permute.xlu0 %1284
    %1286 = vrot.lane.b32.xlu0 %v583, 60
    %v1287 = vpop.permute.xlu0 %1286
    %1288 = vrot.lane.b32.xlu0 %v584, 60
    %v1289 = vpop.permute.xlu0 %1288
    %1290 = vrot.lane.b32.xlu0 %v585, 60
    %v1291 = vpop.permute.xlu0 %1290
    %1292 = vrot.lane.b32.xlu0 %v586, 60
    %v1293 = vpop.permute.xlu0 %1292
    %vm1294 = vcmask 490496
    %v1295 = vsel %vm1294, %v1263, %v1265
    %v1296 = vsel %vm1294, %v1265, %v1267
    %v1297 = vsel %vm1294, %v1267, %v1269
    %v1298 = vsel %vm1294, %v1269, %v1271
    %v1299 = vsel %vm1294, %v1271, %v1273
    %v1300 = vsel %vm1294, %v1273, %v1275
    %v1301 = vsel %vm1294, %v1275, %v1277
    %v1302 = vsel %vm1294, %v1277, %v1279
    %v1303 = vsel %vm1294, %v1279, %v1281
    %v1304 = vsel %vm1294, %v1281, %v1283
    %v1305 = vsel %vm1294, %v1283, %v1285
    %v1306 = vsel %vm1294, %v1285, %v1287
    %v1307 = vsel %vm1294, %v1287, %v1289
    %v1308 = vsel %vm1294, %v1289, %v1291
    %v1309 = vsel %vm1294, %v1291, %v1293
    %1325 = vst [vmem:[#allocation2 + $0x258] sm:$0x1c] %v1295
    %1326 = vst [vmem:[#allocation2 + $0x260] sm:$0x1c] %v1296
    %1327 = vst [vmem:[#allocation2 + $0x268] sm:$0x1c] %v1297
    %1328 = vst [vmem:[#allocation2 + $0x270] sm:$0x1c] %v1298
    %1329 = vst [vmem:[#allocation2 + $0x278] sm:$0x1c] %v1299
    %1330 = vst [vmem:[#allocation2 + $0x280] sm:$0x1c] %v1300
    %1331 = vst [vmem:[#allocation2 + $0x288] sm:$0x1c] %v1301
    %1332 = vst [vmem:[#allocation2 + $0x290] sm:$0x1c] %v1302
    %1333 = vst [vmem:[#allocation2 + $0x298] sm:$0x1c] %v1303
    %1334 = vst [vmem:[#allocation2 + $0x2a0] sm:$0x1c] %v1304
    %1335 = vst [vmem:[#allocation2 + $0x2a8] sm:$0x1c] %v1305
    %1336 = vst [vmem:[#allocation2 + $0x2b0] sm:$0x1c] %v1306
    %1337 = vst [vmem:[#allocation2 + $0x2b8] sm:$0x1c] %v1307
    %1338 = vst [vmem:[#allocation2 + $0x2c0] sm:$0x1c] %v1308
    %1339 = vst.msk [vmem:[#allocation2 + $0x2c8] sm:$0x1c] %vm664, %v1309
    %1340 = vrot.lane.b32.xlu0 %v666, 32
    %v1341 = vpop.permute.xlu0 %1340
    %1342 = vrot.lane.b32.xlu0 %v667, 32
    %v1343 = vpop.permute.xlu0 %1342
    %1344 = vrot.lane.b32.xlu0 %v668, 32
    %v1345 = vpop.permute.xlu0 %1344
    %1346 = vrot.lane.b32.xlu0 %v669, 32
    %v1347 = vpop.permute.xlu0 %1346
    %1348 = vrot.lane.b32.xlu0 %v670, 32
    %v1349 = vpop.permute.xlu0 %1348
    %1350 = vrot.lane.b32.xlu0 %v671, 32
    %v1351 = vpop.permute.xlu0 %1350
    %1352 = vrot.lane.b32.xlu0 %v672, 32
    %v1353 = vpop.permute.xlu0 %1352
    %1354 = vrot.lane.b32.xlu0 %v673, 32
    %v1355 = vpop.permute.xlu0 %1354
    %1356 = vrot.lane.b32.xlu0 %v674, 32
    %v1357 = vpop.permute.xlu0 %1356
    %1358 = vrot.lane.b32.xlu0 %v675, 32
    %v1359 = vpop.permute.xlu0 %1358
    %1360 = vrot.lane.b32.xlu0 %v676, 32
    %v1361 = vpop.permute.xlu0 %1360
    %1362 = vrot.lane.b32.xlu0 %v677, 32
    %v1363 = vpop.permute.xlu0 %1362
    %1364 = vrot.lane.b32.xlu0 %v678, 32
    %v1365 = vpop.permute.xlu0 %1364
    %1366 = vrot.lane.b32.xlu0 %v679, 32
    %v1367 = vpop.permute.xlu0 %1366
    %1368 = vrot.lane.b32.xlu0 %v680, 32
    %v1369 = vpop.permute.xlu0 %1368
    %1370 = vrot.lane.b32.xlu0 %v681, 32
    %v1371 = vpop.permute.xlu0 %1370
    %vm1372 = vcmask 261120
    %v1373 = vsel %vm1372, %v1341, %v1343
    %v1374 = vsel %vm1372, %v1343, %v1345
    %v1375 = vsel %vm1372, %v1345, %v1347
    %v1376 = vsel %vm1372, %v1347, %v1349
    %v1377 = vsel %vm1372, %v1349, %v1351
    %v1378 = vsel %vm1372, %v1351, %v1353
    %v1379 = vsel %vm1372, %v1353, %v1355
    %v1380 = vsel %vm1372, %v1355, %v1357
    %v1381 = vsel %vm1372, %v1357, %v1359
    %v1382 = vsel %vm1372, %v1359, %v1361
    %v1383 = vsel %vm1372, %v1361, %v1363
    %v1384 = vsel %vm1372, %v1363, %v1365
    %v1385 = vsel %vm1372, %v1365, %v1367
    %v1386 = vsel %vm1372, %v1367, %v1369
    %v1387 = vsel %vm1372, %v1369, %v1371
    %1403 = vst [vmem:[#allocation2 + $0x258] sm:$0xe0] %v1373
    %1404 = vst [vmem:[#allocation2 + $0x260] sm:$0xe0] %v1374
    %1405 = vst [vmem:[#allocation2 + $0x268] sm:$0xe0] %v1375
    %1406 = vst [vmem:[#allocation2 + $0x270] sm:$0xe0] %v1376
    %1407 = vst [vmem:[#allocation2 + $0x278] sm:$0xe0] %v1377
    %1408 = vst [vmem:[#allocation2 + $0x280] sm:$0xe0] %v1378
    %1409 = vst [vmem:[#allocation2 + $0x288] sm:$0xe0] %v1379
    %1410 = vst [vmem:[#allocation2 + $0x290] sm:$0xe0] %v1380
    %1411 = vst [vmem:[#allocation2 + $0x298] sm:$0xe0] %v1381
    %1412 = vst [vmem:[#allocation2 + $0x2a0] sm:$0xe0] %v1382
    %1413 = vst [vmem:[#allocation2 + $0x2a8] sm:$0xe0] %v1383
    %1414 = vst [vmem:[#allocation2 + $0x2b0] sm:$0xe0] %v1384
    %1415 = vst [vmem:[#allocation2 + $0x2b8] sm:$0xe0] %v1385
    %1416 = vst [vmem:[#allocation2 + $0x2c0] sm:$0xe0] %v1386
    %1417 = vst.msk [vmem:[#allocation2 + $0x2c8] sm:$0xe0] %vm759, %v1387
    %1418 = vrot.lane.b32.xlu0 %v40, 31
    %v1419 = vpop.permute.xlu0 %1418
    %1420 = vrot.lane.b32.xlu0 %v56, 31
    %v1421 = vpop.permute.xlu0 %1420
    %1422 = vrot.lane.b32.xlu0 %v41, 31
    %v1423 = vpop.permute.xlu0 %1422
    %1424 = vrot.lane.b32.xlu0 %v57, 31
    %v1425 = vpop.permute.xlu0 %1424
    %1426 = vrot.lane.b32.xlu0 %v42, 31
    %v1427 = vpop.permute.xlu0 %1426
    %1428 = vrot.lane.b32.xlu0 %v58, 31
    %v1429 = vpop.permute.xlu0 %1428
    %1430 = vrot.lane.b32.xlu0 %v43, 31
    %v1431 = vpop.permute.xlu0 %1430
    %1432 = vrot.lane.b32.xlu0 %v59, 31
    %v1433 = vpop.permute.xlu0 %1432
    %1434 = vrot.lane.b32.xlu0 %v44, 31
    %v1435 = vpop.permute.xlu0 %1434
    %1436 = vrot.lane.b32.xlu0 %v60, 31
    %v1437 = vpop.permute.xlu0 %1436
    %1438 = vrot.lane.b32.xlu0 %v45, 31
    %v1439 = vpop.permute.xlu0 %1438
    %1440 = vrot.lane.b32.xlu0 %v61, 31
    %v1441 = vpop.permute.xlu0 %1440
    %1442 = vrot.lane.b32.xlu0 %v46, 31
    %v1443 = vpop.permute.xlu0 %1442
    %1444 = vrot.lane.b32.xlu0 %v62, 31
    %v1445 = vpop.permute.xlu0 %1444
    %1446 = vrot.lane.b32.xlu0 %v47, 31
    %v1447 = vpop.permute.xlu0 %1446
    %1448 = vrot.lane.b32.xlu0 %v459, 31
    %v1449 = vpop.permute.xlu0 %1448
    %vm1450 = vcmask 252928
    %v1451 = vsel %vm1450, %v1419, %v1421
    %v1452 = vsel %vm1450, %v1421, %v1423
    %v1453 = vsel %vm1450, %v1423, %v1425
    %v1454 = vsel %vm1450, %v1425, %v1427
    %v1455 = vsel %vm1450, %v1427, %v1429
    %v1456 = vsel %vm1450, %v1429, %v1431
    %v1457 = vsel %vm1450, %v1431, %v1433
    %v1458 = vsel %vm1450, %v1433, %v1435
    %v1459 = vsel %vm1450, %v1435, %v1437
    %v1460 = vsel %vm1450, %v1437, %v1439
    %v1461 = vsel %vm1450, %v1439, %v1441
    %v1462 = vsel %vm1450, %v1441, %v1443
    %v1463 = vsel %vm1450, %v1443, %v1445
    %v1464 = vsel %vm1450, %v1445, %v1447
    %v1465 = vsel %vm1450, %v1447, %v1449
    %1481 = vst [vmem:[#allocation2 + $0x2d0] sm:$0x7] %v1451
    %1482 = vst [vmem:[#allocation2 + $0x2d8] sm:$0x7] %v1452
    %1483 = vst [vmem:[#allocation2 + $0x2e0] sm:$0x7] %v1453
    %1484 = vst [vmem:[#allocation2 + $0x2e8] sm:$0x7] %v1454
    %1485 = vst [vmem:[#allocation2 + $0x2f0] sm:$0x7] %v1455
    %1486 = vst [vmem:[#allocation2 + $0x2f8] sm:$0x7] %v1456
    %1487 = vst [vmem:[#allocation2 + $0x300] sm:$0x7] %v1457
    %1488 = vst [vmem:[#allocation2 + $0x308] sm:$0x7] %v1458
    %1489 = vst [vmem:[#allocation2 + $0x310] sm:$0x7] %v1459
    %1490 = vst [vmem:[#allocation2 + $0x318] sm:$0x7] %v1460
    %1491 = vst [vmem:[#allocation2 + $0x320] sm:$0x7] %v1461
    %1492 = vst [vmem:[#allocation2 + $0x328] sm:$0x7] %v1462
    %1493 = vst [vmem:[#allocation2 + $0x330] sm:$0x7] %v1463
    %1494 = vst [vmem:[#allocation2 + $0x338] sm:$0x7] %v1464
    %1495 = vst.msk [vmem:[#allocation2 + $0x340] sm:$0x7] %vm84, %v1465
    %1496 = vrot.lane.b32.xlu0 %v86, 30
    %v1497 = vpop.permute.xlu0 %1496
    %1498 = vrot.lane.b32.xlu0 %v87, 30
    %v1499 = vpop.permute.xlu0 %1498
    %1500 = vrot.lane.b32.xlu0 %v88, 30
    %v1501 = vpop.permute.xlu0 %1500
    %1502 = vrot.lane.b32.xlu0 %v89, 30
    %v1503 = vpop.permute.xlu0 %1502
    %1504 = vrot.lane.b32.xlu0 %v90, 30
    %v1505 = vpop.permute.xlu0 %1504
    %1506 = vrot.lane.b32.xlu0 %v91, 30
    %v1507 = vpop.permute.xlu0 %1506
    %1508 = vrot.lane.b32.xlu0 %v92, 30
    %v1509 = vpop.permute.xlu0 %1508
    %1510 = vrot.lane.b32.xlu0 %v93, 30
    %v1511 = vpop.permute.xlu0 %1510
    %1512 = vrot.lane.b32.xlu0 %v94, 30
    %v1513 = vpop.permute.xlu0 %1512
    %1514 = vrot.lane.b32.xlu0 %v95, 30
    %v1515 = vpop.permute.xlu0 %1514
    %1516 = vrot.lane.b32.xlu0 %v96, 30
    %v1517 = vpop.permute.xlu0 %1516
    %1518 = vrot.lane.b32.xlu0 %v97, 30
    %v1519 = vpop.permute.xlu0 %1518
    %1520 = vrot.lane.b32.xlu0 %v98, 30
    %v1521 = vpop.permute.xlu0 %1520
    %1522 = vrot.lane.b32.xlu0 %v99, 30
    %v1523 = vpop.permute.xlu0 %1522
    %1524 = vrot.lane.b32.xlu0 %v100, 30
    %v1525 = vpop.permute.xlu0 %1524
    %1526 = vrot.lane.b32.xlu0 %v839, 30
    %v1527 = vpop.permute.xlu0 %1526
    %vm1528 = vcmask 244736
    %v1529 = vsel %vm1528, %v1497, %v1499
    %v1530 = vsel %vm1528, %v1499, %v1501
    %v1531 = vsel %vm1528, %v1501, %v1503
    %v1532 = vsel %vm1528, %v1503, %v1505
    %v1533 = vsel %vm1528, %v1505, %v1507
    %v1534 = vsel %vm1528, %v1507, %v1509
    %v1535 = vsel %vm1528, %v1509, %v1511
    %v1536 = vsel %vm1528, %v1511, %v1513
    %v1537 = vsel %vm1528, %v1513, %v1515
    %v1538 = vsel %vm1528, %v1515, %v1517
    %v1539 = vsel %vm1528, %v1517, %v1519
    %v1540 = vsel %vm1528, %v1519, %v1521
    %v1541 = vsel %vm1528, %v1521, %v1523
    %v1542 = vsel %vm1528, %v1523, %v1525
    %v1543 = vsel %vm1528, %v1525, %v1527
    %1559 = vst [vmem:[#allocation2 + $0x2d0] sm:$0x38] %v1529
    %1560 = vst [vmem:[#allocation2 + $0x2d8] sm:$0x38] %v1530
    %1561 = vst [vmem:[#allocation2 + $0x2e0] sm:$0x38] %v1531
    %1562 = vst [vmem:[#allocation2 + $0x2e8] sm:$0x38] %v1532
    %1563 = vst [vmem:[#allocation2 + $0x2f0] sm:$0x38] %v1533
    %1564 = vst [vmem:[#allocation2 + $0x2f8] sm:$0x38] %v1534
    %1565 = vst [vmem:[#allocation2 + $0x300] sm:$0x38] %v1535
    %1566 = vst [vmem:[#allocation2 + $0x308] sm:$0x38] %v1536
    %1567 = vst [vmem:[#allocation2 + $0x310] sm:$0x38] %v1537
    %1568 = vst [vmem:[#allocation2 + $0x318] sm:$0x38] %v1538
    %1569 = vst [vmem:[#allocation2 + $0x320] sm:$0x38] %v1539
    %1570 = vst [vmem:[#allocation2 + $0x328] sm:$0x38] %v1540
    %1571 = vst [vmem:[#allocation2 + $0x330] sm:$0x38] %v1541
    %1572 = vst [vmem:[#allocation2 + $0x338] sm:$0x38] %v1542
    %1573 = vst.msk [vmem:[#allocation2 + $0x340] sm:$0x38] %vm175, %v1543
    %1574 = vrot.lane.b32.xlu0 %v177, 29
    %v1575 = vpop.permute.xlu0 %1574
    %1576 = vrot.lane.b32.xlu0 %v178, 29
    %v1577 = vpop.permute.xlu0 %1576
    %1578 = vrot.lane.b32.xlu0 %v179, 29
    %v1579 = vpop.permute.xlu0 %1578
    %1580 = vrot.lane.b32.xlu0 %v180, 29
    %v1581 = vpop.permute.xlu0 %1580
    %1582 = vrot.lane.b32.xlu0 %v181, 29
    %v1583 = vpop.permute.xlu0 %1582
    %1584 = vrot.lane.b32.xlu0 %v182, 29
    %v1585 = vpop.permute.xlu0 %1584
    %1586 = vrot.lane.b32.xlu0 %v183, 29
    %v1587 = vpop.permute.xlu0 %1586
    %1588 = vrot.lane.b32.xlu0 %v184, 29
    %v1589 = vpop.permute.xlu0 %1588
    %1590 = vrot.lane.b32.xlu0 %v185, 29
    %v1591 = vpop.permute.xlu0 %1590
    %1592 = vrot.lane.b32.xlu0 %v186, 29
    %v1593 = vpop.permute.xlu0 %1592
    %1594 = vrot.lane.b32.xlu0 %v187, 29
    %v1595 = vpop.permute.xlu0 %1594
    %1596 = vrot.lane.b32.xlu0 %v188, 29
    %v1597 = vpop.permute.xlu0 %1596
    %1598 = vrot.lane.b32.xlu0 %v189, 29
    %v1599 = vpop.permute.xlu0 %1598
    %1600 = vrot.lane.b32.xlu0 %v190, 29
    %v1601 = vpop.permute.xlu0 %1600
    %1602 = vrot.lane.b32.xlu0 %v191, 29
    %v1603 = vpop.permute.xlu0 %1602
    %1604 = vrot.lane.b32.xlu0 %v918, 29
    %v1605 = vpop.permute.xlu0 %1604
    %vm1606 = vcmask 236544
    %v1607 = vsel %vm1606, %v1575, %v1577
    %v1608 = vsel %vm1606, %v1577, %v1579
    %v1609 = vsel %vm1606, %v1579, %v1581
    %v1610 = vsel %vm1606, %v1581, %v1583
    %v1611 = vsel %vm1606, %v1583, %v1585
    %v1612 = vsel %vm1606, %v1585, %v1587
    %v1613 = vsel %vm1606, %v1587, %v1589
    %v1614 = vsel %vm1606, %v1589, %v1591
    %v1615 = vsel %vm1606, %v1591, %v1593
    %v1616 = vsel %vm1606, %v1593, %v1595
    %v1617 = vsel %vm1606, %v1595, %v1597
    %v1618 = vsel %vm1606, %v1597, %v1599
    %v1619 = vsel %vm1606, %v1599, %v1601
    %v1620 = vsel %vm1606, %v1601, %v1603
    %v1621 = vsel %vm1606, %v1603, %v1605
    %1637 = vst [vmem:[#allocation2 + $0x2d0] sm:$0xc0] %v1607
    %1638 = vst [vmem:[#allocation2 + $0x2d8] sm:$0xc0] %v1608
    %1639 = vst [vmem:[#allocation2 + $0x2e0] sm:$0xc0] %v1609
    %1640 = vst [vmem:[#allocation2 + $0x2e8] sm:$0xc0] %v1610
    %1641 = vst [vmem:[#allocation2 + $0x2f0] sm:$0xc0] %v1611
    %1642 = vst [vmem:[#allocation2 + $0x2f8] sm:$0xc0] %v1612
    %1643 = vst [vmem:[#allocation2 + $0x300] sm:$0xc0] %v1613
    %1644 = vst [vmem:[#allocation2 + $0x308] sm:$0xc0] %v1614
    %1645 = vst [vmem:[#allocation2 + $0x310] sm:$0xc0] %v1615
    %1646 = vst [vmem:[#allocation2 + $0x318] sm:$0xc0] %v1616
    %1647 = vst [vmem:[#allocation2 + $0x320] sm:$0xc0] %v1617
    %1648 = vst [vmem:[#allocation2 + $0x328] sm:$0xc0] %v1618
    %1649 = vst [vmem:[#allocation2 + $0x330] sm:$0xc0] %v1619
    %1650 = vst [vmem:[#allocation2 + $0x338] sm:$0xc0] %v1620
    %1651 = vst.msk [vmem:[#allocation2 + $0x340] sm:$0xc0] %vm266, %v1621
    %1652 = vst [vmem:[#allocation2 + $0x348] sm:$0x1] %v1607
    %1653 = vst [vmem:[#allocation2 + $0x350] sm:$0x1] %v1608
    %1654 = vst [vmem:[#allocation2 + $0x358] sm:$0x1] %v1609
    %1655 = vst [vmem:[#allocation2 + $0x360] sm:$0x1] %v1610
    %1656 = vst [vmem:[#allocation2 + $0x368] sm:$0x1] %v1611
    %1657 = vst [vmem:[#allocation2 + $0x370] sm:$0x1] %v1612
    %1658 = vst [vmem:[#allocation2 + $0x378] sm:$0x1] %v1613
    %1659 = vst [vmem:[#allocation2 + $0x380] sm:$0x1] %v1614
    %1660 = vst [vmem:[#allocation2 + $0x388] sm:$0x1] %v1615
    %1661 = vst [vmem:[#allocation2 + $0x390] sm:$0x1] %v1616
    %1662 = vst [vmem:[#allocation2 + $0x398] sm:$0x1] %v1617
    %1663 = vst [vmem:[#allocation2 + $0x3a0] sm:$0x1] %v1618
    %1664 = vst [vmem:[#allocation2 + $0x3a8] sm:$0x1] %v1619
    %1665 = vst [vmem:[#allocation2 + $0x3b0] sm:$0x1] %v1620
    %1666 = vst.msk [vmem:[#allocation2 + $0x3b8] sm:$0x1] %vm282, %v1621
    %1667 = vrot.lane.b32.xlu0 %v284, 28
    %v1668 = vpop.permute.xlu0 %1667
    %1669 = vrot.lane.b32.xlu0 %v285, 28
    %v1670 = vpop.permute.xlu0 %1669
    %1671 = vrot.lane.b32.xlu0 %v286, 28
    %v1672 = vpop.permute.xlu0 %1671
    %1673 = vrot.lane.b32.xlu0 %v287, 28
    %v1674 = vpop.permute.xlu0 %1673
    %1675 = vrot.lane.b32.xlu0 %v288, 28
    %v1676 = vpop.permute.xlu0 %1675
    %1677 = vrot.lane.b32.xlu0 %v289, 28
    %v1678 = vpop.permute.xlu0 %1677
    %1679 = vrot.lane.b32.xlu0 %v290, 28
    %v1680 = vpop.permute.xlu0 %1679
    %1681 = vrot.lane.b32.xlu0 %v291, 28
    %v1682 = vpop.permute.xlu0 %1681
    %1683 = vrot.lane.b32.xlu0 %v292, 28
    %v1684 = vpop.permute.xlu0 %1683
    %1685 = vrot.lane.b32.xlu0 %v293, 28
    %v1686 = vpop.permute.xlu0 %1685
    %1687 = vrot.lane.b32.xlu0 %v294, 28
    %v1688 = vpop.permute.xlu0 %1687
    %1689 = vrot.lane.b32.xlu0 %v295, 28
    %v1690 = vpop.permute.xlu0 %1689
    %1691 = vrot.lane.b32.xlu0 %v296, 28
    %v1692 = vpop.permute.xlu0 %1691
    %1693 = vrot.lane.b32.xlu0 %v297, 28
    %v1694 = vpop.permute.xlu0 %1693
    %1695 = vrot.lane.b32.xlu0 %v298, 28
    %v1696 = vpop.permute.xlu0 %1695
    %1697 = vrot.lane.b32.xlu0 %v1012, 28
    %v1698 = vpop.permute.xlu0 %1697
    %vm1699 = vcmask 228352
    %v1700 = vsel %vm1699, %v1668, %v1670
    %v1701 = vsel %vm1699, %v1670, %v1672
    %v1702 = vsel %vm1699, %v1672, %v1674
    %v1703 = vsel %vm1699, %v1674, %v1676
    %v1704 = vsel %vm1699, %v1676, %v1678
    %v1705 = vsel %vm1699, %v1678, %v1680
    %v1706 = vsel %vm1699, %v1680, %v1682
    %v1707 = vsel %vm1699, %v1682, %v1684
    %v1708 = vsel %vm1699, %v1684, %v1686
    %v1709 = vsel %vm1699, %v1686, %v1688
    %v1710 = vsel %vm1699, %v1688, %v1690
    %v1711 = vsel %vm1699, %v1690, %v1692
    %v1712 = vsel %vm1699, %v1692, %v1694
    %v1713 = vsel %vm1699, %v1694, %v1696
    %v1714 = vsel %vm1699, %v1696, %v1698
    %1730 = vst [vmem:[#allocation2 + $0x348] sm:$0xe] %v1700
    %1731 = vst [vmem:[#allocation2 + $0x350] sm:$0xe] %v1701
    %1732 = vst [vmem:[#allocation2 + $0x358] sm:$0xe] %v1702
    %1733 = vst [vmem:[#allocation2 + $0x360] sm:$0xe] %v1703
    %1734 = vst [vmem:[#allocation2 + $0x368] sm:$0xe] %v1704
    %1735 = vst [vmem:[#allocation2 + $0x370] sm:$0xe] %v1705
    %1736 = vst [vmem:[#allocation2 + $0x378] sm:$0xe] %v1706
    %1737 = vst [vmem:[#allocation2 + $0x380] sm:$0xe] %v1707
    %1738 = vst [vmem:[#allocation2 + $0x388] sm:$0xe] %v1708
    %1739 = vst [vmem:[#allocation2 + $0x390] sm:$0xe] %v1709
    %1740 = vst [vmem:[#allocation2 + $0x398] sm:$0xe] %v1710
    %1741 = vst [vmem:[#allocation2 + $0x3a0] sm:$0xe] %v1711
    %1742 = vst [vmem:[#allocation2 + $0x3a8] sm:$0xe] %v1712
    %1743 = vst [vmem:[#allocation2 + $0x3b0] sm:$0xe] %v1713
    %1744 = vst.msk [vmem:[#allocation2 + $0x3b8] sm:$0xe] %vm373, %v1714
    %1752 = vst [vmem:[#allocation2 + $0x348] sm:$0x70] %v40
    %1753 = vst [vmem:[#allocation2 + $0x350] sm:$0x70] %v376
    %1754 = vst [vmem:[#allocation2 + $0x358] sm:$0x70] %v41
    %1755 = vst [vmem:[#allocation2 + $0x360] sm:$0x70] %v377
    %1756 = vst [vmem:[#allocation2 + $0x368] sm:$0x70] %v42
    %1757 = vst [vmem:[#allocation2 + $0x370] sm:$0x70] %v378
    %1758 = vst [vmem:[#allocation2 + $0x378] sm:$0x70] %v43
    %1759 = vst [vmem:[#allocation2 + $0x380] sm:$0x70] %v379
    %1760 = vst [vmem:[#allocation2 + $0x388] sm:$0x70] %v44
    %1761 = vst [vmem:[#allocation2 + $0x390] sm:$0x70] %v380
    %1762 = vst [vmem:[#allocation2 + $0x398] sm:$0x70] %v45
    %1763 = vst [vmem:[#allocation2 + $0x3a0] sm:$0x70] %v381
    %1764 = vst [vmem:[#allocation2 + $0x3a8] sm:$0x70] %v46
    %1765 = vst [vmem:[#allocation2 + $0x3b0] sm:$0x70] %v382
    %1766 = vst.msk [vmem:[#allocation2 + $0x3b8] sm:$0x70] %vm457, %v47
    %1767 = vrot.lane.b32.xlu0 %v461, 127
    %v1768 = vpop.permute.xlu0 %1767
    %1769 = vrot.lane.b32.xlu0 %v462, 127
    %v1770 = vpop.permute.xlu0 %1769
    %1771 = vrot.lane.b32.xlu0 %v463, 127
    %v1772 = vpop.permute.xlu0 %1771
    %1773 = vrot.lane.b32.xlu0 %v464, 127
    %v1774 = vpop.permute.xlu0 %1773
    %1775 = vrot.lane.b32.xlu0 %v465, 127
    %v1776 = vpop.permute.xlu0 %1775
    %1777 = vrot.lane.b32.xlu0 %v466, 127
    %v1778 = vpop.permute.xlu0 %1777
    %1779 = vrot.lane.b32.xlu0 %v467, 127
    %v1780 = vpop.permute.xlu0 %1779
    %1781 = vrot.lane.b32.xlu0 %v468, 127
    %v1782 = vpop.permute.xlu0 %1781
    %1783 = vrot.lane.b32.xlu0 %v469, 127
    %v1784 = vpop.permute.xlu0 %1783
    %1785 = vrot.lane.b32.xlu0 %v470, 127
    %v1786 = vpop.permute.xlu0 %1785
    %1787 = vrot.lane.b32.xlu0 %v471, 127
    %v1788 = vpop.permute.xlu0 %1787
    %1789 = vrot.lane.b32.xlu0 %v472, 127
    %v1790 = vpop.permute.xlu0 %1789
    %1791 = vrot.lane.b32.xlu0 %v473, 127
    %v1792 = vpop.permute.xlu0 %1791
    %1793 = vrot.lane.b32.xlu0 %v474, 127
    %v1794 = vpop.permute.xlu0 %1793
    %1795 = vrot.lane.b32.xlu0 %v475, 127
    %v1796 = vpop.permute.xlu0 %1795
    %v1797 = vsel %vm131, %v1768, %v1770
    %v1798 = vsel %vm131, %v1770, %v1772
    %v1799 = vsel %vm131, %v1772, %v1774
    %v1800 = vsel %vm131, %v1774, %v1776
    %v1801 = vsel %vm131, %v1776, %v1778
    %v1802 = vsel %vm131, %v1778, %v1780
    %v1803 = vsel %vm131, %v1780, %v1782
    %v1804 = vsel %vm131, %v1782, %v1784
    %v1805 = vsel %vm131, %v1784, %v1786
    %v1806 = vsel %vm131, %v1786, %v1788
    %v1807 = vsel %vm131, %v1788, %v1790
    %v1808 = vsel %vm131, %v1790, %v1792
    %v1809 = vsel %vm131, %v1792, %v1794
    %v1810 = vsel %vm131, %v1794, %v1796
    %1826 = vst [vmem:[#allocation2 + $0x348] sm:$0x80] %v1797
    %1827 = vst [vmem:[#allocation2 + $0x350] sm:$0x80] %v1798
    %1828 = vst [vmem:[#allocation2 + $0x358] sm:$0x80] %v1799
    %1829 = vst [vmem:[#allocation2 + $0x360] sm:$0x80] %v1800
    %1830 = vst [vmem:[#allocation2 + $0x368] sm:$0x80] %v1801
    %1831 = vst [vmem:[#allocation2 + $0x370] sm:$0x80] %v1802
    %1832 = vst [vmem:[#allocation2 + $0x378] sm:$0x80] %v1803
    %1833 = vst [vmem:[#allocation2 + $0x380] sm:$0x80] %v1804
    %1834 = vst [vmem:[#allocation2 + $0x388] sm:$0x80] %v1805
    %1835 = vst [vmem:[#allocation2 + $0x390] sm:$0x80] %v1806
    %1836 = vst [vmem:[#allocation2 + $0x398] sm:$0x80] %v1807
    %1837 = vst [vmem:[#allocation2 + $0x3a0] sm:$0x80] %v1808
    %1838 = vst [vmem:[#allocation2 + $0x3a8] sm:$0x80] %v1809
    %1839 = vst [vmem:[#allocation2 + $0x3b0] sm:$0x80] %v1810
    %1840 = vst.msk [vmem:[#allocation2 + $0x3b8] sm:$0x80] %vm553, %v1796
    %1841 = vst [vmem:[#allocation2 + $0x3c0] sm:$0x3] %v1797
    %1842 = vst [vmem:[#allocation2 + $0x3c8] sm:$0x3] %v1798
    %1843 = vst [vmem:[#allocation2 + $0x3d0] sm:$0x3] %v1799
    %1844 = vst [vmem:[#allocation2 + $0x3d8] sm:$0x3] %v1800
    %1845 = vst [vmem:[#allocation2 + $0x3e0] sm:$0x3] %v1801
    %1846 = vst [vmem:[#allocation2 + $0x3e8] sm:$0x3] %v1802
    %1847 = vst [vmem:[#allocation2 + $0x3f0] sm:$0x3] %v1803
    %1848 = vst [vmem:[#allocation2 + $0x3f8] sm:$0x3] %v1804
    %1849 = vst [vmem:[#allocation2 + $0x400] sm:$0x3] %v1805
    %1850 = vst [vmem:[#allocation2 + $0x408] sm:$0x3] %v1806
    %1851 = vst [vmem:[#allocation2 + $0x410] sm:$0x3] %v1807
    %1852 = vst [vmem:[#allocation2 + $0x418] sm:$0x3] %v1808
    %1853 = vst [vmem:[#allocation2 + $0x420] sm:$0x3] %v1809
    %1854 = vst [vmem:[#allocation2 + $0x428] sm:$0x3] %v1810
    %1855 = vst.msk [vmem:[#allocation2 + $0x430] sm:$0x3] %vm569, %v1796
    %1856 = vrot.lane.b32.xlu0 %v572, 126
    %v1857 = vpop.permute.xlu0 %1856
    %1858 = vrot.lane.b32.xlu0 %v573, 126
    %v1859 = vpop.permute.xlu0 %1858
    %1860 = vrot.lane.b32.xlu0 %v574, 126
    %v1861 = vpop.permute.xlu0 %1860
    %1862 = vrot.lane.b32.xlu0 %v575, 126
    %v1863 = vpop.permute.xlu0 %1862
    %1864 = vrot.lane.b32.xlu0 %v576, 126
    %v1865 = vpop.permute.xlu0 %1864
    %1866 = vrot.lane.b32.xlu0 %v577, 126
    %v1867 = vpop.permute.xlu0 %1866
    %1868 = vrot.lane.b32.xlu0 %v578, 126
    %v1869 = vpop.permute.xlu0 %1868
    %1870 = vrot.lane.b32.xlu0 %v579, 126
    %v1871 = vpop.permute.xlu0 %1870
    %1872 = vrot.lane.b32.xlu0 %v580, 126
    %v1873 = vpop.permute.xlu0 %1872
    %1874 = vrot.lane.b32.xlu0 %v581, 126
    %v1875 = vpop.permute.xlu0 %1874
    %1876 = vrot.lane.b32.xlu0 %v582, 126
    %v1877 = vpop.permute.xlu0 %1876
    %1878 = vrot.lane.b32.xlu0 %v583, 126
    %v1879 = vpop.permute.xlu0 %1878
    %1880 = vrot.lane.b32.xlu0 %v584, 126
    %v1881 = vpop.permute.xlu0 %1880
    %1882 = vrot.lane.b32.xlu0 %v585, 126
    %v1883 = vpop.permute.xlu0 %1882
    %1884 = vrot.lane.b32.xlu0 %v586, 126
    %v1885 = vpop.permute.xlu0 %1884
    %v1886 = vsel %vm222, %v1857, %v1859
    %v1887 = vsel %vm222, %v1859, %v1861
    %v1888 = vsel %vm222, %v1861, %v1863
    %v1889 = vsel %vm222, %v1863, %v1865
    %v1890 = vsel %vm222, %v1865, %v1867
    %v1891 = vsel %vm222, %v1867, %v1869
    %v1892 = vsel %vm222, %v1869, %v1871
    %v1893 = vsel %vm222, %v1871, %v1873
    %v1894 = vsel %vm222, %v1873, %v1875
    %v1895 = vsel %vm222, %v1875, %v1877
    %v1896 = vsel %vm222, %v1877, %v1879
    %v1897 = vsel %vm222, %v1879, %v1881
    %v1898 = vsel %vm222, %v1881, %v1883
    %v1899 = vsel %vm222, %v1883, %v1885
    %1915 = vst [vmem:[#allocation2 + $0x3c0] sm:$0x1c] %v1886
    %1916 = vst [vmem:[#allocation2 + $0x3c8] sm:$0x1c] %v1887
    %1917 = vst [vmem:[#allocation2 + $0x3d0] sm:$0x1c] %v1888
    %1918 = vst [vmem:[#allocation2 + $0x3d8] sm:$0x1c] %v1889
    %1919 = vst [vmem:[#allocation2 + $0x3e0] sm:$0x1c] %v1890
    %1920 = vst [vmem:[#allocation2 + $0x3e8] sm:$0x1c] %v1891
    %1921 = vst [vmem:[#allocation2 + $0x3f0] sm:$0x1c] %v1892
    %1922 = vst [vmem:[#allocation2 + $0x3f8] sm:$0x1c] %v1893
    %1923 = vst [vmem:[#allocation2 + $0x400] sm:$0x1c] %v1894
    %1924 = vst [vmem:[#allocation2 + $0x408] sm:$0x1c] %v1895
    %1925 = vst [vmem:[#allocation2 + $0x410] sm:$0x1c] %v1896
    %1926 = vst [vmem:[#allocation2 + $0x418] sm:$0x1c] %v1897
    %1927 = vst [vmem:[#allocation2 + $0x420] sm:$0x1c] %v1898
    %1928 = vst [vmem:[#allocation2 + $0x428] sm:$0x1c] %v1899
    %1929 = vst.msk [vmem:[#allocation2 + $0x430] sm:$0x1c] %vm664, %v1885
    %1930 = vrot.lane.b32.xlu0 %v667, 125
    %v1931 = vpop.permute.xlu0 %1930
    %1932 = vrot.lane.b32.xlu0 %v668, 125
    %v1933 = vpop.permute.xlu0 %1932
    %1934 = vrot.lane.b32.xlu0 %v669, 125
    %v1935 = vpop.permute.xlu0 %1934
    %1936 = vrot.lane.b32.xlu0 %v670, 125
    %v1937 = vpop.permute.xlu0 %1936
    %1938 = vrot.lane.b32.xlu0 %v671, 125
    %v1939 = vpop.permute.xlu0 %1938
    %1940 = vrot.lane.b32.xlu0 %v672, 125
    %v1941 = vpop.permute.xlu0 %1940
    %1942 = vrot.lane.b32.xlu0 %v673, 125
    %v1943 = vpop.permute.xlu0 %1942
    %1944 = vrot.lane.b32.xlu0 %v674, 125
    %v1945 = vpop.permute.xlu0 %1944
    %1946 = vrot.lane.b32.xlu0 %v675, 125
    %v1947 = vpop.permute.xlu0 %1946
    %1948 = vrot.lane.b32.xlu0 %v676, 125
    %v1949 = vpop.permute.xlu0 %1948
    %1950 = vrot.lane.b32.xlu0 %v677, 125
    %v1951 = vpop.permute.xlu0 %1950
    %1952 = vrot.lane.b32.xlu0 %v678, 125
    %v1953 = vpop.permute.xlu0 %1952
    %1954 = vrot.lane.b32.xlu0 %v679, 125
    %v1955 = vpop.permute.xlu0 %1954
    %1956 = vrot.lane.b32.xlu0 %v680, 125
    %v1957 = vpop.permute.xlu0 %1956
    %1958 = vrot.lane.b32.xlu0 %v681, 125
    %v1959 = vpop.permute.xlu0 %1958
    %v1960 = vsel %vm329, %v1931, %v1933
    %v1961 = vsel %vm329, %v1933, %v1935
    %v1962 = vsel %vm329, %v1935, %v1937
    %v1963 = vsel %vm329, %v1937, %v1939
    %v1964 = vsel %vm329, %v1939, %v1941
    %v1965 = vsel %vm329, %v1941, %v1943
    %v1966 = vsel %vm329, %v1943, %v1945
    %v1967 = vsel %vm329, %v1945, %v1947
    %v1968 = vsel %vm329, %v1947, %v1949
    %v1969 = vsel %vm329, %v1949, %v1951
    %v1970 = vsel %vm329, %v1951, %v1953
    %v1971 = vsel %vm329, %v1953, %v1955
    %v1972 = vsel %vm329, %v1955, %v1957
    %v1973 = vsel %vm329, %v1957, %v1959
    %1989 = vst [vmem:[#allocation2 + $0x3c0] sm:$0xe0] %v1960
    %1990 = vst [vmem:[#allocation2 + $0x3c8] sm:$0xe0] %v1961
    %1991 = vst [vmem:[#allocation2 + $0x3d0] sm:$0xe0] %v1962
    %1992 = vst [vmem:[#allocation2 + $0x3d8] sm:$0xe0] %v1963
    %1993 = vst [vmem:[#allocation2 + $0x3e0] sm:$0xe0] %v1964
    %1994 = vst [vmem:[#allocation2 + $0x3e8] sm:$0xe0] %v1965
    %1995 = vst [vmem:[#allocation2 + $0x3f0] sm:$0xe0] %v1966
    %1996 = vst [vmem:[#allocation2 + $0x3f8] sm:$0xe0] %v1967
    %1997 = vst [vmem:[#allocation2 + $0x400] sm:$0xe0] %v1968
    %1998 = vst [vmem:[#allocation2 + $0x408] sm:$0xe0] %v1969
    %1999 = vst [vmem:[#allocation2 + $0x410] sm:$0xe0] %v1970
    %2000 = vst [vmem:[#allocation2 + $0x418] sm:$0xe0] %v1971
    %2001 = vst [vmem:[#allocation2 + $0x420] sm:$0xe0] %v1972
    %2002 = vst [vmem:[#allocation2 + $0x428] sm:$0xe0] %v1973
    %2003 = vst.msk [vmem:[#allocation2 + $0x430] sm:$0xe0] %vm759, %v1959
    %2004 = vrot.lane.b32.xlu0 %v56, 124
    %v2005 = vpop.permute.xlu0 %2004
    %2006 = vrot.lane.b32.xlu0 %v57, 124
    %v2007 = vpop.permute.xlu0 %2006
    %2008 = vrot.lane.b32.xlu0 %v58, 124
    %v2009 = vpop.permute.xlu0 %2008
    %2010 = vrot.lane.b32.xlu0 %v59, 124
    %v2011 = vpop.permute.xlu0 %2010
    %2012 = vrot.lane.b32.xlu0 %v60, 124
    %v2013 = vpop.permute.xlu0 %2012
    %2014 = vrot.lane.b32.xlu0 %v61, 124
    %v2015 = vpop.permute.xlu0 %2014
    %2016 = vrot.lane.b32.xlu0 %v62, 124
    %v2017 = vpop.permute.xlu0 %2016
    %2018 = vrot.lane.b32.xlu0 %v47, 124
    %v2019 = vpop.permute.xlu0 %2018
    %2020 = vrot.lane.b32.xlu0 %v459, 124
    %v2021 = vpop.permute.xlu0 %2020
    %v2022 = vsel %vm413, %v2005, %v390
    %v2023 = vsel %vm413, %v390, %v2007
    %v2024 = vsel %vm413, %v2007, %v394
    %v2025 = vsel %vm413, %v394, %v2009
    %v2026 = vsel %vm413, %v2009, %v398
    %v2027 = vsel %vm413, %v398, %v2011
    %v2028 = vsel %vm413, %v2011, %v402
    %v2029 = vsel %vm413, %v402, %v2013
    %v2030 = vsel %vm413, %v2013, %v406
    %v2031 = vsel %vm413, %v406, %v2015
    %v2032 = vsel %vm413, %v2015, %v410
    %v2033 = vsel %vm413, %v410, %v2017
    %v2034 = vsel %vm413, %v2017, %v2019
    %v2035 = vsel %vm413, %v2019, %v2021
    %2051 = vst [vmem:[#allocation2 + $0x438] sm:$0x7] %v2022
    %2052 = vst [vmem:[#allocation2 + $0x440] sm:$0x7] %v2023
    %2053 = vst [vmem:[#allocation2 + $0x448] sm:$0x7] %v2024
    %2054 = vst [vmem:[#allocation2 + $0x450] sm:$0x7] %v2025
    %2055 = vst [vmem:[#allocation2 + $0x458] sm:$0x7] %v2026
    %2056 = vst [vmem:[#allocation2 + $0x460] sm:$0x7] %v2027
    %2057 = vst [vmem:[#allocation2 + $0x468] sm:$0x7] %v2028
    %2058 = vst [vmem:[#allocation2 + $0x470] sm:$0x7] %v2029
    %2059 = vst [vmem:[#allocation2 + $0x478] sm:$0x7] %v2030
    %2060 = vst [vmem:[#allocation2 + $0x480] sm:$0x7] %v2031
    %2061 = vst [vmem:[#allocation2 + $0x488] sm:$0x7] %v2032
    %2062 = vst [vmem:[#allocation2 + $0x490] sm:$0x7] %v2033
    %2063 = vst [vmem:[#allocation2 + $0x498] sm:$0x7] %v2034
    %2064 = vst [vmem:[#allocation2 + $0x4a0] sm:$0x7] %v2035
    %2065 = vst.msk [vmem:[#allocation2 + $0x4a8] sm:$0x7] %vm84, %v2021
    %v2066 = vld [vmem:[%s1] sm:$0x7]
    %v2067 = vld [vmem:[#allocation2] sm:$0xff]
    %v2068 = vld [vmem:[#allocation2 + $0x8] sm:$0xff]
    %v2069 = vld [vmem:[#allocation2 + $0x10] sm:$0xff]
    %v2070 = vld [vmem:[#allocation2 + $0x18] sm:$0xff]
    %v2071 = vld [vmem:[#allocation2 + $0x20] sm:$0xff]
    %v2072 = vld [vmem:[#allocation2 + $0x28] sm:$0xff]
    %v2073 = vld [vmem:[#allocation2 + $0x30] sm:$0xff]
    %v2074 = vld [vmem:[#allocation2 + $0x38] sm:$0xff]
    %v2075 = vld [vmem:[#allocation2 + $0x40] sm:$0xff]
    %v2076 = vld [vmem:[#allocation2 + $0x48] sm:$0xff]
    %v2077 = vld [vmem:[#allocation2 + $0x50] sm:$0xff]
    %v2078 = vld [vmem:[#allocation2 + $0x58] sm:$0xff]
    %v2079 = vld [vmem:[#allocation2 + $0x60] sm:$0xff]
    %v2080 = vld [vmem:[#allocation2 + $0x68] sm:$0xff]
    %v2081 = vld [vmem:[#allocation2 + $0x70] sm:$0xff]
    %v2082 = vld [vmem:[#allocation2 + $0x78] sm:$0xff]
    %v2083 = vld [vmem:[#allocation2 + $0x80] sm:$0xff]
    %v2084 = vld [vmem:[#allocation2 + $0x88] sm:$0xff]
    %v2085 = vld [vmem:[#allocation2 + $0x90] sm:$0xff]
    %v2086 = vld [vmem:[#allocation2 + $0x98] sm:$0xff]
    %v2087 = vld [vmem:[#allocation2 + $0xa0] sm:$0xff]
    %v2088 = vld [vmem:[#allocation2 + $0xa8] sm:$0xff]
    %v2089 = vld [vmem:[#allocation2 + $0xb0] sm:$0xff]
    %v2090 = vld [vmem:[#allocation2 + $0xb8] sm:$0xff]
    %v2091 = vld [vmem:[#allocation2 + $0xc0] sm:$0xff]
    %v2092 = vld [vmem:[#allocation2 + $0xc8] sm:$0xff]
    %v2093 = vld [vmem:[#allocation2 + $0xd0] sm:$0xff]
    %v2094 = vld [vmem:[#allocation2 + $0xd8] sm:$0xff]
    %v2095 = vld [vmem:[#allocation2 + $0xe0] sm:$0xff]
    %v2096 = vld [vmem:[#allocation2 + $0xe8] sm:$0xff]
    %v2097 = vld [vmem:[#allocation2 + $0xf0] sm:$0xff]
    %v2098 = vld [vmem:[#allocation2 + $0xf8] sm:$0xff]
    %v2099 = vld [vmem:[#allocation2 + $0x100] sm:$0xff]
    %v2100 = vld [vmem:[#allocation2 + $0x108] sm:$0xff]
    %v2101 = vld [vmem:[#allocation2 + $0x110] sm:$0xff]
    %v2102 = vld [vmem:[#allocation2 + $0x118] sm:$0xff]
    %v2103 = vld [vmem:[#allocation2 + $0x120] sm:$0xff]
    %v2104 = vld [vmem:[#allocation2 + $0x128] sm:$0xff]
    %v2105 = vld [vmem:[#allocation2 + $0x130] sm:$0xff]
    %v2106 = vld [vmem:[#allocation2 + $0x138] sm:$0xff]
    %v2107 = vld [vmem:[#allocation2 + $0x140] sm:$0xff]
    %v2108 = vld [vmem:[#allocation2 + $0x148] sm:$0xff]
    %v2109 = vld [vmem:[#allocation2 + $0x150] sm:$0xff]
    %v2110 = vld [vmem:[#allocation2 + $0x158] sm:$0xff]
    %v2111 = vld [vmem:[#allocation2 + $0x160] sm:$0xff]
    %v2112 = vld [vmem:[#allocation2 + $0x168] sm:$0xff]
    %v2113 = vld [vmem:[#allocation2 + $0x170] sm:$0xff]
    %v2114 = vld [vmem:[#allocation2 + $0x178] sm:$0xff]
    %v2115 = vld [vmem:[#allocation2 + $0x180] sm:$0xff]
    %v2116 = vld [vmem:[#allocation2 + $0x188] sm:$0xff]
    %v2117 = vld [vmem:[#allocation2 + $0x190] sm:$0xff]
    %v2118 = vld [vmem:[#allocation2 + $0x198] sm:$0xff]
    %v2119 = vld [vmem:[#allocation2 + $0x1a0] sm:$0xff]
    %v2120 = vld [vmem:[#allocation2 + $0x1a8] sm:$0xff]
    %v2121 = vld [vmem:[#allocation2 + $0x1b0] sm:$0xff]
    %v2122 = vld [vmem:[#allocation2 + $0x1b8] sm:$0xff]
    %v2123 = vld [vmem:[#allocation2 + $0x1c0] sm:$0xff]
    %v2124 = vld [vmem:[#allocation2 + $0x1c8] sm:$0xff]
    %v2125 = vld [vmem:[#allocation2 + $0x1d0] sm:$0xff]
    %v2126 = vld [vmem:[#allocation2 + $0x1d8] sm:$0xff]
    %v2127 = vld [vmem:[#allocation2 + $0x1e0] sm:$0xff]
    %v2128 = vld [vmem:[#allocation2 + $0x1e8] sm:$0xff]
    %v2129 = vld [vmem:[#allocation2 + $0x1f0] sm:$0xff]
    %v2130 = vld [vmem:[#allocation2 + $0x1f8] sm:$0xff]
    %v2131 = vld [vmem:[#allocation2 + $0x200] sm:$0xff]
    %v2132 = vld [vmem:[#allocation2 + $0x208] sm:$0xff]
    %v2133 = vld [vmem:[#allocation2 + $0x210] sm:$0xff]
    %v2134 = vld [vmem:[#allocation2 + $0x218] sm:$0xff]
    %v2135 = vld [vmem:[#allocation2 + $0x220] sm:$0xff]
    %v2136 = vld [vmem:[#allocation2 + $0x228] sm:$0xff]
    %v2137 = vld [vmem:[#allocation2 + $0x230] sm:$0xff]
    %v2138 = vld [vmem:[#allocation2 + $0x238] sm:$0xff]
    %v2139 = vld [vmem:[#allocation2 + $0x240] sm:$0xff]
    %v2140 = vld [vmem:[#allocation2 + $0x248] sm:$0xff]
    %v2141 = vld [vmem:[#allocation2 + $0x250] sm:$0xff]
    %v2142 = vld [vmem:[#allocation2 + $0x258] sm:$0xff]
    %v2143 = vld [vmem:[#allocation2 + $0x260] sm:$0xff]
    %v2144 = vld [vmem:[#allocation2 + $0x268] sm:$0xff]
    %v2145 = vld [vmem:[#allocation2 + $0x270] sm:$0xff]
    %v2146 = vld [vmem:[#allocation2 + $0x278] sm:$0xff]
    %v2147 = vld [vmem:[#allocation2 + $0x280] sm:$0xff]
    %v2148 = vld [vmem:[#allocation2 + $0x288] sm:$0xff]
    %v2149 = vld [vmem:[#allocation2 + $0x290] sm:$0xff]
    %v2150 = vld [vmem:[#allocation2 + $0x298] sm:$0xff]
    %v2151 = vld [vmem:[#allocation2 + $0x2a0] sm:$0xff]
    %v2152 = vld [vmem:[#allocation2 + $0x2a8] sm:$0xff]
    %v2153 = vld [vmem:[#allocation2 + $0x2b0] sm:$0xff]
    %v2154 = vld [vmem:[#allocation2 + $0x2b8] sm:$0xff]
    %v2155 = vld [vmem:[#allocation2 + $0x2c0] sm:$0xff]
    %v2156 = vld [vmem:[#allocation2 + $0x2c8] sm:$0xff]
    %v2157 = vld [vmem:[#allocation2 + $0x2d0] sm:$0xff]
    %v2158 = vld [vmem:[#allocation2 + $0x2d8] sm:$0xff]
    %v2159 = vld [vmem:[#allocation2 + $0x2e0] sm:$0xff]
    %v2160 = vld [vmem:[#allocation2 + $0x2e8] sm:$0xff]
    %v2161 = vld [vmem:[#allocation2 + $0x2f0] sm:$0xff]
    %v2162 = vld [vmem:[#allocation2 + $0x2f8] sm:$0xff]
    %v2163 = vld [vmem:[#allocation2 + $0x300] sm:$0xff]
    %v2164 = vld [vmem:[#allocation2 + $0x308] sm:$0xff]
    %v2165 = vld [vmem:[#allocation2 + $0x310] sm:$0xff]
    %v2166 = vld [vmem:[#allocation2 + $0x318] sm:$0xff]
    %v2167 = vld [vmem:[#allocation2 + $0x320] sm:$0xff]
    %v2168 = vld [vmem:[#allocation2 + $0x328] sm:$0xff]
    %v2169 = vld [vmem:[#allocation2 + $0x330] sm:$0xff]
    %v2170 = vld [vmem:[#allocation2 + $0x338] sm:$0xff]
    %v2171 = vld [vmem:[#allocation2 + $0x340] sm:$0xff]
    %v2172 = vld [vmem:[#allocation2 + $0x348] sm:$0xff]
    %v2173 = vld [vmem:[#allocation2 + $0x350] sm:$0xff]
    %v2174 = vld [vmem:[#allocation2 + $0x358] sm:$0xff]
    %v2175 = vld [vmem:[#allocation2 + $0x360] sm:$0xff]
    %v2176 = vld [vmem:[#allocation2 + $0x368] sm:$0xff]
    %v2177 = vld [vmem:[#allocation2 + $0x370] sm:$0xff]
    %v2178 = vld [vmem:[#allocation2 + $0x378] sm:$0xff]
    %v2179 = vld [vmem:[#allocation2 + $0x380] sm:$0xff]
    %v2180 = vld [vmem:[#allocation2 + $0x388] sm:$0xff]
    %v2181 = vld [vmem:[#allocation2 + $0x390] sm:$0xff]
    %v2182 = vld [vmem:[#allocation2 + $0x398] sm:$0xff]
    %v2183 = vld [vmem:[#allocation2 + $0x3a0] sm:$0xff]
    %v2184 = vld [vmem:[#allocation2 + $0x3a8] sm:$0xff]
    %v2185 = vld [vmem:[#allocation2 + $0x3b0] sm:$0xff]
    %v2186 = vld [vmem:[#allocation2 + $0x3b8] sm:$0xff]
    %v2187 = vld [vmem:[#allocation2 + $0x3c0] sm:$0xff]
    %v2188 = vld [vmem:[#allocation2 + $0x3c8] sm:$0xff]
    %v2189 = vld [vmem:[#allocation2 + $0x3d0] sm:$0xff]
    %v2190 = vld [vmem:[#allocation2 + $0x3d8] sm:$0xff]
    %v2191 = vld [vmem:[#allocation2 + $0x3e0] sm:$0xff]
    %v2192 = vld [vmem:[#allocation2 + $0x3e8] sm:$0xff]
    %v2193 = vld [vmem:[#allocation2 + $0x3f0] sm:$0xff]
    %v2194 = vld [vmem:[#allocation2 + $0x3f8] sm:$0xff]
    %v2195 = vld [vmem:[#allocation2 + $0x400] sm:$0xff]
    %v2196 = vld [vmem:[#allocation2 + $0x408] sm:$0xff]
    %v2197 = vld [vmem:[#allocation2 + $0x410] sm:$0xff]
    %v2198 = vld [vmem:[#allocation2 + $0x418] sm:$0xff]
    %v2199 = vld [vmem:[#allocation2 + $0x420] sm:$0xff]
    %v2200 = vld [vmem:[#allocation2 + $0x428] sm:$0xff]
    %v2201 = vld [vmem:[#allocation2 + $0x430] sm:$0xff]
    %v2202 = vld [vmem:[#allocation2 + $0x438] sm:$0x7]
    %v2203 = vld [vmem:[#allocation2 + $0x440] sm:$0x7]
    %v2204 = vld [vmem:[#allocation2 + $0x448] sm:$0x7]
    %v2205 = vld [vmem:[#allocation2 + $0x450] sm:$0x7]
    %v2206 = vld [vmem:[#allocation2 + $0x458] sm:$0x7]
    %v2207 = vld [vmem:[#allocation2 + $0x460] sm:$0x7]
    %v2208 = vld [vmem:[#allocation2 + $0x468] sm:$0x7]
    %v2209 = vld [vmem:[#allocation2 + $0x470] sm:$0x7]
    %v2210 = vld [vmem:[#allocation2 + $0x478] sm:$0x7]
    %v2211 = vld [vmem:[#allocation2 + $0x480] sm:$0x7]
    %v2212 = vld [vmem:[#allocation2 + $0x488] sm:$0x7]
    %v2213 = vld [vmem:[#allocation2 + $0x490] sm:$0x7]
    %v2214 = vld [vmem:[#allocation2 + $0x498] sm:$0x7]
    %v2215 = vld [vmem:[#allocation2 + $0x4a0] sm:$0x7]
    %v2216 = vld [vmem:[#allocation2 + $0x4a8] sm:$0x7]
    %v2217 = vpack.c.bf16 %v2082, %v2067
    %v2218 = vpack.c.bf16 %v2083, %v2068
    %v2219 = vpack.c.bf16 %v2084, %v2069
    %v2220 = vpack.c.bf16 %v2085, %v2070
    %v2221 = vpack.c.bf16 %v2086, %v2071
    %v2222 = vpack.c.bf16 %v2087, %v2072
    %v2223 = vpack.c.bf16 %v2088, %v2073
    %v2224 = vpack.c.bf16 %v2089, %v2074
    %v2225 = vpack.c.bf16 %v2090, %v2075
    %v2226 = vpack.c.bf16 %v2091, %v2076
    %v2227 = vpack.c.bf16 %v2092, %v2077
    %v2228 = vpack.c.bf16 %v2093, %v2078
    %v2229 = vpack.c.bf16 %v2094, %v2079
    %v2230 = vpack.c.bf16 %v2095, %v2080
    %v2231 = vpack.c.bf16 %v2096, %v2081
    %v2232 = vpack.c.bf16 %v2112, %v2097
    %v2233 = vpack.c.bf16 %v2113, %v2098
    %v2234 = vpack.c.bf16 %v2114, %v2099
    %v2235 = vpack.c.bf16 %v2115, %v2100
    %v2236 = vpack.c.bf16 %v2116, %v2101
    %v2237 = vpack.c.bf16 %v2117, %v2102
    %v2238 = vpack.c.bf16 %v2118, %v2103
    %v2239 = vpack.c.bf16 %v2119, %v2104
    %v2240 = vpack.c.bf16 %v2120, %v2105
    %v2241 = vpack.c.bf16 %v2121, %v2106
    %v2242 = vpack.c.bf16 %v2122, %v2107
    %v2243 = vpack.c.bf16 %v2123, %v2108
    %v2244 = vpack.c.bf16 %v2124, %v2109
    %v2245 = vpack.c.bf16 %v2125, %v2110
    %v2246 = vpack.c.bf16 %v2126, %v2111
    %v2247 = vpack.c.bf16 %v2142, %v2127
    %v2248 = vpack.c.bf16 %v2143, %v2128
    %v2249 = vpack.c.bf16 %v2144, %v2129
    %v2250 = vpack.c.bf16 %v2145, %v2130
    %v2251 = vpack.c.bf16 %v2146, %v2131
    %v2252 = vpack.c.bf16 %v2147, %v2132
    %v2253 = vpack.c.bf16 %v2148, %v2133
    %v2254 = vpack.c.bf16 %v2149, %v2134
    %v2255 = vpack.c.bf16 %v2150, %v2135
    %v2256 = vpack.c.bf16 %v2151, %v2136
    %v2257 = vpack.c.bf16 %v2152, %v2137
    %v2258 = vpack.c.bf16 %v2153, %v2138
    %v2259 = vpack.c.bf16 %v2154, %v2139
    %v2260 = vpack.c.bf16 %v2155, %v2140
    %v2261 = vpack.c.bf16 %v2156, %v2141
    %v2262 = vpack.c.bf16 %v2172, %v2157
    %v2263 = vpack.c.bf16 %v2173, %v2158
    %v2264 = vpack.c.bf16 %v2174, %v2159
    %v2265 = vpack.c.bf16 %v2175, %v2160
    %v2266 = vpack.c.bf16 %v2176, %v2161
    %v2267 = vpack.c.bf16 %v2177, %v2162
    %v2268 = vpack.c.bf16 %v2178, %v2163
    %v2269 = vpack.c.bf16 %v2179, %v2164
    %v2270 = vpack.c.bf16 %v2180, %v2165
    %v2271 = vpack.c.bf16 %v2181, %v2166
    %v2272 = vpack.c.bf16 %v2182, %v2167
    %v2273 = vpack.c.bf16 %v2183, %v2168
    %v2274 = vpack.c.bf16 %v2184, %v2169
    %v2275 = vpack.c.bf16 %v2185, %v2170
    %v2276 = vpack.c.bf16 %v2186, %v2171
    %v2277 = vpack.c.bf16 %v2202, %v2187
    %v2278 = vpack.c.bf16 %v2203, %v2188
    %v2279 = vpack.c.bf16 %v2204, %v2189
    %v2280 = vpack.c.bf16 %v2205, %v2190
    %v2281 = vpack.c.bf16 %v2206, %v2191
    %v2282 = vpack.c.bf16 %v2207, %v2192
    %v2283 = vpack.c.bf16 %v2208, %v2193
    %v2284 = vpack.c.bf16 %v2209, %v2194
    %v2285 = vpack.c.bf16 %v2210, %v2195
    %v2286 = vpack.c.bf16 %v2211, %v2196
    %v2287 = vpack.c.bf16 %v2212, %v2197
    %v2288 = vpack.c.bf16 %v2213, %v2198
    %v2289 = vpack.c.bf16 %v2214, %v2199
    %v2290 = vpack.c.bf16 %v2215, %v2200
    %v2291 = vpack.c.bf16 %v2216, %v2201
    %v2292 = vld [vmem:[%s2] sm:$0x3f]
    %2294 = vset.pattern.permute.xlu0 0
    %2295 = vperm.xlu0 %2294, %v2292
    %v2296 = vpop.permute.xlu0 %2295
    %vm2298 = vcmask 613376
    %v2300 = vsel %vm2298, %v2066, 0
    %vm2302 = vcmask 1044480
    %vm2303 = vcmask 1045504
    %v2304 = vsel %vm2302, 4294967295, 65535
    %v2305 = vsel %vm2303, %v2304, 0
    %v2307 = vand.u32 %v2277, %v2305
    %v2310 = vand.u32 %v2278, %v2305
    %v2313 = vand.u32 %v2279, %v2305
    %v2316 = vand.u32 %v2280, %v2305
    %v2319 = vand.u32 %v2281, %v2305
    %v2322 = vand.u32 %v2282, %v2305
    %v2325 = vand.u32 %v2283, %v2305
    %v2328 = vand.u32 %v2284, %v2305
    %v2331 = vand.u32 %v2285, %v2305
    %v2334 = vand.u32 %v2286, %v2305
    %v2337 = vand.u32 %v2287, %v2305
    %v2340 = vand.u32 %v2288, %v2305
    %v2343 = vand.u32 %v2289, %v2305
    %v2346 = vand.u32 %v2290, %v2305
    %v2349 = vand.u32 %v2291, %v2305
    %2351 = vmatprep.subr.bf16.mxu0 %v2218
    %2352 = vmatpush1.bf16.msra.mxu0 %v2217
    %2353 = vmatprep.subr.bf16.mxu0 %v2233
    %2354 = vmatpush1.bf16.msra.mxu0 %v2232
    %2355 = vmatprep.subr.bf16.mxu0 %v2248
    %2356 = vmatpush1.bf16.msra.mxu0 %v2247
    %2357 = vmatprep.subr.bf16.mxu0 %v2263
    %2358 = vmatpush1.bf16.msra.mxu0 %v2262
    %2359 = vmatprep.subr.bf16.mxu0 %v2310
    %2360 = vmatpush1.bf16.msra.mxu0 %v2307
    %2361 = vmatprep.subr.bf16.mxu0 0
    %2362 = vmatpush1.bf16.msra.mxu0 0
    %2363 = vmatprep.subr.bf16.mxu0 0
    %2364 = vmatpush1.bf16.msra.mxu0 0
    %2365 = vmatprep.subr.bf16.mxu0 0
    %2366 = vmatpush1.bf16.msra.mxu0 0
    %2367 = vmatprep.subr.bf16.mxu0 0
    %2368 = vmatpush1.bf16.msra.mxu0 0
    %2369 = vmatprep.subr.bf16.mxu0 0
    %2370 = vmatpush1.bf16.msra.mxu0 0
    %2371 = vmatprep.subr.bf16.mxu0 0
    %2372 = vmatpush1.bf16.msra.mxu0 0
    %2373 = vmatprep.subr.bf16.mxu0 0
    %2374 = vmatpush1.bf16.msra.mxu0 0
    %2375 = vmatprep.subr.bf16.mxu0 0
    %2376 = vmatpush1.bf16.msra.mxu0 0
    %2377 = vmatprep.subr.bf16.mxu0 0
    %2378 = vmatpush1.bf16.msra.mxu0 0
    %2379 = vmatprep.subr.bf16.mxu0 0
    %2380 = vmatpush1.bf16.msra.mxu0 0
    %2381 = vmatprep.subr.bf16.mxu0 0
    %2382 = vmatpush1.bf16.msra.mxu0 0
    %2383 = vmatprep.mubr.bf16.mxu0 0
    %2384 = vmatmul.mubr.bf16.gmra.mrb[0].mxu0 %v2300
    %v2385 = vpop.f32.mrb[0].mxu0
    %v2386 = vadd.f32 %v2296, %v2385
    %v2387 = vpop.f32.mrb[0].mxu0
    %v2388 = vadd.f32 %v2296, %v2387
    %v2389 = vpop.f32.mrb[0].mxu0
    %v2390 = vpop.f32.mrb[0].mxu0
    %2391 = vdwg.mxu0
    %2392 = vmatprep.subr.bf16.mxu0 %v2220
    %2393 = vmatpush1.bf16.msra.mxu0 %v2219
    %2394 = vmatprep.subr.bf16.mxu0 %v2235
    %2395 = vmatpush1.bf16.msra.mxu0 %v2234
    %2396 = vmatprep.subr.bf16.mxu0 %v2250
    %2397 = vmatpush1.bf16.msra.mxu0 %v2249
    %2398 = vmatprep.subr.bf16.mxu0 %v2265
    %2399 = vmatpush1.bf16.msra.mxu0 %v2264
    %2400 = vmatprep.subr.bf16.mxu0 %v2316
    %2401 = vmatpush1.bf16.msra.mxu0 %v2313
    %2402 = vmatprep.subr.bf16.mxu0 0
    %2403 = vmatpush1.bf16.msra.mxu0 0
    %2404 = vmatprep.subr.bf16.mxu0 0
    %2405 = vmatpush1.bf16.msra.mxu0 0
    %2406 = vmatprep.subr.bf16.mxu0 0
    %2407 = vmatpush1.bf16.msra.mxu0 0
    %2408 = vmatprep.subr.bf16.mxu0 0
    %2409 = vmatpush1.bf16.msra.mxu0 0
    %2410 = vmatprep.subr.bf16.mxu0 0
    %2411 = vmatpush1.bf16.msra.mxu0 0
    %2412 = vmatprep.subr.bf16.mxu0 0
    %2413 = vmatpush1.bf16.msra.mxu0 0
    %2414 = vmatprep.subr.bf16.mxu0 0
    %2415 = vmatpush1.bf16.msra.mxu0 0
    %2416 = vmatprep.subr.bf16.mxu0 0
    %2417 = vmatpush1.bf16.msra.mxu0 0
    %2418 = vmatprep.subr.bf16.mxu0 0
    %2419 = vmatpush1.bf16.msra.mxu0 0
    %2420 = vmatprep.subr.bf16.mxu0 0
    %2421 = vmatpush1.bf16.msra.mxu0 0
    %2422 = vmatprep.subr.bf16.mxu0 0
    %2423 = vmatpush1.bf16.msra.mxu0 0
    %2424 = vmatprep.mubr.bf16.mxu0 0
    %2425 = vmatmul.mubr.bf16.gmra.mrb[0].mxu0 %v2300
    %v2426 = vpop.f32.mrb[0].mxu0
    %v2427 = vadd.f32 %v2296, %v2426
    %v2428 = vpop.f32.mrb[0].mxu0
    %v2429 = vadd.f32 %v2296, %v2428
    %v2430 = vpop.f32.mrb[0].mxu0
    %v2431 = vpop.f32.mrb[0].mxu0
    %2432 = vdwg.mxu0
    %2433 = vmatprep.subr.bf16.mxu0 %v2222
    %2434 = vmatpush1.bf16.msra.mxu0 %v2221
    %2435 = vmatprep.subr.bf16.mxu0 %v2237
    %2436 = vmatpush1.bf16.msra.mxu0 %v2236
    %2437 = vmatprep.subr.bf16.mxu0 %v2252
    %2438 = vmatpush1.bf16.msra.mxu0 %v2251
    %2439 = vmatprep.subr.bf16.mxu0 %v2267
    %2440 = vmatpush1.bf16.msra.mxu0 %v2266
    %2441 = vmatprep.subr.bf16.mxu0 %v2322
    %2442 = vmatpush1.bf16.msra.mxu0 %v2319
    %2443 = vmatprep.subr.bf16.mxu0 0
    %2444 = vmatpush1.bf16.msra.mxu0 0
    %2445 = vmatprep.subr.bf16.mxu0 0
    %2446 = vmatpush1.bf16.msra.mxu0 0
    %2447 = vmatprep.subr.bf16.mxu0 0
    %2448 = vmatpush1.bf16.msra.mxu0 0
    %2449 = vmatprep.subr.bf16.mxu0 0
    %2450 = vmatpush1.bf16.msra.mxu0 0
    %2451 = vmatprep.subr.bf16.mxu0 0
    %2452 = vmatpush1.bf16.msra.mxu0 0
    %2453 = vmatprep.subr.bf16.mxu0 0
    %2454 = vmatpush1.bf16.msra.mxu0 0
    %2455 = vmatprep.subr.bf16.mxu0 0
    %2456 = vmatpush1.bf16.msra.mxu0 0
    %2457 = vmatprep.subr.bf16.mxu0 0
    %2458 = vmatpush1.bf16.msra.mxu0 0
    %2459 = vmatprep.subr.bf16.mxu0 0
    %2460 = vmatpush1.bf16.msra.mxu0 0
    %2461 = vmatprep.subr.bf16.mxu0 0
    %2462 = vmatpush1.bf16.msra.mxu0 0
    %2463 = vmatprep.subr.bf16.mxu0 0
    %2464 = vmatpush1.bf16.msra.mxu0 0
    %2465 = vmatprep.mubr.bf16.mxu0 0
    %2466 = vmatmul.mubr.bf16.gmra.mrb[0].mxu0 %v2300
    %v2467 = vpop.f32.mrb[0].mxu0
    %v2468 = vadd.f32 %v2296, %v2467
    %v2469 = vpop.f32.mrb[0].mxu0
    %v2470 = vadd.f32 %v2296, %v2469
    %v2471 = vpop.f32.mrb[0].mxu0
    %v2472 = vpop.f32.mrb[0].mxu0
    %2473 = vdwg.mxu0
    %2474 = vmatprep.subr.bf16.mxu0 %v2224
    %2475 = vmatpush1.bf16.msra.mxu0 %v2223
    %2476 = vmatprep.subr.bf16.mxu0 %v2239
    %2477 = vmatpush1.bf16.msra.mxu0 %v2238
    %2478 = vmatprep.subr.bf16.mxu0 %v2254
    %2479 = vmatpush1.bf16.msra.mxu0 %v2253
    %2480 = vmatprep.subr.bf16.mxu0 %v2269
    %2481 = vmatpush1.bf16.msra.mxu0 %v2268
    %2482 = vmatprep.subr.bf16.mxu0 %v2328
    %2483 = vmatpush1.bf16.msra.mxu0 %v2325
    %2484 = vmatprep.subr.bf16.mxu0 0
    %2485 = vmatpush1.bf16.msra.mxu0 0
    %2486 = vmatprep.subr.bf16.mxu0 0
    %2487 = vmatpush1.bf16.msra.mxu0 0
    %2488 = vmatprep.subr.bf16.mxu0 0
    %2489 = vmatpush1.bf16.msra.mxu0 0
    %2490 = vmatprep.subr.bf16.mxu0 0
    %2491 = vmatpush1.bf16.msra.mxu0 0
    %2492 = vmatprep.subr.bf16.mxu0 0
    %2493 = vmatpush1.bf16.msra.mxu0 0
    %2494 = vmatprep.subr.bf16.mxu0 0
    %2495 = vmatpush1.bf16.msra.mxu0 0
    %2496 = vmatprep.subr.bf16.mxu0 0
    %2497 = vmatpush1.bf16.msra.mxu0 0
    %2498 = vmatprep.subr.bf16.mxu0 0
    %2499 = vmatpush1.bf16.msra.mxu0 0
    %2500 = vmatprep.subr.bf16.mxu0 0
    %2501 = vmatpush1.bf16.msra.mxu0 0
    %2502 = vmatprep.subr.bf16.mxu0 0
    %2503 = vmatpush1.bf16.msra.mxu0 0
    %2504 = vmatprep.subr.bf16.mxu0 0
    %2505 = vmatpush1.bf16.msra.mxu0 0
    %2506 = vmatprep.mubr.bf16.mxu0 0
    %2507 = vmatmul.mubr.bf16.gmra.mrb[0].mxu0 %v2300
    %v2508 = vpop.f32.mrb[0].mxu0
    %v2509 = vadd.f32 %v2296, %v2508
    %v2510 = vpop.f32.mrb[0].mxu0
    %v2511 = vadd.f32 %v2296, %v2510
    %v2512 = vpop.f32.mrb[0].mxu0
    %v2513 = vpop.f32.mrb[0].mxu0
    %2514 = vdwg.mxu0
    %2515 = vmatprep.subr.bf16.mxu0 %v2226
    %2516 = vmatpush1.bf16.msra.mxu0 %v2225
    %2517 = vmatprep.subr.bf16.mxu0 %v2241
    %2518 = vmatpush1.bf16.msra.mxu0 %v2240
    %2519 = vmatprep.subr.bf16.mxu0 %v2256
    %2520 = vmatpush1.bf16.msra.mxu0 %v2255
    %2521 = vmatprep.subr.bf16.mxu0 %v2271
    %2522 = vmatpush1.bf16.msra.mxu0 %v2270
    %2523 = vmatprep.subr.bf16.mxu0 %v2334
    %2524 = vmatpush1.bf16.msra.mxu0 %v2331
    %2525 = vmatprep.subr.bf16.mxu0 0
    %2526 = vmatpush1.bf16.msra.mxu0 0
    %2527 = vmatprep.subr.bf16.mxu0 0
    %2528 = vmatpush1.bf16.msra.mxu0 0
    %2529 = vmatprep.subr.bf16.mxu0 0
    %2530 = vmatpush1.bf16.msra.mxu0 0
    %2531 = vmatprep.subr.bf16.mxu0 0
    %2532 = vmatpush1.bf16.msra.mxu0 0
    %2533 = vmatprep.subr.bf16.mxu0 0
    %2534 = vmatpush1.bf16.msra.mxu0 0
    %2535 = vmatprep.subr.bf16.mxu0 0
    %2536 = vmatpush1.bf16.msra.mxu0 0
    %2537 = vmatprep.subr.bf16.mxu0 0
    %2538 = vmatpush1.bf16.msra.mxu0 0
    %2539 = vmatprep.subr.bf16.mxu0 0
    %2540 = vmatpush1.bf16.msra.mxu0 0
    %2541 = vmatprep.subr.bf16.mxu0 0
    %2542 = vmatpush1.bf16.msra.mxu0 0
    %2543 = vmatprep.subr.bf16.mxu0 0
    %2544 = vmatpush1.bf16.msra.mxu0 0
    %2545 = vmatprep.subr.bf16.mxu0 0
    %2546 = vmatpush1.bf16.msra.mxu0 0
    %2547 = vmatprep.mubr.bf16.mxu0 0
    %2548 = vmatmul.mubr.bf16.gmra.mrb[0].mxu0 %v2300
    %v2549 = vpop.f32.mrb[0].mxu0
    %v2550 = vadd.f32 %v2296, %v2549
    %v2551 = vpop.f32.mrb[0].mxu0
    %v2552 = vadd.f32 %v2296, %v2551
    %v2553 = vpop.f32.mrb[0].mxu0
    %v2554 = vpop.f32.mrb[0].mxu0
    %2555 = vdwg.mxu0
    %2556 = vmatprep.subr.bf16.mxu0 %v2228
    %2557 = vmatpush1.bf16.msra.mxu0 %v2227
    %2558 = vmatprep.subr.bf16.mxu0 %v2243
    %2559 = vmatpush1.bf16.msra.mxu0 %v2242
    %2560 = vmatprep.subr.bf16.mxu0 %v2258
    %2561 = vmatpush1.bf16.msra.mxu0 %v2257
    %2562 = vmatprep.subr.bf16.mxu0 %v2273
    %2563 = vmatpush1.bf16.msra.mxu0 %v2272
    %2564 = vmatprep.subr.bf16.mxu0 %v2340
    %2565 = vmatpush1.bf16.msra.mxu0 %v2337
    %2566 = vmatprep.subr.bf16.mxu0 0
    %2567 = vmatpush1.bf16.msra.mxu0 0
    %2568 = vmatprep.subr.bf16.mxu0 0
    %2569 = vmatpush1.bf16.msra.mxu0 0
    %2570 = vmatprep.subr.bf16.mxu0 0
    %2571 = vmatpush1.bf16.msra.mxu0 0
    %2572 = vmatprep.subr.bf16.mxu0 0
    %2573 = vmatpush1.bf16.msra.mxu0 0
    %2574 = vmatprep.subr.bf16.mxu0 0
    %2575 = vmatpush1.bf16.msra.mxu0 0
    %2576 = vmatprep.subr.bf16.mxu0 0
    %2577 = vmatpush1.bf16.msra.mxu0 0
    %2578 = vmatprep.subr.bf16.mxu0 0
    %2579 = vmatpush1.bf16.msra.mxu0 0
    %2580 = vmatprep.subr.bf16.mxu0 0
    %2581 = vmatpush1.bf16.msra.mxu0 0
    %2582 = vmatprep.subr.bf16.mxu0 0
    %2583 = vmatpush1.bf16.msra.mxu0 0
    %2584 = vmatprep.subr.bf16.mxu0 0
    %2585 = vmatpush1.bf16.msra.mxu0 0
    %2586 = vmatprep.subr.bf16.mxu0 0
    %2587 = vmatpush1.bf16.msra.mxu0 0
    %2588 = vmatprep.mubr.bf16.mxu0 0
    %2589 = vmatmul.mubr.bf16.gmra.mrb[0].mxu0 %v2300
    %v2590 = vpop.f32.mrb[0].mxu0
    %v2591 = vadd.f32 %v2296, %v2590
    %v2592 = vpop.f32.mrb[0].mxu0
    %v2593 = vadd.f32 %v2296, %v2592
    %v2594 = vpop.f32.mrb[0].mxu0
    %v2595 = vpop.f32.mrb[0].mxu0
    %2596 = vdwg.mxu0
    %2597 = vmatprep.subr.bf16.mxu0 %v2230
    %2598 = vmatpush1.bf16.msra.mxu0 %v2229
    %2599 = vmatprep.subr.bf16.mxu0 %v2245
    %2600 = vmatpush1.bf16.msra.mxu0 %v2244
    %2601 = vmatprep.subr.bf16.mxu0 %v2260
    %2602 = vmatpush1.bf16.msra.mxu0 %v2259
    %2603 = vmatprep.subr.bf16.mxu0 %v2275
    %2604 = vmatpush1.bf16.msra.mxu0 %v2274
    %2605 = vmatprep.subr.bf16.mxu0 %v2346
    %2606 = vmatpush1.bf16.msra.mxu0 %v2343
    %2607 = vmatprep.subr.bf16.mxu0 0
    %2608 = vmatpush1.bf16.msra.mxu0 0
    %2609 = vmatprep.subr.bf16.mxu0 0
    %2610 = vmatpush1.bf16.msra.mxu0 0
    %2611 = vmatprep.subr.bf16.mxu0 0
    %2612 = vmatpush1.bf16.msra.mxu0 0
    %2613 = vmatprep.subr.bf16.mxu0 0
    %2614 = vmatpush1.bf16.msra.mxu0 0
    %2615 = vmatprep.subr.bf16.mxu0 0
    %2616 = vmatpush1.bf16.msra.mxu0 0
    %2617 = vmatprep.subr.bf16.mxu0 0
    %2618 = vmatpush1.bf16.msra.mxu0 0
    %2619 = vmatprep.subr.bf16.mxu0 0
    %2620 = vmatpush1.bf16.msra.mxu0 0
    %2621 = vmatprep.subr.bf16.mxu0 0
    %2622 = vmatpush1.bf16.msra.mxu0 0
    %2623 = vmatprep.subr.bf16.mxu0 0
    %2624 = vmatpush1.bf16.msra.mxu0 0
    %2625 = vmatprep.subr.bf16.mxu0 0
    %2626 = vmatpush1.bf16.msra.mxu0 0
    %2627 = vmatprep.subr.bf16.mxu0 0
    %2628 = vmatpush1.bf16.msra.mxu0 0
    %2629 = vmatprep.mubr.bf16.mxu0 0
    %2630 = vmatmul.mubr.bf16.gmra.mrb[0].mxu0 %v2300
    %v2631 = vpop.f32.mrb[0].mxu0
    %v2632 = vadd.f32 %v2296, %v2631
    %v2633 = vpop.f32.mrb[0].mxu0
    %v2634 = vadd.f32 %v2296, %v2633
    %v2635 = vpop.f32.mrb[0].mxu0
    %v2636 = vpop.f32.mrb[0].mxu0
    %2637 = vdwg.mxu0
    %2638 = vmatprep.subr.bf16.mxu0 0
    %2639 = vmatpush1.bf16.msra.mxu0 %v2231
    %2640 = vmatprep.subr.bf16.mxu0 0
    %2641 = vmatpush1.bf16.msra.mxu0 %v2246
    %2642 = vmatprep.subr.bf16.mxu0 0
    %2643 = vmatpush1.bf16.msra.mxu0 %v2261
    %2644 = vmatprep.subr.bf16.mxu0 0
    %2645 = vmatpush1.bf16.msra.mxu0 %v2276
    %2646 = vmatprep.subr.bf16.mxu0 0
    %2647 = vmatpush1.bf16.msra.mxu0 %v2349
    %2648 = vmatprep.subr.bf16.mxu0 0
    %2649 = vmatpush1.bf16.msra.mxu0 0
    %2650 = vmatprep.subr.bf16.mxu0 0
    %2651 = vmatpush1.bf16.msra.mxu0 0
    %2652 = vmatprep.subr.bf16.mxu0 0
    %2653 = vmatpush1.bf16.msra.mxu0 0
    %2654 = vmatprep.subr.bf16.mxu0 0
    %2655 = vmatpush1.bf16.msra.mxu0 0
    %2656 = vmatprep.subr.bf16.mxu0 0
    %2657 = vmatpush1.bf16.msra.mxu0 0
    %2658 = vmatprep.subr.bf16.mxu0 0
    %2659 = vmatpush1.bf16.msra.mxu0 0
    %2660 = vmatprep.subr.bf16.mxu0 0
    %2661 = vmatpush1.bf16.msra.mxu0 0
    %2662 = vmatprep.subr.bf16.mxu0 0
    %2663 = vmatpush1.bf16.msra.mxu0 0
    %2664 = vmatprep.subr.bf16.mxu0 0
    %2665 = vmatpush1.bf16.msra.mxu0 0
    %2666 = vmatprep.subr.bf16.mxu0 0
    %2667 = vmatpush1.bf16.msra.mxu0 0
    %2668 = vmatprep.subr.bf16.mxu0 0
    %2669 = vmatpush1.bf16.msra.mxu0 0
    %2670 = vmatprep.mubr.bf16.mxu0 0
    %2671 = vmatmul.mubr.bf16.gmra.mrb[0].mxu0 %v2300
    %v2672 = vpop.f32.mrb[0].mxu0
    %v2673 = vadd.f32 %v2296, %v2672
    %v2674 = vpop.f32.mrb[0].mxu0
    %v2675 = vpop.f32.mrb[0].mxu0
    %v2676 = vpop.f32.mrb[0].mxu0
    %2677 = vdwg.mxu0
    %v2678 = vmax.f32 %v2386, 0.0
    %v2679 = vmax.f32 %v2388, 0.0
    %v2680 = vmax.f32 %v2427, 0.0
    %v2681 = vmax.f32 %v2429, 0.0
    %v2682 = vmax.f32 %v2468, 0.0
    %v2683 = vmax.f32 %v2470, 0.0
    %v2684 = vmax.f32 %v2509, 0.0
    %v2685 = vmax.f32 %v2511, 0.0
    %v2686 = vmax.f32 %v2550, 0.0
    %v2687 = vmax.f32 %v2552, 0.0
    %v2688 = vmax.f32 %v2591, 0.0
    %v2689 = vmax.f32 %v2593, 0.0
    %v2690 = vmax.f32 %v2632, 0.0
    %v2691 = vmax.f32 %v2634, 0.0
    %v2692 = vmax.f32 %v2673, 0.0
    %2708 = vrot.lane.b32.xlu0 %v2678, 127
    %v2709 = vpop.permute.xlu0 %2708
    %2710 = vrot.lane.b32.xlu0 %v2679, 127
    %v2711 = vpop.permute.xlu0 %2710
    %2712 = vrot.lane.b32.xlu0 %v2680, 127
    %v2713 = vpop.permute.xlu0 %2712
    %2714 = vrot.lane.b32.xlu0 %v2681, 127
    %v2715 = vpop.permute.xlu0 %2714
    %2716 = vrot.lane.b32.xlu0 %v2682, 127
    %v2717 = vpop.permute.xlu0 %2716
    %2718 = vrot.lane.b32.xlu0 %v2683, 127
    %v2719 = vpop.permute.xlu0 %2718
    %2720 = vrot.lane.b32.xlu0 %v2684, 127
    %v2721 = vpop.permute.xlu0 %2720
    %2722 = vrot.lane.b32.xlu0 %v2685, 127
    %v2723 = vpop.permute.xlu0 %2722
    %2724 = vrot.lane.b32.xlu0 %v2686, 127
    %v2725 = vpop.permute.xlu0 %2724
    %2726 = vrot.lane.b32.xlu0 %v2687, 127
    %v2727 = vpop.permute.xlu0 %2726
    %2728 = vrot.lane.b32.xlu0 %v2688, 127
    %v2729 = vpop.permute.xlu0 %2728
    %2730 = vrot.lane.b32.xlu0 %v2689, 127
    %v2731 = vpop.permute.xlu0 %2730
    %2732 = vrot.lane.b32.xlu0 %v2690, 127
    %v2733 = vpop.permute.xlu0 %2732
    %2734 = vrot.lane.b32.xlu0 %v2691, 127
    %v2735 = vpop.permute.xlu0 %2734
    %2736 = vrot.lane.b32.xlu0 %v2692, 127
    %v2737 = vpop.permute.xlu0 %2736
    %v2738 = vsel %vm131, %v2709, %v2711
    %v2739 = vsel %vm131, %v2711, %v2713
    %v2740 = vsel %vm131, %v2713, %v2715
    %v2741 = vsel %vm131, %v2715, %v2717
    %v2742 = vsel %vm131, %v2717, %v2719
    %v2743 = vsel %vm131, %v2719, %v2721
    %v2744 = vsel %vm131, %v2721, %v2723
    %v2745 = vsel %vm131, %v2723, %v2725
    %v2746 = vsel %vm131, %v2725, %v2727
    %v2747 = vsel %vm131, %v2727, %v2729
    %v2748 = vsel %vm131, %v2729, %v2731
    %v2749 = vsel %vm131, %v2731, %v2733
    %v2750 = vsel %vm131, %v2733, %v2735
    %v2751 = vsel %vm131, %v2735, %v2737
    %v2767 = vmax.f32 %v2678, %v2738
    %v2768 = vmax.f32 %v2679, %v2739
    %v2769 = vmax.f32 %v2680, %v2740
    %v2770 = vmax.f32 %v2681, %v2741
    %v2771 = vmax.f32 %v2682, %v2742
    %v2772 = vmax.f32 %v2683, %v2743
    %v2773 = vmax.f32 %v2684, %v2744
    %v2774 = vmax.f32 %v2685, %v2745
    %v2775 = vmax.f32 %v2686, %v2746
    %v2776 = vmax.f32 %v2687, %v2747
    %v2777 = vmax.f32 %v2688, %v2748
    %v2778 = vmax.f32 %v2689, %v2749
    %v2779 = vmax.f32 %v2690, %v2750
    %v2780 = vmax.f32 %v2691, %v2751
    %v2781 = vmax.f32 %v2692, %v2737
    %2797 = vrot.lane.b32.xlu0 %v2767, 96
    %v2798 = vpop.permute.xlu0 %2797
    %2799 = vrot.lane.b32.xlu0 %v2768, 96
    %v2800 = vpop.permute.xlu0 %2799
    %2801 = vrot.lane.b32.xlu0 %v2769, 96
    %v2802 = vpop.permute.xlu0 %2801
    %2803 = vrot.lane.b32.xlu0 %v2770, 96
    %v2804 = vpop.permute.xlu0 %2803
    %2805 = vrot.lane.b32.xlu0 %v2771, 96
    %v2806 = vpop.permute.xlu0 %2805
    %2807 = vrot.lane.b32.xlu0 %v2772, 96
    %v2808 = vpop.permute.xlu0 %2807
    %2809 = vrot.lane.b32.xlu0 %v2773, 96
    %v2810 = vpop.permute.xlu0 %2809
    %2811 = vrot.lane.b32.xlu0 %v2774, 96
    %v2812 = vpop.permute.xlu0 %2811
    %2813 = vrot.lane.b32.xlu0 %v2775, 96
    %v2814 = vpop.permute.xlu0 %2813
    %2815 = vrot.lane.b32.xlu0 %v2776, 96
    %v2816 = vpop.permute.xlu0 %2815
    %2817 = vrot.lane.b32.xlu0 %v2777, 96
    %v2818 = vpop.permute.xlu0 %2817
    %2819 = vrot.lane.b32.xlu0 %v2778, 96
    %v2820 = vpop.permute.xlu0 %2819
    %2821 = vrot.lane.b32.xlu0 %v2779, 96
    %v2822 = vpop.permute.xlu0 %2821
    %2823 = vrot.lane.b32.xlu0 %v2780, 96
    %v2824 = vpop.permute.xlu0 %2823
    %2825 = vrot.lane.b32.xlu0 %v2781, 96
    %v2826 = vpop.permute.xlu0 %2825
    %v2827 = vsel %vm508, %v2798, %v2800
    %v2828 = vsel %vm508, %v2800, %v2802
    %v2829 = vsel %vm508, %v2802, %v2804
    %v2830 = vsel %vm508, %v2804, %v2806
    %v2831 = vsel %vm508, %v2806, %v2808
    %v2832 = vsel %vm508, %v2808, %v2810
    %v2833 = vsel %vm508, %v2810, %v2812
    %v2834 = vsel %vm508, %v2812, %v2814
    %v2835 = vsel %vm508, %v2814, %v2816
    %v2836 = vsel %vm508, %v2816, %v2818
    %v2837 = vsel %vm508, %v2818, %v2820
    %v2838 = vsel %vm508, %v2820, %v2822
    %v2839 = vsel %vm508, %v2822, %v2824
    %v2840 = vsel %vm508, %v2824, %v2826
    %v2856 = vmax.f32 %v2767, %v2827
    %v2857 = vmax.f32 %v2768, %v2828
    %v2858 = vmax.f32 %v2769, %v2829
    %v2859 = vmax.f32 %v2770, %v2830
    %v2860 = vmax.f32 %v2771, %v2831
    %v2861 = vmax.f32 %v2772, %v2832
    %v2862 = vmax.f32 %v2773, %v2833
    %v2863 = vmax.f32 %v2774, %v2834
    %v2864 = vmax.f32 %v2775, %v2835
    %v2865 = vmax.f32 %v2776, %v2836
    %v2866 = vmax.f32 %v2777, %v2837
    %v2867 = vmax.f32 %v2778, %v2838
    %v2868 = vmax.f32 %v2779, %v2839
    %v2869 = vmax.f32 %v2780, %v2840
    %v2870 = vmax.f32 %v2781, %v2826
    %2871 = vst [vmem:[#allocation3] sm:$0x3f] %v2856
    %2872 = vst [vmem:[#allocation3 + $0x8] sm:$0x3f] %v2857
    %2873 = vst [vmem:[#allocation3 + $0x10] sm:$0x3f] %v2858
    %2874 = vst [vmem:[#allocation3 + $0x18] sm:$0x3f] %v2859
    %2875 = vst [vmem:[#allocation3 + $0x20] sm:$0x3f] %v2860
    %2876 = vst [vmem:[#allocation3 + $0x28] sm:$0x3f] %v2861
    %2877 = vst [vmem:[#allocation3 + $0x30] sm:$0x3f] %v2862
    %2878 = vst [vmem:[#allocation3 + $0x38] sm:$0x3f] %v2863
    %2879 = vst [vmem:[#allocation3 + $0x40] sm:$0x3f] %v2864
    %2880 = vst [vmem:[#allocation3 + $0x48] sm:$0x3f] %v2865
    %2881 = vst [vmem:[#allocation3 + $0x50] sm:$0x3f] %v2866
    %2882 = vst [vmem:[#allocation3 + $0x58] sm:$0x3f] %v2867
    %vm2883 = vcmask 676864
    %2884 = vst.msk [vmem:[#allocation3 + $0x60] sm:$0x3f] %vm2883, %v2868
    %v2898 = vrot.slane %v2856, 2
    %v2899 = vrot.slane %v2857, 2
    %v2900 = vrot.slane %v2858, 2
    %v2901 = vrot.slane %v2859, 2
    %v2902 = vrot.slane %v2860, 2
    %v2903 = vrot.slane %v2861, 2
    %v2904 = vrot.slane %v2862, 2
    %v2905 = vrot.slane %v2863, 2
    %v2906 = vrot.slane %v2864, 2
    %v2907 = vrot.slane %v2865, 2
    %v2908 = vrot.slane %v2866, 2
    %v2909 = vrot.slane %v2867, 2
    %v2910 = vrot.slane %v2868, 2
    %2911 = vrot.lane.b32.xlu0 %v2898, 126
    %v2912 = vpop.permute.xlu0 %2911
    %2913 = vrot.lane.b32.xlu0 %v2899, 126
    %v2914 = vpop.permute.xlu0 %2913
    %2915 = vrot.lane.b32.xlu0 %v2900, 126
    %v2916 = vpop.permute.xlu0 %2915
    %2917 = vrot.lane.b32.xlu0 %v2901, 126
    %v2918 = vpop.permute.xlu0 %2917
    %2919 = vrot.lane.b32.xlu0 %v2902, 126
    %v2920 = vpop.permute.xlu0 %2919
    %2921 = vrot.lane.b32.xlu0 %v2903, 126
    %v2922 = vpop.permute.xlu0 %2921
    %2923 = vrot.lane.b32.xlu0 %v2904, 126
    %v2924 = vpop.permute.xlu0 %2923
    %2925 = vrot.lane.b32.xlu0 %v2905, 126
    %v2926 = vpop.permute.xlu0 %2925
    %2927 = vrot.lane.b32.xlu0 %v2906, 126
    %v2928 = vpop.permute.xlu0 %2927
    %2929 = vrot.lane.b32.xlu0 %v2907, 126
    %v2930 = vpop.permute.xlu0 %2929
    %2931 = vrot.lane.b32.xlu0 %v2908, 126
    %v2932 = vpop.permute.xlu0 %2931
    %2933 = vrot.lane.b32.xlu0 %v2909, 126
    %v2934 = vpop.permute.xlu0 %2933
    %2935 = vrot.lane.b32.xlu0 %v2910, 126
    %v2936 = vpop.permute.xlu0 %2935
    %v2937 = vsel %vm222, %v2912, %v2914
    %v2938 = vsel %vm222, %v2914, %v2916
    %v2939 = vsel %vm222, %v2916, %v2918
    %v2940 = vsel %vm222, %v2918, %v2920
    %v2941 = vsel %vm222, %v2920, %v2922
    %v2942 = vsel %vm222, %v2922, %v2924
    %v2943 = vsel %vm222, %v2924, %v2926
    %v2944 = vsel %vm222, %v2926, %v2928
    %v2945 = vsel %vm222, %v2928, %v2930
    %v2946 = vsel %vm222, %v2930, %v2932
    %v2947 = vsel %vm222, %v2932, %v2934
    %v2948 = vsel %vm222, %v2934, %v2936
    %2962 = vst [vmem:[#allocation3] sm:$0xc0] %v2937
    %2963 = vst [vmem:[#allocation3 + $0x8] sm:$0xc0] %v2938
    %2964 = vst [vmem:[#allocation3 + $0x10] sm:$0xc0] %v2939
    %2965 = vst [vmem:[#allocation3 + $0x18] sm:$0xc0] %v2940
    %2966 = vst [vmem:[#allocation3 + $0x20] sm:$0xc0] %v2941
    %2967 = vst [vmem:[#allocation3 + $0x28] sm:$0xc0] %v2942
    %2968 = vst [vmem:[#allocation3 + $0x30] sm:$0xc0] %v2943
    %2969 = vst [vmem:[#allocation3 + $0x38] sm:$0xc0] %v2944
    %2970 = vst [vmem:[#allocation3 + $0x40] sm:$0xc0] %v2945
    %2971 = vst [vmem:[#allocation3 + $0x48] sm:$0xc0] %v2946
    %2972 = vst [vmem:[#allocation3 + $0x50] sm:$0xc0] %v2947
    %2973 = vst [vmem:[#allocation3 + $0x58] sm:$0xc0] %v2948
    %vm2974 = vcmask 678918
    %2975 = vst.msk [vmem:[#allocation3 + $0x60] sm:$0xc0] %vm2974, %v2936
    %2976 = vst [vmem:[#allocation3 + $0x68] sm:$0xf] %v2937
    %2977 = vst [vmem:[#allocation3 + $0x70] sm:$0xf] %v2938
    %2978 = vst [vmem:[#allocation3 + $0x78] sm:$0xf] %v2939
    %2979 = vst [vmem:[#allocation3 + $0x80] sm:$0xf] %v2940
    %2980 = vst [vmem:[#allocation3 + $0x88] sm:$0xf] %v2941
    %2981 = vst [vmem:[#allocation3 + $0x90] sm:$0xf] %v2942
    %2982 = vst [vmem:[#allocation3 + $0x98] sm:$0xf] %v2943
    %2983 = vst [vmem:[#allocation3 + $0xa0] sm:$0xf] %v2944
    %2984 = vst [vmem:[#allocation3 + $0xa8] sm:$0xf] %v2945
    %2985 = vst [vmem:[#allocation3 + $0xb0] sm:$0xf] %v2946
    %2986 = vst [vmem:[#allocation3 + $0xb8] sm:$0xf] %v2947
    %2987 = vst [vmem:[#allocation3 + $0xc0] sm:$0xf] %v2948
    %vm2988 = vcmask 674816
    %2989 = vst.msk [vmem:[#allocation3 + $0xc8] sm:$0xf] %vm2988, %v2936
    %v2990 = vrot.slane %v2856, 4
    %v2991 = vrot.slane %v2857, 4
    %v2992 = vrot.slane %v2858, 4
    %v2993 = vrot.slane %v2859, 4
    %v2994 = vrot.slane %v2860, 4
    %v2995 = vrot.slane %v2861, 4
    %v2996 = vrot.slane %v2862, 4
    %v2997 = vrot.slane %v2863, 4
    %v2998 = vrot.slane %v2864, 4
    %v2999 = vrot.slane %v2865, 4
    %v3000 = vrot.slane %v2866, 4
    %v3001 = vrot.slane %v2867, 4
    %v3002 = vrot.slane %v2868, 4
    %3003 = vrot.lane.b32.xlu0 %v2990, 124
    %v3004 = vpop.permute.xlu0 %3003
    %3005 = vrot.lane.b32.xlu0 %v2991, 124
    %v3006 = vpop.permute.xlu0 %3005
    %3007 = vrot.lane.b32.xlu0 %v2992, 124
    %v3008 = vpop.permute.xlu0 %3007
    %3009 = vrot.lane.b32.xlu0 %v2993, 124
    %v3010 = vpop.permute.xlu0 %3009
    %3011 = vrot.lane.b32.xlu0 %v2994, 124
    %v3012 = vpop.permute.xlu0 %3011
    %3013 = vrot.lane.b32.xlu0 %v2995, 124
    %v3014 = vpop.permute.xlu0 %3013
    %3015 = vrot.lane.b32.xlu0 %v2996, 124
    %v3016 = vpop.permute.xlu0 %3015
    %3017 = vrot.lane.b32.xlu0 %v2997, 124
    %v3018 = vpop.permute.xlu0 %3017
    %3019 = vrot.lane.b32.xlu0 %v2998, 124
    %v3020 = vpop.permute.xlu0 %3019
    %3021 = vrot.lane.b32.xlu0 %v2999, 124
    %v3022 = vpop.permute.xlu0 %3021
    %3023 = vrot.lane.b32.xlu0 %v3000, 124
    %v3024 = vpop.permute.xlu0 %3023
    %3025 = vrot.lane.b32.xlu0 %v3001, 124
    %v3026 = vpop.permute.xlu0 %3025
    %3027 = vrot.lane.b32.xlu0 %v3002, 124
    %v3028 = vpop.permute.xlu0 %3027
    %v3029 = vsel %vm413, %v3004, %v3006
    %v3030 = vsel %vm413, %v3006, %v3008
    %v3031 = vsel %vm413, %v3008, %v3010
    %v3032 = vsel %vm413, %v3010, %v3012
    %v3033 = vsel %vm413, %v3012, %v3014
    %v3034 = vsel %vm413, %v3014, %v3016
    %v3035 = vsel %vm413, %v3016, %v3018
    %v3036 = vsel %vm413, %v3018, %v3020
    %v3037 = vsel %vm413, %v3020, %v3022
    %v3038 = vsel %vm413, %v3022, %v3024
    %v3039 = vsel %vm413, %v3024, %v3026
    %v3040 = vsel %vm413, %v3026, %v3028
    %3054 = vst [vmem:[#allocation3 + $0x68] sm:$0xf0] %v3029
    %3055 = vst [vmem:[#allocation3 + $0x70] sm:$0xf0] %v3030
    %3056 = vst [vmem:[#allocation3 + $0x78] sm:$0xf0] %v3031
    %3057 = vst [vmem:[#allocation3 + $0x80] sm:$0xf0] %v3032
    %3058 = vst [vmem:[#allocation3 + $0x88] sm:$0xf0] %v3033
    %3059 = vst [vmem:[#allocation3 + $0x90] sm:$0xf0] %v3034
    %3060 = vst [vmem:[#allocation3 + $0x98] sm:$0xf0] %v3035
    %3061 = vst [vmem:[#allocation3 + $0xa0] sm:$0xf0] %v3036
    %3062 = vst [vmem:[#allocation3 + $0xa8] sm:$0xf0] %v3037
    %3063 = vst [vmem:[#allocation3 + $0xb0] sm:$0xf0] %v3038
    %3064 = vst [vmem:[#allocation3 + $0xb8] sm:$0xf0] %v3039
    %3065 = vst [vmem:[#allocation3 + $0xc0] sm:$0xf0] %v3040
    %vm3066 = vcmask 678916
    %3067 = vst.msk [vmem:[#allocation3 + $0xc8] sm:$0xf0] %vm3066, %v3028
    %3068 = vst [vmem:[#allocation3 + $0xd0] sm:$0x3] %v3029
    %3069 = vst [vmem:[#allocation3 + $0xd8] sm:$0x3] %v3030
    %3070 = vst [vmem:[#allocation3 + $0xe0] sm:$0x3] %v3031
    %3071 = vst [vmem:[#allocation3 + $0xe8] sm:$0x3] %v3032
    %3072 = vst [vmem:[#allocation3 + $0xf0] sm:$0x3] %v3033
    %3073 = vst [vmem:[#allocation3 + $0xf8] sm:$0x3] %v3034
    %3074 = vst [vmem:[#allocation3 + $0x100] sm:$0x3] %v3035
    %3075 = vst [vmem:[#allocation3 + $0x108] sm:$0x3] %v3036
    %3076 = vst [vmem:[#allocation3 + $0x110] sm:$0x3] %v3037
    %3077 = vst [vmem:[#allocation3 + $0x118] sm:$0x3] %v3038
    %3078 = vst [vmem:[#allocation3 + $0x120] sm:$0x3] %v3039
    %3079 = vst [vmem:[#allocation3 + $0x128] sm:$0x3] %v3040
    %vm3080 = vcmask 672768
    %3081 = vst.msk [vmem:[#allocation3 + $0x130] sm:$0x3] %vm3080, %v3028
    %v3082 = vrot.slane %v2856, 6
    %v3083 = vrot.slane %v2857, 6
    %v3084 = vrot.slane %v2858, 6
    %v3085 = vrot.slane %v2859, 6
    %v3086 = vrot.slane %v2860, 6
    %v3087 = vrot.slane %v2861, 6
    %v3088 = vrot.slane %v2862, 6
    %v3089 = vrot.slane %v2863, 6
    %v3090 = vrot.slane %v2864, 6
    %v3091 = vrot.slane %v2865, 6
    %v3092 = vrot.slane %v2866, 6
    %v3093 = vrot.slane %v2867, 6
    %v3094 = vrot.slane %v2868, 6
    %3095 = vrot.lane.b32.xlu0 %v3082, 122
    %v3096 = vpop.permute.xlu0 %3095
    %3097 = vrot.lane.b32.xlu0 %v3083, 122
    %v3098 = vpop.permute.xlu0 %3097
    %3099 = vrot.lane.b32.xlu0 %v3084, 122
    %v3100 = vpop.permute.xlu0 %3099
    %3101 = vrot.lane.b32.xlu0 %v3085, 122
    %v3102 = vpop.permute.xlu0 %3101
    %3103 = vrot.lane.b32.xlu0 %v3086, 122
    %v3104 = vpop.permute.xlu0 %3103
    %3105 = vrot.lane.b32.xlu0 %v3087, 122
    %v3106 = vpop.permute.xlu0 %3105
    %3107 = vrot.lane.b32.xlu0 %v3088, 122
    %v3108 = vpop.permute.xlu0 %3107
    %3109 = vrot.lane.b32.xlu0 %v3089, 122
    %v3110 = vpop.permute.xlu0 %3109
    %3111 = vrot.lane.b32.xlu0 %v3090, 122
    %v3112 = vpop.permute.xlu0 %3111
    %3113 = vrot.lane.b32.xlu0 %v3091, 122
    %v3114 = vpop.permute.xlu0 %3113
    %3115 = vrot.lane.b32.xlu0 %v3092, 122
    %v3116 = vpop.permute.xlu0 %3115
    %3117 = vrot.lane.b32.xlu0 %v3093, 122
    %v3118 = vpop.permute.xlu0 %3117
    %3119 = vrot.lane.b32.xlu0 %v3094, 122
    %v3120 = vpop.permute.xlu0 %3119
    %vm3121 = vcmask 998400
    %v3122 = vsel %vm3121, %v3096, %v3098
    %v3123 = vsel %vm3121, %v3098, %v3100
    %v3124 = vsel %vm3121, %v3100, %v3102
    %v3125 = vsel %vm3121, %v3102, %v3104
    %v3126 = vsel %vm3121, %v3104, %v3106
    %v3127 = vsel %vm3121, %v3106, %v3108
    %v3128 = vsel %vm3121, %v3108, %v3110
    %v3129 = vsel %vm3121, %v3110, %v3112
    %v3130 = vsel %vm3121, %v3112, %v3114
    %v3131 = vsel %vm3121, %v3114, %v3116
    %v3132 = vsel %vm3121, %v3116, %v3118
    %v3133 = vsel %vm3121, %v3118, %v3120
    %3147 = vst [vmem:[#allocation3 + $0xd0] sm:$0xfc] %v3122
    %3148 = vst [vmem:[#allocation3 + $0xd8] sm:$0xfc] %v3123
    %3149 = vst [vmem:[#allocation3 + $0xe0] sm:$0xfc] %v3124
    %3150 = vst [vmem:[#allocation3 + $0xe8] sm:$0xfc] %v3125
    %3151 = vst [vmem:[#allocation3 + $0xf0] sm:$0xfc] %v3126
    %3152 = vst [vmem:[#allocation3 + $0xf8] sm:$0xfc] %v3127
    %3153 = vst [vmem:[#allocation3 + $0x100] sm:$0xfc] %v3128
    %3154 = vst [vmem:[#allocation3 + $0x108] sm:$0xfc] %v3129
    %3155 = vst [vmem:[#allocation3 + $0x110] sm:$0xfc] %v3130
    %3156 = vst [vmem:[#allocation3 + $0x118] sm:$0xfc] %v3131
    %3157 = vst [vmem:[#allocation3 + $0x120] sm:$0xfc] %v3132
    %3158 = vst [vmem:[#allocation3 + $0x128] sm:$0xfc] %v3133
    %vm3159 = vcmask 678914
    %3160 = vst.msk [vmem:[#allocation3 + $0x130] sm:$0xfc] %vm3159, %v3120
    %3161 = vrot.lane.b32.xlu0 %v2856, 120
    %v3162 = vpop.permute.xlu0 %3161
    %3163 = vrot.lane.b32.xlu0 %v2857, 120
    %v3164 = vpop.permute.xlu0 %3163
    %3165 = vrot.lane.b32.xlu0 %v2858, 120
    %v3166 = vpop.permute.xlu0 %3165
    %3167 = vrot.lane.b32.xlu0 %v2859, 120
    %v3168 = vpop.permute.xlu0 %3167
    %3169 = vrot.lane.b32.xlu0 %v2860, 120
    %v3170 = vpop.permute.xlu0 %3169
    %3171 = vrot.lane.b32.xlu0 %v2861, 120
    %v3172 = vpop.permute.xlu0 %3171
    %3173 = vrot.lane.b32.xlu0 %v2862, 120
    %v3174 = vpop.permute.xlu0 %3173
    %3175 = vrot.lane.b32.xlu0 %v2863, 120
    %v3176 = vpop.permute.xlu0 %3175
    %3177 = vrot.lane.b32.xlu0 %v2864, 120
    %v3178 = vpop.permute.xlu0 %3177
    %3179 = vrot.lane.b32.xlu0 %v2865, 120
    %v3180 = vpop.permute.xlu0 %3179
    %3181 = vrot.lane.b32.xlu0 %v2866, 120
    %v3182 = vpop.permute.xlu0 %3181
    %3183 = vrot.lane.b32.xlu0 %v2867, 120
    %v3184 = vpop.permute.xlu0 %3183
    %3185 = vrot.lane.b32.xlu0 %v2868, 120
    %v3186 = vpop.permute.xlu0 %3185
    %vm3187 = vcmask 982016
    %v3188 = vsel %vm3187, %v3162, %v3164
    %v3189 = vsel %vm3187, %v3164, %v3166
    %v3190 = vsel %vm3187, %v3166, %v3168
    %v3191 = vsel %vm3187, %v3168, %v3170
    %v3192 = vsel %vm3187, %v3170, %v3172
    %v3193 = vsel %vm3187, %v3172, %v3174
    %v3194 = vsel %vm3187, %v3174, %v3176
    %v3195 = vsel %vm3187, %v3176, %v3178
    %v3196 = vsel %vm3187, %v3178, %v3180
    %v3197 = vsel %vm3187, %v3180, %v3182
    %v3198 = vsel %vm3187, %v3182, %v3184
    %v3199 = vsel %vm3187, %v3184, %v3186
    %3213 = vst [vmem:[#allocation3 + $0x138] sm:$0x3f] %v3188
    %3214 = vst [vmem:[#allocation3 + $0x140] sm:$0x3f] %v3189
    %3215 = vst [vmem:[#allocation3 + $0x148] sm:$0x3f] %v3190
    %3216 = vst [vmem:[#allocation3 + $0x150] sm:$0x3f] %v3191
    %3217 = vst [vmem:[#allocation3 + $0x158] sm:$0x3f] %v3192
    %3218 = vst [vmem:[#allocation3 + $0x160] sm:$0x3f] %v3193
    %3219 = vst [vmem:[#allocation3 + $0x168] sm:$0x3f] %v3194
    %3220 = vst [vmem:[#allocation3 + $0x170] sm:$0x3f] %v3195
    %3221 = vst [vmem:[#allocation3 + $0x178] sm:$0x3f] %v3196
    %3222 = vst [vmem:[#allocation3 + $0x180] sm:$0x3f] %v3197
    %3223 = vst [vmem:[#allocation3 + $0x188] sm:$0x3f] %v3198
    %3224 = vst [vmem:[#allocation3 + $0x190] sm:$0x3f] %v3199
    %3225 = vst.msk [vmem:[#allocation3 + $0x198] sm:$0x3f] %vm2883, %v3186
    %v3227 = vrot.slane %v2869, 2
    %3228 = vrot.lane.b32.xlu0 %v2898, 64
    %v3229 = vpop.permute.xlu0 %3228
    %3230 = vrot.lane.b32.xlu0 %v2899, 64
    %v3231 = vpop.permute.xlu0 %3230
    %3232 = vrot.lane.b32.xlu0 %v2900, 64
    %v3233 = vpop.permute.xlu0 %3232
    %3234 = vrot.lane.b32.xlu0 %v2901, 64
    %v3235 = vpop.permute.xlu0 %3234
    %3236 = vrot.lane.b32.xlu0 %v2902, 64
    %v3237 = vpop.permute.xlu0 %3236
    %3238 = vrot.lane.b32.xlu0 %v2903, 64
    %v3239 = vpop.permute.xlu0 %3238
    %3240 = vrot.lane.b32.xlu0 %v2904, 64
    %v3241 = vpop.permute.xlu0 %3240
    %3242 = vrot.lane.b32.xlu0 %v2905, 64
    %v3243 = vpop.permute.xlu0 %3242
    %3244 = vrot.lane.b32.xlu0 %v2906, 64
    %v3245 = vpop.permute.xlu0 %3244
    %3246 = vrot.lane.b32.xlu0 %v2907, 64
    %v3247 = vpop.permute.xlu0 %3246
    %3248 = vrot.lane.b32.xlu0 %v2908, 64
    %v3249 = vpop.permute.xlu0 %3248
    %3250 = vrot.lane.b32.xlu0 %v2909, 64
    %v3251 = vpop.permute.xlu0 %3250
    %3252 = vrot.lane.b32.xlu0 %v2910, 64
    %v3253 = vpop.permute.xlu0 %3252
    %3254 = vrot.lane.b32.xlu0 %v3227, 64
    %v3255 = vpop.permute.xlu0 %3254
    %v3256 = vsel %vm951, %v3229, %v3231
    %v3257 = vsel %vm951, %v3231, %v3233
    %v3258 = vsel %vm951, %v3233, %v3235
    %v3259 = vsel %vm951, %v3235, %v3237
    %v3260 = vsel %vm951, %v3237, %v3239
    %v3261 = vsel %vm951, %v3239, %v3241
    %v3262 = vsel %vm951, %v3241, %v3243
    %v3263 = vsel %vm951, %v3243, %v3245
    %v3264 = vsel %vm951, %v3245, %v3247
    %v3265 = vsel %vm951, %v3247, %v3249
    %v3266 = vsel %vm951, %v3249, %v3251
    %v3267 = vsel %vm951, %v3251, %v3253
    %v3268 = vsel %vm951, %v3253, %v3255
    %3282 = vst [vmem:[#allocation3 + $0x138] sm:$0xc0] %v3256
    %3283 = vst [vmem:[#allocation3 + $0x140] sm:$0xc0] %v3257
    %3284 = vst [vmem:[#allocation3 + $0x148] sm:$0xc0] %v3258
    %3285 = vst [vmem:[#allocation3 + $0x150] sm:$0xc0] %v3259
    %3286 = vst [vmem:[#allocation3 + $0x158] sm:$0xc0] %v3260
    %3287 = vst [vmem:[#allocation3 + $0x160] sm:$0xc0] %v3261
    %3288 = vst [vmem:[#allocation3 + $0x168] sm:$0xc0] %v3262
    %3289 = vst [vmem:[#allocation3 + $0x170] sm:$0xc0] %v3263
    %3290 = vst [vmem:[#allocation3 + $0x178] sm:$0xc0] %v3264
    %3291 = vst [vmem:[#allocation3 + $0x180] sm:$0xc0] %v3265
    %3292 = vst [vmem:[#allocation3 + $0x188] sm:$0xc0] %v3266
    %3293 = vst [vmem:[#allocation3 + $0x190] sm:$0xc0] %v3267
    %3294 = vst.msk [vmem:[#allocation3 + $0x198] sm:$0xc0] %vm2974, %v3268
    %3295 = vst [vmem:[#allocation3 + $0x1a0] sm:$0xf] %v3256
    %3296 = vst [vmem:[#allocation3 + $0x1a8] sm:$0xf] %v3257
    %3297 = vst [vmem:[#allocation3 + $0x1b0] sm:$0xf] %v3258
    %3298 = vst [vmem:[#allocation3 + $0x1b8] sm:$0xf] %v3259
    %3299 = vst [vmem:[#allocation3 + $0x1c0] sm:$0xf] %v3260
    %3300 = vst [vmem:[#allocation3 + $0x1c8] sm:$0xf] %v3261
    %3301 = vst [vmem:[#allocation3 + $0x1d0] sm:$0xf] %v3262
    %3302 = vst [vmem:[#allocation3 + $0x1d8] sm:$0xf] %v3263
    %3303 = vst [vmem:[#allocation3 + $0x1e0] sm:$0xf] %v3264
    %3304 = vst [vmem:[#allocation3 + $0x1e8] sm:$0xf] %v3265
    %3305 = vst [vmem:[#allocation3 + $0x1f0] sm:$0xf] %v3266
    %3306 = vst [vmem:[#allocation3 + $0x1f8] sm:$0xf] %v3267
    %3307 = vst.msk [vmem:[#allocation3 + $0x200] sm:$0xf] %vm2988, %v3268
    %v3308 = vrot.slane %v2869, 4
    %3309 = vrot.lane.b32.xlu0 %v2990, 62
    %v3310 = vpop.permute.xlu0 %3309
    %3311 = vrot.lane.b32.xlu0 %v2991, 62
    %v3312 = vpop.permute.xlu0 %3311
    %3313 = vrot.lane.b32.xlu0 %v2992, 62
    %v3314 = vpop.permute.xlu0 %3313
    %3315 = vrot.lane.b32.xlu0 %v2993, 62
    %v3316 = vpop.permute.xlu0 %3315
    %3317 = vrot.lane.b32.xlu0 %v2994, 62
    %v3318 = vpop.permute.xlu0 %3317
    %3319 = vrot.lane.b32.xlu0 %v2995, 62
    %v3320 = vpop.permute.xlu0 %3319
    %3321 = vrot.lane.b32.xlu0 %v2996, 62
    %v3322 = vpop.permute.xlu0 %3321
    %3323 = vrot.lane.b32.xlu0 %v2997, 62
    %v3324 = vpop.permute.xlu0 %3323
    %3325 = vrot.lane.b32.xlu0 %v2998, 62
    %v3326 = vpop.permute.xlu0 %3325
    %3327 = vrot.lane.b32.xlu0 %v2999, 62
    %v3328 = vpop.permute.xlu0 %3327
    %3329 = vrot.lane.b32.xlu0 %v3000, 62
    %v3330 = vpop.permute.xlu0 %3329
    %3331 = vrot.lane.b32.xlu0 %v3001, 62
    %v3332 = vpop.permute.xlu0 %3331
    %3333 = vrot.lane.b32.xlu0 %v3002, 62
    %v3334 = vpop.permute.xlu0 %3333
    %3335 = vrot.lane.b32.xlu0 %v3308, 62
    %v3336 = vpop.permute.xlu0 %3335
    %v3337 = vsel %vm1123, %v3310, %v3312
    %v3338 = vsel %vm1123, %v3312, %v3314
    %v3339 = vsel %vm1123, %v3314, %v3316
    %v3340 = vsel %vm1123, %v3316, %v3318
    %v3341 = vsel %vm1123, %v3318, %v3320
    %v3342 = vsel %vm1123, %v3320, %v3322
    %v3343 = vsel %vm1123, %v3322, %v3324
    %v3344 = vsel %vm1123, %v3324, %v3326
    %v3345 = vsel %vm1123, %v3326, %v3328
    %v3346 = vsel %vm1123, %v3328, %v3330
    %v3347 = vsel %vm1123, %v3330, %v3332
    %v3348 = vsel %vm1123, %v3332, %v3334
    %v3349 = vsel %vm1123, %v3334, %v3336
    %3363 = vst [vmem:[#allocation3 + $0x1a0] sm:$0xf0] %v3337
    %3364 = vst [vmem:[#allocation3 + $0x1a8] sm:$0xf0] %v3338
    %3365 = vst [vmem:[#allocation3 + $0x1b0] sm:$0xf0] %v3339
    %3366 = vst [vmem:[#allocation3 + $0x1b8] sm:$0xf0] %v3340
    %3367 = vst [vmem:[#allocation3 + $0x1c0] sm:$0xf0] %v3341
    %3368 = vst [vmem:[#allocation3 + $0x1c8] sm:$0xf0] %v3342
    %3369 = vst [vmem:[#allocation3 + $0x1d0] sm:$0xf0] %v3343
    %3370 = vst [vmem:[#allocation3 + $0x1d8] sm:$0xf0] %v3344
    %3371 = vst [vmem:[#allocation3 + $0x1e0] sm:$0xf0] %v3345
    %3372 = vst [vmem:[#allocation3 + $0x1e8] sm:$0xf0] %v3346
    %3373 = vst [vmem:[#allocation3 + $0x1f0] sm:$0xf0] %v3347
    %3374 = vst [vmem:[#allocation3 + $0x1f8] sm:$0xf0] %v3348
    %3375 = vst.msk [vmem:[#allocation3 + $0x200] sm:$0xf0] %vm3066, %v3349
    %3376 = vst [vmem:[#allocation3 + $0x208] sm:$0x3] %v3337
    %3377 = vst [vmem:[#allocation3 + $0x210] sm:$0x3] %v3338
    %3378 = vst [vmem:[#allocation3 + $0x218] sm:$0x3] %v3339
    %3379 = vst [vmem:[#allocation3 + $0x220] sm:$0x3] %v3340
    %3380 = vst [vmem:[#allocation3 + $0x228] sm:$0x3] %v3341
    %3381 = vst [vmem:[#allocation3 + $0x230] sm:$0x3] %v3342
    %3382 = vst [vmem:[#allocation3 + $0x238] sm:$0x3] %v3343
    %3383 = vst [vmem:[#allocation3 + $0x240] sm:$0x3] %v3344
    %3384 = vst [vmem:[#allocation3 + $0x248] sm:$0x3] %v3345
    %3385 = vst [vmem:[#allocation3 + $0x250] sm:$0x3] %v3346
    %3386 = vst [vmem:[#allocation3 + $0x258] sm:$0x3] %v3347
    %3387 = vst [vmem:[#allocation3 + $0x260] sm:$0x3] %v3348
    %3388 = vst.msk [vmem:[#allocation3 + $0x268] sm:$0x3] %vm3080, %v3349
    %v3389 = vrot.slane %v2869, 6
    %3390 = vrot.lane.b32.xlu0 %v3082, 60
    %v3391 = vpop.permute.xlu0 %3390
    %3392 = vrot.lane.b32.xlu0 %v3083, 60
    %v3393 = vpop.permute.xlu0 %3392
    %3394 = vrot.lane.b32.xlu0 %v3084, 60
    %v3395 = vpop.permute.xlu0 %3394
    %3396 = vrot.lane.b32.xlu0 %v3085, 60
    %v3397 = vpop.permute.xlu0 %3396
    %3398 = vrot.lane.b32.xlu0 %v3086, 60
    %v3399 = vpop.permute.xlu0 %3398
    %3400 = vrot.lane.b32.xlu0 %v3087, 60
    %v3401 = vpop.permute.xlu0 %3400
    %3402 = vrot.lane.b32.xlu0 %v3088, 60
    %v3403 = vpop.permute.xlu0 %3402
    %3404 = vrot.lane.b32.xlu0 %v3089, 60
    %v3405 = vpop.permute.xlu0 %3404
    %3406 = vrot.lane.b32.xlu0 %v3090, 60
    %v3407 = vpop.permute.xlu0 %3406
    %3408 = vrot.lane.b32.xlu0 %v3091, 60
    %v3409 = vpop.permute.xlu0 %3408
    %3410 = vrot.lane.b32.xlu0 %v3092, 60
    %v3411 = vpop.permute.xlu0 %3410
    %3412 = vrot.lane.b32.xlu0 %v3093, 60
    %v3413 = vpop.permute.xlu0 %3412
    %3414 = vrot.lane.b32.xlu0 %v3094, 60
    %v3415 = vpop.permute.xlu0 %3414
    %3416 = vrot.lane.b32.xlu0 %v3389, 60
    %v3417 = vpop.permute.xlu0 %3416
    %v3418 = vsel %vm1294, %v3391, %v3393
    %v3419 = vsel %vm1294, %v3393, %v3395
    %v3420 = vsel %vm1294, %v3395, %v3397
    %v3421 = vsel %vm1294, %v3397, %v3399
    %v3422 = vsel %vm1294, %v3399, %v3401
    %v3423 = vsel %vm1294, %v3401, %v3403
    %v3424 = vsel %vm1294, %v3403, %v3405
    %v3425 = vsel %vm1294, %v3405, %v3407
    %v3426 = vsel %vm1294, %v3407, %v3409
    %v3427 = vsel %vm1294, %v3409, %v3411
    %v3428 = vsel %vm1294, %v3411, %v3413
    %v3429 = vsel %vm1294, %v3413, %v3415
    %v3430 = vsel %vm1294, %v3415, %v3417
    %3444 = vst [vmem:[#allocation3 + $0x208] sm:$0xfc] %v3418
    %3445 = vst [vmem:[#allocation3 + $0x210] sm:$0xfc] %v3419
    %3446 = vst [vmem:[#allocation3 + $0x218] sm:$0xfc] %v3420
    %3447 = vst [vmem:[#allocation3 + $0x220] sm:$0xfc] %v3421
    %3448 = vst [vmem:[#allocation3 + $0x228] sm:$0xfc] %v3422
    %3449 = vst [vmem:[#allocation3 + $0x230] sm:$0xfc] %v3423
    %3450 = vst [vmem:[#allocation3 + $0x238] sm:$0xfc] %v3424
    %3451 = vst [vmem:[#allocation3 + $0x240] sm:$0xfc] %v3425
    %3452 = vst [vmem:[#allocation3 + $0x248] sm:$0xfc] %v3426
    %3453 = vst [vmem:[#allocation3 + $0x250] sm:$0xfc] %v3427
    %3454 = vst [vmem:[#allocation3 + $0x258] sm:$0xfc] %v3428
    %3455 = vst [vmem:[#allocation3 + $0x260] sm:$0xfc] %v3429
    %3456 = vst.msk [vmem:[#allocation3 + $0x268] sm:$0xfc] %vm3159, %v3430
    %3457 = vrot.lane.b32.xlu0 %v2856, 58
    %v3458 = vpop.permute.xlu0 %3457
    %3459 = vrot.lane.b32.xlu0 %v2857, 58
    %v3460 = vpop.permute.xlu0 %3459
    %3461 = vrot.lane.b32.xlu0 %v2858, 58
    %v3462 = vpop.permute.xlu0 %3461
    %3463 = vrot.lane.b32.xlu0 %v2859, 58
    %v3464 = vpop.permute.xlu0 %3463
    %3465 = vrot.lane.b32.xlu0 %v2860, 58
    %v3466 = vpop.permute.xlu0 %3465
    %3467 = vrot.lane.b32.xlu0 %v2861, 58
    %v3468 = vpop.permute.xlu0 %3467
    %3469 = vrot.lane.b32.xlu0 %v2862, 58
    %v3470 = vpop.permute.xlu0 %3469
    %3471 = vrot.lane.b32.xlu0 %v2863, 58
    %v3472 = vpop.permute.xlu0 %3471
    %3473 = vrot.lane.b32.xlu0 %v2864, 58
    %v3474 = vpop.permute.xlu0 %3473
    %3475 = vrot.lane.b32.xlu0 %v2865, 58
    %v3476 = vpop.permute.xlu0 %3475
    %3477 = vrot.lane.b32.xlu0 %v2866, 58
    %v3478 = vpop.permute.xlu0 %3477
    %3479 = vrot.lane.b32.xlu0 %v2867, 58
    %v3480 = vpop.permute.xlu0 %3479
    %3481 = vrot.lane.b32.xlu0 %v2868, 58
    %v3482 = vpop.permute.xlu0 %3481
    %3483 = vrot.lane.b32.xlu0 %v2869, 58
    %v3484 = vpop.permute.xlu0 %3483
    %vm3485 = vcmask 474112
    %v3486 = vsel %vm3485, %v3458, %v3460
    %v3487 = vsel %vm3485, %v3460, %v3462
    %v3488 = vsel %vm3485, %v3462, %v3464
    %v3489 = vsel %vm3485, %v3464, %v3466
    %v3490 = vsel %vm3485, %v3466, %v3468
    %v3491 = vsel %vm3485, %v3468, %v3470
    %v3492 = vsel %vm3485, %v3470, %v3472
    %v3493 = vsel %vm3485, %v3472, %v3474
    %v3494 = vsel %vm3485, %v3474, %v3476
    %v3495 = vsel %vm3485, %v3476, %v3478
    %v3496 = vsel %vm3485, %v3478, %v3480
    %v3497 = vsel %vm3485, %v3480, %v3482
    %v3498 = vsel %vm3485, %v3482, %v3484
    %3512 = vst [vmem:[#allocation3 + $0x270] sm:$0x3f] %v3486
    %3513 = vst [vmem:[#allocation3 + $0x278] sm:$0x3f] %v3487
    %3514 = vst [vmem:[#allocation3 + $0x280] sm:$0x3f] %v3488
    %3515 = vst [vmem:[#allocation3 + $0x288] sm:$0x3f] %v3489
    %3516 = vst [vmem:[#allocation3 + $0x290] sm:$0x3f] %v3490
    %3517 = vst [vmem:[#allocation3 + $0x298] sm:$0x3f] %v3491
    %3518 = vst [vmem:[#allocation3 + $0x2a0] sm:$0x3f] %v3492
    %3519 = vst [vmem:[#allocation3 + $0x2a8] sm:$0x3f] %v3493
    %3520 = vst [vmem:[#allocation3 + $0x2b0] sm:$0x3f] %v3494
    %3521 = vst [vmem:[#allocation3 + $0x2b8] sm:$0x3f] %v3495
    %3522 = vst [vmem:[#allocation3 + $0x2c0] sm:$0x3f] %v3496
    %3523 = vst [vmem:[#allocation3 + $0x2c8] sm:$0x3f] %v3497
    %3524 = vst.msk [vmem:[#allocation3 + $0x2d0] sm:$0x3f] %vm2883, %v3498
    %3525 = vrot.lane.b32.xlu0 %v2898, 56
    %v3526 = vpop.permute.xlu0 %3525
    %3527 = vrot.lane.b32.xlu0 %v2899, 56
    %v3528 = vpop.permute.xlu0 %3527
    %3529 = vrot.lane.b32.xlu0 %v2900, 56
    %v3530 = vpop.permute.xlu0 %3529
    %3531 = vrot.lane.b32.xlu0 %v2901, 56
    %v3532 = vpop.permute.xlu0 %3531
    %3533 = vrot.lane.b32.xlu0 %v2902, 56
    %v3534 = vpop.permute.xlu0 %3533
    %3535 = vrot.lane.b32.xlu0 %v2903, 56
    %v3536 = vpop.permute.xlu0 %3535
    %3537 = vrot.lane.b32.xlu0 %v2904, 56
    %v3538 = vpop.permute.xlu0 %3537
    %3539 = vrot.lane.b32.xlu0 %v2905, 56
    %v3540 = vpop.permute.xlu0 %3539
    %3541 = vrot.lane.b32.xlu0 %v2906, 56
    %v3542 = vpop.permute.xlu0 %3541
    %3543 = vrot.lane.b32.xlu0 %v2907, 56
    %v3544 = vpop.permute.xlu0 %3543
    %3545 = vrot.lane.b32.xlu0 %v2908, 56
    %v3546 = vpop.permute.xlu0 %3545
    %3547 = vrot.lane.b32.xlu0 %v2909, 56
    %v3548 = vpop.permute.xlu0 %3547
    %3549 = vrot.lane.b32.xlu0 %v2910, 56
    %v3550 = vpop.permute.xlu0 %3549
    %3551 = vrot.lane.b32.xlu0 %v3227, 56
    %v3552 = vpop.permute.xlu0 %3551
    %vm3553 = vcmask 457728
    %v3554 = vsel %vm3553, %v3526, %v3528
    %v3555 = vsel %vm3553, %v3528, %v3530
    %v3556 = vsel %vm3553, %v3530, %v3532
    %v3557 = vsel %vm3553, %v3532, %v3534
    %v3558 = vsel %vm3553, %v3534, %v3536
    %v3559 = vsel %vm3553, %v3536, %v3538
    %v3560 = vsel %vm3553, %v3538, %v3540
    %v3561 = vsel %vm3553, %v3540, %v3542
    %v3562 = vsel %vm3553, %v3542, %v3544
    %v3563 = vsel %vm3553, %v3544, %v3546
    %v3564 = vsel %vm3553, %v3546, %v3548
    %v3565 = vsel %vm3553, %v3548, %v3550
    %v3566 = vsel %vm3553, %v3550, %v3552
    %3580 = vst [vmem:[#allocation3 + $0x270] sm:$0xc0] %v3554
    %3581 = vst [vmem:[#allocation3 + $0x278] sm:$0xc0] %v3555
    %3582 = vst [vmem:[#allocation3 + $0x280] sm:$0xc0] %v3556
    %3583 = vst [vmem:[#allocation3 + $0x288] sm:$0xc0] %v3557
    %3584 = vst [vmem:[#allocation3 + $0x290] sm:$0xc0] %v3558
    %3585 = vst [vmem:[#allocation3 + $0x298] sm:$0xc0] %v3559
    %3586 = vst [vmem:[#allocation3 + $0x2a0] sm:$0xc0] %v3560
    %3587 = vst [vmem:[#allocation3 + $0x2a8] sm:$0xc0] %v3561
    %3588 = vst [vmem:[#allocation3 + $0x2b0] sm:$0xc0] %v3562
    %3589 = vst [vmem:[#allocation3 + $0x2b8] sm:$0xc0] %v3563
    %3590 = vst [vmem:[#allocation3 + $0x2c0] sm:$0xc0] %v3564
    %3591 = vst [vmem:[#allocation3 + $0x2c8] sm:$0xc0] %v3565
    %3592 = vst.msk [vmem:[#allocation3 + $0x2d0] sm:$0xc0] %vm2974, %v3566
    %3593 = vst [vmem:[#allocation3 + $0x2d8] sm:$0xf] %v3554
    %3594 = vst [vmem:[#allocation3 + $0x2e0] sm:$0xf] %v3555
    %3595 = vst [vmem:[#allocation3 + $0x2e8] sm:$0xf] %v3556
    %3596 = vst [vmem:[#allocation3 + $0x2f0] sm:$0xf] %v3557
    %3597 = vst [vmem:[#allocation3 + $0x2f8] sm:$0xf] %v3558
    %3598 = vst [vmem:[#allocation3 + $0x300] sm:$0xf] %v3559
    %3599 = vst [vmem:[#allocation3 + $0x308] sm:$0xf] %v3560
    %3600 = vst [vmem:[#allocation3 + $0x310] sm:$0xf] %v3561
    %3601 = vst [vmem:[#allocation3 + $0x318] sm:$0xf] %v3562
    %3602 = vst [vmem:[#allocation3 + $0x320] sm:$0xf] %v3563
    %3603 = vst [vmem:[#allocation3 + $0x328] sm:$0xf] %v3564
    %3604 = vst [vmem:[#allocation3 + $0x330] sm:$0xf] %v3565
    %3605 = vst.msk [vmem:[#allocation3 + $0x338] sm:$0xf] %vm2988, %v3566
    %3619 = vst [vmem:[#allocation3 + $0x2d8] sm:$0xf0] %v2991
    %3620 = vst [vmem:[#allocation3 + $0x2e0] sm:$0xf0] %v2992
    %3621 = vst [vmem:[#allocation3 + $0x2e8] sm:$0xf0] %v2993
    %3622 = vst [vmem:[#allocation3 + $0x2f0] sm:$0xf0] %v2994
    %3623 = vst [vmem:[#allocation3 + $0x2f8] sm:$0xf0] %v2995
    %3624 = vst [vmem:[#allocation3 + $0x300] sm:$0xf0] %v2996
    %3625 = vst [vmem:[#allocation3 + $0x308] sm:$0xf0] %v2997
    %3626 = vst [vmem:[#allocation3 + $0x310] sm:$0xf0] %v2998
    %3627 = vst [vmem:[#allocation3 + $0x318] sm:$0xf0] %v2999
    %3628 = vst [vmem:[#allocation3 + $0x320] sm:$0xf0] %v3000
    %3629 = vst [vmem:[#allocation3 + $0x328] sm:$0xf0] %v3001
    %3630 = vst [vmem:[#allocation3 + $0x330] sm:$0xf0] %v3002
    %3631 = vst.msk [vmem:[#allocation3 + $0x338] sm:$0xf0] %vm3066, %v3308
    %3632 = vst [vmem:[#allocation3 + $0x340] sm:$0x3] %v2991
    %3633 = vst [vmem:[#allocation3 + $0x348] sm:$0x3] %v2992
    %3634 = vst [vmem:[#allocation3 + $0x350] sm:$0x3] %v2993
    %3635 = vst [vmem:[#allocation3 + $0x358] sm:$0x3] %v2994
    %3636 = vst [vmem:[#allocation3 + $0x360] sm:$0x3] %v2995
    %3637 = vst [vmem:[#allocation3 + $0x368] sm:$0x3] %v2996
    %3638 = vst [vmem:[#allocation3 + $0x370] sm:$0x3] %v2997
    %3639 = vst [vmem:[#allocation3 + $0x378] sm:$0x3] %v2998
    %3640 = vst [vmem:[#allocation3 + $0x380] sm:$0x3] %v2999
    %3641 = vst [vmem:[#allocation3 + $0x388] sm:$0x3] %v3000
    %3642 = vst [vmem:[#allocation3 + $0x390] sm:$0x3] %v3001
    %3643 = vst [vmem:[#allocation3 + $0x398] sm:$0x3] %v3002
    %3644 = vst.msk [vmem:[#allocation3 + $0x3a0] sm:$0x3] %vm3080, %v3308
    %3645 = vrot.lane.b32.xlu0 %v3083, 126
    %v3646 = vpop.permute.xlu0 %3645
    %3647 = vrot.lane.b32.xlu0 %v3084, 126
    %v3648 = vpop.permute.xlu0 %3647
    %3649 = vrot.lane.b32.xlu0 %v3085, 126
    %v3650 = vpop.permute.xlu0 %3649
    %3651 = vrot.lane.b32.xlu0 %v3086, 126
    %v3652 = vpop.permute.xlu0 %3651
    %3653 = vrot.lane.b32.xlu0 %v3087, 126
    %v3654 = vpop.permute.xlu0 %3653
    %3655 = vrot.lane.b32.xlu0 %v3088, 126
    %v3656 = vpop.permute.xlu0 %3655
    %3657 = vrot.lane.b32.xlu0 %v3089, 126
    %v3658 = vpop.permute.xlu0 %3657
    %3659 = vrot.lane.b32.xlu0 %v3090, 126
    %v3660 = vpop.permute.xlu0 %3659
    %3661 = vrot.lane.b32.xlu0 %v3091, 126
    %v3662 = vpop.permute.xlu0 %3661
    %3663 = vrot.lane.b32.xlu0 %v3092, 126
    %v3664 = vpop.permute.xlu0 %3663
    %3665 = vrot.lane.b32.xlu0 %v3093, 126
    %v3666 = vpop.permute.xlu0 %3665
    %3667 = vrot.lane.b32.xlu0 %v3094, 126
    %v3668 = vpop.permute.xlu0 %3667
    %3669 = vrot.lane.b32.xlu0 %v3389, 126
    %v3670 = vpop.permute.xlu0 %3669
    %v3671 = vsel %vm222, %v3646, %v3648
    %v3672 = vsel %vm222, %v3648, %v3650
    %v3673 = vsel %vm222, %v3650, %v3652
    %v3674 = vsel %vm222, %v3652, %v3654
    %v3675 = vsel %vm222, %v3654, %v3656
    %v3676 = vsel %vm222, %v3656, %v3658
    %v3677 = vsel %vm222, %v3658, %v3660
    %v3678 = vsel %vm222, %v3660, %v3662
    %v3679 = vsel %vm222, %v3662, %v3664
    %v3680 = vsel %vm222, %v3664, %v3666
    %v3681 = vsel %vm222, %v3666, %v3668
    %v3682 = vsel %vm222, %v3668, %v3670
    %3696 = vst [vmem:[#allocation3 + $0x340] sm:$0xfc] %v3671
    %3697 = vst [vmem:[#allocation3 + $0x348] sm:$0xfc] %v3672
    %3698 = vst [vmem:[#allocation3 + $0x350] sm:$0xfc] %v3673
    %3699 = vst [vmem:[#allocation3 + $0x358] sm:$0xfc] %v3674
    %3700 = vst [vmem:[#allocation3 + $0x360] sm:$0xfc] %v3675
    %3701 = vst [vmem:[#allocation3 + $0x368] sm:$0xfc] %v3676
    %3702 = vst [vmem:[#allocation3 + $0x370] sm:$0xfc] %v3677
    %3703 = vst [vmem:[#allocation3 + $0x378] sm:$0xfc] %v3678
    %3704 = vst [vmem:[#allocation3 + $0x380] sm:$0xfc] %v3679
    %3705 = vst [vmem:[#allocation3 + $0x388] sm:$0xfc] %v3680
    %3706 = vst [vmem:[#allocation3 + $0x390] sm:$0xfc] %v3681
    %3707 = vst [vmem:[#allocation3 + $0x398] sm:$0xfc] %v3682
    %3708 = vst.msk [vmem:[#allocation3 + $0x3a0] sm:$0xfc] %vm3159, %v3670
    %3709 = vrot.lane.b32.xlu0 %v2857, 124
    %v3710 = vpop.permute.xlu0 %3709
    %3711 = vrot.lane.b32.xlu0 %v2858, 124
    %v3712 = vpop.permute.xlu0 %3711
    %3713 = vrot.lane.b32.xlu0 %v2859, 124
    %v3714 = vpop.permute.xlu0 %3713
    %3715 = vrot.lane.b32.xlu0 %v2860, 124
    %v3716 = vpop.permute.xlu0 %3715
    %3717 = vrot.lane.b32.xlu0 %v2861, 124
    %v3718 = vpop.permute.xlu0 %3717
    %3719 = vrot.lane.b32.xlu0 %v2862, 124
    %v3720 = vpop.permute.xlu0 %3719
    %3721 = vrot.lane.b32.xlu0 %v2863, 124
    %v3722 = vpop.permute.xlu0 %3721
    %3723 = vrot.lane.b32.xlu0 %v2864, 124
    %v3724 = vpop.permute.xlu0 %3723
    %3725 = vrot.lane.b32.xlu0 %v2865, 124
    %v3726 = vpop.permute.xlu0 %3725
    %3727 = vrot.lane.b32.xlu0 %v2866, 124
    %v3728 = vpop.permute.xlu0 %3727
    %3729 = vrot.lane.b32.xlu0 %v2867, 124
    %v3730 = vpop.permute.xlu0 %3729
    %3731 = vrot.lane.b32.xlu0 %v2868, 124
    %v3732 = vpop.permute.xlu0 %3731
    %3733 = vrot.lane.b32.xlu0 %v2869, 124
    %v3734 = vpop.permute.xlu0 %3733
    %v3735 = vsel %vm413, %v3710, %v3712
    %v3736 = vsel %vm413, %v3712, %v3714
    %v3737 = vsel %vm413, %v3714, %v3716
    %v3738 = vsel %vm413, %v3716, %v3718
    %v3739 = vsel %vm413, %v3718, %v3720
    %v3740 = vsel %vm413, %v3720, %v3722
    %v3741 = vsel %vm413, %v3722, %v3724
    %v3742 = vsel %vm413, %v3724, %v3726
    %v3743 = vsel %vm413, %v3726, %v3728
    %v3744 = vsel %vm413, %v3728, %v3730
    %v3745 = vsel %vm413, %v3730, %v3732
    %v3746 = vsel %vm413, %v3732, %v3734
    %3760 = vst [vmem:[#allocation3 + $0x3a8] sm:$0x3f] %v3735
    %3761 = vst [vmem:[#allocation3 + $0x3b0] sm:$0x3f] %v3736
    %3762 = vst [vmem:[#allocation3 + $0x3b8] sm:$0x3f] %v3737
    %3763 = vst [vmem:[#allocation3 + $0x3c0] sm:$0x3f] %v3738
    %3764 = vst [vmem:[#allocation3 + $0x3c8] sm:$0x3f] %v3739
    %3765 = vst [vmem:[#allocation3 + $0x3d0] sm:$0x3f] %v3740
    %3766 = vst [vmem:[#allocation3 + $0x3d8] sm:$0x3f] %v3741
    %3767 = vst [vmem:[#allocation3 + $0x3e0] sm:$0x3f] %v3742
    %3768 = vst [vmem:[#allocation3 + $0x3e8] sm:$0x3f] %v3743
    %3769 = vst [vmem:[#allocation3 + $0x3f0] sm:$0x3f] %v3744
    %3770 = vst [vmem:[#allocation3 + $0x3f8] sm:$0x3f] %v3745
    %3771 = vst [vmem:[#allocation3 + $0x400] sm:$0x3f] %v3746
    %3772 = vst.msk [vmem:[#allocation3 + $0x408] sm:$0x3f] %vm2883, %v3734
    %3773 = vrot.lane.b32.xlu0 %v2899, 122
    %v3774 = vpop.permute.xlu0 %3773
    %3775 = vrot.lane.b32.xlu0 %v2900, 122
    %v3776 = vpop.permute.xlu0 %3775
    %3777 = vrot.lane.b32.xlu0 %v2901, 122
    %v3778 = vpop.permute.xlu0 %3777
    %3779 = vrot.lane.b32.xlu0 %v2902, 122
    %v3780 = vpop.permute.xlu0 %3779
    %3781 = vrot.lane.b32.xlu0 %v2903, 122
    %v3782 = vpop.permute.xlu0 %3781
    %3783 = vrot.lane.b32.xlu0 %v2904, 122
    %v3784 = vpop.permute.xlu0 %3783
    %3785 = vrot.lane.b32.xlu0 %v2905, 122
    %v3786 = vpop.permute.xlu0 %3785
    %3787 = vrot.lane.b32.xlu0 %v2906, 122
    %v3788 = vpop.permute.xlu0 %3787
    %3789 = vrot.lane.b32.xlu0 %v2907, 122
    %v3790 = vpop.permute.xlu0 %3789
    %3791 = vrot.lane.b32.xlu0 %v2908, 122
    %v3792 = vpop.permute.xlu0 %3791
    %3793 = vrot.lane.b32.xlu0 %v2909, 122
    %v3794 = vpop.permute.xlu0 %3793
    %3795 = vrot.lane.b32.xlu0 %v2910, 122
    %v3796 = vpop.permute.xlu0 %3795
    %3797 = vrot.lane.b32.xlu0 %v3227, 122
    %v3798 = vpop.permute.xlu0 %3797
    %v3799 = vsel %vm3121, %v3774, %v3776
    %v3800 = vsel %vm3121, %v3776, %v3778
    %v3801 = vsel %vm3121, %v3778, %v3780
    %v3802 = vsel %vm3121, %v3780, %v3782
    %v3803 = vsel %vm3121, %v3782, %v3784
    %v3804 = vsel %vm3121, %v3784, %v3786
    %v3805 = vsel %vm3121, %v3786, %v3788
    %v3806 = vsel %vm3121, %v3788, %v3790
    %v3807 = vsel %vm3121, %v3790, %v3792
    %v3808 = vsel %vm3121, %v3792, %v3794
    %v3809 = vsel %vm3121, %v3794, %v3796
    %v3810 = vsel %vm3121, %v3796, %v3798
    %3824 = vst [vmem:[#allocation3 + $0x3a8] sm:$0xc0] %v3799
    %3825 = vst [vmem:[#allocation3 + $0x3b0] sm:$0xc0] %v3800
    %3826 = vst [vmem:[#allocation3 + $0x3b8] sm:$0xc0] %v3801
    %3827 = vst [vmem:[#allocation3 + $0x3c0] sm:$0xc0] %v3802
    %3828 = vst [vmem:[#allocation3 + $0x3c8] sm:$0xc0] %v3803
    %3829 = vst [vmem:[#allocation3 + $0x3d0] sm:$0xc0] %v3804
    %3830 = vst [vmem:[#allocation3 + $0x3d8] sm:$0xc0] %v3805
    %3831 = vst [vmem:[#allocation3 + $0x3e0] sm:$0xc0] %v3806
    %3832 = vst [vmem:[#allocation3 + $0x3e8] sm:$0xc0] %v3807
    %3833 = vst [vmem:[#allocation3 + $0x3f0] sm:$0xc0] %v3808
    %3834 = vst [vmem:[#allocation3 + $0x3f8] sm:$0xc0] %v3809
    %3835 = vst [vmem:[#allocation3 + $0x400] sm:$0xc0] %v3810
    %3836 = vst.msk [vmem:[#allocation3 + $0x408] sm:$0xc0] %vm2974, %v3798
    %3837 = vst [vmem:[#allocation3 + $0x410] sm:$0xf] %v3799
    %3838 = vst [vmem:[#allocation3 + $0x418] sm:$0xf] %v3800
    %3839 = vst [vmem:[#allocation3 + $0x420] sm:$0xf] %v3801
    %3840 = vst [vmem:[#allocation3 + $0x428] sm:$0xf] %v3802
    %3841 = vst [vmem:[#allocation3 + $0x430] sm:$0xf] %v3803
    %3842 = vst [vmem:[#allocation3 + $0x438] sm:$0xf] %v3804
    %3843 = vst [vmem:[#allocation3 + $0x440] sm:$0xf] %v3805
    %3844 = vst [vmem:[#allocation3 + $0x448] sm:$0xf] %v3806
    %3845 = vst [vmem:[#allocation3 + $0x450] sm:$0xf] %v3807
    %3846 = vst [vmem:[#allocation3 + $0x458] sm:$0xf] %v3808
    %3847 = vst [vmem:[#allocation3 + $0x460] sm:$0xf] %v3809
    %3848 = vst [vmem:[#allocation3 + $0x468] sm:$0xf] %v3810
    %3849 = vst.msk [vmem:[#allocation3 + $0x470] sm:$0xf] %vm2988, %v3798
    %3850 = vrot.lane.b32.xlu0 %v2991, 120
    %v3851 = vpop.permute.xlu0 %3850
    %3852 = vrot.lane.b32.xlu0 %v2992, 120
    %v3853 = vpop.permute.xlu0 %3852
    %3854 = vrot.lane.b32.xlu0 %v2993, 120
    %v3855 = vpop.permute.xlu0 %3854
    %3856 = vrot.lane.b32.xlu0 %v2994, 120
    %v3857 = vpop.permute.xlu0 %3856
    %3858 = vrot.lane.b32.xlu0 %v2995, 120
    %v3859 = vpop.permute.xlu0 %3858
    %3860 = vrot.lane.b32.xlu0 %v2996, 120
    %v3861 = vpop.permute.xlu0 %3860
    %3862 = vrot.lane.b32.xlu0 %v2997, 120
    %v3863 = vpop.permute.xlu0 %3862
    %3864 = vrot.lane.b32.xlu0 %v2998, 120
    %v3865 = vpop.permute.xlu0 %3864
    %3866 = vrot.lane.b32.xlu0 %v2999, 120
    %v3867 = vpop.permute.xlu0 %3866
    %3868 = vrot.lane.b32.xlu0 %v3000, 120
    %v3869 = vpop.permute.xlu0 %3868
    %3870 = vrot.lane.b32.xlu0 %v3001, 120
    %v3871 = vpop.permute.xlu0 %3870
    %3872 = vrot.lane.b32.xlu0 %v3002, 120
    %v3873 = vpop.permute.xlu0 %3872
    %3874 = vrot.lane.b32.xlu0 %v3308, 120
    %v3875 = vpop.permute.xlu0 %3874
    %v3876 = vsel %vm3187, %v3851, %v3853
    %v3877 = vsel %vm3187, %v3853, %v3855
    %v3878 = vsel %vm3187, %v3855, %v3857
    %v3879 = vsel %vm3187, %v3857, %v3859
    %v3880 = vsel %vm3187, %v3859, %v3861
    %v3881 = vsel %vm3187, %v3861, %v3863
    %v3882 = vsel %vm3187, %v3863, %v3865
    %v3883 = vsel %vm3187, %v3865, %v3867
    %v3884 = vsel %vm3187, %v3867, %v3869
    %v3885 = vsel %vm3187, %v3869, %v3871
    %v3886 = vsel %vm3187, %v3871, %v3873
    %v3887 = vsel %vm3187, %v3873, %v3875
    %3901 = vst [vmem:[#allocation3 + $0x410] sm:$0xf0] %v3876
    %3902 = vst [vmem:[#allocation3 + $0x418] sm:$0xf0] %v3877
    %3903 = vst [vmem:[#allocation3 + $0x420] sm:$0xf0] %v3878
    %3904 = vst [vmem:[#allocation3 + $0x428] sm:$0xf0] %v3879
    %3905 = vst [vmem:[#allocation3 + $0x430] sm:$0xf0] %v3880
    %3906 = vst [vmem:[#allocation3 + $0x438] sm:$0xf0] %v3881
    %3907 = vst [vmem:[#allocation3 + $0x440] sm:$0xf0] %v3882
    %3908 = vst [vmem:[#allocation3 + $0x448] sm:$0xf0] %v3883
    %3909 = vst [vmem:[#allocation3 + $0x450] sm:$0xf0] %v3884
    %3910 = vst [vmem:[#allocation3 + $0x458] sm:$0xf0] %v3885
    %3911 = vst [vmem:[#allocation3 + $0x460] sm:$0xf0] %v3886
    %3912 = vst [vmem:[#allocation3 + $0x468] sm:$0xf0] %v3887
    %3913 = vst.msk [vmem:[#allocation3 + $0x470] sm:$0xf0] %vm3066, %v3875
    %3914 = vst [vmem:[#allocation3 + $0x478] sm:$0x3] %v3876
    %3915 = vst [vmem:[#allocation3 + $0x480] sm:$0x3] %v3877
    %3916 = vst [vmem:[#allocation3 + $0x488] sm:$0x3] %v3878
    %3917 = vst [vmem:[#allocation3 + $0x490] sm:$0x3] %v3879
    %3918 = vst [vmem:[#allocation3 + $0x498] sm:$0x3] %v3880
    %3919 = vst [vmem:[#allocation3 + $0x4a0] sm:$0x3] %v3881
    %3920 = vst [vmem:[#allocation3 + $0x4a8] sm:$0x3] %v3882
    %3921 = vst [vmem:[#allocation3 + $0x4b0] sm:$0x3] %v3883
    %3922 = vst [vmem:[#allocation3 + $0x4b8] sm:$0x3] %v3884
    %3923 = vst [vmem:[#allocation3 + $0x4c0] sm:$0x3] %v3885
    %3924 = vst [vmem:[#allocation3 + $0x4c8] sm:$0x3] %v3886
    %3925 = vst [vmem:[#allocation3 + $0x4d0] sm:$0x3] %v3887
    %3926 = vst.msk [vmem:[#allocation3 + $0x4d8] sm:$0x3] %vm3080, %v3875
    %v3928 = vrot.slane %v2870, 6
    %3929 = vrot.lane.b32.xlu0 %v3083, 64
    %v3930 = vpop.permute.xlu0 %3929
    %3931 = vrot.lane.b32.xlu0 %v3084, 64
    %v3932 = vpop.permute.xlu0 %3931
    %3933 = vrot.lane.b32.xlu0 %v3085, 64
    %v3934 = vpop.permute.xlu0 %3933
    %3935 = vrot.lane.b32.xlu0 %v3086, 64
    %v3936 = vpop.permute.xlu0 %3935
    %3937 = vrot.lane.b32.xlu0 %v3087, 64
    %v3938 = vpop.permute.xlu0 %3937
    %3939 = vrot.lane.b32.xlu0 %v3088, 64
    %v3940 = vpop.permute.xlu0 %3939
    %3941 = vrot.lane.b32.xlu0 %v3089, 64
    %v3942 = vpop.permute.xlu0 %3941
    %3943 = vrot.lane.b32.xlu0 %v3090, 64
    %v3944 = vpop.permute.xlu0 %3943
    %3945 = vrot.lane.b32.xlu0 %v3091, 64
    %v3946 = vpop.permute.xlu0 %3945
    %3947 = vrot.lane.b32.xlu0 %v3092, 64
    %v3948 = vpop.permute.xlu0 %3947
    %3949 = vrot.lane.b32.xlu0 %v3093, 64
    %v3950 = vpop.permute.xlu0 %3949
    %3951 = vrot.lane.b32.xlu0 %v3094, 64
    %v3952 = vpop.permute.xlu0 %3951
    %3953 = vrot.lane.b32.xlu0 %v3389, 64
    %v3954 = vpop.permute.xlu0 %3953
    %3955 = vrot.lane.b32.xlu0 %v3928, 64
    %v3956 = vpop.permute.xlu0 %3955
    %v3957 = vsel %vm951, %v3930, %v3932
    %v3958 = vsel %vm951, %v3932, %v3934
    %v3959 = vsel %vm951, %v3934, %v3936
    %v3960 = vsel %vm951, %v3936, %v3938
    %v3961 = vsel %vm951, %v3938, %v3940
    %v3962 = vsel %vm951, %v3940, %v3942
    %v3963 = vsel %vm951, %v3942, %v3944
    %v3964 = vsel %vm951, %v3944, %v3946
    %v3965 = vsel %vm951, %v3946, %v3948
    %v3966 = vsel %vm951, %v3948, %v3950
    %v3967 = vsel %vm951, %v3950, %v3952
    %v3968 = vsel %vm951, %v3952, %v3954
    %v3969 = vsel %vm951, %v3954, %v3956
    %3983 = vst [vmem:[#allocation3 + $0x478] sm:$0xfc] %v3957
    %3984 = vst [vmem:[#allocation3 + $0x480] sm:$0xfc] %v3958
    %3985 = vst [vmem:[#allocation3 + $0x488] sm:$0xfc] %v3959
    %3986 = vst [vmem:[#allocation3 + $0x490] sm:$0xfc] %v3960
    %3987 = vst [vmem:[#allocation3 + $0x498] sm:$0xfc] %v3961
    %3988 = vst [vmem:[#allocation3 + $0x4a0] sm:$0xfc] %v3962
    %3989 = vst [vmem:[#allocation3 + $0x4a8] sm:$0xfc] %v3963
    %3990 = vst [vmem:[#allocation3 + $0x4b0] sm:$0xfc] %v3964
    %3991 = vst [vmem:[#allocation3 + $0x4b8] sm:$0xfc] %v3965
    %3992 = vst [vmem:[#allocation3 + $0x4c0] sm:$0xfc] %v3966
    %3993 = vst [vmem:[#allocation3 + $0x4c8] sm:$0xfc] %v3967
    %3994 = vst [vmem:[#allocation3 + $0x4d0] sm:$0xfc] %v3968
    %3995 = vst.msk [vmem:[#allocation3 + $0x4d8] sm:$0xfc] %vm3159, %v3969
    %3996 = vrot.lane.b32.xlu0 %v2857, 62
    %v3997 = vpop.permute.xlu0 %3996
    %3998 = vrot.lane.b32.xlu0 %v2858, 62
    %v3999 = vpop.permute.xlu0 %3998
    %4000 = vrot.lane.b32.xlu0 %v2859, 62
    %v4001 = vpop.permute.xlu0 %4000
    %4002 = vrot.lane.b32.xlu0 %v2860, 62
    %v4003 = vpop.permute.xlu0 %4002
    %4004 = vrot.lane.b32.xlu0 %v2861, 62
    %v4005 = vpop.permute.xlu0 %4004
    %4006 = vrot.lane.b32.xlu0 %v2862, 62
    %v4007 = vpop.permute.xlu0 %4006
    %4008 = vrot.lane.b32.xlu0 %v2863, 62
    %v4009 = vpop.permute.xlu0 %4008
    %4010 = vrot.lane.b32.xlu0 %v2864, 62
    %v4011 = vpop.permute.xlu0 %4010
    %4012 = vrot.lane.b32.xlu0 %v2865, 62
    %v4013 = vpop.permute.xlu0 %4012
    %4014 = vrot.lane.b32.xlu0 %v2866, 62
    %v4015 = vpop.permute.xlu0 %4014
    %4016 = vrot.lane.b32.xlu0 %v2867, 62
    %v4017 = vpop.permute.xlu0 %4016
    %4018 = vrot.lane.b32.xlu0 %v2868, 62
    %v4019 = vpop.permute.xlu0 %4018
    %4020 = vrot.lane.b32.xlu0 %v2869, 62
    %v4021 = vpop.permute.xlu0 %4020
    %4022 = vrot.lane.b32.xlu0 %v2870, 62
    %v4023 = vpop.permute.xlu0 %4022
    %v4024 = vsel %vm1123, %v3997, %v3999
    %v4025 = vsel %vm1123, %v3999, %v4001
    %v4026 = vsel %vm1123, %v4001, %v4003
    %v4027 = vsel %vm1123, %v4003, %v4005
    %v4028 = vsel %vm1123, %v4005, %v4007
    %v4029 = vsel %vm1123, %v4007, %v4009
    %v4030 = vsel %vm1123, %v4009, %v4011
    %v4031 = vsel %vm1123, %v4011, %v4013
    %v4032 = vsel %vm1123, %v4013, %v4015
    %v4033 = vsel %vm1123, %v4015, %v4017
    %v4034 = vsel %vm1123, %v4017, %v4019
    %v4035 = vsel %vm1123, %v4019, %v4021
    %v4036 = vsel %vm1123, %v4021, %v4023
    %4050 = vst [vmem:[#allocation3 + $0x4e0] sm:$0x3f] %v4024
    %4051 = vst [vmem:[#allocation3 + $0x4e8] sm:$0x3f] %v4025
    %4052 = vst [vmem:[#allocation3 + $0x4f0] sm:$0x3f] %v4026
    %4053 = vst [vmem:[#allocation3 + $0x4f8] sm:$0x3f] %v4027
    %4054 = vst [vmem:[#allocation3 + $0x500] sm:$0x3f] %v4028
    %4055 = vst [vmem:[#allocation3 + $0x508] sm:$0x3f] %v4029
    %4056 = vst [vmem:[#allocation3 + $0x510] sm:$0x3f] %v4030
    %4057 = vst [vmem:[#allocation3 + $0x518] sm:$0x3f] %v4031
    %4058 = vst [vmem:[#allocation3 + $0x520] sm:$0x3f] %v4032
    %4059 = vst [vmem:[#allocation3 + $0x528] sm:$0x3f] %v4033
    %4060 = vst [vmem:[#allocation3 + $0x530] sm:$0x3f] %v4034
    %4061 = vst [vmem:[#allocation3 + $0x538] sm:$0x3f] %v4035
    %4062 = vst.msk [vmem:[#allocation3 + $0x540] sm:$0x3f] %vm2883, %v4036
    %v4063 = vrot.slane %v2870, 2
    %4064 = vrot.lane.b32.xlu0 %v2899, 60
    %v4065 = vpop.permute.xlu0 %4064
    %4066 = vrot.lane.b32.xlu0 %v2900, 60
    %v4067 = vpop.permute.xlu0 %4066
    %4068 = vrot.lane.b32.xlu0 %v2901, 60
    %v4069 = vpop.permute.xlu0 %4068
    %4070 = vrot.lane.b32.xlu0 %v2902, 60
    %v4071 = vpop.permute.xlu0 %4070
    %4072 = vrot.lane.b32.xlu0 %v2903, 60
    %v4073 = vpop.permute.xlu0 %4072
    %4074 = vrot.lane.b32.xlu0 %v2904, 60
    %v4075 = vpop.permute.xlu0 %4074
    %4076 = vrot.lane.b32.xlu0 %v2905, 60
    %v4077 = vpop.permute.xlu0 %4076
    %4078 = vrot.lane.b32.xlu0 %v2906, 60
    %v4079 = vpop.permute.xlu0 %4078
    %4080 = vrot.lane.b32.xlu0 %v2907, 60
    %v4081 = vpop.permute.xlu0 %4080
    %4082 = vrot.lane.b32.xlu0 %v2908, 60
    %v4083 = vpop.permute.xlu0 %4082
    %4084 = vrot.lane.b32.xlu0 %v2909, 60
    %v4085 = vpop.permute.xlu0 %4084
    %4086 = vrot.lane.b32.xlu0 %v2910, 60
    %v4087 = vpop.permute.xlu0 %4086
    %4088 = vrot.lane.b32.xlu0 %v3227, 60
    %v4089 = vpop.permute.xlu0 %4088
    %4090 = vrot.lane.b32.xlu0 %v4063, 60
    %v4091 = vpop.permute.xlu0 %4090
    %v4092 = vsel %vm1294, %v4065, %v4067
    %v4093 = vsel %vm1294, %v4067, %v4069
    %v4094 = vsel %vm1294, %v4069, %v4071
    %v4095 = vsel %vm1294, %v4071, %v4073
    %v4096 = vsel %vm1294, %v4073, %v4075
    %v4097 = vsel %vm1294, %v4075, %v4077
    %v4098 = vsel %vm1294, %v4077, %v4079
    %v4099 = vsel %vm1294, %v4079, %v4081
    %v4100 = vsel %vm1294, %v4081, %v4083
    %v4101 = vsel %vm1294, %v4083, %v4085
    %v4102 = vsel %vm1294, %v4085, %v4087
    %v4103 = vsel %vm1294, %v4087, %v4089
    %v4104 = vsel %vm1294, %v4089, %v4091
    %4118 = vst [vmem:[#allocation3 + $0x4e0] sm:$0xc0] %v4092
    %4119 = vst [vmem:[#allocation3 + $0x4e8] sm:$0xc0] %v4093
    %4120 = vst [vmem:[#allocation3 + $0x4f0] sm:$0xc0] %v4094
    %4121 = vst [vmem:[#allocation3 + $0x4f8] sm:$0xc0] %v4095
    %4122 = vst [vmem:[#allocation3 + $0x500] sm:$0xc0] %v4096
    %4123 = vst [vmem:[#allocation3 + $0x508] sm:$0xc0] %v4097
    %4124 = vst [vmem:[#allocation3 + $0x510] sm:$0xc0] %v4098
    %4125 = vst [vmem:[#allocation3 + $0x518] sm:$0xc0] %v4099
    %4126 = vst [vmem:[#allocation3 + $0x520] sm:$0xc0] %v4100
    %4127 = vst [vmem:[#allocation3 + $0x528] sm:$0xc0] %v4101
    %4128 = vst [vmem:[#allocation3 + $0x530] sm:$0xc0] %v4102
    %4129 = vst [vmem:[#allocation3 + $0x538] sm:$0xc0] %v4103
    %4130 = vst.msk [vmem:[#allocation3 + $0x540] sm:$0xc0] %vm2974, %v4104
    %4131 = vst [vmem:[#allocation3 + $0x548] sm:$0xf] %v4092
    %4132 = vst [vmem:[#allocation3 + $0x550] sm:$0xf] %v4093
    %4133 = vst [vmem:[#allocation3 + $0x558] sm:$0xf] %v4094
    %4134 = vst [vmem:[#allocation3 + $0x560] sm:$0xf] %v4095
    %4135 = vst [vmem:[#allocation3 + $0x568] sm:$0xf] %v4096
    %4136 = vst [vmem:[#allocation3 + $0x570] sm:$0xf] %v4097
    %4137 = vst [vmem:[#allocation3 + $0x578] sm:$0xf] %v4098
    %4138 = vst [vmem:[#allocation3 + $0x580] sm:$0xf] %v4099
    %4139 = vst [vmem:[#allocation3 + $0x588] sm:$0xf] %v4100
    %4140 = vst [vmem:[#allocation3 + $0x590] sm:$0xf] %v4101
    %4141 = vst [vmem:[#allocation3 + $0x598] sm:$0xf] %v4102
    %4142 = vst [vmem:[#allocation3 + $0x5a0] sm:$0xf] %v4103
    %4143 = vst.msk [vmem:[#allocation3 + $0x5a8] sm:$0xf] %vm2988, %v4104
    %v4144 = vrot.slane %v2870, 4
    %4145 = vrot.lane.b32.xlu0 %v2991, 58
    %v4146 = vpop.permute.xlu0 %4145
    %4147 = vrot.lane.b32.xlu0 %v2992, 58
    %v4148 = vpop.permute.xlu0 %4147
    %4149 = vrot.lane.b32.xlu0 %v2993, 58
    %v4150 = vpop.permute.xlu0 %4149
    %4151 = vrot.lane.b32.xlu0 %v2994, 58
    %v4152 = vpop.permute.xlu0 %4151
    %4153 = vrot.lane.b32.xlu0 %v2995, 58
    %v4154 = vpop.permute.xlu0 %4153
    %4155 = vrot.lane.b32.xlu0 %v2996, 58
    %v4156 = vpop.permute.xlu0 %4155
    %4157 = vrot.lane.b32.xlu0 %v2997, 58
    %v4158 = vpop.permute.xlu0 %4157
    %4159 = vrot.lane.b32.xlu0 %v2998, 58
    %v4160 = vpop.permute.xlu0 %4159
    %4161 = vrot.lane.b32.xlu0 %v2999, 58
    %v4162 = vpop.permute.xlu0 %4161
    %4163 = vrot.lane.b32.xlu0 %v3000, 58
    %v4164 = vpop.permute.xlu0 %4163
    %4165 = vrot.lane.b32.xlu0 %v3001, 58
    %v4166 = vpop.permute.xlu0 %4165
    %4167 = vrot.lane.b32.xlu0 %v3002, 58
    %v4168 = vpop.permute.xlu0 %4167
    %4169 = vrot.lane.b32.xlu0 %v3308, 58
    %v4170 = vpop.permute.xlu0 %4169
    %4171 = vrot.lane.b32.xlu0 %v4144, 58
    %v4172 = vpop.permute.xlu0 %4171
    %v4173 = vsel %vm3485, %v4146, %v4148
    %v4174 = vsel %vm3485, %v4148, %v4150
    %v4175 = vsel %vm3485, %v4150, %v4152
    %v4176 = vsel %vm3485, %v4152, %v4154
    %v4177 = vsel %vm3485, %v4154, %v4156
    %v4178 = vsel %vm3485, %v4156, %v4158
    %v4179 = vsel %vm3485, %v4158, %v4160
    %v4180 = vsel %vm3485, %v4160, %v4162
    %v4181 = vsel %vm3485, %v4162, %v4164
    %v4182 = vsel %vm3485, %v4164, %v4166
    %v4183 = vsel %vm3485, %v4166, %v4168
    %v4184 = vsel %vm3485, %v4168, %v4170
    %v4185 = vsel %vm3485, %v4170, %v4172
    %4199 = vst [vmem:[#allocation3 + $0x548] sm:$0xf0] %v4173
    %4200 = vst [vmem:[#allocation3 + $0x550] sm:$0xf0] %v4174
    %4201 = vst [vmem:[#allocation3 + $0x558] sm:$0xf0] %v4175
    %4202 = vst [vmem:[#allocation3 + $0x560] sm:$0xf0] %v4176
    %4203 = vst [vmem:[#allocation3 + $0x568] sm:$0xf0] %v4177
    %4204 = vst [vmem:[#allocation3 + $0x570] sm:$0xf0] %v4178
    %4205 = vst [vmem:[#allocation3 + $0x578] sm:$0xf0] %v4179
    %4206 = vst [vmem:[#allocation3 + $0x580] sm:$0xf0] %v4180
    %4207 = vst [vmem:[#allocation3 + $0x588] sm:$0xf0] %v4181
    %4208 = vst [vmem:[#allocation3 + $0x590] sm:$0xf0] %v4182
    %4209 = vst [vmem:[#allocation3 + $0x598] sm:$0xf0] %v4183
    %4210 = vst [vmem:[#allocation3 + $0x5a0] sm:$0xf0] %v4184
    %4211 = vst.msk [vmem:[#allocation3 + $0x5a8] sm:$0xf0] %vm3066, %v4185
    %4212 = vst [vmem:[#allocation3 + $0x5b0] sm:$0x3] %v4173
    %4213 = vst [vmem:[#allocation3 + $0x5b8] sm:$0x3] %v4174
    %4214 = vst [vmem:[#allocation3 + $0x5c0] sm:$0x3] %v4175
    %4215 = vst [vmem:[#allocation3 + $0x5c8] sm:$0x3] %v4176
    %4216 = vst [vmem:[#allocation3 + $0x5d0] sm:$0x3] %v4177
    %4217 = vst [vmem:[#allocation3 + $0x5d8] sm:$0x3] %v4178
    %4218 = vst [vmem:[#allocation3 + $0x5e0] sm:$0x3] %v4179
    %4219 = vst [vmem:[#allocation3 + $0x5e8] sm:$0x3] %v4180
    %4220 = vst [vmem:[#allocation3 + $0x5f0] sm:$0x3] %v4181
    %4221 = vst [vmem:[#allocation3 + $0x5f8] sm:$0x3] %v4182
    %4222 = vst [vmem:[#allocation3 + $0x600] sm:$0x3] %v4183
    %4223 = vst [vmem:[#allocation3 + $0x608] sm:$0x3] %v4184
    %4224 = vst.msk [vmem:[#allocation3 + $0x610] sm:$0x3] %vm3080, %v4185
    %4225 = vrot.lane.b32.xlu0 %v3083, 56
    %v4226 = vpop.permute.xlu0 %4225
    %4227 = vrot.lane.b32.xlu0 %v3084, 56
    %v4228 = vpop.permute.xlu0 %4227
    %4229 = vrot.lane.b32.xlu0 %v3085, 56
    %v4230 = vpop.permute.xlu0 %4229
    %4231 = vrot.lane.b32.xlu0 %v3086, 56
    %v4232 = vpop.permute.xlu0 %4231
    %4233 = vrot.lane.b32.xlu0 %v3087, 56
    %v4234 = vpop.permute.xlu0 %4233
    %4235 = vrot.lane.b32.xlu0 %v3088, 56
    %v4236 = vpop.permute.xlu0 %4235
    %4237 = vrot.lane.b32.xlu0 %v3089, 56
    %v4238 = vpop.permute.xlu0 %4237
    %4239 = vrot.lane.b32.xlu0 %v3090, 56
    %v4240 = vpop.permute.xlu0 %4239
    %4241 = vrot.lane.b32.xlu0 %v3091, 56
    %v4242 = vpop.permute.xlu0 %4241
    %4243 = vrot.lane.b32.xlu0 %v3092, 56
    %v4244 = vpop.permute.xlu0 %4243
    %4245 = vrot.lane.b32.xlu0 %v3093, 56
    %v4246 = vpop.permute.xlu0 %4245
    %4247 = vrot.lane.b32.xlu0 %v3094, 56
    %v4248 = vpop.permute.xlu0 %4247
    %4249 = vrot.lane.b32.xlu0 %v3389, 56
    %v4250 = vpop.permute.xlu0 %4249
    %4251 = vrot.lane.b32.xlu0 %v3928, 56
    %v4252 = vpop.permute.xlu0 %4251
    %v4253 = vsel %vm3553, %v4226, %v4228
    %v4254 = vsel %vm3553, %v4228, %v4230
    %v4255 = vsel %vm3553, %v4230, %v4232
    %v4256 = vsel %vm3553, %v4232, %v4234
    %v4257 = vsel %vm3553, %v4234, %v4236
    %v4258 = vsel %vm3553, %v4236, %v4238
    %v4259 = vsel %vm3553, %v4238, %v4240
    %v4260 = vsel %vm3553, %v4240, %v4242
    %v4261 = vsel %vm3553, %v4242, %v4244
    %v4262 = vsel %vm3553, %v4244, %v4246
    %v4263 = vsel %vm3553, %v4246, %v4248
    %v4264 = vsel %vm3553, %v4248, %v4250
    %v4265 = vsel %vm3553, %v4250, %v4252
    %4279 = vst [vmem:[#allocation3 + $0x5b0] sm:$0xfc] %v4253
    %4280 = vst [vmem:[#allocation3 + $0x5b8] sm:$0xfc] %v4254
    %4281 = vst [vmem:[#allocation3 + $0x5c0] sm:$0xfc] %v4255
    %4282 = vst [vmem:[#allocation3 + $0x5c8] sm:$0xfc] %v4256
    %4283 = vst [vmem:[#allocation3 + $0x5d0] sm:$0xfc] %v4257
    %4284 = vst [vmem:[#allocation3 + $0x5d8] sm:$0xfc] %v4258
    %4285 = vst [vmem:[#allocation3 + $0x5e0] sm:$0xfc] %v4259
    %4286 = vst [vmem:[#allocation3 + $0x5e8] sm:$0xfc] %v4260
    %4287 = vst [vmem:[#allocation3 + $0x5f0] sm:$0xfc] %v4261
    %4288 = vst [vmem:[#allocation3 + $0x5f8] sm:$0xfc] %v4262
    %4289 = vst [vmem:[#allocation3 + $0x600] sm:$0xfc] %v4263
    %4290 = vst [vmem:[#allocation3 + $0x608] sm:$0xfc] %v4264
    %4291 = vst.msk [vmem:[#allocation3 + $0x610] sm:$0xfc] %vm3159, %v4265
    %4292 = vst [vmem:[#allocation3 + $0x618] sm:$0x3f] %v2858
    %4293 = vst [vmem:[#allocation3 + $0x620] sm:$0x3f] %v2859
    %4294 = vst [vmem:[#allocation3 + $0x628] sm:$0x3f] %v2860
    %4295 = vst [vmem:[#allocation3 + $0x630] sm:$0x3f] %v2861
    %4296 = vst [vmem:[#allocation3 + $0x638] sm:$0x3f] %v2862
    %4297 = vst [vmem:[#allocation3 + $0x640] sm:$0x3f] %v2863
    %4298 = vst [vmem:[#allocation3 + $0x648] sm:$0x3f] %v2864
    %4299 = vst [vmem:[#allocation3 + $0x650] sm:$0x3f] %v2865
    %4300 = vst [vmem:[#allocation3 + $0x658] sm:$0x3f] %v2866
    %4301 = vst [vmem:[#allocation3 + $0x660] sm:$0x3f] %v2867
    %4302 = vst [vmem:[#allocation3 + $0x668] sm:$0x3f] %v2868
    %4303 = vst [vmem:[#allocation3 + $0x670] sm:$0x3f] %v2869
    %4304 = vst.msk [vmem:[#allocation3 + $0x678] sm:$0x3f] %vm2883, %v2870
    %4305 = vrot.lane.b32.xlu0 %v3227, 126
    %v4306 = vpop.permute.xlu0 %4305
    %4307 = vrot.lane.b32.xlu0 %v4063, 126
    %v4308 = vpop.permute.xlu0 %4307
    %v4309 = vsel %vm222, %v2936, %v4306
    %v4310 = vsel %vm222, %v4306, %v4308
    %4314 = vst [vmem:[#allocation3 + $0x618] sm:$0xc0] %v2939
    %4315 = vst [vmem:[#allocation3 + $0x620] sm:$0xc0] %v2940
    %4316 = vst [vmem:[#allocation3 + $0x628] sm:$0xc0] %v2941
    %4317 = vst [vmem:[#allocation3 + $0x630] sm:$0xc0] %v2942
    %4318 = vst [vmem:[#allocation3 + $0x638] sm:$0xc0] %v2943
    %4319 = vst [vmem:[#allocation3 + $0x640] sm:$0xc0] %v2944
    %4320 = vst [vmem:[#allocation3 + $0x648] sm:$0xc0] %v2945
    %4321 = vst [vmem:[#allocation3 + $0x650] sm:$0xc0] %v2946
    %4322 = vst [vmem:[#allocation3 + $0x658] sm:$0xc0] %v2947
    %4323 = vst [vmem:[#allocation3 + $0x660] sm:$0xc0] %v2948
    %4324 = vst [vmem:[#allocation3 + $0x668] sm:$0xc0] %v4309
    %4325 = vst [vmem:[#allocation3 + $0x670] sm:$0xc0] %v4310
    %4326 = vst.msk [vmem:[#allocation3 + $0x678] sm:$0xc0] %vm2974, %v4308
    %4327 = vst [vmem:[#allocation3 + $0x680] sm:$0xf] %v2939
    %4328 = vst [vmem:[#allocation3 + $0x688] sm:$0xf] %v2940
    %4329 = vst [vmem:[#allocation3 + $0x690] sm:$0xf] %v2941
    %4330 = vst [vmem:[#allocation3 + $0x698] sm:$0xf] %v2942
    %4331 = vst [vmem:[#allocation3 + $0x6a0] sm:$0xf] %v2943
    %4332 = vst [vmem:[#allocation3 + $0x6a8] sm:$0xf] %v2944
    %4333 = vst [vmem:[#allocation3 + $0x6b0] sm:$0xf] %v2945
    %4334 = vst [vmem:[#allocation3 + $0x6b8] sm:$0xf] %v2946
    %4335 = vst [vmem:[#allocation3 + $0x6c0] sm:$0xf] %v2947
    %4336 = vst [vmem:[#allocation3 + $0x6c8] sm:$0xf] %v2948
    %4337 = vst [vmem:[#allocation3 + $0x6d0] sm:$0xf] %v4309
    %4338 = vst [vmem:[#allocation3 + $0x6d8] sm:$0xf] %v4310
    %4339 = vst.msk [vmem:[#allocation3 + $0x6e0] sm:$0xf] %vm2988, %v4308
    %4340 = vrot.lane.b32.xlu0 %v3308, 124
    %v4341 = vpop.permute.xlu0 %4340
    %4342 = vrot.lane.b32.xlu0 %v4144, 124
    %v4343 = vpop.permute.xlu0 %4342
    %v4344 = vsel %vm413, %v3028, %v4341
    %v4345 = vsel %vm413, %v4341, %v4343
    %4349 = vst [vmem:[#allocation3 + $0x680] sm:$0xf0] %v3031
    %4350 = vst [vmem:[#allocation3 + $0x688] sm:$0xf0] %v3032
    %4351 = vst [vmem:[#allocation3 + $0x690] sm:$0xf0] %v3033
    %4352 = vst [vmem:[#allocation3 + $0x698] sm:$0xf0] %v3034
    %4353 = vst [vmem:[#allocation3 + $0x6a0] sm:$0xf0] %v3035
    %4354 = vst [vmem:[#allocation3 + $0x6a8] sm:$0xf0] %v3036
    %4355 = vst [vmem:[#allocation3 + $0x6b0] sm:$0xf0] %v3037
    %4356 = vst [vmem:[#allocation3 + $0x6b8] sm:$0xf0] %v3038
    %4357 = vst [vmem:[#allocation3 + $0x6c0] sm:$0xf0] %v3039
    %4358 = vst [vmem:[#allocation3 + $0x6c8] sm:$0xf0] %v3040
    %4359 = vst [vmem:[#allocation3 + $0x6d0] sm:$0xf0] %v4344
    %4360 = vst [vmem:[#allocation3 + $0x6d8] sm:$0xf0] %v4345
    %4361 = vst.msk [vmem:[#allocation3 + $0x6e0] sm:$0xf0] %vm3066, %v4343
    %4362 = vst [vmem:[#allocation3 + $0x6e8] sm:$0x3] %v3031
    %4363 = vst [vmem:[#allocation3 + $0x6f0] sm:$0x3] %v3032
    %4364 = vst [vmem:[#allocation3 + $0x6f8] sm:$0x3] %v3033
    %4365 = vst [vmem:[#allocation3 + $0x700] sm:$0x3] %v3034
    %4366 = vst [vmem:[#allocation3 + $0x708] sm:$0x3] %v3035
    %4367 = vst [vmem:[#allocation3 + $0x710] sm:$0x3] %v3036
    %4368 = vst [vmem:[#allocation3 + $0x718] sm:$0x3] %v3037
    %4369 = vst [vmem:[#allocation3 + $0x720] sm:$0x3] %v3038
    %4370 = vst [vmem:[#allocation3 + $0x728] sm:$0x3] %v3039
    %4371 = vst [vmem:[#allocation3 + $0x730] sm:$0x3] %v3040
    %4372 = vst [vmem:[#allocation3 + $0x738] sm:$0x3] %v4344
    %4373 = vst [vmem:[#allocation3 + $0x740] sm:$0x3] %v4345
    %4374 = vst.msk [vmem:[#allocation3 + $0x748] sm:$0x3] %vm3080, %v4343
    %4375 = vrot.lane.b32.xlu0 %v3389, 122
    %v4376 = vpop.permute.xlu0 %4375
    %4377 = vrot.lane.b32.xlu0 %v3928, 122
    %v4378 = vpop.permute.xlu0 %4377
    %v4379 = vsel %vm3121, %v3120, %v4376
    %v4380 = vsel %vm3121, %v4376, %v4378
    %4384 = vst [vmem:[#allocation3 + $0x6e8] sm:$0xfc] %v3124
    %4385 = vst [vmem:[#allocation3 + $0x6f0] sm:$0xfc] %v3125
    %4386 = vst [vmem:[#allocation3 + $0x6f8] sm:$0xfc] %v3126
    %4387 = vst [vmem:[#allocation3 + $0x700] sm:$0xfc] %v3127
    %4388 = vst [vmem:[#allocation3 + $0x708] sm:$0xfc] %v3128
    %4389 = vst [vmem:[#allocation3 + $0x710] sm:$0xfc] %v3129
    %4390 = vst [vmem:[#allocation3 + $0x718] sm:$0xfc] %v3130
    %4391 = vst [vmem:[#allocation3 + $0x720] sm:$0xfc] %v3131
    %4392 = vst [vmem:[#allocation3 + $0x728] sm:$0xfc] %v3132
    %4393 = vst [vmem:[#allocation3 + $0x730] sm:$0xfc] %v3133
    %4394 = vst [vmem:[#allocation3 + $0x738] sm:$0xfc] %v4379
    %4395 = vst [vmem:[#allocation3 + $0x740] sm:$0xfc] %v4380
    %4396 = vst.msk [vmem:[#allocation3 + $0x748] sm:$0xfc] %vm3159, %v4378
    %4397 = vrot.lane.b32.xlu0 %v2869, 120
    %v4398 = vpop.permute.xlu0 %4397
    %4399 = vrot.lane.b32.xlu0 %v2870, 120
    %v4400 = vpop.permute.xlu0 %4399
    %v4401 = vsel %vm3187, %v3186, %v4398
    %v4402 = vsel %vm3187, %v4398, %v4400
    %4406 = vst [vmem:[#allocation3 + $0x750] sm:$0x3f] %v3190
    %4407 = vst [vmem:[#allocation3 + $0x758] sm:$0x3f] %v3191
    %4408 = vst [vmem:[#allocation3 + $0x760] sm:$0x3f] %v3192
    %4409 = vst [vmem:[#allocation3 + $0x768] sm:$0x3f] %v3193
    %4410 = vst [vmem:[#allocation3 + $0x770] sm:$0x3f] %v3194
    %4411 = vst [vmem:[#allocation3 + $0x778] sm:$0x3f] %v3195
    %4412 = vst [vmem:[#allocation3 + $0x780] sm:$0x3f] %v3196
    %4413 = vst [vmem:[#allocation3 + $0x788] sm:$0x3f] %v3197
    %4414 = vst [vmem:[#allocation3 + $0x790] sm:$0x3f] %v3198
    %4415 = vst [vmem:[#allocation3 + $0x798] sm:$0x3f] %v3199
    %4416 = vst [vmem:[#allocation3 + $0x7a0] sm:$0x3f] %v4401
    %4417 = vst [vmem:[#allocation3 + $0x7a8] sm:$0x3f] %v4402
    %4418 = vst.msk [vmem:[#allocation3 + $0x7b0] sm:$0x3f] %vm2883, %v4400
    %v4419 = vld [vmem:[%s3] sm:$0xff]
    %v4420 = vld [vmem:[%s3 + $0x8] sm:$0xff]
    %v4421 = vld [vmem:[#allocation3] sm:$0xff]
    %v4422 = vld [vmem:[#allocation3 + $0x8] sm:$0xff]
    %v4423 = vld [vmem:[#allocation3 + $0x10] sm:$0xff]
    %v4424 = vld [vmem:[#allocation3 + $0x18] sm:$0xff]
    %v4425 = vld [vmem:[#allocation3 + $0x20] sm:$0xff]
    %v4426 = vld [vmem:[#allocation3 + $0x28] sm:$0xff]
    %v4427 = vld [vmem:[#allocation3 + $0x30] sm:$0xff]
    %v4428 = vld [vmem:[#allocation3 + $0x38] sm:$0xff]
    %v4429 = vld [vmem:[#allocation3 + $0x40] sm:$0xff]
    %v4430 = vld [vmem:[#allocation3 + $0x48] sm:$0xff]
    %v4431 = vld [vmem:[#allocation3 + $0x50] sm:$0xff]
    %v4432 = vld [vmem:[#allocation3 + $0x58] sm:$0xff]
    %v4433 = vld [vmem:[#allocation3 + $0x60] sm:$0xff]
    %v4434 = vld [vmem:[#allocation3 + $0x68] sm:$0xff]
    %v4435 = vld [vmem:[#allocation3 + $0x70] sm:$0xff]
    %v4436 = vld [vmem:[#allocation3 + $0x78] sm:$0xff]
    %v4437 = vld [vmem:[#allocation3 + $0x80] sm:$0xff]
    %v4438 = vld [vmem:[#allocation3 + $0x88] sm:$0xff]
    %v4439 = vld [vmem:[#allocation3 + $0x90] sm:$0xff]
    %v4440 = vld [vmem:[#allocation3 + $0x98] sm:$0xff]
    %v4441 = vld [vmem:[#allocation3 + $0xa0] sm:$0xff]
    %v4442 = vld [vmem:[#allocation3 + $0xa8] sm:$0xff]
    %v4443 = vld [vmem:[#allocation3 + $0xb0] sm:$0xff]
    %v4444 = vld [vmem:[#allocation3 + $0xb8] sm:$0xff]
    %v4445 = vld [vmem:[#allocation3 + $0xc0] sm:$0xff]
    %v4446 = vld [vmem:[#allocation3 + $0xc8] sm:$0xff]
    %v4447 = vld [vmem:[#allocation3 + $0xd0] sm:$0xff]
    %v4448 = vld [vmem:[#allocation3 + $0xd8] sm:$0xff]
    %v4449 = vld [vmem:[#allocation3 + $0xe0] sm:$0xff]
    %v4450 = vld [vmem:[#allocation3 + $0xe8] sm:$0xff]
    %v4451 = vld [vmem:[#allocation3 + $0xf0] sm:$0xff]
    %v4452 = vld [vmem:[#allocation3 + $0xf8] sm:$0xff]
    %v4453 = vld [vmem:[#allocation3 + $0x100] sm:$0xff]
    %v4454 = vld [vmem:[#allocation3 + $0x108] sm:$0xff]
    %v4455 = vld [vmem:[#allocation3 + $0x110] sm:$0xff]
    %v4456 = vld [vmem:[#allocation3 + $0x118] sm:$0xff]
    %v4457 = vld [vmem:[#allocation3 + $0x120] sm:$0xff]
    %v4458 = vld [vmem:[#allocation3 + $0x128] sm:$0xff]
    %v4459 = vld [vmem:[#allocation3 + $0x130] sm:$0xff]
    %v4460 = vld [vmem:[#allocation3 + $0x138] sm:$0xff]
    %v4461 = vld [vmem:[#allocation3 + $0x140] sm:$0xff]
    %v4462 = vld [vmem:[#allocation3 + $0x148] sm:$0xff]
    %v4463 = vld [vmem:[#allocation3 + $0x150] sm:$0xff]
    %v4464 = vld [vmem:[#allocation3 + $0x158] sm:$0xff]
    %v4465 = vld [vmem:[#allocation3 + $0x160] sm:$0xff]
    %v4466 = vld [vmem:[#allocation3 + $0x168] sm:$0xff]
    %v4467 = vld [vmem:[#allocation3 + $0x170] sm:$0xff]
    %v4468 = vld [vmem:[#allocation3 + $0x178] sm:$0xff]
    %v4469 = vld [vmem:[#allocation3 + $0x180] sm:$0xff]
    %v4470 = vld [vmem:[#allocation3 + $0x188] sm:$0xff]
    %v4471 = vld [vmem:[#allocation3 + $0x190] sm:$0xff]
    %v4472 = vld [vmem:[#allocation3 + $0x198] sm:$0xff]
    %v4473 = vld [vmem:[#allocation3 + $0x1a0] sm:$0xff]
    %v4474 = vld [vmem:[#allocation3 + $0x1a8] sm:$0xff]
    %v4475 = vld [vmem:[#allocation3 + $0x1b0] sm:$0xff]
    %v4476 = vld [vmem:[#allocation3 + $0x1b8] sm:$0xff]
    %v4477 = vld [vmem:[#allocation3 + $0x1c0] sm:$0xff]
    %v4478 = vld [vmem:[#allocation3 + $0x1c8] sm:$0xff]
    %v4479 = vld [vmem:[#allocation3 + $0x1d0] sm:$0xff]
    %v4480 = vld [vmem:[#allocation3 + $0x1d8] sm:$0xff]
    %v4481 = vld [vmem:[#allocation3 + $0x1e0] sm:$0xff]
    %v4482 = vld [vmem:[#allocation3 + $0x1e8] sm:$0xff]
    %v4483 = vld [vmem:[#allocation3 + $0x1f0] sm:$0xff]
    %v4484 = vld [vmem:[#allocation3 + $0x1f8] sm:$0xff]
    %v4485 = vld [vmem:[#allocation3 + $0x200] sm:$0xff]
    %v4486 = vld [vmem:[#allocation3 + $0x208] sm:$0xff]
    %v4487 = vld [vmem:[#allocation3 + $0x210] sm:$0xff]
    %v4488 = vld [vmem:[#allocation3 + $0x218] sm:$0xff]
    %v4489 = vld [vmem:[#allocation3 + $0x220] sm:$0xff]
    %v4490 = vld [vmem:[#allocation3 + $0x228] sm:$0xff]
    %v4491 = vld [vmem:[#allocation3 + $0x230] sm:$0xff]
    %v4492 = vld [vmem:[#allocation3 + $0x238] sm:$0xff]
    %v4493 = vld [vmem:[#allocation3 + $0x240] sm:$0xff]
    %v4494 = vld [vmem:[#allocation3 + $0x248] sm:$0xff]
    %v4495 = vld [vmem:[#allocation3 + $0x250] sm:$0xff]
    %v4496 = vld [vmem:[#allocation3 + $0x258] sm:$0xff]
    %v4497 = vld [vmem:[#allocation3 + $0x260] sm:$0xff]
    %v4498 = vld [vmem:[#allocation3 + $0x268] sm:$0xff]
    %v4499 = vld [vmem:[#allocation3 + $0x270] sm:$0xff]
    %v4500 = vld [vmem:[#allocation3 + $0x278] sm:$0xff]
    %v4501 = vld [vmem:[#allocation3 + $0x280] sm:$0xff]
    %v4502 = vld [vmem:[#allocation3 + $0x288] sm:$0xff]
    %v4503 = vld [vmem:[#allocation3 + $0x290] sm:$0xff]
    %v4504 = vld [vmem:[#allocation3 + $0x298] sm:$0xff]
    %v4505 = vld [vmem:[#allocation3 + $0x2a0] sm:$0xff]
    %v4506 = vld [vmem:[#allocation3 + $0x2a8] sm:$0xff]
    %v4507 = vld [vmem:[#allocation3 + $0x2b0] sm:$0xff]
    %v4508 = vld [vmem:[#allocation3 + $0x2b8] sm:$0xff]
    %v4509 = vld [vmem:[#allocation3 + $0x2c0] sm:$0xff]
    %v4510 = vld [vmem:[#allocation3 + $0x2c8] sm:$0xff]
    %v4511 = vld [vmem:[#allocation3 + $0x2d0] sm:$0xff]
    %v4512 = vld [vmem:[#allocation3 + $0x2d8] sm:$0xff]
    %v4513 = vld [vmem:[#allocation3 + $0x2e0] sm:$0xff]
    %v4514 = vld [vmem:[#allocation3 + $0x2e8] sm:$0xff]
    %v4515 = vld [vmem:[#allocation3 + $0x2f0] sm:$0xff]
    %v4516 = vld [vmem:[#allocation3 + $0x2f8] sm:$0xff]
    %v4517 = vld [vmem:[#allocation3 + $0x300] sm:$0xff]
    %v4518 = vld [vmem:[#allocation3 + $0x308] sm:$0xff]
    %v4519 = vld [vmem:[#allocation3 + $0x310] sm:$0xff]
    %v4520 = vld [vmem:[#allocation3 + $0x318] sm:$0xff]
    %v4521 = vld [vmem:[#allocation3 + $0x320] sm:$0xff]
    %v4522 = vld [vmem:[#allocation3 + $0x328] sm:$0xff]
    %v4523 = vld [vmem:[#allocation3 + $0x330] sm:$0xff]
    %v4524 = vld [vmem:[#allocation3 + $0x338] sm:$0xff]
    %v4525 = vld [vmem:[#allocation3 + $0x340] sm:$0xff]
    %v4526 = vld [vmem:[#allocation3 + $0x348] sm:$0xff]
    %v4527 = vld [vmem:[#allocation3 + $0x350] sm:$0xff]
    %v4528 = vld [vmem:[#allocation3 + $0x358] sm:$0xff]
    %v4529 = vld [vmem:[#allocation3 + $0x360] sm:$0xff]
    %v4530 = vld [vmem:[#allocation3 + $0x368] sm:$0xff]
    %v4531 = vld [vmem:[#allocation3 + $0x370] sm:$0xff]
    %v4532 = vld [vmem:[#allocation3 + $0x378] sm:$0xff]
    %v4533 = vld [vmem:[#allocation3 + $0x380] sm:$0xff]
    %v4534 = vld [vmem:[#allocation3 + $0x388] sm:$0xff]
    %v4535 = vld [vmem:[#allocation3 + $0x390] sm:$0xff]
    %v4536 = vld [vmem:[#allocation3 + $0x398] sm:$0xff]
    %v4537 = vld [vmem:[#allocation3 + $0x3a0] sm:$0xff]
    %v4538 = vld [vmem:[#allocation3 + $0x3a8] sm:$0xff]
    %v4539 = vld [vmem:[#allocation3 + $0x3b0] sm:$0xff]
    %v4540 = vld [vmem:[#allocation3 + $0x3b8] sm:$0xff]
    %v4541 = vld [vmem:[#allocation3 + $0x3c0] sm:$0xff]
    %v4542 = vld [vmem:[#allocation3 + $0x3c8] sm:$0xff]
    %v4543 = vld [vmem:[#allocation3 + $0x3d0] sm:$0xff]
    %v4544 = vld [vmem:[#allocation3 + $0x3d8] sm:$0xff]
    %v4545 = vld [vmem:[#allocation3 + $0x3e0] sm:$0xff]
    %v4546 = vld [vmem:[#allocation3 + $0x3e8] sm:$0xff]
    %v4547 = vld [vmem:[#allocation3 + $0x3f0] sm:$0xff]
    %v4548 = vld [vmem:[#allocation3 + $0x3f8] sm:$0xff]
    %v4549 = vld [vmem:[#allocation3 + $0x400] sm:$0xff]
    %v4550 = vld [vmem:[#allocation3 + $0x408] sm:$0xff]
    %v4551 = vld [vmem:[#allocation3 + $0x410] sm:$0xff]
    %v4552 = vld [vmem:[#allocation3 + $0x418] sm:$0xff]
    %v4553 = vld [vmem:[#allocation3 + $0x420] sm:$0xff]
    %v4554 = vld [vmem:[#allocation3 + $0x428] sm:$0xff]
    %v4555 = vld [vmem:[#allocation3 + $0x430] sm:$0xff]
    %v4556 = vld [vmem:[#allocation3 + $0x438] sm:$0xff]
    %v4557 = vld [vmem:[#allocation3 + $0x440] sm:$0xff]
    %v4558 = vld [vmem:[#allocation3 + $0x448] sm:$0xff]
    %v4559 = vld [vmem:[#allocation3 + $0x450] sm:$0xff]
    %v4560 = vld [vmem:[#allocation3 + $0x458] sm:$0xff]
    %v4561 = vld [vmem:[#allocation3 + $0x460] sm:$0xff]
    %v4562 = vld [vmem:[#allocation3 + $0x468] sm:$0xff]
    %v4563 = vld [vmem:[#allocation3 + $0x470] sm:$0xff]
    %v4564 = vld [vmem:[#allocation3 + $0x478] sm:$0xff]
    %v4565 = vld [vmem:[#allocation3 + $0x480] sm:$0xff]
    %v4566 = vld [vmem:[#allocation3 + $0x488] sm:$0xff]
    %v4567 = vld [vmem:[#allocation3 + $0x490] sm:$0xff]
    %v4568 = vld [vmem:[#allocation3 + $0x498] sm:$0xff]
    %v4569 = vld [vmem:[#allocation3 + $0x4a0] sm:$0xff]
    %v4570 = vld [vmem:[#allocation3 + $0x4a8] sm:$0xff]
    %v4571 = vld [vmem:[#allocation3 + $0x4b0] sm:$0xff]
    %v4572 = vld [vmem:[#allocation3 + $0x4b8] sm:$0xff]
    %v4573 = vld [vmem:[#allocation3 + $0x4c0] sm:$0xff]
    %v4574 = vld [vmem:[#allocation3 + $0x4c8] sm:$0xff]
    %v4575 = vld [vmem:[#allocation3 + $0x4d0] sm:$0xff]
    %v4576 = vld [vmem:[#allocation3 + $0x4d8] sm:$0xff]
    %v4577 = vld [vmem:[#allocation3 + $0x4e0] sm:$0xff]
    %v4578 = vld [vmem:[#allocation3 + $0x4e8] sm:$0xff]
    %v4579 = vld [vmem:[#allocation3 + $0x4f0] sm:$0xff]
    %v4580 = vld [vmem:[#allocation3 + $0x4f8] sm:$0xff]
    %v4581 = vld [vmem:[#allocation3 + $0x500] sm:$0xff]
    %v4582 = vld [vmem:[#allocation3 + $0x508] sm:$0xff]
    %v4583 = vld [vmem:[#allocation3 + $0x510] sm:$0xff]
    %v4584 = vld [vmem:[#allocation3 + $0x518] sm:$0xff]
    %v4585 = vld [vmem:[#allocation3 + $0x520] sm:$0xff]
    %v4586 = vld [vmem:[#allocation3 + $0x528] sm:$0xff]
    %v4587 = vld [vmem:[#allocation3 + $0x530] sm:$0xff]
    %v4588 = vld [vmem:[#allocation3 + $0x538] sm:$0xff]
    %v4589 = vld [vmem:[#allocation3 + $0x540] sm:$0xff]
    %v4590 = vld [vmem:[#allocation3 + $0x548] sm:$0xff]
    %v4591 = vld [vmem:[#allocation3 + $0x550] sm:$0xff]
    %v4592 = vld [vmem:[#allocation3 + $0x558] sm:$0xff]
    %v4593 = vld [vmem:[#allocation3 + $0x560] sm:$0xff]
    %v4594 = vld [vmem:[#allocation3 + $0x568] sm:$0xff]
    %v4595 = vld [vmem:[#allocation3 + $0x570] sm:$0xff]
    %v4596 = vld [vmem:[#allocation3 + $0x578] sm:$0xff]
    %v4597 = vld [vmem:[#allocation3 + $0x580] sm:$0xff]
    %v4598 = vld [vmem:[#allocation3 + $0x588] sm:$0xff]
    %v4599 = vld [vmem:[#allocation3 + $0x590] sm:$0xff]
    %v4600 = vld [vmem:[#allocation3 + $0x598] sm:$0xff]
    %v4601 = vld [vmem:[#allocation3 + $0x5a0] sm:$0xff]
    %v4602 = vld [vmem:[#allocation3 + $0x5a8] sm:$0xff]
    %v4603 = vld [vmem:[#allocation3 + $0x5b0] sm:$0xff]
    %v4604 = vld [vmem:[#allocation3 + $0x5b8] sm:$0xff]
    %v4605 = vld [vmem:[#allocation3 + $0x5c0] sm:$0xff]
    %v4606 = vld [vmem:[#allocation3 + $0x5c8] sm:$0xff]
    %v4607 = vld [vmem:[#allocation3 + $0x5d0] sm:$0xff]
    %v4608 = vld [vmem:[#allocation3 + $0x5d8] sm:$0xff]
    %v4609 = vld [vmem:[#allocation3 + $0x5e0] sm:$0xff]
    %v4610 = vld [vmem:[#allocation3 + $0x5e8] sm:$0xff]
    %v4611 = vld [vmem:[#allocation3 + $0x5f0] sm:$0xff]
    %v4612 = vld [vmem:[#allocation3 + $0x5f8] sm:$0xff]
    %v4613 = vld [vmem:[#allocation3 + $0x600] sm:$0xff]
    %v4614 = vld [vmem:[#allocation3 + $0x608] sm:$0xff]
    %v4615 = vld [vmem:[#allocation3 + $0x610] sm:$0xff]
    %v4616 = vld [vmem:[#allocation3 + $0x618] sm:$0xff]
    %v4617 = vld [vmem:[#allocation3 + $0x620] sm:$0xff]
    %v4618 = vld [vmem:[#allocation3 + $0x628] sm:$0xff]
    %v4619 = vld [vmem:[#allocation3 + $0x630] sm:$0xff]
    %v4620 = vld [vmem:[#allocation3 + $0x638] sm:$0xff]
    %v4621 = vld [vmem:[#allocation3 + $0x640] sm:$0xff]
    %v4622 = vld [vmem:[#allocation3 + $0x648] sm:$0xff]
    %v4623 = vld [vmem:[#allocation3 + $0x650] sm:$0xff]
    %v4624 = vld [vmem:[#allocation3 + $0x658] sm:$0xff]
    %v4625 = vld [vmem:[#allocation3 + $0x660] sm:$0xff]
    %v4626 = vld [vmem:[#allocation3 + $0x668] sm:$0xff]
    %v4627 = vld [vmem:[#allocation3 + $0x670] sm:$0xff]
    %v4628 = vld [vmem:[#allocation3 + $0x678] sm:$0xff]
    %v4629 = vld [vmem:[#allocation3 + $0x680] sm:$0xff]
    %v4630 = vld [vmem:[#allocation3 + $0x688] sm:$0xff]
    %v4631 = vld [vmem:[#allocation3 + $0x690] sm:$0xff]
    %v4632 = vld [vmem:[#allocation3 + $0x698] sm:$0xff]
    %v4633 = vld [vmem:[#allocation3 + $0x6a0] sm:$0xff]
    %v4634 = vld [vmem:[#allocation3 + $0x6a8] sm:$0xff]
    %v4635 = vld [vmem:[#allocation3 + $0x6b0] sm:$0xff]
    %v4636 = vld [vmem:[#allocation3 + $0x6b8] sm:$0xff]
    %v4637 = vld [vmem:[#allocation3 + $0x6c0] sm:$0xff]
    %v4638 = vld [vmem:[#allocation3 + $0x6c8] sm:$0xff]
    %v4639 = vld [vmem:[#allocation3 + $0x6d0] sm:$0xff]
    %v4640 = vld [vmem:[#allocation3 + $0x6d8] sm:$0xff]
    %v4641 = vld [vmem:[#allocation3 + $0x6e0] sm:$0xff]
    %v4642 = vld [vmem:[#allocation3 + $0x6e8] sm:$0xff]
    %v4643 = vld [vmem:[#allocation3 + $0x6f0] sm:$0xff]
    %v4644 = vld [vmem:[#allocation3 + $0x6f8] sm:$0xff]
    %v4645 = vld [vmem:[#allocation3 + $0x700] sm:$0xff]
    %v4646 = vld [vmem:[#allocation3 + $0x708] sm:$0xff]
    %v4647 = vld [vmem:[#allocation3 + $0x710] sm:$0xff]
    %v4648 = vld [vmem:[#allocation3 + $0x718] sm:$0xff]
    %v4649 = vld [vmem:[#allocation3 + $0x720] sm:$0xff]
    %v4650 = vld [vmem:[#allocation3 + $0x728] sm:$0xff]
    %v4651 = vld [vmem:[#allocation3 + $0x730] sm:$0xff]
    %v4652 = vld [vmem:[#allocation3 + $0x738] sm:$0xff]
    %v4653 = vld [vmem:[#allocation3 + $0x740] sm:$0xff]
    %v4654 = vld [vmem:[#allocation3 + $0x748] sm:$0xff]
    %v4655 = vld [vmem:[#allocation3 + $0x750] sm:$0x3f]
    %v4656 = vld [vmem:[#allocation3 + $0x758] sm:$0x3f]
    %v4657 = vld [vmem:[#allocation3 + $0x760] sm:$0x3f]
    %v4658 = vld [vmem:[#allocation3 + $0x768] sm:$0x3f]
    %v4659 = vld [vmem:[#allocation3 + $0x770] sm:$0x3f]
    %v4660 = vld [vmem:[#allocation3 + $0x778] sm:$0x3f]
    %v4661 = vld [vmem:[#allocation3 + $0x780] sm:$0x3f]
    %v4662 = vld [vmem:[#allocation3 + $0x788] sm:$0x3f]
    %v4663 = vld [vmem:[#allocation3 + $0x790] sm:$0x3f]
    %v4664 = vld [vmem:[#allocation3 + $0x798] sm:$0x3f]
    %v4665 = vld [vmem:[#allocation3 + $0x7a0] sm:$0x3f]
    %v4666 = vld [vmem:[#allocation3 + $0x7a8] sm:$0x3f]
    %v4667 = vld [vmem:[#allocation3 + $0x7b0] sm:$0x3f]
    %v4668 = vpack.c.bf16 %v4434, %v4421
    %v4669 = vpack.c.bf16 %v4435, %v4422
    %v4670 = vpack.c.bf16 %v4436, %v4423
    %v4671 = vpack.c.bf16 %v4437, %v4424
    %v4672 = vpack.c.bf16 %v4438, %v4425
    %v4673 = vpack.c.bf16 %v4439, %v4426
    %v4674 = vpack.c.bf16 %v4440, %v4427
    %v4675 = vpack.c.bf16 %v4441, %v4428
    %v4676 = vpack.c.bf16 %v4442, %v4429
    %v4677 = vpack.c.bf16 %v4443, %v4430
    %v4678 = vpack.c.bf16 %v4444, %v4431
    %v4679 = vpack.c.bf16 %v4445, %v4432
    %v4680 = vpack.c.bf16 %v4446, %v4433
    %v4681 = vpack.c.bf16 %v4460, %v4447
    %v4682 = vpack.c.bf16 %v4461, %v4448
    %v4683 = vpack.c.bf16 %v4462, %v4449
    %v4684 = vpack.c.bf16 %v4463, %v4450
    %v4685 = vpack.c.bf16 %v4464, %v4451
    %v4686 = vpack.c.bf16 %v4465, %v4452
    %v4687 = vpack.c.bf16 %v4466, %v4453
    %v4688 = vpack.c.bf16 %v4467, %v4454
    %v4689 = vpack.c.bf16 %v4468, %v4455
    %v4690 = vpack.c.bf16 %v4469, %v4456
    %v4691 = vpack.c.bf16 %v4470, %v4457
    %v4692 = vpack.c.bf16 %v4471, %v4458
    %v4693 = vpack.c.bf16 %v4472, %v4459
    %v4694 = vpack.c.bf16 %v4486, %v4473
    %v4695 = vpack.c.bf16 %v4487, %v4474
    %v4696 = vpack.c.bf16 %v4488, %v4475
    %v4697 = vpack.c.bf16 %v4489, %v4476
    %v4698 = vpack.c.bf16 %v4490, %v4477
    %v4699 = vpack.c.bf16 %v4491, %v4478
    %v4700 = vpack.c.bf16 %v4492, %v4479
    %v4701 = vpack.c.bf16 %v4493, %v4480
    %v4702 = vpack.c.bf16 %v4494, %v4481
    %v4703 = vpack.c.bf16 %v4495, %v4482
    %v4704 = vpack.c.bf16 %v4496, %v4483
    %v4705 = vpack.c.bf16 %v4497, %v4484
    %v4706 = vpack.c.bf16 %v4498, %v4485
    %v4707 = vpack.c.bf16 %v4512, %v4499
    %v4708 = vpack.c.bf16 %v4513, %v4500
    %v4709 = vpack.c.bf16 %v4514, %v4501
    %v4710 = vpack.c.bf16 %v4515, %v4502
    %v4711 = vpack.c.bf16 %v4516, %v4503
    %v4712 = vpack.c.bf16 %v4517, %v4504
    %v4713 = vpack.c.bf16 %v4518, %v4505
    %v4714 = vpack.c.bf16 %v4519, %v4506
    %v4715 = vpack.c.bf16 %v4520, %v4507
    %v4716 = vpack.c.bf16 %v4521, %v4508
    %v4717 = vpack.c.bf16 %v4522, %v4509
    %v4718 = vpack.c.bf16 %v4523, %v4510
    %v4719 = vpack.c.bf16 %v4524, %v4511
    %v4720 = vpack.c.bf16 %v4538, %v4525
    %v4721 = vpack.c.bf16 %v4539, %v4526
    %v4722 = vpack.c.bf16 %v4540, %v4527
    %v4723 = vpack.c.bf16 %v4541, %v4528
    %v4724 = vpack.c.bf16 %v4542, %v4529
    %v4725 = vpack.c.bf16 %v4543, %v4530
    %v4726 = vpack.c.bf16 %v4544, %v4531
    %v4727 = vpack.c.bf16 %v4545, %v4532
    %v4728 = vpack.c.bf16 %v4546, %v4533
    %v4729 = vpack.c.bf16 %v4547, %v4534
    %v4730 = vpack.c.bf16 %v4548, %v4535
    %v4731 = vpack.c.bf16 %v4549, %v4536
    %v4732 = vpack.c.bf16 %v4550, %v4537
    %v4733 = vpack.c.bf16 %v4564, %v4551
    %v4734 = vpack.c.bf16 %v4565, %v4552
    %v4735 = vpack.c.bf16 %v4566, %v4553
    %v4736 = vpack.c.bf16 %v4567, %v4554
    %v4737 = vpack.c.bf16 %v4568, %v4555
    %v4738 = vpack.c.bf16 %v4569, %v4556
    %v4739 = vpack.c.bf16 %v4570, %v4557
    %v4740 = vpack.c.bf16 %v4571, %v4558
    %v4741 = vpack.c.bf16 %v4572, %v4559
    %v4742 = vpack.c.bf16 %v4573, %v4560
    %v4743 = vpack.c.bf16 %v4574, %v4561
    %v4744 = vpack.c.bf16 %v4575, %v4562
    %v4745 = vpack.c.bf16 %v4576, %v4563
    %v4746 = vpack.c.bf16 %v4590, %v4577
    %v4747 = vpack.c.bf16 %v4591, %v4578
    %v4748 = vpack.c.bf16 %v4592, %v4579
    %v4749 = vpack.c.bf16 %v4593, %v4580
    %v4750 = vpack.c.bf16 %v4594, %v4581
    %v4751 = vpack.c.bf16 %v4595, %v4582
    %v4752 = vpack.c.bf16 %v4596, %v4583
    %v4753 = vpack.c.bf16 %v4597, %v4584
    %v4754 = vpack.c.bf16 %v4598, %v4585
    %v4755 = vpack.c.bf16 %v4599, %v4586
    %v4756 = vpack.c.bf16 %v4600, %v4587
    %v4757 = vpack.c.bf16 %v4601, %v4588
    %v4758 = vpack.c.bf16 %v4602, %v4589
    %v4759 = vpack.c.bf16 %v4616, %v4603
    %v4760 = vpack.c.bf16 %v4617, %v4604
    %v4761 = vpack.c.bf16 %v4618, %v4605
    %v4762 = vpack.c.bf16 %v4619, %v4606
    %v4763 = vpack.c.bf16 %v4620, %v4607
    %v4764 = vpack.c.bf16 %v4621, %v4608
    %v4765 = vpack.c.bf16 %v4622, %v4609
    %v4766 = vpack.c.bf16 %v4623, %v4610
    %v4767 = vpack.c.bf16 %v4624, %v4611
    %v4768 = vpack.c.bf16 %v4625, %v4612
    %v4769 = vpack.c.bf16 %v4626, %v4613
    %v4770 = vpack.c.bf16 %v4627, %v4614
    %v4771 = vpack.c.bf16 %v4628, %v4615
    %v4772 = vpack.c.bf16 %v4642, %v4629
    %v4773 = vpack.c.bf16 %v4643, %v4630
    %v4774 = vpack.c.bf16 %v4644, %v4631
    %v4775 = vpack.c.bf16 %v4645, %v4632
    %v4776 = vpack.c.bf16 %v4646, %v4633
    %v4777 = vpack.c.bf16 %v4647, %v4634
    %v4778 = vpack.c.bf16 %v4648, %v4635
    %v4779 = vpack.c.bf16 %v4649, %v4636
    %v4780 = vpack.c.bf16 %v4650, %v4637
    %v4781 = vpack.c.bf16 %v4651, %v4638
    %v4782 = vpack.c.bf16 %v4652, %v4639
    %v4783 = vpack.c.bf16 %v4653, %v4640
    %v4784 = vpack.c.bf16 %v4654, %v4641
    %v4785 = vpack.c.bf16 %v4655, %v4655
    %v4786 = vpack.c.bf16 %v4656, %v4656
    %v4787 = vpack.c.bf16 %v4657, %v4657
    %v4788 = vpack.c.bf16 %v4658, %v4658
    %v4789 = vpack.c.bf16 %v4659, %v4659
    %v4790 = vpack.c.bf16 %v4660, %v4660
    %v4791 = vpack.c.bf16 %v4661, %v4661
    %v4792 = vpack.c.bf16 %v4662, %v4662
    %v4793 = vpack.c.bf16 %v4663, %v4663
    %v4794 = vpack.c.bf16 %v4664, %v4664
    %v4795 = vpack.c.bf16 %v4665, %v4665
    %v4796 = vpack.c.bf16 %v4666, %v4666
    %v4797 = vpack.c.bf16 %v4667, %v4667
    %v4798 = vld [vmem:[%s4] sm:$0xff]
    %v4799 = vld [vmem:[%s4 + $0x8] sm:$0xff]
    %4801 = vset.pattern.permute.xlu0 0
    %4802 = vperm.xlu0 %4801, %v4798
    %v4803 = vpop.permute.xlu0 %4802
    %4806 = vset.pattern.permute.xlu0 0
    %4807 = vperm.xlu0 %4806, %v4799
    %v4808 = vpop.permute.xlu0 %4807
    %v4812 = vunpack.c.l.b16 %v4419
    %v4813 = vunpack.c.h.b16 %v4419
    %v4814 = vunpack.c.l.b16 %v4420
    %v4815 = vunpack.c.h.b16 %v4420
    %v4816 = vpack.c.b16 %v4814, %v4812
    %v4817 = vpack.c.b16 %v4815, %v4813
    %vm4819 = vcmask 179200
    %v4821 = vsel %vm4819, %v4817, 0
    %vm4823 = vcmask 1042432
    %v4825 = vsel %vm4823, %v4785, 0
    %v4828 = vsel %vm4823, %v4786, 0
    %v4831 = vsel %vm4823, %v4787, 0
    %v4834 = vsel %vm4823, %v4788, 0
    %v4837 = vsel %vm4823, %v4789, 0
    %v4840 = vsel %vm4823, %v4790, 0
    %v4843 = vsel %vm4823, %v4791, 0
    %v4846 = vsel %vm4823, %v4792, 0
    %v4849 = vsel %vm4823, %v4793, 0
    %v4852 = vsel %vm4823, %v4794, 0
    %v4855 = vsel %vm4823, %v4795, 0
    %v4858 = vsel %vm4823, %v4796, 0
    %v4861 = vsel %vm4823, %v4797, 0
    %4863 = vmatprep.subr.bf16.mxu0 %v4669
    %4864 = vmatpush1.bf16.msra.mxu0 %v4668
    %4865 = vmatprep.subr.bf16.mxu0 %v4682
    %4866 = vmatpush1.bf16.msra.mxu0 %v4681
    %4867 = vmatprep.subr.bf16.mxu0 %v4695
    %4868 = vmatpush1.bf16.msra.mxu0 %v4694
    %4869 = vmatprep.subr.bf16.mxu0 %v4708
    %4870 = vmatpush1.bf16.msra.mxu0 %v4707
    %4871 = vmatprep.subr.bf16.mxu0 %v4721
    %4872 = vmatpush1.bf16.msra.mxu0 %v4720
    %4873 = vmatprep.subr.bf16.mxu0 %v4734
    %4874 = vmatpush1.bf16.msra.mxu0 %v4733
    %4875 = vmatprep.subr.bf16.mxu0 %v4747
    %4876 = vmatpush1.bf16.msra.mxu0 %v4746
    %4877 = vmatprep.subr.bf16.mxu0 %v4760
    %4878 = vmatpush1.bf16.msra.mxu0 %v4759
    %4879 = vmatprep.subr.bf16.mxu0 %v4773
    %4880 = vmatpush1.bf16.msra.mxu0 %v4772
    %4881 = vmatprep.subr.bf16.mxu0 %v4828
    %4882 = vmatpush1.bf16.msra.mxu0 %v4825
    %4883 = vmatprep.subr.bf16.mxu0 0
    %4884 = vmatpush1.bf16.msra.mxu0 0
    %4885 = vmatprep.subr.bf16.mxu0 0
    %4886 = vmatpush1.bf16.msra.mxu0 0
    %4887 = vmatprep.subr.bf16.mxu0 0
    %4888 = vmatpush1.bf16.msra.mxu0 0
    %4889 = vmatprep.subr.bf16.mxu0 0
    %4890 = vmatpush1.bf16.msra.mxu0 0
    %4891 = vmatprep.subr.bf16.mxu0 0
    %4892 = vmatpush1.bf16.msra.mxu0 0
    %4893 = vmatprep.subr.bf16.mxu0 0
    %4894 = vmatpush1.bf16.msra.mxu0 0
    %4895 = vmatprep.mubr.bf16.mxu0 %v4821
    %4896 = vmatmul.mubr.bf16.gmra.mrb[0].mxu0 %v4816
    %v4897 = vpop.f32.mrb[0].mxu0
    %v4898 = vadd.f32 %v4803, %v4897
    %v4899 = vpop.f32.mrb[0].mxu0
    %v4900 = vadd.f32 %v4803, %v4899
    %v4901 = vpop.f32.mrb[0].mxu0
    %v4902 = vadd.f32 %v4808, %v4901
    %v4903 = vpop.f32.mrb[0].mxu0
    %v4904 = vadd.f32 %v4808, %v4903
    %4905 = vdwg.mxu0
    %4906 = vmatprep.subr.bf16.mxu0 %v4671
    %4907 = vmatpush1.bf16.msra.mxu0 %v4670
    %4908 = vmatprep.subr.bf16.mxu0 %v4684
    %4909 = vmatpush1.bf16.msra.mxu0 %v4683
    %4910 = vmatprep.subr.bf16.mxu0 %v4697
    %4911 = vmatpush1.bf16.msra.mxu0 %v4696
    %4912 = vmatprep.subr.bf16.mxu0 %v4710
    %4913 = vmatpush1.bf16.msra.mxu0 %v4709
    %4914 = vmatprep.subr.bf16.mxu0 %v4723
    %4915 = vmatpush1.bf16.msra.mxu0 %v4722
    %4916 = vmatprep.subr.bf16.mxu0 %v4736
    %4917 = vmatpush1.bf16.msra.mxu0 %v4735
    %4918 = vmatprep.subr.bf16.mxu0 %v4749
    %4919 = vmatpush1.bf16.msra.mxu0 %v4748
    %4920 = vmatprep.subr.bf16.mxu0 %v4762
    %4921 = vmatpush1.bf16.msra.mxu0 %v4761
    %4922 = vmatprep.subr.bf16.mxu0 %v4775
    %4923 = vmatpush1.bf16.msra.mxu0 %v4774
    %4924 = vmatprep.subr.bf16.mxu0 %v4834
    %4925 = vmatpush1.bf16.msra.mxu0 %v4831
    %4926 = vmatprep.subr.bf16.mxu0 0
    %4927 = vmatpush1.bf16.msra.mxu0 0
    %4928 = vmatprep.subr.bf16.mxu0 0
    %4929 = vmatpush1.bf16.msra.mxu0 0
    %4930 = vmatprep.subr.bf16.mxu0 0
    %4931 = vmatpush1.bf16.msra.mxu0 0
    %4932 = vmatprep.subr.bf16.mxu0 0
    %4933 = vmatpush1.bf16.msra.mxu0 0
    %4934 = vmatprep.subr.bf16.mxu0 0
    %4935 = vmatpush1.bf16.msra.mxu0 0
    %4936 = vmatprep.subr.bf16.mxu0 0
    %4937 = vmatpush1.bf16.msra.mxu0 0
    %4938 = vmatprep.mubr.bf16.mxu0 %v4821
    %4939 = vmatmul.mubr.bf16.gmra.mrb[0].mxu0 %v4816
    %v4940 = vpop.f32.mrb[0].mxu0
    %v4941 = vadd.f32 %v4803, %v4940
    %v4942 = vpop.f32.mrb[0].mxu0
    %v4943 = vadd.f32 %v4803, %v4942
    %v4944 = vpop.f32.mrb[0].mxu0
    %v4945 = vadd.f32 %v4808, %v4944
    %v4946 = vpop.f32.mrb[0].mxu0
    %v4947 = vadd.f32 %v4808, %v4946
    %4948 = vdwg.mxu0
    %4949 = vmatprep.subr.bf16.mxu0 %v4673
    %4950 = vmatpush1.bf16.msra.mxu0 %v4672
    %4951 = vmatprep.subr.bf16.mxu0 %v4686
    %4952 = vmatpush1.bf16.msra.mxu0 %v4685
    %4953 = vmatprep.subr.bf16.mxu0 %v4699
    %4954 = vmatpush1.bf16.msra.mxu0 %v4698
    %4955 = vmatprep.subr.bf16.mxu0 %v4712
    %4956 = vmatpush1.bf16.msra.mxu0 %v4711
    %4957 = vmatprep.subr.bf16.mxu0 %v4725
    %4958 = vmatpush1.bf16.msra.mxu0 %v4724
    %4959 = vmatprep.subr.bf16.mxu0 %v4738
    %4960 = vmatpush1.bf16.msra.mxu0 %v4737
    %4961 = vmatprep.subr.bf16.mxu0 %v4751
    %4962 = vmatpush1.bf16.msra.mxu0 %v4750
    %4963 = vmatprep.subr.bf16.mxu0 %v4764
    %4964 = vmatpush1.bf16.msra.mxu0 %v4763
    %4965 = vmatprep.subr.bf16.mxu0 %v4777
    %4966 = vmatpush1.bf16.msra.mxu0 %v4776
    %4967 = vmatprep.subr.bf16.mxu0 %v4840
    %4968 = vmatpush1.bf16.msra.mxu0 %v4837
    %4969 = vmatprep.subr.bf16.mxu0 0
    %4970 = vmatpush1.bf16.msra.mxu0 0
    %4971 = vmatprep.subr.bf16.mxu0 0
    %4972 = vmatpush1.bf16.msra.mxu0 0
    %4973 = vmatprep.subr.bf16.mxu0 0
    %4974 = vmatpush1.bf16.msra.mxu0 0
    %4975 = vmatprep.subr.bf16.mxu0 0
    %4976 = vmatpush1.bf16.msra.mxu0 0
    %4977 = vmatprep.subr.bf16.mxu0 0
    %4978 = vmatpush1.bf16.msra.mxu0 0
    %4979 = vmatprep.subr.bf16.mxu0 0
    %4980 = vmatpush1.bf16.msra.mxu0 0
    %4981 = vmatprep.mubr.bf16.mxu0 %v4821
    %4982 = vmatmul.mubr.bf16.gmra.mrb[0].mxu0 %v4816
    %v4983 = vpop.f32.mrb[0].mxu0
    %v4984 = vadd.f32 %v4803, %v4983
    %v4985 = vpop.f32.mrb[0].mxu0
    %v4986 = vadd.f32 %v4803, %v4985
    %v4987 = vpop.f32.mrb[0].mxu0
    %v4988 = vadd.f32 %v4808, %v4987
    %v4989 = vpop.f32.mrb[0].mxu0
    %v4990 = vadd.f32 %v4808, %v4989
    %4991 = vdwg.mxu0
    %4992 = vmatprep.subr.bf16.mxu0 %v4675
    %4993 = vmatpush1.bf16.msra.mxu0 %v4674
    %4994 = vmatprep.subr.bf16.mxu0 %v4688
    %4995 = vmatpush1.bf16.msra.mxu0 %v4687
    %4996 = vmatprep.subr.bf16.mxu0 %v4701
    %4997 = vmatpush1.bf16.msra.mxu0 %v4700
    %4998 = vmatprep.subr.bf16.mxu0 %v4714
    %4999 = vmatpush1.bf16.msra.mxu0 %v4713
    %5000 = vmatprep.subr.bf16.mxu0 %v4727
    %5001 = vmatpush1.bf16.msra.mxu0 %v4726
    %5002 = vmatprep.subr.bf16.mxu0 %v4740
    %5003 = vmatpush1.bf16.msra.mxu0 %v4739
    %5004 = vmatprep.subr.bf16.mxu0 %v4753
    %5005 = vmatpush1.bf16.msra.mxu0 %v4752
    %5006 = vmatprep.subr.bf16.mxu0 %v4766
    %5007 = vmatpush1.bf16.msra.mxu0 %v4765
    %5008 = vmatprep.subr.bf16.mxu0 %v4779
    %5009 = vmatpush1.bf16.msra.mxu0 %v4778
    %5010 = vmatprep.subr.bf16.mxu0 %v4846
    %5011 = vmatpush1.bf16.msra.mxu0 %v4843
    %5012 = vmatprep.subr.bf16.mxu0 0
    %5013 = vmatpush1.bf16.msra.mxu0 0
    %5014 = vmatprep.subr.bf16.mxu0 0
    %5015 = vmatpush1.bf16.msra.mxu0 0
    %5016 = vmatprep.subr.bf16.mxu0 0
    %5017 = vmatpush1.bf16.msra.mxu0 0
    %5018 = vmatprep.subr.bf16.mxu0 0
    %5019 = vmatpush1.bf16.msra.mxu0 0
    %5020 = vmatprep.subr.bf16.mxu0 0
    %5021 = vmatpush1.bf16.msra.mxu0 0
    %5022 = vmatprep.subr.bf16.mxu0 0
    %5023 = vmatpush1.bf16.msra.mxu0 0
    %5024 = vmatprep.mubr.bf16.mxu0 %v4821
    %5025 = vmatmul.mubr.bf16.gmra.mrb[0].mxu0 %v4816
    %v5026 = vpop.f32.mrb[0].mxu0
    %v5027 = vadd.f32 %v4803, %v5026
    %v5028 = vpop.f32.mrb[0].mxu0
    %v5029 = vpop.f32.mrb[0].mxu0
    %v5030 = vadd.f32 %v4808, %v5029
    %v5031 = vpop.f32.mrb[0].mxu0
    %5032 = vdwg.mxu0
    %5033 = vmatprep.subr.bf16.mxu0 %v4677
    %5034 = vmatpush1.bf16.msra.mxu0 %v4676
    %5035 = vmatprep.subr.bf16.mxu0 %v4690
    %5036 = vmatpush1.bf16.msra.mxu0 %v4689
    %5037 = vmatprep.subr.bf16.mxu0 %v4703
    %5038 = vmatpush1.bf16.msra.mxu0 %v4702
    %5039 = vmatprep.subr.bf16.mxu0 %v4716
    %5040 = vmatpush1.bf16.msra.mxu0 %v4715
    %5041 = vmatprep.subr.bf16.mxu0 %v4729
    %5042 = vmatpush1.bf16.msra.mxu0 %v4728
    %5043 = vmatprep.subr.bf16.mxu0 %v4742
    %5044 = vmatpush1.bf16.msra.mxu0 %v4741
    %5045 = vmatprep.subr.bf16.mxu0 %v4755
    %5046 = vmatpush1.bf16.msra.mxu0 %v4754
    %5047 = vmatprep.subr.bf16.mxu0 %v4768
    %5048 = vmatpush1.bf16.msra.mxu0 %v4767
    %5049 = vmatprep.subr.bf16.mxu0 %v4781
    %5050 = vmatpush1.bf16.msra.mxu0 %v4780
    %5051 = vmatprep.subr.bf16.mxu0 %v4852
    %5052 = vmatpush1.bf16.msra.mxu0 %v4849
    %5053 = vmatprep.subr.bf16.mxu0 0
    %5054 = vmatpush1.bf16.msra.mxu0 0
    %5055 = vmatprep.subr.bf16.mxu0 0
    %5056 = vmatpush1.bf16.msra.mxu0 0
    %5057 = vmatprep.subr.bf16.mxu0 0
    %5058 = vmatpush1.bf16.msra.mxu0 0
    %5059 = vmatprep.subr.bf16.mxu0 0
    %5060 = vmatpush1.bf16.msra.mxu0 0
    %5061 = vmatprep.subr.bf16.mxu0 0
    %5062 = vmatpush1.bf16.msra.mxu0 0
    %5063 = vmatprep.subr.bf16.mxu0 0
    %5064 = vmatpush1.bf16.msra.mxu0 0
    %5065 = vmatprep.mubr.bf16.mxu0 %v4821
    %5066 = vmatmul.mubr.bf16.gmra.mrb[0].mxu0 %v4816
    %v5067 = vpop.f32.mrb[0].mxu0
    %v5068 = vadd.f32 %v4803, %v5067
    %v5069 = vpop.f32.mrb[0].mxu0
    %v5070 = vadd.f32 %v4803, %v5069
    %v5071 = vpop.f32.mrb[0].mxu0
    %v5072 = vadd.f32 %v4808, %v5071
    %v5073 = vpop.f32.mrb[0].mxu0
    %v5074 = vadd.f32 %v4808, %v5073
    %5075 = vdwg.mxu0
    %5076 = vmatprep.subr.bf16.mxu0 %v4679
    %5077 = vmatpush1.bf16.msra.mxu0 %v4678
    %5078 = vmatprep.subr.bf16.mxu0 %v4692
    %5079 = vmatpush1.bf16.msra.mxu0 %v4691
    %5080 = vmatprep.subr.bf16.mxu0 %v4705
    %5081 = vmatpush1.bf16.msra.mxu0 %v4704
    %5082 = vmatprep.subr.bf16.mxu0 %v4718
    %5083 = vmatpush1.bf16.msra.mxu0 %v4717
    %5084 = vmatprep.subr.bf16.mxu0 %v4731
    %5085 = vmatpush1.bf16.msra.mxu0 %v4730
    %5086 = vmatprep.subr.bf16.mxu0 %v4744
    %5087 = vmatpush1.bf16.msra.mxu0 %v4743
    %5088 = vmatprep.subr.bf16.mxu0 %v4757
    %5089 = vmatpush1.bf16.msra.mxu0 %v4756
    %5090 = vmatprep.subr.bf16.mxu0 %v4770
    %5091 = vmatpush1.bf16.msra.mxu0 %v4769
    %5092 = vmatprep.subr.bf16.mxu0 %v4783
    %5093 = vmatpush1.bf16.msra.mxu0 %v4782
    %5094 = vmatprep.subr.bf16.mxu0 %v4858
    %5095 = vmatpush1.bf16.msra.mxu0 %v4855
    %5096 = vmatprep.subr.bf16.mxu0 0
    %5097 = vmatpush1.bf16.msra.mxu0 0
    %5098 = vmatprep.subr.bf16.mxu0 0
    %5099 = vmatpush1.bf16.msra.mxu0 0
    %5100 = vmatprep.subr.bf16.mxu0 0
    %5101 = vmatpush1.bf16.msra.mxu0 0
    %5102 = vmatprep.subr.bf16.mxu0 0
    %5103 = vmatpush1.bf16.msra.mxu0 0
    %5104 = vmatprep.subr.bf16.mxu0 0
    %5105 = vmatpush1.bf16.msra.mxu0 0
    %5106 = vmatprep.subr.bf16.mxu0 0
    %5107 = vmatpush1.bf16.msra.mxu0 0
    %5108 = vmatprep.mubr.bf16.mxu0 %v4821
    %5109 = vmatmul.mubr.bf16.gmra.mrb[0].mxu0 %v4816
    %v5110 = vpop.f32.mrb[0].mxu0
    %v5111 = vadd.f32 %v4803, %v5110
    %v5112 = vpop.f32.mrb[0].mxu0
    %v5113 = vadd.f32 %v4803, %v5112
    %v5114 = vpop.f32.mrb[0].mxu0
    %v5115 = vadd.f32 %v4808, %v5114
    %v5116 = vpop.f32.mrb[0].mxu0
    %v5117 = vadd.f32 %v4808, %v5116
    %5118 = vdwg.mxu0
    %5119 = vmatprep.subr.bf16.mxu0 0
    %5120 = vmatpush1.bf16.msra.mxu0 %v4680
    %5121 = vmatprep.subr.bf16.mxu0 0
    %5122 = vmatpush1.bf16.msra.mxu0 %v4693
    %5123 = vmatprep.subr.bf16.mxu0 0
    %5124 = vmatpush1.bf16.msra.mxu0 %v4706
    %5125 = vmatprep.subr.bf16.mxu0 0
    %5126 = vmatpush1.bf16.msra.mxu0 %v4719
    %5127 = vmatprep.subr.bf16.mxu0 0
    %5128 = vmatpush1.bf16.msra.mxu0 %v4732
    %5129 = vmatprep.subr.bf16.mxu0 0
    %5130 = vmatpush1.bf16.msra.mxu0 %v4745
    %5131 = vmatprep.subr.bf16.mxu0 0
    %5132 = vmatpush1.bf16.msra.mxu0 %v4758
    %5133 = vmatprep.subr.bf16.mxu0 0
    %5134 = vmatpush1.bf16.msra.mxu0 %v4771
    %5135 = vmatprep.subr.bf16.mxu0 0
    %5136 = vmatpush1.bf16.msra.mxu0 %v4784
    %5137 = vmatprep.subr.bf16.mxu0 0
    %5138 = vmatpush1.bf16.msra.mxu0 %v4861
    %5139 = vmatprep.subr.bf16.mxu0 0
    %5140 = vmatpush1.bf16.msra.mxu0 0
    %5141 = vmatprep.subr.bf16.mxu0 0
    %5142 = vmatpush1.bf16.msra.mxu0 0
    %5143 = vmatprep.subr.bf16.mxu0 0
    %5144 = vmatpush1.bf16.msra.mxu0 0
    %5145 = vmatprep.subr.bf16.mxu0 0
    %5146 = vmatpush1.bf16.msra.mxu0 0
    %5147 = vmatprep.subr.bf16.mxu0 0
    %5148 = vmatpush1.bf16.msra.mxu0 0
    %5149 = vmatprep.subr.bf16.mxu0 0
    %5150 = vmatpush1.bf16.msra.mxu0 0
    %5151 = vmatprep.mubr.bf16.mxu0 %v4821
    %5152 = vmatmul.mubr.bf16.gmra.mrb[0].mxu0 %v4816
    %v5153 = vpop.f32.mrb[0].mxu0
    %v5154 = vadd.f32 %v4803, %v5153
    %v5155 = vpop.f32.mrb[0].mxu0
    %v5156 = vpop.f32.mrb[0].mxu0
    %v5157 = vadd.f32 %v4808, %v5156
    %v5158 = vpop.f32.mrb[0].mxu0
    %5159 = vdwg.mxu0
    %v5160 = vmax.f32 %v4898, 0.0
    %v5161 = vmax.f32 %v4900, 0.0
    %v5162 = vmax.f32 %v4941, 0.0
    %v5163 = vmax.f32 %v4943, 0.0
    %v5164 = vmax.f32 %v4984, 0.0
    %v5165 = vmax.f32 %v4986, 0.0
    %v5166 = vmax.f32 %v5027, 0.0
    %v5167 = vmax.f32 %v5068, 0.0
    %v5168 = vmax.f32 %v5070, 0.0
    %v5169 = vmax.f32 %v5111, 0.0
    %v5170 = vmax.f32 %v5113, 0.0
    %v5171 = vmax.f32 %v5154, 0.0
    %v5172 = vmax.f32 %v4902, 0.0
    %v5173 = vmax.f32 %v4904, 0.0
    %v5174 = vmax.f32 %v4945, 0.0
    %v5175 = vmax.f32 %v4947, 0.0
    %v5176 = vmax.f32 %v4988, 0.0
    %v5177 = vmax.f32 %v4990, 0.0
    %v5178 = vmax.f32 %v5030, 0.0
    %v5179 = vmax.f32 %v5072, 0.0
    %v5180 = vmax.f32 %v5074, 0.0
    %v5181 = vmax.f32 %v5115, 0.0
    %v5182 = vmax.f32 %v5117, 0.0
    %v5183 = vmax.f32 %v5157, 0.0
    %5206 = vrot.lane.b32.xlu0 %v5160, 126
    %v5207 = vpop.permute.xlu0 %5206
    %5208 = vrot.lane.b32.xlu0 %v5161, 126
    %v5209 = vpop.permute.xlu0 %5208
    %5210 = vrot.lane.b32.xlu0 %v5162, 126
    %v5211 = vpop.permute.xlu0 %5210
    %5212 = vrot.lane.b32.xlu0 %v5163, 126
    %v5213 = vpop.permute.xlu0 %5212
    %5214 = vrot.lane.b32.xlu0 %v5164, 126
    %v5215 = vpop.permute.xlu0 %5214
    %5216 = vrot.lane.b32.xlu0 %v5165, 126
    %v5217 = vpop.permute.xlu0 %5216
    %5218 = vrot.lane.b32.xlu0 %v5167, 126
    %v5219 = vpop.permute.xlu0 %5218
    %5220 = vrot.lane.b32.xlu0 %v5168, 126
    %v5221 = vpop.permute.xlu0 %5220
    %5222 = vrot.lane.b32.xlu0 %v5169, 126
    %v5223 = vpop.permute.xlu0 %5222
    %5224 = vrot.lane.b32.xlu0 %v5170, 126
    %v5225 = vpop.permute.xlu0 %5224
    %5226 = vrot.lane.b32.xlu0 %v5171, 126
    %v5227 = vpop.permute.xlu0 %5226
    %5228 = vrot.lane.b32.xlu0 %v5172, 126
    %v5229 = vpop.permute.xlu0 %5228
    %5230 = vrot.lane.b32.xlu0 %v5173, 126
    %v5231 = vpop.permute.xlu0 %5230
    %5232 = vrot.lane.b32.xlu0 %v5174, 126
    %v5233 = vpop.permute.xlu0 %5232
    %5234 = vrot.lane.b32.xlu0 %v5175, 126
    %v5235 = vpop.permute.xlu0 %5234
    %5236 = vrot.lane.b32.xlu0 %v5176, 126
    %v5237 = vpop.permute.xlu0 %5236
    %5238 = vrot.lane.b32.xlu0 %v5177, 126
    %v5239 = vpop.permute.xlu0 %5238
    %5240 = vrot.lane.b32.xlu0 %v5179, 126
    %v5241 = vpop.permute.xlu0 %5240
    %5242 = vrot.lane.b32.xlu0 %v5180, 126
    %v5243 = vpop.permute.xlu0 %5242
    %5244 = vrot.lane.b32.xlu0 %v5181, 126
    %v5245 = vpop.permute.xlu0 %5244
    %5246 = vrot.lane.b32.xlu0 %v5182, 126
    %v5247 = vpop.permute.xlu0 %5246
    %5248 = vrot.lane.b32.xlu0 %v5183, 126
    %v5249 = vpop.permute.xlu0 %5248
    %v5250 = vsel %vm222, %v5207, %v5209
    %v5251 = vsel %vm222, %v5209, %v5211
    %v5252 = vsel %vm222, %v5211, %v5213
    %v5253 = vsel %vm222, %v5213, %v5215
    %v5254 = vsel %vm222, %v5215, %v5217
    %v5255 = vsel %vm222, %v5219, %v5221
    %v5256 = vsel %vm222, %v5221, %v5223
    %v5257 = vsel %vm222, %v5223, %v5225
    %v5258 = vsel %vm222, %v5225, %v5227
    %v5259 = vsel %vm222, %v5229, %v5231
    %v5260 = vsel %vm222, %v5231, %v5233
    %v5261 = vsel %vm222, %v5233, %v5235
    %v5262 = vsel %vm222, %v5235, %v5237
    %v5263 = vsel %vm222, %v5237, %v5239
    %v5264 = vsel %vm222, %v5241, %v5243
    %v5265 = vsel %vm222, %v5243, %v5245
    %v5266 = vsel %vm222, %v5245, %v5247
    %v5267 = vsel %vm222, %v5247, %v5249
    %v5288 = vmax.f32 %v5160, %v5250
    %v5289 = vmax.f32 %v5161, %v5251
    %v5290 = vmax.f32 %v5162, %v5252
    %v5291 = vmax.f32 %v5163, %v5253
    %v5292 = vmax.f32 %v5164, %v5254
    %v5293 = vmax.f32 %v5167, %v5255
    %v5294 = vmax.f32 %v5168, %v5256
    %v5295 = vmax.f32 %v5169, %v5257
    %v5296 = vmax.f32 %v5170, %v5258
    %v5297 = vmax.f32 %v5171, %v5227
    %v5298 = vmax.f32 %v5172, %v5259
    %v5299 = vmax.f32 %v5173, %v5260
    %v5300 = vmax.f32 %v5174, %v5261
    %v5301 = vmax.f32 %v5175, %v5262
    %v5302 = vmax.f32 %v5176, %v5263
    %v5303 = vmax.f32 %v5179, %v5264
    %v5304 = vmax.f32 %v5180, %v5265
    %v5305 = vmax.f32 %v5181, %v5266
    %v5306 = vmax.f32 %v5182, %v5267
    %v5307 = vmax.f32 %v5183, %v5249
    %5310 = vrot.lane.b32.xlu0 %v5166, 126
    %v5311 = vpop.permute.xlu0 %5310
    %5312 = vrot.lane.b32.xlu0 %v5178, 126
    %v5313 = vpop.permute.xlu0 %5312
    %v5314 = vsel %vm222, %v5217, %v5311
    %v5315 = vsel %vm222, %v5239, %v5313
    %v5318 = vmax.f32 %v5165, %v5314
    %v5319 = vmax.f32 %v5177, %v5315
    %5342 = vrot.lane.b32.xlu0 %v5288, 64
    %v5343 = vpop.permute.xlu0 %5342
    %5344 = vrot.lane.b32.xlu0 %v5289, 64
    %v5345 = vpop.permute.xlu0 %5344
    %5346 = vrot.lane.b32.xlu0 %v5290, 64
    %v5347 = vpop.permute.xlu0 %5346
    %5348 = vrot.lane.b32.xlu0 %v5291, 64
    %v5349 = vpop.permute.xlu0 %5348
    %5350 = vrot.lane.b32.xlu0 %v5292, 64
    %v5351 = vpop.permute.xlu0 %5350
    %5352 = vrot.lane.b32.xlu0 %v5318, 64
    %v5353 = vpop.permute.xlu0 %5352
    %5354 = vrot.lane.b32.xlu0 %v5293, 64
    %v5355 = vpop.permute.xlu0 %5354
    %5356 = vrot.lane.b32.xlu0 %v5294, 64
    %v5357 = vpop.permute.xlu0 %5356
    %5358 = vrot.lane.b32.xlu0 %v5295, 64
    %v5359 = vpop.permute.xlu0 %5358
    %5360 = vrot.lane.b32.xlu0 %v5296, 64
    %v5361 = vpop.permute.xlu0 %5360
    %5362 = vrot.lane.b32.xlu0 %v5297, 64
    %v5363 = vpop.permute.xlu0 %5362
    %5364 = vrot.lane.b32.xlu0 %v5298, 64
    %v5365 = vpop.permute.xlu0 %5364
    %5366 = vrot.lane.b32.xlu0 %v5299, 64
    %v5367 = vpop.permute.xlu0 %5366
    %5368 = vrot.lane.b32.xlu0 %v5300, 64
    %v5369 = vpop.permute.xlu0 %5368
    %5370 = vrot.lane.b32.xlu0 %v5301, 64
    %v5371 = vpop.permute.xlu0 %5370
    %5372 = vrot.lane.b32.xlu0 %v5302, 64
    %v5373 = vpop.permute.xlu0 %5372
    %5374 = vrot.lane.b32.xlu0 %v5319, 64
    %v5375 = vpop.permute.xlu0 %5374
    %5376 = vrot.lane.b32.xlu0 %v5303, 64
    %v5377 = vpop.permute.xlu0 %5376
    %5378 = vrot.lane.b32.xlu0 %v5304, 64
    %v5379 = vpop.permute.xlu0 %5378
    %5380 = vrot.lane.b32.xlu0 %v5305, 64
    %v5381 = vpop.permute.xlu0 %5380
    %5382 = vrot.lane.b32.xlu0 %v5306, 64
    %v5383 = vpop.permute.xlu0 %5382
    %5384 = vrot.lane.b32.xlu0 %v5307, 64
    %v5385 = vpop.permute.xlu0 %5384
    %v5386 = vsel %vm951, %v5343, %v5345
    %v5387 = vsel %vm951, %v5345, %v5347
    %v5388 = vsel %vm951, %v5347, %v5349
    %v5389 = vsel %vm951, %v5349, %v5351
    %v5390 = vsel %vm951, %v5351, %v5353
    %v5391 = vsel %vm951, %v5355, %v5357
    %v5392 = vsel %vm951, %v5357, %v5359
    %v5393 = vsel %vm951, %v5359, %v5361
    %v5394 = vsel %vm951, %v5361, %v5363
    %v5395 = vsel %vm951, %v5365, %v5367
    %v5396 = vsel %vm951, %v5367, %v5369
    %v5397 = vsel %vm951, %v5369, %v5371
    %v5398 = vsel %vm951, %v5371, %v5373
    %v5399 = vsel %vm951, %v5373, %v5375
    %v5400 = vsel %vm951, %v5377, %v5379
    %v5401 = vsel %vm951, %v5379, %v5381
    %v5402 = vsel %vm951, %v5381, %v5383
    %v5403 = vsel %vm951, %v5383, %v5385
    %v5424 = vmax.f32 %v5288, %v5386
    %v5425 = vmax.f32 %v5289, %v5387
    %v5426 = vmax.f32 %v5290, %v5388
    %v5427 = vmax.f32 %v5291, %v5389
    %v5428 = vmax.f32 %v5292, %v5390
    %v5429 = vmax.f32 %v5293, %v5391
    %v5430 = vmax.f32 %v5294, %v5392
    %v5431 = vmax.f32 %v5295, %v5393
    %v5432 = vmax.f32 %v5296, %v5394
    %v5433 = vmax.f32 %v5297, %v5363
    %v5434 = vmax.f32 %v5298, %v5395
    %v5435 = vmax.f32 %v5299, %v5396
    %v5436 = vmax.f32 %v5300, %v5397
    %v5437 = vmax.f32 %v5301, %v5398
    %v5438 = vmax.f32 %v5302, %v5399
    %v5439 = vmax.f32 %v5303, %v5400
    %v5440 = vmax.f32 %v5304, %v5401
    %v5441 = vmax.f32 %v5305, %v5402
    %v5442 = vmax.f32 %v5306, %v5403
    %v5443 = vmax.f32 %v5307, %v5385
    %v5449 = vcombine.low %v5424, %v5425
    %v5450 = vcombine.low %v5426, %v5427
    %v5452 = vunpack.c.l.s4 1966171168
    %v5453 = vunpack.c.0.s8 %v5452
    %v5454 = vlaneseq
    %v5455 = vshrl.u32 %v5454, 7
    %v5456 = vsub.s32 %v5453, %v5455
    %v5457 = vrot.slane %v5449, %v5456
    %v5459 = vunpack.c.l.s4 1966171168
    %v5460 = vunpack.c.0.s8 %v5459
    %v5461 = vlaneseq
    %v5462 = vshrl.u32 %v5461, 7
    %v5463 = vsub.s32 %v5460, %v5462
    %v5464 = vrot.slane %v5450, %v5463
    %v5466 = vunpack.c.l.s4 1966171168
    %v5467 = vunpack.c.0.s8 %v5466
    %v5468 = vlaneseq
    %v5469 = vshrl.u32 %v5468, 7
    %v5470 = vsub.s32 %v5467, %v5469
    %v5471 = vrot.slane %v5428, %v5470
    %v5472 = vcombine.low %v5457, %v5464
    %v5474 = vunpack.c.l.s4 1966171168
    %v5475 = vunpack.c.0.s8 %v5474
    %v5476 = vlaneseq
    %v5477 = vshrl.u32 %v5476, 7
    %v5478 = vsub.s32 %v5475, %v5477
    %v5479 = vrot.slane %v5472, %v5478
    %v5481 = vunpack.c.l.s4 1966171168
    %v5482 = vunpack.c.0.s8 %v5481
    %v5483 = vlaneseq
    %v5484 = vshrl.u32 %v5483, 7
    %v5485 = vsub.s32 %v5482, %v5484
    %v5486 = vrot.slane %v5471, %v5485
    %v5487 = vcombine.low %v5479, %v5486
    %v5489 = vlaneseq
    %vm5490 = vcmp.ge.s32.totalorder %v5489, 0
    %vm5491 = vcmp.lt.s32.totalorder %v5489, 529
    %vm5492 = vmand %vm5490, %vm5491
    %5493 = vst.msk [vmem:[#allocation4] ss:$2 sm:$0x1f] %vm5492, %v5487
    %v5494 = vcombine.high %v5457, %v5464
    %v5495 = vcombine.high %v5471, %v5471
    %v5497 = vunpack.c.l.s4 1966171168
    %v5498 = vunpack.c.0.s8 %v5497
    %v5499 = vlaneseq
    %v5500 = vshrl.u32 %v5499, 7
    %v5501 = vsub.s32 %v5498, %v5500
    %v5502 = vrot.slane %v5494, %v5501
    %v5504 = vunpack.c.l.s4 1966171168
    %v5505 = vunpack.c.0.s8 %v5504
    %v5506 = vlaneseq
    %v5507 = vshrl.u32 %v5506, 7
    %v5508 = vsub.s32 %v5505, %v5507
    %v5509 = vrot.slane %v5495, %v5508
    %v5510 = vcombine.low %v5502, %v5509
    %5511 = vrot.lane.b32.xlu0 %v5510, 17
    %v5512 = vpop.permute.xlu0 %5511
    %v5513 = vrot.slane %v5512, 7
    %vm5514 = vcmask 138240
    %v5515 = vsel %vm5514, %v5513, %v5512
    %vm5517 = vcmp.ge.s32.totalorder %v5489, 17
    %vm5518 = vcmp.lt.s32.totalorder %v5489, 546
    %vm5519 = vmand %vm5517, %vm5518
    %s5520 = scalar_lea.vmem [#allocation4], 8
    %5521 = vst.msk [vmem:[%s5520] ss:$2 sm:$0x1f] %vm5519, %v5515
    %v5522 = vcombine.high %v5479, %v5486
    %5523 = vrot.lane.b32.xlu0 %v5522, 34
    %v5524 = vpop.permute.xlu0 %5523
    %v5525 = vrot.slane %v5524, 7
    %vm5526 = vcmask 277504
    %v5527 = vsel %vm5526, %v5525, %v5524
    %vm5529 = vcmp.ge.s32.totalorder %v5489, 34
    %vm5530 = vcmp.lt.s32.totalorder %v5489, 563
    %vm5531 = vmand %vm5529, %vm5530
    %s5532 = scalar_lea.vmem [#allocation4], 16
    %5533 = vst.msk [vmem:[%s5532] ss:$2 sm:$0x1f] %vm5531, %v5527
    %v5534 = vcombine.high %v5502, %v5509
    %5535 = vrot.lane.b32.xlu0 %v5534, 51
    %v5536 = vpop.permute.xlu0 %5535
    %v5537 = vrot.slane %v5536, 7
    %vm5538 = vcmask 416768
    %v5539 = vsel %vm5538, %v5537, %v5536
    %vm5541 = vcmp.ge.s32.totalorder %v5489, 51
    %vm5542 = vcmp.lt.s32.totalorder %v5489, 580
    %vm5543 = vmand %vm5541, %vm5542
    %s5544 = scalar_lea.vmem [#allocation4], 24
    %5545 = vst.msk [vmem:[%s5544] ss:$2 sm:$0x1f] %vm5543, %v5539
    %v5546 = vcombine.high %v5424, %v5425
    %v5547 = vcombine.high %v5426, %v5427
    %v5548 = vcombine.high %v5428, %v5428
    %v5550 = vunpack.c.l.s4 1966171168
    %v5551 = vunpack.c.0.s8 %v5550
    %v5552 = vlaneseq
    %v5553 = vshrl.u32 %v5552, 7
    %v5554 = vsub.s32 %v5551, %v5553
    %v5555 = vrot.slane %v5546, %v5554
    %v5557 = vunpack.c.l.s4 1966171168
    %v5558 = vunpack.c.0.s8 %v5557
    %v5559 = vlaneseq
    %v5560 = vshrl.u32 %v5559, 7
    %v5561 = vsub.s32 %v5558, %v5560
    %v5562 = vrot.slane %v5547, %v5561
    %v5564 = vunpack.c.l.s4 1966171168
    %v5565 = vunpack.c.0.s8 %v5564
    %v5566 = vlaneseq
    %v5567 = vshrl.u32 %v5566, 7
    %v5568 = vsub.s32 %v5565, %v5567
    %v5569 = vrot.slane %v5548, %v5568
    %v5570 = vcombine.low %v5555, %v5562
    %v5572 = vunpack.c.l.s4 1966171168
    %v5573 = vunpack.c.0.s8 %v5572
    %v5574 = vlaneseq
    %v5575 = vshrl.u32 %v5574, 7
    %v5576 = vsub.s32 %v5573, %v5575
    %v5577 = vrot.slane %v5570, %v5576
    %v5579 = vunpack.c.l.s4 1966171168
    %v5580 = vunpack.c.0.s8 %v5579
    %v5581 = vlaneseq
    %v5582 = vshrl.u32 %v5581, 7
    %v5583 = vsub.s32 %v5580, %v5582
    %v5584 = vrot.slane %v5569, %v5583
    %v5585 = vcombine.low %v5577, %v5584
    %5586 = vrot.lane.b32.xlu0 %v5585, 68
    %v5587 = vpop.permute.xlu0 %5586
    %v5588 = vrot.slane %v5587, 7
    %vm5589 = vcmask 556032
    %v5590 = vsel %vm5589, %v5588, %v5587
    %vm5592 = vcmp.ge.s32.totalorder %v5489, 68
    %vm5593 = vcmp.lt.s32.totalorder %v5489, 597
    %vm5594 = vmand %vm5592, %vm5593
    %s5595 = scalar_lea.vmem [#allocation4], 32
    %5596 = vst.msk [vmem:[%s5595] ss:$2 sm:$0x1f] %vm5594, %v5590
    %v5597 = vcombine.high %v5555, %v5562
    %v5598 = vcombine.high %v5569, %v5569
    %v5600 = vunpack.c.l.s4 1966171168
    %v5601 = vunpack.c.0.s8 %v5600
    %v5602 = vlaneseq
    %v5603 = vshrl.u32 %v5602, 7
    %v5604 = vsub.s32 %v5601, %v5603
    %v5605 = vrot.slane %v5597, %v5604
    %v5607 = vunpack.c.l.s4 1966171168
    %v5608 = vunpack.c.0.s8 %v5607
    %v5609 = vlaneseq
    %v5610 = vshrl.u32 %v5609, 7
    %v5611 = vsub.s32 %v5608, %v5610
    %v5612 = vrot.slane %v5598, %v5611
    %v5613 = vcombine.low %v5605, %v5612
    %5614 = vrot.lane.b32.xlu0 %v5613, 85
    %v5615 = vpop.permute.xlu0 %5614
    %v5616 = vrot.slane %v5615, 7
    %vm5617 = vcmask 695296
    %v5618 = vsel %vm5617, %v5616, %v5615
    %vm5620 = vcmp.ge.s32.totalorder %v5489, 85
    %vm5621 = vcmp.lt.s32.totalorder %v5489, 614
    %vm5622 = vmand %vm5620, %vm5621
    %s5623 = scalar_lea.vmem [#allocation4], 40
    %5624 = vst.msk [vmem:[%s5623] ss:$2 sm:$0x1f] %vm5622, %v5618
    %v5625 = vcombine.high %v5577, %v5584
    %5626 = vrot.lane.b32.xlu0 %v5625, 102
    %v5627 = vpop.permute.xlu0 %5626
    %v5628 = vrot.slane %v5627, 7
    %vm5629 = vcmask 834560
    %v5630 = vsel %vm5629, %v5628, %v5627
    %vm5632 = vcmp.ge.s32.totalorder %v5489, 102
    %vm5633 = vcmp.lt.s32.totalorder %v5489, 631
    %vm5634 = vmand %vm5632, %vm5633
    %s5635 = scalar_lea.vmem [#allocation4], 48
    %5636 = vst.msk [vmem:[%s5635] ss:$2 sm:$0x1f] %vm5634, %v5630
    %v5637 = vcombine.high %v5605, %v5612
    %5638 = vrot.lane.b32.xlu0 %v5637, 119
    %v5639 = vpop.permute.xlu0 %5638
    %v5640 = vrot.slane %v5639, 7
    %vm5641 = vcmask 973824
    %v5642 = vsel %vm5641, %v5640, %v5639
    %vm5644 = vcmp.ge.s32.totalorder %v5489, 119
    %vm5645 = vcmp.lt.s32.totalorder %v5489, 648
    %vm5646 = vmand %vm5644, %vm5645
    %s5647 = scalar_lea.vmem [#allocation4], 56
    %5648 = vst.msk [vmem:[%s5647] ss:$2 sm:$0x3f] %vm5646, %v5642
    %v5654 = vcombine.low %v5434, %v5435
    %v5655 = vcombine.low %v5436, %v5437
    %v5657 = vunpack.c.l.s4 1966171168
    %v5658 = vunpack.c.0.s8 %v5657
    %v5659 = vlaneseq
    %v5660 = vshrl.u32 %v5659, 7
    %v5661 = vsub.s32 %v5658, %v5660
    %v5662 = vrot.slane %v5654, %v5661
    %v5664 = vunpack.c.l.s4 1966171168
    %v5665 = vunpack.c.0.s8 %v5664
    %v5666 = vlaneseq
    %v5667 = vshrl.u32 %v5666, 7
    %v5668 = vsub.s32 %v5665, %v5667
    %v5669 = vrot.slane %v5655, %v5668
    %v5671 = vunpack.c.l.s4 1966171168
    %v5672 = vunpack.c.0.s8 %v5671
    %v5673 = vlaneseq
    %v5674 = vshrl.u32 %v5673, 7
    %v5675 = vsub.s32 %v5672, %v5674
    %v5676 = vrot.slane %v5438, %v5675
    %v5677 = vcombine.low %v5662, %v5669
    %v5679 = vunpack.c.l.s4 1966171168
    %v5680 = vunpack.c.0.s8 %v5679
    %v5681 = vlaneseq
    %v5682 = vshrl.u32 %v5681, 7
    %v5683 = vsub.s32 %v5680, %v5682
    %v5684 = vrot.slane %v5677, %v5683
    %v5686 = vunpack.c.l.s4 1966171168
    %v5687 = vunpack.c.0.s8 %v5686
    %v5688 = vlaneseq
    %v5689 = vshrl.u32 %v5688, 7
    %v5690 = vsub.s32 %v5687, %v5689
    %v5691 = vrot.slane %v5676, %v5690
    %v5692 = vcombine.low %v5684, %v5691
    %5693 = vrot.lane.b32.xlu0 %v5692, 8
    %v5694 = vpop.permute.xlu0 %5693
    %v5695 = vrot.slane %v5694, 7
    %vm5696 = vcmask 64512
    %v5697 = vsel %vm5696, %v5695, %v5694
    %vm5699 = vcmp.ge.s32.totalorder %v5489, 8
    %vm5700 = vcmp.lt.s32.totalorder %v5489, 537
    %vm5701 = vmand %vm5699, %vm5700
    %s5702 = scalar_lea.vmem [#allocation4], 66
    %5703 = vst.msk [vmem:[%s5702] ss:$2 sm:$0x1f] %vm5701, %v5697
    %v5704 = vcombine.high %v5662, %v5669
    %v5705 = vcombine.high %v5676, %v5676
    %v5707 = vunpack.c.l.s4 1966171168
    %v5708 = vunpack.c.0.s8 %v5707
    %v5709 = vlaneseq
    %v5710 = vshrl.u32 %v5709, 7
    %v5711 = vsub.s32 %v5708, %v5710
    %v5712 = vrot.slane %v5704, %v5711
    %v5714 = vunpack.c.l.s4 1966171168
    %v5715 = vunpack.c.0.s8 %v5714
    %v5716 = vlaneseq
    %v5717 = vshrl.u32 %v5716, 7
    %v5718 = vsub.s32 %v5715, %v5717
    %v5719 = vrot.slane %v5705, %v5718
    %v5720 = vcombine.low %v5712, %v5719
    %5721 = vrot.lane.b32.xlu0 %v5720, 25
    %v5722 = vpop.permute.xlu0 %5721
    %v5723 = vrot.slane %v5722, 7
    %vm5724 = vcmask 203776
    %v5725 = vsel %vm5724, %v5723, %v5722
    %vm5727 = vcmp.ge.s32.totalorder %v5489, 25
    %vm5728 = vcmp.lt.s32.totalorder %v5489, 554
    %vm5729 = vmand %vm5727, %vm5728
    %s5730 = scalar_lea.vmem [#allocation4], 74
    %5731 = vst.msk [vmem:[%s5730] ss:$2 sm:$0x1f] %vm5729, %v5725
    %v5732 = vcombine.high %v5684, %v5691
    %5733 = vrot.lane.b32.xlu0 %v5732, 42
    %v5734 = vpop.permute.xlu0 %5733
    %v5735 = vrot.slane %v5734, 7
    %vm5736 = vcmask 343040
    %v5737 = vsel %vm5736, %v5735, %v5734
    %vm5739 = vcmp.ge.s32.totalorder %v5489, 42
    %vm5740 = vcmp.lt.s32.totalorder %v5489, 571
    %vm5741 = vmand %vm5739, %vm5740
    %s5742 = scalar_lea.vmem [#allocation4], 82
    %5743 = vst.msk [vmem:[%s5742] ss:$2 sm:$0x1f] %vm5741, %v5737
    %v5744 = vcombine.high %v5712, %v5719
    %5745 = vrot.lane.b32.xlu0 %v5744, 59
    %v5746 = vpop.permute.xlu0 %5745
    %v5747 = vrot.slane %v5746, 7
    %vm5748 = vcmask 482304
    %v5749 = vsel %vm5748, %v5747, %v5746
    %vm5751 = vcmp.ge.s32.totalorder %v5489, 59
    %vm5752 = vcmp.lt.s32.totalorder %v5489, 588
    %vm5753 = vmand %vm5751, %vm5752
    %s5754 = scalar_lea.vmem [#allocation4], 90
    %5755 = vst.msk [vmem:[%s5754] ss:$2 sm:$0x1f] %vm5753, %v5749
    %v5756 = vcombine.high %v5434, %v5435
    %v5757 = vcombine.high %v5436, %v5437
    %v5758 = vcombine.high %v5438, %v5438
    %v5760 = vunpack.c.l.s4 1966171168
    %v5761 = vunpack.c.0.s8 %v5760
    %v5762 = vlaneseq
    %v5763 = vshrl.u32 %v5762, 7
    %v5764 = vsub.s32 %v5761, %v5763
    %v5765 = vrot.slane %v5756, %v5764
    %v5767 = vunpack.c.l.s4 1966171168
    %v5768 = vunpack.c.0.s8 %v5767
    %v5769 = vlaneseq
    %v5770 = vshrl.u32 %v5769, 7
    %v5771 = vsub.s32 %v5768, %v5770
    %v5772 = vrot.slane %v5757, %v5771
    %v5774 = vunpack.c.l.s4 1966171168
    %v5775 = vunpack.c.0.s8 %v5774
    %v5776 = vlaneseq
    %v5777 = vshrl.u32 %v5776, 7
    %v5778 = vsub.s32 %v5775, %v5777
    %v5779 = vrot.slane %v5758, %v5778
    %v5780 = vcombine.low %v5765, %v5772
    %v5782 = vunpack.c.l.s4 1966171168
    %v5783 = vunpack.c.0.s8 %v5782
    %v5784 = vlaneseq
    %v5785 = vshrl.u32 %v5784, 7
    %v5786 = vsub.s32 %v5783, %v5785
    %v5787 = vrot.slane %v5780, %v5786
    %v5789 = vunpack.c.l.s4 1966171168
    %v5790 = vunpack.c.0.s8 %v5789
    %v5791 = vlaneseq
    %v5792 = vshrl.u32 %v5791, 7
    %v5793 = vsub.s32 %v5790, %v5792
    %v5794 = vrot.slane %v5779, %v5793
    %v5795 = vcombine.low %v5787, %v5794
    %5796 = vrot.lane.b32.xlu0 %v5795, 76
    %v5797 = vpop.permute.xlu0 %5796
    %v5798 = vrot.slane %v5797, 7
    %vm5799 = vcmask 621568
    %v5800 = vsel %vm5799, %v5798, %v5797
    %vm5802 = vcmp.ge.s32.totalorder %v5489, 76
    %vm5803 = vcmp.lt.s32.totalorder %v5489, 605
    %vm5804 = vmand %vm5802, %vm5803
    %s5805 = scalar_lea.vmem [#allocation4], 98
    %5806 = vst.msk [vmem:[%s5805] ss:$2 sm:$0x1f] %vm5804, %v5800
    %v5807 = vcombine.high %v5765, %v5772
    %v5808 = vcombine.high %v5779, %v5779
    %v5810 = vunpack.c.l.s4 1966171168
    %v5811 = vunpack.c.0.s8 %v5810
    %v5812 = vlaneseq
    %v5813 = vshrl.u32 %v5812, 7
    %v5814 = vsub.s32 %v5811, %v5813
    %v5815 = vrot.slane %v5807, %v5814
    %v5817 = vunpack.c.l.s4 1966171168
    %v5818 = vunpack.c.0.s8 %v5817
    %v5819 = vlaneseq
    %v5820 = vshrl.u32 %v5819, 7
    %v5821 = vsub.s32 %v5818, %v5820
    %v5822 = vrot.slane %v5808, %v5821
    %v5823 = vcombine.low %v5815, %v5822
    %5824 = vrot.lane.b32.xlu0 %v5823, 93
    %v5825 = vpop.permute.xlu0 %5824
    %v5826 = vrot.slane %v5825, 7
    %v5827 = vsel %vm793, %v5826, %v5825
    %vm5829 = vcmp.ge.s32.totalorder %v5489, 93
    %vm5830 = vcmp.lt.s32.totalorder %v5489, 622
    %vm5831 = vmand %vm5829, %vm5830
    %s5832 = scalar_lea.vmem [#allocation4], 106
    %5833 = vst.msk [vmem:[%s5832] ss:$2 sm:$0x1f] %vm5831, %v5827
    %v5834 = vcombine.high %v5787, %v5794
    %5835 = vrot.lane.b32.xlu0 %v5834, 110
    %v5836 = vpop.permute.xlu0 %5835
    %v5837 = vrot.slane %v5836, 7
    %vm5838 = vcmask 900096
    %v5839 = vsel %vm5838, %v5837, %v5836
    %vm5841 = vcmp.ge.s32.totalorder %v5489, 110
    %vm5842 = vcmp.lt.s32.totalorder %v5489, 639
    %vm5843 = vmand %vm5841, %vm5842
    %s5844 = scalar_lea.vmem [#allocation4], 114
    %5845 = vst.msk [vmem:[%s5844] ss:$2 sm:$0x1f] %vm5843, %v5839
    %v5846 = vcombine.high %v5815, %v5822
    %5847 = vrot.lane.b32.xlu0 %v5846, 127
    %v5848 = vpop.permute.xlu0 %5847
    %v5849 = vrot.slane %v5848, 7
    %v5850 = vsel %vm131, %v5849, %v5848
    %vm5852 = vcmp.ge.s32.totalorder %v5489, 127
    %vm5853 = vcmp.lt.s32.totalorder %v5489, 656
    %vm5854 = vmand %vm5852, %vm5853
    %s5855 = scalar_lea.vmem [#allocation4], 122
    %5856 = vst.msk [vmem:[%s5855] ss:$2 sm:$0x3f] %vm5854, %v5850
    %v5862 = vcombine.low %v5429, %v5430
    %v5863 = vcombine.low %v5431, %v5432
    %v5865 = vunpack.c.l.s4 1966171168
    %v5866 = vunpack.c.0.s8 %v5865
    %v5867 = vlaneseq
    %v5868 = vshrl.u32 %v5867, 7
    %v5869 = vsub.s32 %v5866, %v5868
    %v5870 = vrot.slane %v5862, %v5869
    %v5872 = vunpack.c.l.s4 1966171168
    %v5873 = vunpack.c.0.s8 %v5872
    %v5874 = vlaneseq
    %v5875 = vshrl.u32 %v5874, 7
    %v5876 = vsub.s32 %v5873, %v5875
    %v5877 = vrot.slane %v5863, %v5876
    %v5879 = vunpack.c.l.s4 1966171168
    %v5880 = vunpack.c.0.s8 %v5879
    %v5881 = vlaneseq
    %v5882 = vshrl.u32 %v5881, 7
    %v5883 = vsub.s32 %v5880, %v5882
    %v5884 = vrot.slane %v5433, %v5883
    %v5885 = vcombine.low %v5870, %v5877
    %v5887 = vunpack.c.l.s4 1966171168
    %v5888 = vunpack.c.0.s8 %v5887
    %v5889 = vlaneseq
    %v5890 = vshrl.u32 %v5889, 7
    %v5891 = vsub.s32 %v5888, %v5890
    %v5892 = vrot.slane %v5885, %v5891
    %v5894 = vunpack.c.l.s4 1966171168
    %v5895 = vunpack.c.0.s8 %v5894
    %v5896 = vlaneseq
    %v5897 = vshrl.u32 %v5896, 7
    %v5898 = vsub.s32 %v5895, %v5897
    %v5899 = vrot.slane %v5884, %v5898
    %v5900 = vcombine.low %v5892, %v5899
    %s5902 = scalar_lea.vmem [#allocation4], 1
    %5903 = vst.msk [vmem:[%s5902] ss:$2 sm:$0x1f] %vm5492, %v5900
    %v5904 = vcombine.high %v5870, %v5877
    %v5905 = vcombine.high %v5884, %v5884
    %v5907 = vunpack.c.l.s4 1966171168
    %v5908 = vunpack.c.0.s8 %v5907
    %v5909 = vlaneseq
    %v5910 = vshrl.u32 %v5909, 7
    %v5911 = vsub.s32 %v5908, %v5910
    %v5912 = vrot.slane %v5904, %v5911
    %v5914 = vunpack.c.l.s4 1966171168
    %v5915 = vunpack.c.0.s8 %v5914
    %v5916 = vlaneseq
    %v5917 = vshrl.u32 %v5916, 7
    %v5918 = vsub.s32 %v5915, %v5917
    %v5919 = vrot.slane %v5905, %v5918
    %v5920 = vcombine.low %v5912, %v5919
    %5921 = vrot.lane.b32.xlu0 %v5920, 17
    %v5922 = vpop.permute.xlu0 %5921
    %v5923 = vrot.slane %v5922, 7
    %v5924 = vsel %vm5514, %v5923, %v5922
    %s5926 = scalar_lea.vmem [#allocation4], 9
    %5927 = vst.msk [vmem:[%s5926] ss:$2 sm:$0x1f] %vm5519, %v5924
    %v5928 = vcombine.high %v5892, %v5899
    %5929 = vrot.lane.b32.xlu0 %v5928, 34
    %v5930 = vpop.permute.xlu0 %5929
    %v5931 = vrot.slane %v5930, 7
    %v5932 = vsel %vm5526, %v5931, %v5930
    %s5934 = scalar_lea.vmem [#allocation4], 17
    %5935 = vst.msk [vmem:[%s5934] ss:$2 sm:$0x1f] %vm5531, %v5932
    %v5936 = vcombine.high %v5912, %v5919
    %5937 = vrot.lane.b32.xlu0 %v5936, 51
    %v5938 = vpop.permute.xlu0 %5937
    %v5939 = vrot.slane %v5938, 7
    %v5940 = vsel %vm5538, %v5939, %v5938
    %s5942 = scalar_lea.vmem [#allocation4], 25
    %5943 = vst.msk [vmem:[%s5942] ss:$2 sm:$0x1f] %vm5543, %v5940
    %v5944 = vcombine.high %v5429, %v5430
    %v5945 = vcombine.high %v5431, %v5432
    %v5946 = vcombine.high %v5433, %v5433
    %v5948 = vunpack.c.l.s4 1966171168
    %v5949 = vunpack.c.0.s8 %v5948
    %v5950 = vlaneseq
    %v5951 = vshrl.u32 %v5950, 7
    %v5952 = vsub.s32 %v5949, %v5951
    %v5953 = vrot.slane %v5944, %v5952
    %v5955 = vunpack.c.l.s4 1966171168
    %v5956 = vunpack.c.0.s8 %v5955
    %v5957 = vlaneseq
    %v5958 = vshrl.u32 %v5957, 7
    %v5959 = vsub.s32 %v5956, %v5958
    %v5960 = vrot.slane %v5945, %v5959
    %v5962 = vunpack.c.l.s4 1966171168
    %v5963 = vunpack.c.0.s8 %v5962
    %v5964 = vlaneseq
    %v5965 = vshrl.u32 %v5964, 7
    %v5966 = vsub.s32 %v5963, %v5965
    %v5967 = vrot.slane %v5946, %v5966
    %v5968 = vcombine.low %v5953, %v5960
    %v5970 = vunpack.c.l.s4 1966171168
    %v5971 = vunpack.c.0.s8 %v5970
    %v5972 = vlaneseq
    %v5973 = vshrl.u32 %v5972, 7
    %v5974 = vsub.s32 %v5971, %v5973
    %v5975 = vrot.slane %v5968, %v5974
    %v5977 = vunpack.c.l.s4 1966171168
    %v5978 = vunpack.c.0.s8 %v5977
    %v5979 = vlaneseq
    %v5980 = vshrl.u32 %v5979, 7
    %v5981 = vsub.s32 %v5978, %v5980
    %v5982 = vrot.slane %v5967, %v5981
    %v5983 = vcombine.low %v5975, %v5982
    %5984 = vrot.lane.b32.xlu0 %v5983, 68
    %v5985 = vpop.permute.xlu0 %5984
    %v5986 = vrot.slane %v5985, 7
    %v5987 = vsel %vm5589, %v5986, %v5985
    %s5989 = scalar_lea.vmem [#allocation4], 33
    %5990 = vst.msk [vmem:[%s5989] ss:$2 sm:$0x1f] %vm5594, %v5987
    %v5991 = vcombine.high %v5953, %v5960
    %v5992 = vcombine.high %v5967, %v5967
    %v5994 = vunpack.c.l.s4 1966171168
    %v5995 = vunpack.c.0.s8 %v5994
    %v5996 = vlaneseq
    %v5997 = vshrl.u32 %v5996, 7
    %v5998 = vsub.s32 %v5995, %v5997
    %v5999 = vrot.slane %v5991, %v5998
    %v6001 = vunpack.c.l.s4 1966171168
    %v6002 = vunpack.c.0.s8 %v6001
    %v6003 = vlaneseq
    %v6004 = vshrl.u32 %v6003, 7
    %v6005 = vsub.s32 %v6002, %v6004
    %v6006 = vrot.slane %v5992, %v6005
    %v6007 = vcombine.low %v5999, %v6006
    %6008 = vrot.lane.b32.xlu0 %v6007, 85
    %v6009 = vpop.permute.xlu0 %6008
    %v6010 = vrot.slane %v6009, 7
    %v6011 = vsel %vm5617, %v6010, %v6009
    %s6013 = scalar_lea.vmem [#allocation4], 41
    %6014 = vst.msk [vmem:[%s6013] ss:$2 sm:$0x1f] %vm5622, %v6011
    %v6015 = vcombine.high %v5975, %v5982
    %6016 = vrot.lane.b32.xlu0 %v6015, 102
    %v6017 = vpop.permute.xlu0 %6016
    %v6018 = vrot.slane %v6017, 7
    %v6019 = vsel %vm5629, %v6018, %v6017
    %s6021 = scalar_lea.vmem [#allocation4], 49
    %6022 = vst.msk [vmem:[%s6021] ss:$2 sm:$0x1f] %vm5634, %v6019
    %v6023 = vcombine.high %v5999, %v6006
    %6024 = vrot.lane.b32.xlu0 %v6023, 119
    %v6025 = vpop.permute.xlu0 %6024
    %v6026 = vrot.slane %v6025, 7
    %v6027 = vsel %vm5641, %v6026, %v6025
    %s6029 = scalar_lea.vmem [#allocation4], 57
    %6030 = vst.msk [vmem:[%s6029] ss:$2 sm:$0x3f] %vm5646, %v6027
    %v6036 = vcombine.low %v5439, %v5440
    %v6037 = vcombine.low %v5441, %v5442
    %v6039 = vunpack.c.l.s4 1966171168
    %v6040 = vunpack.c.0.s8 %v6039
    %v6041 = vlaneseq
    %v6042 = vshrl.u32 %v6041, 7
    %v6043 = vsub.s32 %v6040, %v6042
    %v6044 = vrot.slane %v6036, %v6043
    %v6046 = vunpack.c.l.s4 1966171168
    %v6047 = vunpack.c.0.s8 %v6046
    %v6048 = vlaneseq
    %v6049 = vshrl.u32 %v6048, 7
    %v6050 = vsub.s32 %v6047, %v6049
    %v6051 = vrot.slane %v6037, %v6050
    %v6053 = vunpack.c.l.s4 1966171168
    %v6054 = vunpack.c.0.s8 %v6053
    %v6055 = vlaneseq
    %v6056 = vshrl.u32 %v6055, 7
    %v6057 = vsub.s32 %v6054, %v6056
    %v6058 = vrot.slane %v5443, %v6057
    %v6059 = vcombine.low %v6044, %v6051
    %v6061 = vunpack.c.l.s4 1966171168
    %v6062 = vunpack.c.0.s8 %v6061
    %v6063 = vlaneseq
    %v6064 = vshrl.u32 %v6063, 7
    %v6065 = vsub.s32 %v6062, %v6064
    %v6066 = vrot.slane %v6059, %v6065
    %v6068 = vunpack.c.l.s4 1966171168
    %v6069 = vunpack.c.0.s8 %v6068
    %v6070 = vlaneseq
    %v6071 = vshrl.u32 %v6070, 7
    %v6072 = vsub.s32 %v6069, %v6071
    %v6073 = vrot.slane %v6058, %v6072
    %v6074 = vcombine.low %v6066, %v6073
    %6075 = vrot.lane.b32.xlu0 %v6074, 8
    %v6076 = vpop.permute.xlu0 %6075
    %v6077 = vrot.slane %v6076, 7
    %v6078 = vsel %vm5696, %v6077, %v6076
    %s6080 = scalar_lea.vmem [#allocation4], 67
    %6081 = vst.msk [vmem:[%s6080] ss:$2 sm:$0x1f] %vm5701, %v6078
    %v6082 = vcombine.high %v6044, %v6051
    %v6083 = vcombine.high %v6058, %v6058
    %v6085 = vunpack.c.l.s4 1966171168
    %v6086 = vunpack.c.0.s8 %v6085
    %v6087 = vlaneseq
    %v6088 = vshrl.u32 %v6087, 7
    %v6089 = vsub.s32 %v6086, %v6088
    %v6090 = vrot.slane %v6082, %v6089
    %v6092 = vunpack.c.l.s4 1966171168
    %v6093 = vunpack.c.0.s8 %v6092
    %v6094 = vlaneseq
    %v6095 = vshrl.u32 %v6094, 7
    %v6096 = vsub.s32 %v6093, %v6095
    %v6097 = vrot.slane %v6083, %v6096
    %v6098 = vcombine.low %v6090, %v6097
    %6099 = vrot.lane.b32.xlu0 %v6098, 25
    %v6100 = vpop.permute.xlu0 %6099
    %v6101 = vrot.slane %v6100, 7
    %v6102 = vsel %vm5724, %v6101, %v6100
    %s6104 = scalar_lea.vmem [#allocation4], 75
    %6105 = vst.msk [vmem:[%s6104] ss:$2 sm:$0x1f] %vm5729, %v6102
    %v6106 = vcombine.high %v6066, %v6073
    %6107 = vrot.lane.b32.xlu0 %v6106, 42
    %v6108 = vpop.permute.xlu0 %6107
    %v6109 = vrot.slane %v6108, 7
    %v6110 = vsel %vm5736, %v6109, %v6108
    %s6112 = scalar_lea.vmem [#allocation4], 83
    %6113 = vst.msk [vmem:[%s6112] ss:$2 sm:$0x1f] %vm5741, %v6110
    %v6114 = vcombine.high %v6090, %v6097
    %6115 = vrot.lane.b32.xlu0 %v6114, 59
    %v6116 = vpop.permute.xlu0 %6115
    %v6117 = vrot.slane %v6116, 7
    %v6118 = vsel %vm5748, %v6117, %v6116
    %s6120 = scalar_lea.vmem [#allocation4], 91
    %6121 = vst.msk [vmem:[%s6120] ss:$2 sm:$0x1f] %vm5753, %v6118
    %v6122 = vcombine.high %v5439, %v5440
    %v6123 = vcombine.high %v5441, %v5442
    %v6124 = vcombine.high %v5443, %v5443
    %v6126 = vunpack.c.l.s4 1966171168
    %v6127 = vunpack.c.0.s8 %v6126
    %v6128 = vlaneseq
    %v6129 = vshrl.u32 %v6128, 7
    %v6130 = vsub.s32 %v6127, %v6129
    %v6131 = vrot.slane %v6122, %v6130
    %v6133 = vunpack.c.l.s4 1966171168
    %v6134 = vunpack.c.0.s8 %v6133
    %v6135 = vlaneseq
    %v6136 = vshrl.u32 %v6135, 7
    %v6137 = vsub.s32 %v6134, %v6136
    %v6138 = vrot.slane %v6123, %v6137
    %v6140 = vunpack.c.l.s4 1966171168
    %v6141 = vunpack.c.0.s8 %v6140
    %v6142 = vlaneseq
    %v6143 = vshrl.u32 %v6142, 7
    %v6144 = vsub.s32 %v6141, %v6143
    %v6145 = vrot.slane %v6124, %v6144
    %v6146 = vcombine.low %v6131, %v6138
    %v6148 = vunpack.c.l.s4 1966171168
    %v6149 = vunpack.c.0.s8 %v6148
    %v6150 = vlaneseq
    %v6151 = vshrl.u32 %v6150, 7
    %v6152 = vsub.s32 %v6149, %v6151
    %v6153 = vrot.slane %v6146, %v6152
    %v6155 = vunpack.c.l.s4 1966171168
    %v6156 = vunpack.c.0.s8 %v6155
    %v6157 = vlaneseq
    %v6158 = vshrl.u32 %v6157, 7
    %v6159 = vsub.s32 %v6156, %v6158
    %v6160 = vrot.slane %v6145, %v6159
    %v6161 = vcombine.low %v6153, %v6160
    %6162 = vrot.lane.b32.xlu0 %v6161, 76
    %v6163 = vpop.permute.xlu0 %6162
    %v6164 = vrot.slane %v6163, 7
    %v6165 = vsel %vm5799, %v6164, %v6163
    %s6167 = scalar_lea.vmem [#allocation4], 99
    %6168 = vst.msk [vmem:[%s6167] ss:$2 sm:$0x1f] %vm5804, %v6165
    %v6169 = vcombine.high %v6131, %v6138
    %v6170 = vcombine.high %v6145, %v6145
    %v6172 = vunpack.c.l.s4 1966171168
    %v6173 = vunpack.c.0.s8 %v6172
    %v6174 = vlaneseq
    %v6175 = vshrl.u32 %v6174, 7
    %v6176 = vsub.s32 %v6173, %v6175
    %v6177 = vrot.slane %v6169, %v6176
    %v6179 = vunpack.c.l.s4 1966171168
    %v6180 = vunpack.c.0.s8 %v6179
    %v6181 = vlaneseq
    %v6182 = vshrl.u32 %v6181, 7
    %v6183 = vsub.s32 %v6180, %v6182
    %v6184 = vrot.slane %v6170, %v6183
    %v6185 = vcombine.low %v6177, %v6184
    %6186 = vrot.lane.b32.xlu0 %v6185, 93
    %v6187 = vpop.permute.xlu0 %6186
    %v6188 = vrot.slane %v6187, 7
    %v6189 = vsel %vm793, %v6188, %v6187
    %s6191 = scalar_lea.vmem [#allocation4], 107
    %6192 = vst.msk [vmem:[%s6191] ss:$2 sm:$0x1f] %vm5831, %v6189
    %v6193 = vcombine.high %v6153, %v6160
    %6194 = vrot.lane.b32.xlu0 %v6193, 110
    %v6195 = vpop.permute.xlu0 %6194
    %v6196 = vrot.slane %v6195, 7
    %v6197 = vsel %vm5838, %v6196, %v6195
    %s6199 = scalar_lea.vmem [#allocation4], 115
    %6200 = vst.msk [vmem:[%s6199] ss:$2 sm:$0x1f] %vm5843, %v6197
    %v6201 = vcombine.high %v6177, %v6184
    %6202 = vrot.lane.b32.xlu0 %v6201, 127
    %v6203 = vpop.permute.xlu0 %6202
    %v6204 = vrot.slane %v6203, 7
    %v6205 = vsel %vm131, %v6204, %v6203
    %s6207 = scalar_lea.vmem [#allocation4], 123
    %6208 = vst.msk [vmem:[%s6207] ss:$2 sm:$0x3f] %vm5854, %v6205
    %v6209 = vld [vmem:[#allocation4] sm:$0xff]
    %v6210 = vld [vmem:[#allocation4 + $0x8] sm:$0xff]
    %v6211 = vld [vmem:[#allocation4 + $0x10] sm:$0xff]
    %v6212 = vld [vmem:[#allocation4 + $0x18] sm:$0xff]
    %v6213 = vld [vmem:[#allocation4 + $0x20] sm:$0xff]
    %v6214 = vld [vmem:[#allocation4 + $0x28] sm:$0xff]
    %v6215 = vld [vmem:[#allocation4 + $0x30] sm:$0xff]
    %v6216 = vld [vmem:[#allocation4 + $0x38] sm:$0xff]
    %v6217 = vld [vmem:[#allocation4 + $0x40] sm:$0xff]
    %v6218 = vld [vmem:[#allocation4 + $0x48] sm:$0xff]
    %v6219 = vld [vmem:[#allocation4 + $0x50] sm:$0xff]
    %v6220 = vld [vmem:[#allocation4 + $0x58] sm:$0xff]
    %v6221 = vld [vmem:[#allocation4 + $0x60] sm:$0xff]
    %v6222 = vld [vmem:[#allocation4 + $0x68] sm:$0xff]
    %v6223 = vld [vmem:[#allocation4 + $0x70] sm:$0xff]
    %v6224 = vld [vmem:[#allocation4 + $0x78] sm:$0xff]
    %v6225 = vld [vmem:[#allocation4 + $0x80] sm:$0x3f]
    %v6243 = vcombine.high %v6209, %v6209
    %v6245 = vunpack.c.l.s4 1983009808
    %v6246 = vunpack.c.0.s8 %v6245
    %v6247 = vlaneseq
    %v6248 = vshrl.u32 %v6247, 7
    %v6249 = vsub.s32 %v6246, %v6248
    %v6250 = vrot.slane %v6209, %v6249
    %v6252 = vunpack.c.l.s4 1983009808
    %v6253 = vunpack.c.0.s8 %v6252
    %v6254 = vlaneseq
    %v6255 = vshrl.u32 %v6254, 7
    %v6256 = vsub.s32 %v6253, %v6255
    %v6257 = vrot.slane %v6243, %v6256
    %v6258 = vcombine.high %v6250, %v6250
    %v6259 = vcombine.high %v6257, %v6257
    %v6260 = vcombine.high %v6210, %v6210
    %v6262 = vunpack.c.l.s4 1983009808
    %v6263 = vunpack.c.0.s8 %v6262
    %v6264 = vlaneseq
    %v6265 = vshrl.u32 %v6264, 7
    %v6266 = vsub.s32 %v6263, %v6265
    %v6267 = vrot.slane %v6210, %v6266
    %v6269 = vunpack.c.l.s4 1983009808
    %v6270 = vunpack.c.0.s8 %v6269
    %v6271 = vlaneseq
    %v6272 = vshrl.u32 %v6271, 7
    %v6273 = vsub.s32 %v6270, %v6272
    %v6274 = vrot.slane %v6260, %v6273
    %v6275 = vcombine.high %v6267, %v6267
    %v6276 = vcombine.high %v6274, %v6274
    %v6277 = vcombine.high %v6211, %v6211
    %v6279 = vunpack.c.l.s4 1983009808
    %v6280 = vunpack.c.0.s8 %v6279
    %v6281 = vlaneseq
    %v6282 = vshrl.u32 %v6281, 7
    %v6283 = vsub.s32 %v6280, %v6282
    %v6284 = vrot.slane %v6211, %v6283
    %v6286 = vunpack.c.l.s4 1983009808
    %v6287 = vunpack.c.0.s8 %v6286
    %v6288 = vlaneseq
    %v6289 = vshrl.u32 %v6288, 7
    %v6290 = vsub.s32 %v6287, %v6289
    %v6291 = vrot.slane %v6277, %v6290
    %v6292 = vcombine.high %v6284, %v6284
    %v6293 = vcombine.high %v6291, %v6291
    %v6294 = vcombine.high %v6212, %v6212
    %v6296 = vunpack.c.l.s4 1983009808
    %v6297 = vunpack.c.0.s8 %v6296
    %v6298 = vlaneseq
    %v6299 = vshrl.u32 %v6298, 7
    %v6300 = vsub.s32 %v6297, %v6299
    %v6301 = vrot.slane %v6212, %v6300
    %v6303 = vunpack.c.l.s4 1983009808
    %v6304 = vunpack.c.0.s8 %v6303
    %v6305 = vlaneseq
    %v6306 = vshrl.u32 %v6305, 7
    %v6307 = vsub.s32 %v6304, %v6306
    %v6308 = vrot.slane %v6294, %v6307
    %v6309 = vcombine.high %v6301, %v6301
    %v6310 = vcombine.high %v6308, %v6308
    %v6311 = vcombine.high %v6213, %v6213
    %v6313 = vunpack.c.l.s4 1983009808
    %v6314 = vunpack.c.0.s8 %v6313
    %v6315 = vlaneseq
    %v6316 = vshrl.u32 %v6315, 7
    %v6317 = vsub.s32 %v6314, %v6316
    %v6318 = vrot.slane %v6213, %v6317
    %v6320 = vunpack.c.l.s4 1983009808
    %v6321 = vunpack.c.0.s8 %v6320
    %v6322 = vlaneseq
    %v6323 = vshrl.u32 %v6322, 7
    %v6324 = vsub.s32 %v6321, %v6323
    %v6325 = vrot.slane %v6311, %v6324
    %v6326 = vcombine.high %v6318, %v6318
    %v6327 = vcombine.high %v6325, %v6325
    %v6328 = vcombine.high %v6214, %v6214
    %v6330 = vunpack.c.l.s4 1983009808
    %v6331 = vunpack.c.0.s8 %v6330
    %v6332 = vlaneseq
    %v6333 = vshrl.u32 %v6332, 7
    %v6334 = vsub.s32 %v6331, %v6333
    %v6335 = vrot.slane %v6214, %v6334
    %v6337 = vunpack.c.l.s4 1983009808
    %v6338 = vunpack.c.0.s8 %v6337
    %v6339 = vlaneseq
    %v6340 = vshrl.u32 %v6339, 7
    %v6341 = vsub.s32 %v6338, %v6340
    %v6342 = vrot.slane %v6328, %v6341
    %v6343 = vcombine.high %v6335, %v6335
    %v6344 = vcombine.high %v6342, %v6342
    %v6345 = vcombine.high %v6215, %v6215
    %v6347 = vunpack.c.l.s4 1983009808
    %v6348 = vunpack.c.0.s8 %v6347
    %v6349 = vlaneseq
    %v6350 = vshrl.u32 %v6349, 7
    %v6351 = vsub.s32 %v6348, %v6350
    %v6352 = vrot.slane %v6215, %v6351
    %v6354 = vunpack.c.l.s4 1983009808
    %v6355 = vunpack.c.0.s8 %v6354
    %v6356 = vlaneseq
    %v6357 = vshrl.u32 %v6356, 7
    %v6358 = vsub.s32 %v6355, %v6357
    %v6359 = vrot.slane %v6345, %v6358
    %v6360 = vcombine.high %v6352, %v6352
    %v6361 = vcombine.high %v6359, %v6359
    %v6362 = vcombine.high %v6216, %v6216
    %v6364 = vunpack.c.l.s4 1983009808
    %v6365 = vunpack.c.0.s8 %v6364
    %v6366 = vlaneseq
    %v6367 = vshrl.u32 %v6366, 7
    %v6368 = vsub.s32 %v6365, %v6367
    %v6369 = vrot.slane %v6216, %v6368
    %v6371 = vunpack.c.l.s4 1983009808
    %v6372 = vunpack.c.0.s8 %v6371
    %v6373 = vlaneseq
    %v6374 = vshrl.u32 %v6373, 7
    %v6375 = vsub.s32 %v6372, %v6374
    %v6376 = vrot.slane %v6362, %v6375
    %v6377 = vcombine.high %v6369, %v6369
    %v6378 = vcombine.high %v6376, %v6376
    %v6379 = vcombine.high %v6217, %v6217
    %v6381 = vunpack.c.l.s4 1983009808
    %v6382 = vunpack.c.0.s8 %v6381
    %v6383 = vlaneseq
    %v6384 = vshrl.u32 %v6383, 7
    %v6385 = vsub.s32 %v6382, %v6384
    %v6386 = vrot.slane %v6217, %v6385
    %v6388 = vunpack.c.l.s4 1983009808
    %v6389 = vunpack.c.0.s8 %v6388
    %v6390 = vlaneseq
    %v6391 = vshrl.u32 %v6390, 7
    %v6392 = vsub.s32 %v6389, %v6391
    %v6393 = vrot.slane %v6379, %v6392
    %v6394 = vcombine.high %v6386, %v6386
    %v6395 = vcombine.high %v6393, %v6393
    %v6396 = vcombine.high %v6218, %v6218
    %v6398 = vunpack.c.l.s4 1983009808
    %v6399 = vunpack.c.0.s8 %v6398
    %v6400 = vlaneseq
    %v6401 = vshrl.u32 %v6400, 7
    %v6402 = vsub.s32 %v6399, %v6401
    %v6403 = vrot.slane %v6218, %v6402
    %v6405 = vunpack.c.l.s4 1983009808
    %v6406 = vunpack.c.0.s8 %v6405
    %v6407 = vlaneseq
    %v6408 = vshrl.u32 %v6407, 7
    %v6409 = vsub.s32 %v6406, %v6408
    %v6410 = vrot.slane %v6396, %v6409
    %v6411 = vcombine.high %v6403, %v6403
    %v6412 = vcombine.high %v6410, %v6410
    %v6413 = vcombine.high %v6219, %v6219
    %v6415 = vunpack.c.l.s4 1983009808
    %v6416 = vunpack.c.0.s8 %v6415
    %v6417 = vlaneseq
    %v6418 = vshrl.u32 %v6417, 7
    %v6419 = vsub.s32 %v6416, %v6418
    %v6420 = vrot.slane %v6219, %v6419
    %v6422 = vunpack.c.l.s4 1983009808
    %v6423 = vunpack.c.0.s8 %v6422
    %v6424 = vlaneseq
    %v6425 = vshrl.u32 %v6424, 7
    %v6426 = vsub.s32 %v6423, %v6425
    %v6427 = vrot.slane %v6413, %v6426
    %v6428 = vcombine.high %v6420, %v6420
    %v6429 = vcombine.high %v6427, %v6427
    %v6430 = vcombine.high %v6220, %v6220
    %v6432 = vunpack.c.l.s4 1983009808
    %v6433 = vunpack.c.0.s8 %v6432
    %v6434 = vlaneseq
    %v6435 = vshrl.u32 %v6434, 7
    %v6436 = vsub.s32 %v6433, %v6435
    %v6437 = vrot.slane %v6220, %v6436
    %v6439 = vunpack.c.l.s4 1983009808
    %v6440 = vunpack.c.0.s8 %v6439
    %v6441 = vlaneseq
    %v6442 = vshrl.u32 %v6441, 7
    %v6443 = vsub.s32 %v6440, %v6442
    %v6444 = vrot.slane %v6430, %v6443
    %v6445 = vcombine.high %v6437, %v6437
    %v6446 = vcombine.high %v6444, %v6444
    %v6447 = vcombine.high %v6221, %v6221
    %v6449 = vunpack.c.l.s4 1983009808
    %v6450 = vunpack.c.0.s8 %v6449
    %v6451 = vlaneseq
    %v6452 = vshrl.u32 %v6451, 7
    %v6453 = vsub.s32 %v6450, %v6452
    %v6454 = vrot.slane %v6221, %v6453
    %v6456 = vunpack.c.l.s4 1983009808
    %v6457 = vunpack.c.0.s8 %v6456
    %v6458 = vlaneseq
    %v6459 = vshrl.u32 %v6458, 7
    %v6460 = vsub.s32 %v6457, %v6459
    %v6461 = vrot.slane %v6447, %v6460
    %v6462 = vcombine.high %v6454, %v6454
    %v6463 = vcombine.high %v6461, %v6461
    %v6464 = vcombine.high %v6222, %v6222
    %v6466 = vunpack.c.l.s4 1983009808
    %v6467 = vunpack.c.0.s8 %v6466
    %v6468 = vlaneseq
    %v6469 = vshrl.u32 %v6468, 7
    %v6470 = vsub.s32 %v6467, %v6469
    %v6471 = vrot.slane %v6222, %v6470
    %v6473 = vunpack.c.l.s4 1983009808
    %v6474 = vunpack.c.0.s8 %v6473
    %v6475 = vlaneseq
    %v6476 = vshrl.u32 %v6475, 7
    %v6477 = vsub.s32 %v6474, %v6476
    %v6478 = vrot.slane %v6464, %v6477
    %v6479 = vcombine.high %v6471, %v6471
    %v6480 = vcombine.high %v6478, %v6478
    %v6481 = vcombine.high %v6223, %v6223
    %v6483 = vunpack.c.l.s4 1983009808
    %v6484 = vunpack.c.0.s8 %v6483
    %v6485 = vlaneseq
    %v6486 = vshrl.u32 %v6485, 7
    %v6487 = vsub.s32 %v6484, %v6486
    %v6488 = vrot.slane %v6223, %v6487
    %v6490 = vunpack.c.l.s4 1983009808
    %v6491 = vunpack.c.0.s8 %v6490
    %v6492 = vlaneseq
    %v6493 = vshrl.u32 %v6492, 7
    %v6494 = vsub.s32 %v6491, %v6493
    %v6495 = vrot.slane %v6481, %v6494
    %v6496 = vcombine.high %v6488, %v6488
    %v6497 = vcombine.high %v6495, %v6495
    %v6498 = vcombine.high %v6224, %v6224
    %v6500 = vunpack.c.l.s4 1983009808
    %v6501 = vunpack.c.0.s8 %v6500
    %v6502 = vlaneseq
    %v6503 = vshrl.u32 %v6502, 7
    %v6504 = vsub.s32 %v6501, %v6503
    %v6505 = vrot.slane %v6224, %v6504
    %v6507 = vunpack.c.l.s4 1983009808
    %v6508 = vunpack.c.0.s8 %v6507
    %v6509 = vlaneseq
    %v6510 = vshrl.u32 %v6509, 7
    %v6511 = vsub.s32 %v6508, %v6510
    %v6512 = vrot.slane %v6498, %v6511
    %v6513 = vcombine.high %v6505, %v6505
    %v6514 = vcombine.high %v6512, %v6512
    %v6515 = vcombine.high %v6225, %v6225
    %v6517 = vunpack.c.l.s4 1983009808
    %v6518 = vunpack.c.0.s8 %v6517
    %v6519 = vlaneseq
    %v6520 = vshrl.u32 %v6519, 7
    %v6521 = vsub.s32 %v6518, %v6520
    %v6522 = vrot.slane %v6225, %v6521
    %v6524 = vunpack.c.l.s4 1983009808
    %v6525 = vunpack.c.0.s8 %v6524
    %v6526 = vlaneseq
    %v6527 = vshrl.u32 %v6526, 7
    %v6528 = vsub.s32 %v6525, %v6527
    %v6529 = vrot.slane %v6515, %v6528
    %v6530 = vcombine.high %v6522, %v6522
    %v6598 = vpack.c.bf16 %v6250, %v6250
    %v6599 = vpack.c.bf16 %v6258, %v6258
    %v6600 = vpack.c.bf16 %v6257, %v6257
    %v6601 = vpack.c.bf16 %v6259, %v6259
    %v6602 = vpack.c.bf16 %v6267, %v6267
    %v6603 = vpack.c.bf16 %v6275, %v6275
    %v6604 = vpack.c.bf16 %v6274, %v6274
    %v6605 = vpack.c.bf16 %v6276, %v6276
    %v6606 = vpack.c.bf16 %v6284, %v6284
    %v6607 = vpack.c.bf16 %v6292, %v6292
    %v6608 = vpack.c.bf16 %v6291, %v6291
    %v6609 = vpack.c.bf16 %v6293, %v6293
    %v6610 = vpack.c.bf16 %v6301, %v6301
    %v6611 = vpack.c.bf16 %v6309, %v6309
    %v6612 = vpack.c.bf16 %v6308, %v6308
    %v6613 = vpack.c.bf16 %v6310, %v6310
    %v6614 = vpack.c.bf16 %v6318, %v6318
    %v6615 = vpack.c.bf16 %v6326, %v6326
    %v6616 = vpack.c.bf16 %v6325, %v6325
    %v6617 = vpack.c.bf16 %v6327, %v6327
    %v6618 = vpack.c.bf16 %v6335, %v6335
    %v6619 = vpack.c.bf16 %v6343, %v6343
    %v6620 = vpack.c.bf16 %v6342, %v6342
    %v6621 = vpack.c.bf16 %v6344, %v6344
    %v6622 = vpack.c.bf16 %v6352, %v6352
    %v6623 = vpack.c.bf16 %v6360, %v6360
    %v6624 = vpack.c.bf16 %v6359, %v6359
    %v6625 = vpack.c.bf16 %v6361, %v6361
    %v6626 = vpack.c.bf16 %v6369, %v6369
    %v6627 = vpack.c.bf16 %v6377, %v6377
    %v6628 = vpack.c.bf16 %v6376, %v6376
    %v6629 = vpack.c.bf16 %v6378, %v6378
    %v6630 = vpack.c.bf16 %v6386, %v6386
    %v6631 = vpack.c.bf16 %v6394, %v6394
    %v6632 = vpack.c.bf16 %v6393, %v6393
    %v6633 = vpack.c.bf16 %v6395, %v6395
    %v6634 = vpack.c.bf16 %v6403, %v6403
    %v6635 = vpack.c.bf16 %v6411, %v6411
    %v6636 = vpack.c.bf16 %v6410, %v6410
    %v6637 = vpack.c.bf16 %v6412, %v6412
    %v6638 = vpack.c.bf16 %v6420, %v6420
    %v6639 = vpack.c.bf16 %v6428, %v6428
    %v6640 = vpack.c.bf16 %v6427, %v6427
    %v6641 = vpack.c.bf16 %v6429, %v6429
    %v6642 = vpack.c.bf16 %v6437, %v6437
    %v6643 = vpack.c.bf16 %v6445, %v6445
    %v6644 = vpack.c.bf16 %v6444, %v6444
    %v6645 = vpack.c.bf16 %v6446, %v6446
    %v6646 = vpack.c.bf16 %v6454, %v6454
    %v6647 = vpack.c.bf16 %v6462, %v6462
    %v6648 = vpack.c.bf16 %v6461, %v6461
    %v6649 = vpack.c.bf16 %v6463, %v6463
    %v6650 = vpack.c.bf16 %v6471, %v6471
    %v6651 = vpack.c.bf16 %v6479, %v6479
    %v6652 = vpack.c.bf16 %v6478, %v6478
    %v6653 = vpack.c.bf16 %v6480, %v6480
    %v6654 = vpack.c.bf16 %v6488, %v6488
    %v6655 = vpack.c.bf16 %v6496, %v6496
    %v6656 = vpack.c.bf16 %v6495, %v6495
    %v6657 = vpack.c.bf16 %v6497, %v6497
    %v6658 = vpack.c.bf16 %v6505, %v6505
    %v6659 = vpack.c.bf16 %v6513, %v6513
    %v6660 = vpack.c.bf16 %v6512, %v6512
    %v6661 = vpack.c.bf16 %v6514, %v6514
    %v6662 = vpack.c.bf16 %v6522, %v6522
    %v6663 = vpack.c.bf16 %v6530, %v6530
    %v6664 = vpack.c.bf16 %v6529, %v6529
    %v6665 = vld [vmem:[%s5] sm:$0xf]
    %v6666 = vld [vmem:[%s5 + $0x4] sm:$0xf]
    %v6667 = vld [vmem:[%s5 + $0x8] sm:$0xf]
    %v6668 = vld [vmem:[%s5 + $0xc] sm:$0xf]
    %v6669 = vld [vmem:[%s5 + $0x10] sm:$0xf]
    %v6670 = vld [vmem:[%s5 + $0x14] sm:$0xf]
    %v6671 = vld [vmem:[%s5 + $0x18] sm:$0xf]
    %v6672 = vld [vmem:[%s5 + $0x1c] sm:$0xf]
    %v6673 = vld [vmem:[%s5 + $0x20] sm:$0xf]
    %v6674 = vld [vmem:[%s5 + $0x24] sm:$0xf]
    %v6675 = vld [vmem:[%s5 + $0x28] sm:$0xf]
    %v6676 = vld [vmem:[%s5 + $0x2c] sm:$0xf]
    %v6677 = vld [vmem:[%s5 + $0x30] sm:$0xf]
    %v6678 = vld [vmem:[%s5 + $0x34] sm:$0xf]
    %v6679 = vld [vmem:[%s5 + $0x38] sm:$0xf]
    %v6680 = vld [vmem:[%s5 + $0x3c] sm:$0xf]
    %v6681 = vld [vmem:[%s5 + $0x40] sm:$0xf]
    %v6682 = vld [vmem:[%s5 + $0x44] sm:$0xf]
    %v6683 = vld [vmem:[%s5 + $0x48] sm:$0xf]
    %v6684 = vld [vmem:[%s5 + $0x4c] sm:$0xf]
    %v6685 = vld [vmem:[%s5 + $0x50] sm:$0xf]
    %v6686 = vld [vmem:[%s5 + $0x54] sm:$0xf]
    %v6687 = vld [vmem:[%s5 + $0x58] sm:$0xf]
    %v6688 = vld [vmem:[%s5 + $0x5c] sm:$0xf]
    %v6689 = vld [vmem:[%s5 + $0x60] sm:$0xf]
    %v6690 = vld [vmem:[%s5 + $0x64] sm:$0xf]
    %v6691 = vld [vmem:[%s5 + $0x68] sm:$0xf]
    %v6692 = vld [vmem:[%s5 + $0x6c] sm:$0xf]
    %v6693 = vld [vmem:[%s5 + $0x70] sm:$0xf]
    %v6694 = vld [vmem:[%s5 + $0x74] sm:$0xf]
    %v6695 = vld [vmem:[%s5 + $0x78] sm:$0xf]
    %v6696 = vld [vmem:[%s5 + $0x7c] sm:$0xf]
    %v6697 = vld [vmem:[%s5 + $0x80] sm:$0xf]
    %v6698 = vld [vmem:[%s5 + $0x84] sm:$0xf]
    %v6699 = vld [vmem:[%s5 + $0x88] sm:$0xf]
    %v6700 = vld [vmem:[%s5 + $0x8c] sm:$0xf]
    %v6701 = vld [vmem:[%s5 + $0x90] sm:$0xf]
    %v6702 = vld [vmem:[%s5 + $0x94] sm:$0xf]
    %v6703 = vld [vmem:[%s5 + $0x98] sm:$0xf]
    %v6704 = vld [vmem:[%s5 + $0x9c] sm:$0xf]
    %v6705 = vld [vmem:[%s5 + $0xa0] sm:$0xf]
    %v6706 = vld [vmem:[%s5 + $0xa4] sm:$0xf]
    %v6707 = vld [vmem:[%s5 + $0xa8] sm:$0xf]
    %v6708 = vld [vmem:[%s5 + $0xac] sm:$0xf]
    %v6709 = vld [vmem:[%s5 + $0xb0] sm:$0xf]
    %v6710 = vld [vmem:[%s5 + $0xb4] sm:$0xf]
    %v6711 = vld [vmem:[%s5 + $0xb8] sm:$0xf]
    %v6712 = vld [vmem:[%s5 + $0xbc] sm:$0xf]
    %v6713 = vld [vmem:[%s5 + $0xc0] sm:$0xf]
    %v6714 = vld [vmem:[%s5 + $0xc4] sm:$0xf]
    %v6715 = vld [vmem:[%s5 + $0xc8] sm:$0xf]
    %v6716 = vld [vmem:[%s5 + $0xcc] sm:$0xf]
    %v6717 = vld [vmem:[%s5 + $0xd0] sm:$0xf]
    %v6718 = vld [vmem:[%s5 + $0xd4] sm:$0xf]
    %v6719 = vld [vmem:[%s5 + $0xd8] sm:$0xf]
    %v6720 = vld [vmem:[%s5 + $0xdc] sm:$0xf]
    %v6721 = vld [vmem:[%s5 + $0xe0] sm:$0xf]
    %v6722 = vld [vmem:[%s5 + $0xe4] sm:$0xf]
    %v6723 = vld [vmem:[%s5 + $0xe8] sm:$0xf]
    %v6724 = vld [vmem:[%s5 + $0xec] sm:$0xf]
    %v6725 = vld [vmem:[%s5 + $0xf0] sm:$0xf]
    %v6726 = vld [vmem:[%s5 + $0xf4] sm:$0xf]
    %v6727 = vld [vmem:[%s5 + $0xf8] sm:$0xf]
    %v6728 = vld [vmem:[%s5 + $0xfc] sm:$0xf]
    %v6729 = vld [vmem:[%s5 + $0x100] sm:$0xf]
    %v6730 = vld [vmem:[%s5 + $0x104] sm:$0xf]
    %v6731 = vld [vmem:[%s5 + $0x108] sm:$0xf]
    %v6732 = vld [vmem:[%s5 + $0x10c] sm:$0xf]
    %v6733 = vld [vmem:[%s5 + $0x110] sm:$0xf]
    %v6734 = vld [vmem:[%s5 + $0x114] sm:$0xf]
    %v6735 = vld [vmem:[%s5 + $0x118] sm:$0xf]
    %v6736 = vld [vmem:[%s5 + $0x11c] sm:$0xf]
    %v6737 = vld [vmem:[%s5 + $0x120] sm:$0xf]
    %v6738 = vld [vmem:[%s5 + $0x124] sm:$0xf]
    %v6739 = vld [vmem:[%s5 + $0x128] sm:$0xf]
    %v6740 = vld [vmem:[%s5 + $0x12c] sm:$0xf]
    %v6741 = vld [vmem:[%s5 + $0x130] sm:$0xf]
    %v6742 = vld [vmem:[%s5 + $0x134] sm:$0xf]
    %v6743 = vld [vmem:[%s5 + $0x138] sm:$0xf]
    %v6744 = vld [vmem:[%s5 + $0x13c] sm:$0xf]
    %v6745 = vld [vmem:[%s5 + $0x140] sm:$0xf]
    %v6746 = vld [vmem:[%s5 + $0x144] sm:$0xf]
    %v6747 = vld [vmem:[%s5 + $0x148] sm:$0xf]
    %v6748 = vld [vmem:[%s5 + $0x14c] sm:$0xf]
    %v6749 = vld [vmem:[%s5 + $0x150] sm:$0xf]
    %v6750 = vld [vmem:[%s5 + $0x154] sm:$0xf]
    %v6751 = vld [vmem:[%s5 + $0x158] sm:$0xf]
    %v6752 = vld [vmem:[%s5 + $0x15c] sm:$0xf]
    %v6753 = vld [vmem:[%s5 + $0x160] sm:$0xf]
    %v6754 = vld [vmem:[%s5 + $0x164] sm:$0xf]
    %v6755 = vld [vmem:[%s5 + $0x168] sm:$0xf]
    %v6756 = vld [vmem:[%s5 + $0x16c] sm:$0xf]
    %v6757 = vld [vmem:[%s5 + $0x170] sm:$0xf]
    %v6758 = vld [vmem:[%s5 + $0x174] sm:$0xf]
    %v6759 = vld [vmem:[%s5 + $0x178] sm:$0xf]
    %v6760 = vld [vmem:[%s5 + $0x17c] sm:$0xf]
    %v6761 = vld [vmem:[%s5 + $0x180] sm:$0xf]
    %v6762 = vld [vmem:[%s5 + $0x184] sm:$0xf]
    %v6763 = vld [vmem:[%s5 + $0x188] sm:$0xf]
    %v6764 = vld [vmem:[%s5 + $0x18c] sm:$0xf]
    %v6765 = vld [vmem:[%s5 + $0x190] sm:$0xf]
    %v6766 = vld [vmem:[%s5 + $0x194] sm:$0xf]
    %v6767 = vld [vmem:[%s5 + $0x198] sm:$0xf]
    %v6768 = vld [vmem:[%s5 + $0x19c] sm:$0xf]
    %v6769 = vld [vmem:[%s5 + $0x1a0] sm:$0xf]
    %v6770 = vld [vmem:[%s5 + $0x1a4] sm:$0xf]
    %v6771 = vld [vmem:[%s5 + $0x1a8] sm:$0xf]
    %v6772 = vld [vmem:[%s5 + $0x1ac] sm:$0xf]
    %v6773 = vld [vmem:[%s5 + $0x1b0] sm:$0xf]
    %v6774 = vld [vmem:[%s5 + $0x1b4] sm:$0xf]
    %v6775 = vld [vmem:[%s5 + $0x1b8] sm:$0xf]
    %v6776 = vld [vmem:[%s5 + $0x1bc] sm:$0xf]
    %v6777 = vld [vmem:[%s5 + $0x1c0] sm:$0xf]
    %v6778 = vld [vmem:[%s5 + $0x1c4] sm:$0xf]
    %v6779 = vld [vmem:[%s5 + $0x1c8] sm:$0xf]
    %v6780 = vld [vmem:[%s5 + $0x1cc] sm:$0xf]
    %v6781 = vld [vmem:[%s5 + $0x1d0] sm:$0xf]
    %v6782 = vld [vmem:[%s5 + $0x1d4] sm:$0xf]
    %v6783 = vld [vmem:[%s5 + $0x1d8] sm:$0xf]
    %v6784 = vld [vmem:[%s5 + $0x1dc] sm:$0xf]
    %v6785 = vld [vmem:[%s5 + $0x1e0] sm:$0xf]
    %v6786 = vld [vmem:[%s5 + $0x1e4] sm:$0xf]
    %v6787 = vld [vmem:[%s5 + $0x1e8] sm:$0xf]
    %v6788 = vld [vmem:[%s5 + $0x1ec] sm:$0xf]
    %v6789 = vld [vmem:[%s5 + $0x1f0] sm:$0xf]
    %v6790 = vld [vmem:[%s5 + $0x1f4] sm:$0xf]
    %v6791 = vld [vmem:[%s5 + $0x1f8] sm:$0xf]
    %v6792 = vld [vmem:[%s5 + $0x1fc] sm:$0xf]
    %v6793 = vld [vmem:[%s5 + $0x200] sm:$0xf]
    %v6794 = vld [vmem:[%s5 + $0x204] sm:$0xf]
    %v6795 = vld [vmem:[%s5 + $0x208] sm:$0xf]
    %v6796 = vld [vmem:[%s5 + $0x20c] sm:$0xf]
    %v6797 = vld [vmem:[%s5 + $0x210] sm:$0xf]
    %v6798 = vld [vmem:[%s5 + $0x214] sm:$0xf]
    %v6799 = vld [vmem:[%s5 + $0x218] sm:$0xf]
    %v6800 = vld [vmem:[%s5 + $0x21c] sm:$0xf]
    %v6801 = vld [vmem:[%s5 + $0x220] sm:$0xf]
    %v6802 = vld [vmem:[%s5 + $0x224] sm:$0xf]
    %v6803 = vld [vmem:[%s5 + $0x228] sm:$0xf]
    %v6804 = vld [vmem:[%s5 + $0x22c] sm:$0xf]
    %v6805 = vld [vmem:[%s5 + $0x230] sm:$0xf]
    %v6806 = vld [vmem:[%s5 + $0x234] sm:$0xf]
    %v6807 = vld [vmem:[%s5 + $0x238] sm:$0xf]
    %v6808 = vld [vmem:[%s5 + $0x23c] sm:$0xf]
    %v6809 = vld [vmem:[%s5 + $0x240] sm:$0xf]
    %v6810 = vld [vmem:[%s5 + $0x244] sm:$0xf]
    %v6811 = vld [vmem:[%s5 + $0x248] sm:$0xf]
    %v6812 = vld [vmem:[%s5 + $0x24c] sm:$0xf]
    %v6813 = vld [vmem:[%s5 + $0x250] sm:$0xf]
    %v6814 = vld [vmem:[%s5 + $0x254] sm:$0xf]
    %v6815 = vld [vmem:[%s5 + $0x258] sm:$0xf]
    %v6816 = vld [vmem:[%s5 + $0x25c] sm:$0xf]
    %v6817 = vld [vmem:[%s5 + $0x260] sm:$0xf]
    %v6818 = vld [vmem:[%s5 + $0x264] sm:$0xf]
    %v6819 = vld [vmem:[%s5 + $0x268] sm:$0xf]
    %v6820 = vld [vmem:[%s5 + $0x26c] sm:$0xf]
    %v6821 = vld [vmem:[%s5 + $0x270] sm:$0xf]
    %v6822 = vld [vmem:[%s5 + $0x274] sm:$0xf]
    %v6823 = vld [vmem:[%s5 + $0x278] sm:$0xf]
    %v6824 = vld [vmem:[%s5 + $0x27c] sm:$0xf]
    %v6825 = vld [vmem:[%s5 + $0x280] sm:$0xf]
    %v6826 = vld [vmem:[%s5 + $0x284] sm:$0xf]
    %v6827 = vld [vmem:[%s5 + $0x288] sm:$0xf]
    %v6828 = vld [vmem:[%s5 + $0x28c] sm:$0xf]
    %v6829 = vld [vmem:[%s5 + $0x290] sm:$0xf]
    %v6830 = vld [vmem:[%s5 + $0x294] sm:$0xf]
    %v6831 = vld [vmem:[%s5 + $0x298] sm:$0xf]
    %v6832 = vld [vmem:[%s5 + $0x29c] sm:$0xf]
    %v6833 = vld [vmem:[%s5 + $0x2a0] sm:$0xf]
    %v6834 = vld [vmem:[%s5 + $0x2a4] sm:$0xf]
    %v6835 = vld [vmem:[%s5 + $0x2a8] sm:$0xf]
    %v6836 = vld [vmem:[%s5 + $0x2ac] sm:$0xf]
    %v6837 = vld [vmem:[%s5 + $0x2b0] sm:$0xf]
    %v6838 = vld [vmem:[%s5 + $0x2b4] sm:$0xf]
    %v6839 = vld [vmem:[%s5 + $0x2b8] sm:$0xf]
    %v6840 = vld [vmem:[%s5 + $0x2bc] sm:$0xf]
    %v6841 = vld [vmem:[%s5 + $0x2c0] sm:$0xf]
    %v6842 = vld [vmem:[%s5 + $0x2c4] sm:$0xf]
    %v6843 = vld [vmem:[%s5 + $0x2c8] sm:$0xf]
    %v6844 = vld [vmem:[%s5 + $0x2cc] sm:$0xf]
    %v6845 = vld [vmem:[%s5 + $0x2d0] sm:$0xf]
    %v6846 = vld [vmem:[%s5 + $0x2d4] sm:$0xf]
    %v6847 = vld [vmem:[%s5 + $0x2d8] sm:$0xf]
    %v6848 = vld [vmem:[%s5 + $0x2dc] sm:$0xf]
    %v6849 = vld [vmem:[%s5 + $0x2e0] sm:$0xf]
    %v6850 = vld [vmem:[%s5 + $0x2e4] sm:$0xf]
    %v6851 = vld [vmem:[%s5 + $0x2e8] sm:$0xf]
    %v6852 = vld [vmem:[%s5 + $0x2ec] sm:$0xf]
    %v6853 = vld [vmem:[%s5 + $0x2f0] sm:$0xf]
    %v6854 = vld [vmem:[%s5 + $0x2f4] sm:$0xf]
    %v6855 = vld [vmem:[%s5 + $0x2f8] sm:$0xf]
    %v6856 = vld [vmem:[%s5 + $0x2fc] sm:$0xf]
    %v6857 = vld [vmem:[%s5 + $0x300] sm:$0xf]
    %v6858 = vld [vmem:[%s5 + $0x304] sm:$0xf]
    %v6859 = vld [vmem:[%s5 + $0x308] sm:$0xf]
    %v6860 = vld [vmem:[%s5 + $0x30c] sm:$0xf]
    %v6861 = vld [vmem:[%s5 + $0x310] sm:$0xf]
    %v6862 = vld [vmem:[%s5 + $0x314] sm:$0xf]
    %v6863 = vld [vmem:[%s5 + $0x318] sm:$0xf]
    %v6864 = vld [vmem:[%s5 + $0x31c] sm:$0xf]
    %v6865 = vld [vmem:[%s5 + $0x320] sm:$0xf]
    %v6866 = vld [vmem:[%s5 + $0x324] sm:$0xf]
    %v6867 = vld [vmem:[%s5 + $0x328] sm:$0xf]
    %v6868 = vld [vmem:[%s5 + $0x32c] sm:$0xf]
    %v6869 = vld [vmem:[%s5 + $0x330] sm:$0xf]
    %v6870 = vld [vmem:[%s5 + $0x334] sm:$0xf]
    %v6871 = vld [vmem:[%s5 + $0x338] sm:$0xf]
    %v6872 = vld [vmem:[%s5 + $0x33c] sm:$0xf]
    %v6873 = vld [vmem:[%s5 + $0x340] sm:$0xf]
    %v6874 = vld [vmem:[%s5 + $0x344] sm:$0xf]
    %v6875 = vld [vmem:[%s5 + $0x348] sm:$0xf]
    %v6876 = vld [vmem:[%s5 + $0x34c] sm:$0xf]
    %v6877 = vld [vmem:[%s5 + $0x350] sm:$0xf]
    %v6878 = vld [vmem:[%s5 + $0x354] sm:$0xf]
    %v6879 = vld [vmem:[%s5 + $0x358] sm:$0xf]
    %v6880 = vld [vmem:[%s5 + $0x35c] sm:$0xf]
    %v6881 = vld [vmem:[%s5 + $0x360] sm:$0xf]
    %v6882 = vld [vmem:[%s5 + $0x364] sm:$0xf]
    %v6883 = vld [vmem:[%s5 + $0x368] sm:$0xf]
    %v6884 = vld [vmem:[%s5 + $0x36c] sm:$0xf]
    %v6885 = vld [vmem:[%s5 + $0x370] sm:$0xf]
    %v6886 = vld [vmem:[%s5 + $0x374] sm:$0xf]
    %v6887 = vld [vmem:[%s5 + $0x378] sm:$0xf]
    %v6888 = vld [vmem:[%s5 + $0x37c] sm:$0xf]
    %v6889 = vld [vmem:[%s5 + $0x380] sm:$0xf]
    %v6890 = vld [vmem:[%s5 + $0x384] sm:$0xf]
    %v6891 = vld [vmem:[%s5 + $0x388] sm:$0xf]
    %v6892 = vld [vmem:[%s5 + $0x38c] sm:$0xf]
    %v6893 = vld [vmem:[%s5 + $0x390] sm:$0xf]
    %v6894 = vld [vmem:[%s5 + $0x394] sm:$0xf]
    %v6895 = vld [vmem:[%s5 + $0x398] sm:$0xf]
    %v6896 = vld [vmem:[%s5 + $0x39c] sm:$0xf]
    %v6897 = vld [vmem:[%s5 + $0x3a0] sm:$0xf]
    %v6898 = vld [vmem:[%s5 + $0x3a4] sm:$0xf]
    %v6899 = vld [vmem:[%s5 + $0x3a8] sm:$0xf]
    %v6900 = vld [vmem:[%s5 + $0x3ac] sm:$0xf]
    %v6901 = vld [vmem:[%s5 + $0x3b0] sm:$0xf]
    %v6902 = vld [vmem:[%s5 + $0x3b4] sm:$0xf]
    %v6903 = vld [vmem:[%s5 + $0x3b8] sm:$0xf]
    %v6904 = vld [vmem:[%s5 + $0x3bc] sm:$0xf]
    %v6905 = vld [vmem:[%s5 + $0x3c0] sm:$0xf]
    %v6906 = vld [vmem:[%s5 + $0x3c4] sm:$0xf]
    %v6907 = vld [vmem:[%s5 + $0x3c8] sm:$0xf]
    %v6908 = vld [vmem:[%s5 + $0x3cc] sm:$0xf]
    %v6909 = vld [vmem:[%s5 + $0x3d0] sm:$0xf]
    %v6910 = vld [vmem:[%s5 + $0x3d4] sm:$0xf]
    %v6911 = vld [vmem:[%s5 + $0x3d8] sm:$0xf]
    %v6912 = vld [vmem:[%s5 + $0x3dc] sm:$0xf]
    %v6913 = vld [vmem:[%s5 + $0x3e0] sm:$0xf]
    %v6914 = vld [vmem:[%s5 + $0x3e4] sm:$0xf]
    %v6915 = vld [vmem:[%s5 + $0x3e8] sm:$0xf]
    %v6916 = vld [vmem:[%s5 + $0x3ec] sm:$0xf]
    %v6917 = vld [vmem:[%s5 + $0x3f0] sm:$0xf]
    %v6918 = vld [vmem:[%s5 + $0x3f4] sm:$0xf]
    %v6919 = vld [vmem:[%s5 + $0x3f8] sm:$0xf]
    %v6920 = vld [vmem:[%s5 + $0x3fc] sm:$0xf]
    %v6921 = vld [vmem:[%s5 + $0x400] sm:$0xf]
    %v6922 = vld [vmem:[%s5 + $0x404] sm:$0xf]
    %v6923 = vld [vmem:[%s5 + $0x408] sm:$0xf]
    %v6924 = vld [vmem:[%s5 + $0x40c] sm:$0xf]
    %v6925 = vld [vmem:[%s5 + $0x410] sm:$0xf]
    %v6926 = vld [vmem:[%s5 + $0x414] sm:$0xf]
    %v6927 = vld [vmem:[%s5 + $0x418] sm:$0xf]
    %v6928 = vld [vmem:[%s5 + $0x41c] sm:$0xf]
    %v6929 = vld [vmem:[%s5 + $0x420] sm:$0xf]
    %v6930 = vld [vmem:[%s5 + $0x424] sm:$0xf]
    %v6931 = vld [vmem:[%s5 + $0x428] sm:$0xf]
    %v6932 = vld [vmem:[%s5 + $0x42c] sm:$0xf]
    %v6933 = vld [vmem:[%s5 + $0x430] sm:$0xf]
    %v6934 = vld [vmem:[%s5 + $0x434] sm:$0xf]
    %v6935 = vld [vmem:[%s5 + $0x438] sm:$0xf]
    %v6936 = vld [vmem:[%s5 + $0x43c] sm:$0xf]
    %v6937 = vld [vmem:[%s5 + $0x440] sm:$0xf]
    %v6938 = vld [vmem:[%s5 + $0x444] sm:$0xf]
    %v6939 = vld [vmem:[%s5 + $0x448] sm:$0xf]
    %v6940 = vld [vmem:[%s5 + $0x44c] sm:$0xf]
    %v6941 = vld [vmem:[%s5 + $0x450] sm:$0xf]
    %v6942 = vld [vmem:[%s5 + $0x454] sm:$0xf]
    %v6943 = vld [vmem:[%s5 + $0x458] sm:$0xf]
    %v6944 = vld [vmem:[%s5 + $0x45c] sm:$0xf]
    %v6945 = vld [vmem:[%s5 + $0x460] sm:$0xf]
    %v6946 = vld [vmem:[%s5 + $0x464] sm:$0xf]
    %v6947 = vld [vmem:[%s5 + $0x468] sm:$0xf]
    %v6948 = vld [vmem:[%s5 + $0x46c] sm:$0xf]
    %v6949 = vld [vmem:[%s5 + $0x470] sm:$0xf]
    %v6950 = vld [vmem:[%s5 + $0x474] sm:$0xf]
    %v6951 = vld [vmem:[%s5 + $0x478] sm:$0xf]
    %v6952 = vld [vmem:[%s5 + $0x47c] sm:$0xf]
    %v6953 = vld [vmem:[%s5 + $0x480] sm:$0xf]
    %v6954 = vld [vmem:[%s5 + $0x484] sm:$0xf]
    %v6955 = vld [vmem:[%s5 + $0x488] sm:$0xf]
    %v6956 = vld [vmem:[%s5 + $0x48c] sm:$0xf]
    %v6957 = vld [vmem:[%s5 + $0x490] sm:$0xf]
    %v6958 = vld [vmem:[%s5 + $0x494] sm:$0xf]
    %v6959 = vld [vmem:[%s5 + $0x498] sm:$0xf]
    %v6960 = vld [vmem:[%s5 + $0x49c] sm:$0xf]
    %v6961 = vld [vmem:[%s5 + $0x4a0] sm:$0xf]
    %v6962 = vld [vmem:[%s5 + $0x4a4] sm:$0xf]
    %v6963 = vld [vmem:[%s5 + $0x4a8] sm:$0xf]
    %v6964 = vld [vmem:[%s5 + $0x4ac] sm:$0xf]
    %v6965 = vld [vmem:[%s5 + $0x4b0] sm:$0xf]
    %v6966 = vld [vmem:[%s5 + $0x4b4] sm:$0xf]
    %v6967 = vld [vmem:[%s5 + $0x4b8] sm:$0xf]
    %v6968 = vld [vmem:[%s5 + $0x4bc] sm:$0xf]
    %v6969 = vld [vmem:[%s5 + $0x4c0] sm:$0xf]
    %v6970 = vld [vmem:[%s5 + $0x4c4] sm:$0xf]
    %v6971 = vld [vmem:[%s5 + $0x4c8] sm:$0xf]
    %v6972 = vld [vmem:[%s5 + $0x4cc] sm:$0xf]
    %v6973 = vld [vmem:[%s5 + $0x4d0] sm:$0xf]
    %v6974 = vld [vmem:[%s5 + $0x4d4] sm:$0xf]
    %v6975 = vld [vmem:[%s5 + $0x4d8] sm:$0xf]
    %v6976 = vld [vmem:[%s5 + $0x4dc] sm:$0xf]
    %v6977 = vld [vmem:[%s5 + $0x4e0] sm:$0xf]
    %v6978 = vld [vmem:[%s5 + $0x4e4] sm:$0xf]
    %v6979 = vld [vmem:[%s5 + $0x4e8] sm:$0xf]
    %v6980 = vld [vmem:[%s5 + $0x4ec] sm:$0xf]
    %v6981 = vld [vmem:[%s5 + $0x4f0] sm:$0xf]
    %v6982 = vld [vmem:[%s5 + $0x4f4] sm:$0xf]
    %v6983 = vld [vmem:[%s5 + $0x4f8] sm:$0xf]
    %v6984 = vld [vmem:[%s5 + $0x4fc] sm:$0xf]
    %v6985 = vld [vmem:[%s5 + $0x500] sm:$0xf]
    %v6986 = vld [vmem:[%s5 + $0x504] sm:$0xf]
    %v6987 = vld [vmem:[%s5 + $0x508] sm:$0xf]
    %v6988 = vld [vmem:[%s5 + $0x50c] sm:$0xf]
    %v6989 = vld [vmem:[%s5 + $0x510] sm:$0xf]
    %v6990 = vld [vmem:[%s5 + $0x514] sm:$0xf]
    %v6991 = vld [vmem:[%s5 + $0x518] sm:$0xf]
    %v6992 = vld [vmem:[%s5 + $0x51c] sm:$0xf]
    %v6993 = vld [vmem:[%s5 + $0x520] sm:$0xf]
    %v6994 = vld [vmem:[%s5 + $0x524] sm:$0xf]
    %v6995 = vld [vmem:[%s5 + $0x528] sm:$0xf]
    %v6996 = vld [vmem:[%s5 + $0x52c] sm:$0xf]
    %v6997 = vld [vmem:[%s5 + $0x530] sm:$0xf]
    %v6998 = vld [vmem:[%s5 + $0x534] sm:$0xf]
    %v6999 = vld [vmem:[%s5 + $0x538] sm:$0xf]
    %v7000 = vld [vmem:[%s5 + $0x53c] sm:$0xf]
    %v7001 = vld [vmem:[%s5 + $0x540] sm:$0xf]
    %v7002 = vld [vmem:[%s5 + $0x544] sm:$0xf]
    %v7003 = vld [vmem:[%s5 + $0x548] sm:$0xf]
    %v7004 = vld [vmem:[%s5 + $0x54c] sm:$0xf]
    %v7005 = vld [vmem:[%s5 + $0x550] sm:$0xf]
    %v7006 = vld [vmem:[%s5 + $0x554] sm:$0xf]
    %v7007 = vld [vmem:[%s5 + $0x558] sm:$0xf]
    %v7008 = vld [vmem:[%s5 + $0x55c] sm:$0xf]
    %v7009 = vld [vmem:[%s5 + $0x560] sm:$0xf]
    %v7010 = vld [vmem:[%s5 + $0x564] sm:$0xf]
    %v7011 = vld [vmem:[%s5 + $0x568] sm:$0xf]
    %v7012 = vld [vmem:[%s5 + $0x56c] sm:$0xf]
    %v7013 = vld [vmem:[%s5 + $0x570] sm:$0xf]
    %v7014 = vld [vmem:[%s5 + $0x574] sm:$0xf]
    %v7015 = vld [vmem:[%s5 + $0x578] sm:$0xf]
    %v7016 = vld [vmem:[%s5 + $0x57c] sm:$0xf]
    %v7017 = vld [vmem:[%s5 + $0x580] sm:$0xf]
    %v7018 = vld [vmem:[%s5 + $0x584] sm:$0xf]
    %v7019 = vld [vmem:[%s5 + $0x588] sm:$0xf]
    %v7020 = vld [vmem:[%s5 + $0x58c] sm:$0xf]
    %v7021 = vld [vmem:[%s5 + $0x590] sm:$0xf]
    %v7022 = vld [vmem:[%s5 + $0x594] sm:$0xf]
    %v7023 = vld [vmem:[%s5 + $0x598] sm:$0xf]
    %v7024 = vld [vmem:[%s5 + $0x59c] sm:$0xf]
    %v7025 = vld [vmem:[%s5 + $0x5a0] sm:$0xf]
    %v7026 = vld [vmem:[%s5 + $0x5a4] sm:$0xf]
    %v7027 = vld [vmem:[%s5 + $0x5a8] sm:$0xf]
    %v7028 = vld [vmem:[%s5 + $0x5ac] sm:$0xf]
    %v7029 = vld [vmem:[%s5 + $0x5b0] sm:$0xf]
    %v7030 = vld [vmem:[%s5 + $0x5b4] sm:$0xf]
    %v7031 = vld [vmem:[%s5 + $0x5b8] sm:$0xf]
    %v7032 = vld [vmem:[%s5 + $0x5bc] sm:$0xf]
    %v7033 = vld [vmem:[%s5 + $0x5c0] sm:$0xf]
    %v7034 = vld [vmem:[%s5 + $0x5c4] sm:$0xf]
    %v7035 = vld [vmem:[%s5 + $0x5c8] sm:$0xf]
    %v7036 = vld [vmem:[%s5 + $0x5cc] sm:$0xf]
    %v7037 = vld [vmem:[%s5 + $0x5d0] sm:$0xf]
    %v7038 = vld [vmem:[%s5 + $0x5d4] sm:$0xf]
    %v7039 = vld [vmem:[%s5 + $0x5d8] sm:$0xf]
    %v7040 = vld [vmem:[%s5 + $0x5dc] sm:$0xf]
    %v7041 = vld [vmem:[%s5 + $0x5e0] sm:$0xf]
    %v7042 = vld [vmem:[%s5 + $0x5e4] sm:$0xf]
    %v7043 = vld [vmem:[%s5 + $0x5e8] sm:$0xf]
    %v7044 = vld [vmem:[%s5 + $0x5ec] sm:$0xf]
    %v7045 = vld [vmem:[%s5 + $0x5f0] sm:$0xf]
    %v7046 = vld [vmem:[%s5 + $0x5f4] sm:$0xf]
    %v7047 = vld [vmem:[%s5 + $0x5f8] sm:$0xf]
    %v7048 = vld [vmem:[%s5 + $0x5fc] sm:$0xf]
    %v7049 = vld [vmem:[%s5 + $0x600] sm:$0xf]
    %v7050 = vld [vmem:[%s5 + $0x604] sm:$0xf]
    %v7051 = vld [vmem:[%s5 + $0x608] sm:$0xf]
    %v7052 = vld [vmem:[%s5 + $0x60c] sm:$0xf]
    %v7053 = vld [vmem:[%s5 + $0x610] sm:$0xf]
    %v7054 = vld [vmem:[%s5 + $0x614] sm:$0xf]
    %v7055 = vld [vmem:[%s5 + $0x618] sm:$0xf]
    %v7056 = vld [vmem:[%s5 + $0x61c] sm:$0xf]
    %v7057 = vld [vmem:[%s5 + $0x620] sm:$0xf]
    %v7058 = vld [vmem:[%s5 + $0x624] sm:$0xf]
    %v7059 = vld [vmem:[%s5 + $0x628] sm:$0xf]
    %v7060 = vld [vmem:[%s5 + $0x62c] sm:$0xf]
    %v7061 = vld [vmem:[%s5 + $0x630] sm:$0xf]
    %v7062 = vld [vmem:[%s5 + $0x634] sm:$0xf]
    %v7063 = vld [vmem:[%s5 + $0x638] sm:$0xf]
    %v7064 = vld [vmem:[%s5 + $0x63c] sm:$0xf]
    %v7065 = vld [vmem:[%s5 + $0x640] sm:$0xf]
    %v7066 = vld [vmem:[%s5 + $0x644] sm:$0xf]
    %v7067 = vld [vmem:[%s5 + $0x648] sm:$0xf]
    %v7068 = vld [vmem:[%s5 + $0x64c] sm:$0xf]
    %v7069 = vld [vmem:[%s5 + $0x650] sm:$0xf]
    %v7070 = vld [vmem:[%s5 + $0x654] sm:$0xf]
    %v7071 = vld [vmem:[%s5 + $0x658] sm:$0xf]
    %v7072 = vld [vmem:[%s5 + $0x65c] sm:$0xf]
    %v7073 = vld [vmem:[%s5 + $0x660] sm:$0xf]
    %v7074 = vld [vmem:[%s5 + $0x664] sm:$0xf]
    %v7075 = vld [vmem:[%s5 + $0x668] sm:$0xf]
    %v7076 = vld [vmem:[%s5 + $0x66c] sm:$0xf]
    %v7077 = vld [vmem:[%s5 + $0x670] sm:$0xf]
    %v7078 = vld [vmem:[%s5 + $0x674] sm:$0xf]
    %v7079 = vld [vmem:[%s5 + $0x678] sm:$0xf]
    %v7080 = vld [vmem:[%s5 + $0x67c] sm:$0xf]
    %v7081 = vld [vmem:[%s5 + $0x680] sm:$0xf]
    %v7082 = vld [vmem:[%s5 + $0x684] sm:$0xf]
    %v7083 = vld [vmem:[%s5 + $0x688] sm:$0xf]
    %v7084 = vld [vmem:[%s5 + $0x68c] sm:$0xf]
    %v7085 = vld [vmem:[%s5 + $0x690] sm:$0xf]
    %v7086 = vld [vmem:[%s5 + $0x694] sm:$0xf]
    %v7087 = vld [vmem:[%s5 + $0x698] sm:$0xf]
    %v7088 = vld [vmem:[%s5 + $0x69c] sm:$0xf]
    %v7089 = vld [vmem:[%s5 + $0x6a0] sm:$0xf]
    %v7090 = vld [vmem:[%s5 + $0x6a4] sm:$0xf]
    %v7091 = vld [vmem:[%s5 + $0x6a8] sm:$0xf]
    %v7092 = vld [vmem:[%s5 + $0x6ac] sm:$0xf]
    %v7093 = vld [vmem:[%s5 + $0x6b0] sm:$0xf]
    %v7094 = vld [vmem:[%s5 + $0x6b4] sm:$0xf]
    %v7095 = vld [vmem:[%s5 + $0x6b8] sm:$0xf]
    %v7096 = vld [vmem:[%s5 + $0x6bc] sm:$0xf]
    %v7097 = vld [vmem:[%s5 + $0x6c0] sm:$0xf]
    %v7098 = vld [vmem:[%s5 + $0x6c4] sm:$0xf]
    %v7099 = vld [vmem:[%s5 + $0x6c8] sm:$0xf]
    %v7100 = vld [vmem:[%s5 + $0x6cc] sm:$0xf]
    %v7101 = vld [vmem:[%s5 + $0x6d0] sm:$0xf]
    %v7102 = vld [vmem:[%s5 + $0x6d4] sm:$0xf]
    %v7103 = vld [vmem:[%s5 + $0x6d8] sm:$0xf]
    %v7104 = vld [vmem:[%s5 + $0x6dc] sm:$0xf]
    %v7105 = vld [vmem:[%s5 + $0x6e0] sm:$0xf]
    %v7106 = vld [vmem:[%s5 + $0x6e4] sm:$0xf]
    %v7107 = vld [vmem:[%s5 + $0x6e8] sm:$0xf]
    %v7108 = vld [vmem:[%s5 + $0x6ec] sm:$0xf]
    %v7109 = vld [vmem:[%s5 + $0x6f0] sm:$0xf]
    %v7110 = vld [vmem:[%s5 + $0x6f4] sm:$0xf]
    %v7111 = vld [vmem:[%s5 + $0x6f8] sm:$0xf]
    %v7112 = vld [vmem:[%s5 + $0x6fc] sm:$0xf]
    %v7113 = vld [vmem:[%s5 + $0x700] sm:$0xf]
    %v7114 = vld [vmem:[%s5 + $0x704] sm:$0xf]
    %v7115 = vld [vmem:[%s5 + $0x708] sm:$0xf]
    %v7116 = vld [vmem:[%s5 + $0x70c] sm:$0xf]
    %v7117 = vld [vmem:[%s5 + $0x710] sm:$0xf]
    %v7118 = vld [vmem:[%s5 + $0x714] sm:$0xf]
    %v7119 = vld [vmem:[%s5 + $0x718] sm:$0xf]
    %v7120 = vld [vmem:[%s5 + $0x71c] sm:$0xf]
    %v7121 = vld [vmem:[%s5 + $0x720] sm:$0xf]
    %v7122 = vld [vmem:[%s5 + $0x724] sm:$0xf]
    %v7123 = vld [vmem:[%s5 + $0x728] sm:$0xf]
    %v7124 = vld [vmem:[%s5 + $0x72c] sm:$0xf]
    %v7125 = vld [vmem:[%s5 + $0x730] sm:$0xf]
    %v7126 = vld [vmem:[%s5 + $0x734] sm:$0xf]
    %v7127 = vld [vmem:[%s5 + $0x738] sm:$0xf]
    %v7128 = vld [vmem:[%s5 + $0x73c] sm:$0xf]
    %v7129 = vld [vmem:[%s5 + $0x740] sm:$0xf]
    %v7130 = vld [vmem:[%s5 + $0x744] sm:$0xf]
    %v7131 = vld [vmem:[%s5 + $0x748] sm:$0xf]
    %v7132 = vld [vmem:[%s5 + $0x74c] sm:$0xf]
    %v7133 = vld [vmem:[%s5 + $0x750] sm:$0xf]
    %v7134 = vld [vmem:[%s5 + $0x754] sm:$0xf]
    %v7135 = vld [vmem:[%s5 + $0x758] sm:$0xf]
    %v7136 = vld [vmem:[%s5 + $0x75c] sm:$0xf]
    %v7137 = vld [vmem:[%s5 + $0x760] sm:$0xf]
    %v7138 = vld [vmem:[%s5 + $0x764] sm:$0xf]
    %v7139 = vld [vmem:[%s5 + $0x768] sm:$0xf]
    %v7140 = vld [vmem:[%s5 + $0x76c] sm:$0xf]
    %v7141 = vld [vmem:[%s5 + $0x770] sm:$0xf]
    %v7142 = vld [vmem:[%s5 + $0x774] sm:$0xf]
    %v7143 = vld [vmem:[%s5 + $0x778] sm:$0xf]
    %v7144 = vld [vmem:[%s5 + $0x77c] sm:$0xf]
    %v7145 = vld [vmem:[%s5 + $0x780] sm:$0xf]
    %v7146 = vld [vmem:[%s5 + $0x784] sm:$0xf]
    %v7147 = vld [vmem:[%s5 + $0x788] sm:$0xf]
    %v7148 = vld [vmem:[%s5 + $0x78c] sm:$0xf]
    %v7149 = vld [vmem:[%s5 + $0x790] sm:$0xf]
    %v7150 = vld [vmem:[%s5 + $0x794] sm:$0xf]
    %v7151 = vld [vmem:[%s5 + $0x798] sm:$0xf]
    %v7152 = vld [vmem:[%s5 + $0x79c] sm:$0xf]
    %v7153 = vld [vmem:[%s5 + $0x7a0] sm:$0xf]
    %v7154 = vld [vmem:[%s5 + $0x7a4] sm:$0xf]
    %v7155 = vld [vmem:[%s5 + $0x7a8] sm:$0xf]
    %v7156 = vld [vmem:[%s5 + $0x7ac] sm:$0xf]
    %v7157 = vld [vmem:[%s5 + $0x7b0] sm:$0xf]
    %v7158 = vld [vmem:[%s5 + $0x7b4] sm:$0xf]
    %v7159 = vld [vmem:[%s5 + $0x7b8] sm:$0xf]
    %v7160 = vld [vmem:[%s5 + $0x7bc] sm:$0xf]
    %v7161 = vld [vmem:[%s5 + $0x7c0] sm:$0xf]
    %v7162 = vld [vmem:[%s5 + $0x7c4] sm:$0xf]
    %v7163 = vld [vmem:[%s5 + $0x7c8] sm:$0xf]
    %v7164 = vld [vmem:[%s5 + $0x7cc] sm:$0xf]
    %v7165 = vld [vmem:[%s5 + $0x7d0] sm:$0xf]
    %v7166 = vld [vmem:[%s5 + $0x7d4] sm:$0xf]
    %v7167 = vld [vmem:[%s5 + $0x7d8] sm:$0xf]
    %v7168 = vld [vmem:[%s5 + $0x7dc] sm:$0xf]
    %v7169 = vld [vmem:[%s5 + $0x7e0] sm:$0xf]
    %v7170 = vld [vmem:[%s5 + $0x7e4] sm:$0xf]
    %v7171 = vld [vmem:[%s5 + $0x7e8] sm:$0xf]
    %v7172 = vld [vmem:[%s5 + $0x7ec] sm:$0xf]
    %v7173 = vld [vmem:[%s5 + $0x7f0] sm:$0xf]
    %v7174 = vld [vmem:[%s5 + $0x7f4] sm:$0xf]
    %v7175 = vld [vmem:[%s5 + $0x7f8] sm:$0xf]
    %v7176 = vld [vmem:[%s5 + $0x7fc] sm:$0xf]
    %v7177 = vld [vmem:[%s5 + $0x800] sm:$0xf]
    %v7178 = vld [vmem:[%s5 + $0x804] sm:$0xf]
    %v7179 = vld [vmem:[%s5 + $0x808] sm:$0xf]
    %v7180 = vld [vmem:[%s5 + $0x80c] sm:$0xf]
    %v7181 = vld [vmem:[%s5 + $0x810] sm:$0xf]
    %v7182 = vld [vmem:[%s5 + $0x814] sm:$0xf]
    %v7183 = vld [vmem:[%s5 + $0x818] sm:$0xf]
    %v7184 = vld [vmem:[%s5 + $0x81c] sm:$0xf]
    %v7185 = vld [vmem:[%s5 + $0x820] sm:$0xf]
    %v7186 = vld [vmem:[%s5 + $0x824] sm:$0xf]
    %v7187 = vld [vmem:[%s5 + $0x828] sm:$0xf]
    %v7188 = vld [vmem:[%s5 + $0x82c] sm:$0xf]
    %v7189 = vld [vmem:[%s5 + $0x830] sm:$0xf]
    %v7190 = vld [vmem:[%s5 + $0x834] sm:$0xf]
    %v7191 = vld [vmem:[%s5 + $0x838] sm:$0xf]
    %v7192 = vld [vmem:[%s5 + $0x83c] sm:$0xf]
    %v7193 = vld [vmem:[%s5 + $0x840] sm:$0xf]
    %v7194 = vld [vmem:[%s5 + $0x844] sm:$0xf]
    %v7195 = vld [vmem:[%s5 + $0x848] sm:$0xf]
    %v7196 = vld [vmem:[%s5 + $0x84c] sm:$0xf]
    %v7197 = vld [vmem:[%s5 + $0x850] sm:$0xf]
    %v7198 = vld [vmem:[%s5 + $0x854] sm:$0xf]
    %v7199 = vld [vmem:[%s5 + $0x858] sm:$0xf]
    %v7200 = vld [vmem:[%s5 + $0x85c] sm:$0xf]
    %v7201 = vld [vmem:[%s5 + $0x860] sm:$0xf]
    %v7202 = vld [vmem:[%s5 + $0x864] sm:$0xf]
    %v7203 = vld [vmem:[%s5 + $0x868] sm:$0xf]
    %v7204 = vld [vmem:[%s5 + $0x86c] sm:$0xf]
    %v7205 = vld [vmem:[%s5 + $0x870] sm:$0xf]
    %v7206 = vld [vmem:[%s5 + $0x874] sm:$0xf]
    %v7207 = vld [vmem:[%s5 + $0x878] sm:$0xf]
    %v7208 = vld [vmem:[%s5 + $0x87c] sm:$0xf]
    %v7209 = vld [vmem:[%s5 + $0x880] sm:$0xf]
    %v7210 = vld [vmem:[%s5 + $0x884] sm:$0xf]
    %v7211 = vld [vmem:[%s5 + $0x888] sm:$0xf]
    %v7212 = vld [vmem:[%s5 + $0x88c] sm:$0xf]
    %v7213 = vld [vmem:[%s5 + $0x890] sm:$0xf]
    %v7214 = vld [vmem:[%s5 + $0x894] sm:$0xf]
    %v7215 = vld [vmem:[%s5 + $0x898] sm:$0xf]
    %v7216 = vld [vmem:[%s5 + $0x89c] sm:$0xf]
    %v7217 = vld [vmem:[%s5 + $0x8a0] sm:$0xf]
    %v7218 = vld [vmem:[%s5 + $0x8a4] sm:$0xf]
    %v7219 = vld [vmem:[%s5 + $0x8a8] sm:$0xf]
    %v7220 = vld [vmem:[%s5 + $0x8ac] sm:$0xf]
    %v7221 = vld [vmem:[%s5 + $0x8b0] sm:$0xf]
    %v7222 = vld [vmem:[%s5 + $0x8b4] sm:$0xf]
    %v7223 = vld [vmem:[%s5 + $0x8b8] sm:$0xf]
    %v7224 = vld [vmem:[%s5 + $0x8bc] sm:$0xf]
    %v7225 = vld [vmem:[%s5 + $0x8c0] sm:$0xf]
    %v7226 = vld [vmem:[%s5 + $0x8c4] sm:$0xf]
    %v7227 = vld [vmem:[%s5 + $0x8c8] sm:$0xf]
    %v7228 = vld [vmem:[%s5 + $0x8cc] sm:$0xf]
    %v7229 = vld [vmem:[%s5 + $0x8d0] sm:$0xf]
    %v7230 = vld [vmem:[%s5 + $0x8d4] sm:$0xf]
    %v7231 = vld [vmem:[%s5 + $0x8d8] sm:$0xf]
    %v7232 = vld [vmem:[%s5 + $0x8dc] sm:$0xf]
    %v7233 = vld [vmem:[%s5 + $0x8e0] sm:$0xf]
    %v7234 = vld [vmem:[%s5 + $0x8e4] sm:$0xf]
    %v7235 = vld [vmem:[%s5 + $0x8e8] sm:$0xf]
    %v7236 = vld [vmem:[%s5 + $0x8ec] sm:$0xf]
    %v7237 = vld [vmem:[%s5 + $0x8f0] sm:$0xf]
    %v7238 = vld [vmem:[%s5 + $0x8f4] sm:$0xf]
    %v7239 = vld [vmem:[%s5 + $0x8f8] sm:$0xf]
    %v7240 = vld [vmem:[%s5 + $0x8fc] sm:$0xf]
    %v7241 = vld [vmem:[%s5 + $0x900] sm:$0xf]
    %v7242 = vld [vmem:[%s5 + $0x904] sm:$0xf]
    %v7243 = vld [vmem:[%s5 + $0x908] sm:$0xf]
    %v7244 = vld [vmem:[%s5 + $0x90c] sm:$0xf]
    %v7245 = vld [vmem:[%s5 + $0x910] sm:$0xf]
    %v7246 = vld [vmem:[%s5 + $0x914] sm:$0xf]
    %v7247 = vld [vmem:[%s5 + $0x918] sm:$0xf]
    %v7248 = vld [vmem:[%s5 + $0x91c] sm:$0xf]
    %v7249 = vld [vmem:[%s5 + $0x920] sm:$0xf]
    %v7250 = vld [vmem:[%s5 + $0x924] sm:$0xf]
    %v7251 = vld [vmem:[%s5 + $0x928] sm:$0xf]
    %v7252 = vld [vmem:[%s5 + $0x92c] sm:$0xf]
    %v7253 = vld [vmem:[%s5 + $0x930] sm:$0xf]
    %v7254 = vld [vmem:[%s5 + $0x934] sm:$0xf]
    %v7255 = vld [vmem:[%s5 + $0x938] sm:$0xf]
    %v7256 = vld [vmem:[%s5 + $0x93c] sm:$0xf]
    %v7257 = vld [vmem:[%s5 + $0x940] sm:$0xf]
    %v7258 = vld [vmem:[%s5 + $0x944] sm:$0xf]
    %v7259 = vld [vmem:[%s5 + $0x948] sm:$0xf]
    %v7260 = vld [vmem:[%s5 + $0x94c] sm:$0xf]
    %v7261 = vld [vmem:[%s5 + $0x950] sm:$0xf]
    %v7262 = vld [vmem:[%s5 + $0x954] sm:$0xf]
    %v7263 = vld [vmem:[%s5 + $0x958] sm:$0xf]
    %v7264 = vld [vmem:[%s5 + $0x95c] sm:$0xf]
    %v7265 = vld [vmem:[%s5 + $0x960] sm:$0xf]
    %v7266 = vld [vmem:[%s5 + $0x964] sm:$0xf]
    %v7267 = vld [vmem:[%s5 + $0x968] sm:$0xf]
    %v7268 = vld [vmem:[%s5 + $0x96c] sm:$0xf]
    %v7269 = vld [vmem:[%s5 + $0x970] sm:$0xf]
    %v7270 = vld [vmem:[%s5 + $0x974] sm:$0xf]
    %v7271 = vld [vmem:[%s5 + $0x978] sm:$0xf]
    %v7272 = vld [vmem:[%s5 + $0x97c] sm:$0xf]
    %v7273 = vld [vmem:[%s5 + $0x980] sm:$0xf]
    %v7274 = vld [vmem:[%s5 + $0x984] sm:$0xf]
    %v7275 = vld [vmem:[%s5 + $0x988] sm:$0xf]
    %v7276 = vld [vmem:[%s5 + $0x98c] sm:$0xf]
    %v7277 = vld [vmem:[%s5 + $0x990] sm:$0xf]
    %v7278 = vld [vmem:[%s5 + $0x994] sm:$0xf]
    %v7279 = vld [vmem:[%s5 + $0x998] sm:$0xf]
    %v7280 = vld [vmem:[%s5 + $0x99c] sm:$0xf]
    %v7281 = vld [vmem:[%s5 + $0x9a0] sm:$0xf]
    %v7282 = vld [vmem:[%s5 + $0x9a4] sm:$0xf]
    %v7283 = vld [vmem:[%s5 + $0x9a8] sm:$0xf]
    %v7284 = vld [vmem:[%s5 + $0x9ac] sm:$0xf]
    %v7285 = vld [vmem:[%s5 + $0x9b0] sm:$0xf]
    %v7286 = vld [vmem:[%s5 + $0x9b4] sm:$0xf]
    %v7287 = vld [vmem:[%s5 + $0x9b8] sm:$0xf]
    %v7288 = vld [vmem:[%s5 + $0x9bc] sm:$0xf]
    %v7289 = vld [vmem:[%s5 + $0x9c0] sm:$0xf]
    %v7290 = vld [vmem:[%s5 + $0x9c4] sm:$0xf]
    %v7291 = vld [vmem:[%s5 + $0x9c8] sm:$0xf]
    %v7292 = vld [vmem:[%s5 + $0x9cc] sm:$0xf]
    %v7293 = vld [vmem:[%s5 + $0x9d0] sm:$0xf]
    %v7294 = vld [vmem:[%s5 + $0x9d4] sm:$0xf]
    %v7295 = vld [vmem:[%s5 + $0x9d8] sm:$0xf]
    %v7296 = vld [vmem:[%s5 + $0x9dc] sm:$0xf]
    %v7297 = vld [vmem:[%s5 + $0x9e0] sm:$0xf]
    %v7298 = vld [vmem:[%s5 + $0x9e4] sm:$0xf]
    %v7299 = vld [vmem:[%s5 + $0x9e8] sm:$0xf]
    %v7300 = vld [vmem:[%s5 + $0x9ec] sm:$0xf]
    %v7301 = vld [vmem:[%s5 + $0x9f0] sm:$0xf]
    %v7302 = vld [vmem:[%s5 + $0x9f4] sm:$0xf]
    %v7303 = vld [vmem:[%s5 + $0x9f8] sm:$0xf]
    %v7304 = vld [vmem:[%s5 + $0x9fc] sm:$0xf]
    %v7305 = vld [vmem:[%s5 + $0xa00] sm:$0xf]
    %v7306 = vld [vmem:[%s5 + $0xa04] sm:$0xf]
    %v7307 = vld [vmem:[%s5 + $0xa08] sm:$0xf]
    %v7308 = vld [vmem:[%s5 + $0xa0c] sm:$0xf]
    %v7309 = vld [vmem:[%s5 + $0xa10] sm:$0xf]
    %v7310 = vld [vmem:[%s5 + $0xa14] sm:$0xf]
    %v7311 = vld [vmem:[%s5 + $0xa18] sm:$0xf]
    %v7312 = vld [vmem:[%s5 + $0xa1c] sm:$0xf]
    %v7313 = vld [vmem:[%s5 + $0xa20] sm:$0xf]
    %v7314 = vld [vmem:[%s5 + $0xa24] sm:$0xf]
    %v7315 = vld [vmem:[%s5 + $0xa28] sm:$0xf]
    %v7316 = vld [vmem:[%s5 + $0xa2c] sm:$0xf]
    %v7317 = vld [vmem:[%s5 + $0xa30] sm:$0xf]
    %v7318 = vld [vmem:[%s5 + $0xa34] sm:$0xf]
    %v7319 = vld [vmem:[%s5 + $0xa38] sm:$0xf]
    %v7320 = vld [vmem:[%s5 + $0xa3c] sm:$0xf]
    %v7321 = vld [vmem:[%s5 + $0xa40] sm:$0xf]
    %v7322 = vld [vmem:[%s5 + $0xa44] sm:$0xf]
    %v7323 = vld [vmem:[%s5 + $0xa48] sm:$0xf]
    %v7324 = vld [vmem:[%s5 + $0xa4c] sm:$0xf]
    %v7325 = vld [vmem:[%s5 + $0xa50] sm:$0xf]
    %v7326 = vld [vmem:[%s5 + $0xa54] sm:$0xf]
    %v7327 = vld [vmem:[%s5 + $0xa58] sm:$0xf]
    %v7328 = vld [vmem:[%s5 + $0xa5c] sm:$0xf]
    %v7329 = vld [vmem:[%s5 + $0xa60] sm:$0xf]
    %v7330 = vld [vmem:[%s5 + $0xa64] sm:$0xf]
    %v7331 = vld [vmem:[%s5 + $0xa68] sm:$0xf]
    %v7332 = vld [vmem:[%s5 + $0xa6c] sm:$0xf]
    %v7333 = vld [vmem:[%s5 + $0xa70] sm:$0xf]
    %v7334 = vld [vmem:[%s5 + $0xa74] sm:$0xf]
    %v7335 = vld [vmem:[%s5 + $0xa78] sm:$0xf]
    %v7336 = vld [vmem:[%s5 + $0xa7c] sm:$0xf]
    %v7337 = vld [vmem:[%s5 + $0xa80] sm:$0xf]
    %v7338 = vld [vmem:[%s5 + $0xa84] sm:$0xf]
    %v7339 = vld [vmem:[%s5 + $0xa88] sm:$0xf]
    %v7340 = vld [vmem:[%s5 + $0xa8c] sm:$0xf]
    %v7341 = vld [vmem:[%s5 + $0xa90] sm:$0xf]
    %v7342 = vld [vmem:[%s5 + $0xa94] sm:$0xf]
    %v7343 = vld [vmem:[%s5 + $0xa98] sm:$0xf]
    %v7344 = vld [vmem:[%s5 + $0xa9c] sm:$0xf]
    %v7345 = vld [vmem:[%s5 + $0xaa0] sm:$0xf]
    %v7346 = vld [vmem:[%s5 + $0xaa4] sm:$0xf]
    %v7347 = vld [vmem:[%s5 + $0xaa8] sm:$0xf]
    %v7348 = vld [vmem:[%s5 + $0xaac] sm:$0xf]
    %v7349 = vld [vmem:[%s5 + $0xab0] sm:$0xf]
    %v7350 = vld [vmem:[%s5 + $0xab4] sm:$0xf]
    %v7351 = vld [vmem:[%s5 + $0xab8] sm:$0xf]
    %v7352 = vld [vmem:[%s5 + $0xabc] sm:$0xf]
    %v7353 = vld [vmem:[%s5 + $0xac0] sm:$0xf]
    %v7354 = vld [vmem:[%s5 + $0xac4] sm:$0xf]
    %v7355 = vld [vmem:[%s5 + $0xac8] sm:$0xf]
    %v7356 = vld [vmem:[%s5 + $0xacc] sm:$0xf]
    %v7357 = vld [vmem:[%s5 + $0xad0] sm:$0xf]
    %v7358 = vld [vmem:[%s5 + $0xad4] sm:$0xf]
    %v7359 = vld [vmem:[%s5 + $0xad8] sm:$0xf]
    %v7360 = vld [vmem:[%s5 + $0xadc] sm:$0xf]
    %v7361 = vld [vmem:[%s5 + $0xae0] sm:$0xf]
    %v7362 = vld [vmem:[%s5 + $0xae4] sm:$0xf]
    %v7363 = vld [vmem:[%s5 + $0xae8] sm:$0xf]
    %v7364 = vld [vmem:[%s5 + $0xaec] sm:$0xf]
    %v7365 = vld [vmem:[%s5 + $0xaf0] sm:$0xf]
    %v7366 = vld [vmem:[%s5 + $0xaf4] sm:$0xf]
    %v7367 = vld [vmem:[%s5 + $0xaf8] sm:$0xf]
    %v7368 = vld [vmem:[%s5 + $0xafc] sm:$0xf]
    %v7369 = vld [vmem:[%s5 + $0xb00] sm:$0xf]
    %v7370 = vld [vmem:[%s5 + $0xb04] sm:$0xf]
    %v7371 = vld [vmem:[%s5 + $0xb08] sm:$0xf]
    %v7372 = vld [vmem:[%s5 + $0xb0c] sm:$0xf]
    %v7373 = vld [vmem:[%s5 + $0xb10] sm:$0xf]
    %v7374 = vld [vmem:[%s5 + $0xb14] sm:$0xf]
    %v7375 = vld [vmem:[%s5 + $0xb18] sm:$0xf]
    %v7376 = vld [vmem:[%s5 + $0xb1c] sm:$0xf]
    %v7377 = vld [vmem:[%s5 + $0xb20] sm:$0xf]
    %v7378 = vld [vmem:[%s5 + $0xb24] sm:$0xf]
    %v7379 = vld [vmem:[%s5 + $0xb28] sm:$0xf]
    %v7380 = vld [vmem:[%s5 + $0xb2c] sm:$0xf]
    %v7381 = vld [vmem:[%s5 + $0xb30] sm:$0xf]
    %v7382 = vld [vmem:[%s5 + $0xb34] sm:$0xf]
    %v7383 = vld [vmem:[%s5 + $0xb38] sm:$0xf]
    %v7384 = vld [vmem:[%s5 + $0xb3c] sm:$0xf]
    %v7385 = vld [vmem:[%s5 + $0xb40] sm:$0xf]
    %v7386 = vld [vmem:[%s5 + $0xb44] sm:$0xf]
    %v7387 = vld [vmem:[%s5 + $0xb48] sm:$0xf]
    %v7388 = vld [vmem:[%s5 + $0xb4c] sm:$0xf]
    %v7389 = vld [vmem:[%s5 + $0xb50] sm:$0xf]
    %v7390 = vld [vmem:[%s5 + $0xb54] sm:$0xf]
    %v7391 = vld [vmem:[%s5 + $0xb58] sm:$0xf]
    %v7392 = vld [vmem:[%s5 + $0xb5c] sm:$0xf]
    %v7393 = vld [vmem:[%s5 + $0xb60] sm:$0xf]
    %v7394 = vld [vmem:[%s5 + $0xb64] sm:$0xf]
    %v7395 = vld [vmem:[%s5 + $0xb68] sm:$0xf]
    %v7396 = vld [vmem:[%s5 + $0xb6c] sm:$0xf]
    %v7397 = vld [vmem:[%s5 + $0xb70] sm:$0xf]
    %v7398 = vld [vmem:[%s5 + $0xb74] sm:$0xf]
    %v7399 = vld [vmem:[%s5 + $0xb78] sm:$0xf]
    %v7400 = vld [vmem:[%s5 + $0xb7c] sm:$0xf]
    %v7401 = vld [vmem:[%s5 + $0xb80] sm:$0xf]
    %v7402 = vld [vmem:[%s5 + $0xb84] sm:$0xf]
    %v7403 = vld [vmem:[%s5 + $0xb88] sm:$0xf]
    %v7404 = vld [vmem:[%s5 + $0xb8c] sm:$0xf]
    %v7405 = vld [vmem:[%s5 + $0xb90] sm:$0xf]
    %v7406 = vld [vmem:[%s5 + $0xb94] sm:$0xf]
    %v7407 = vld [vmem:[%s5 + $0xb98] sm:$0xf]
    %v7408 = vld [vmem:[%s5 + $0xb9c] sm:$0xf]
    %v7409 = vld [vmem:[%s5 + $0xba0] sm:$0xf]
    %v7410 = vld [vmem:[%s5 + $0xba4] sm:$0xf]
    %v7411 = vld [vmem:[%s5 + $0xba8] sm:$0xf]
    %v7412 = vld [vmem:[%s5 + $0xbac] sm:$0xf]
    %v7413 = vld [vmem:[%s5 + $0xbb0] sm:$0xf]
    %v7414 = vld [vmem:[%s5 + $0xbb4] sm:$0xf]
    %v7415 = vld [vmem:[%s5 + $0xbb8] sm:$0xf]
    %v7416 = vld [vmem:[%s5 + $0xbbc] sm:$0xf]
    %v7417 = vld [vmem:[%s5 + $0xbc0] sm:$0xf]
    %v7418 = vld [vmem:[%s5 + $0xbc4] sm:$0xf]
    %v7419 = vld [vmem:[%s5 + $0xbc8] sm:$0xf]
    %v7420 = vld [vmem:[%s5 + $0xbcc] sm:$0xf]
    %v7421 = vld [vmem:[%s5 + $0xbd0] sm:$0xf]
    %v7422 = vld [vmem:[%s5 + $0xbd4] sm:$0xf]
    %v7423 = vld [vmem:[%s5 + $0xbd8] sm:$0xf]
    %v7424 = vld [vmem:[%s5 + $0xbdc] sm:$0xf]
    %v7425 = vld [vmem:[%s5 + $0xbe0] sm:$0xf]
    %v7426 = vld [vmem:[%s5 + $0xbe4] sm:$0xf]
    %v7427 = vld [vmem:[%s5 + $0xbe8] sm:$0xf]
    %v7428 = vld [vmem:[%s5 + $0xbec] sm:$0xf]
    %v7429 = vld [vmem:[%s5 + $0xbf0] sm:$0xf]
    %v7430 = vld [vmem:[%s5 + $0xbf4] sm:$0xf]
    %v7431 = vld [vmem:[%s5 + $0xbf8] sm:$0xf]
    %v7432 = vld [vmem:[%s5 + $0xbfc] sm:$0xf]
    %v7433 = vld [vmem:[%s5 + $0xc00] sm:$0xf]
    %v7434 = vld [vmem:[%s5 + $0xc04] sm:$0xf]
    %v7435 = vld [vmem:[%s5 + $0xc08] sm:$0xf]
    %v7436 = vld [vmem:[%s5 + $0xc0c] sm:$0xf]
    %v7437 = vld [vmem:[%s5 + $0xc10] sm:$0xf]
    %v7438 = vld [vmem:[%s5 + $0xc14] sm:$0xf]
    %v7439 = vld [vmem:[%s5 + $0xc18] sm:$0xf]
    %v7440 = vld [vmem:[%s5 + $0xc1c] sm:$0xf]
    %v7441 = vld [vmem:[%s5 + $0xc20] sm:$0xf]
    %v7442 = vld [vmem:[%s5 + $0xc24] sm:$0xf]
    %v7443 = vld [vmem:[%s5 + $0xc28] sm:$0xf]
    %v7444 = vld [vmem:[%s5 + $0xc2c] sm:$0xf]
    %v7445 = vld [vmem:[%s5 + $0xc30] sm:$0xf]
    %v7446 = vld [vmem:[%s5 + $0xc34] sm:$0xf]
    %v7447 = vld [vmem:[%s5 + $0xc38] sm:$0xf]
    %v7448 = vld [vmem:[%s5 + $0xc3c] sm:$0xf]
    %v7449 = vld [vmem:[%s5 + $0xc40] sm:$0xf]
    %v7450 = vld [vmem:[%s5 + $0xc44] sm:$0xf]
    %v7451 = vld [vmem:[%s5 + $0xc48] sm:$0xf]
    %v7452 = vld [vmem:[%s5 + $0xc4c] sm:$0xf]
    %v7453 = vld [vmem:[%s5 + $0xc50] sm:$0xf]
    %v7454 = vld [vmem:[%s5 + $0xc54] sm:$0xf]
    %v7455 = vld [vmem:[%s5 + $0xc58] sm:$0xf]
    %v7456 = vld [vmem:[%s5 + $0xc5c] sm:$0xf]
    %v7457 = vld [vmem:[%s5 + $0xc60] sm:$0xf]
    %v7458 = vld [vmem:[%s5 + $0xc64] sm:$0xf]
    %v7459 = vld [vmem:[%s5 + $0xc68] sm:$0xf]
    %v7460 = vld [vmem:[%s5 + $0xc6c] sm:$0xf]
    %v7461 = vld [vmem:[%s5 + $0xc70] sm:$0xf]
    %v7462 = vld [vmem:[%s5 + $0xc74] sm:$0xf]
    %v7463 = vld [vmem:[%s5 + $0xc78] sm:$0xf]
    %v7464 = vld [vmem:[%s5 + $0xc7c] sm:$0xf]
    %v7465 = vld [vmem:[%s5 + $0xc80] sm:$0xf]
    %v7466 = vld [vmem:[%s5 + $0xc84] sm:$0xf]
    %v7467 = vld [vmem:[%s5 + $0xc88] sm:$0xf]
    %v7468 = vld [vmem:[%s5 + $0xc8c] sm:$0xf]
    %v7469 = vld [vmem:[%s5 + $0xc90] sm:$0xf]
    %v7470 = vld [vmem:[%s5 + $0xc94] sm:$0xf]
    %v7471 = vld [vmem:[%s5 + $0xc98] sm:$0xf]
    %v7472 = vld [vmem:[%s5 + $0xc9c] sm:$0xf]
    %v7473 = vld [vmem:[%s5 + $0xca0] sm:$0xf]
    %v7474 = vld [vmem:[%s5 + $0xca4] sm:$0xf]
    %v7475 = vld [vmem:[%s5 + $0xca8] sm:$0xf]
    %v7476 = vld [vmem:[%s5 + $0xcac] sm:$0xf]
    %v7477 = vld [vmem:[%s5 + $0xcb0] sm:$0xf]
    %v7478 = vld [vmem:[%s5 + $0xcb4] sm:$0xf]
    %v7479 = vld [vmem:[%s5 + $0xcb8] sm:$0xf]
    %v7480 = vld [vmem:[%s5 + $0xcbc] sm:$0xf]
    %v7481 = vld [vmem:[%s5 + $0xcc0] sm:$0xf]
    %v7482 = vld [vmem:[%s5 + $0xcc4] sm:$0xf]
    %v7483 = vld [vmem:[%s5 + $0xcc8] sm:$0xf]
    %v7484 = vld [vmem:[%s5 + $0xccc] sm:$0xf]
    %v7485 = vld [vmem:[%s5 + $0xcd0] sm:$0xf]
    %v7486 = vld [vmem:[%s5 + $0xcd4] sm:$0xf]
    %v7487 = vld [vmem:[%s5 + $0xcd8] sm:$0xf]
    %v7488 = vld [vmem:[%s5 + $0xcdc] sm:$0xf]
    %v7489 = vld [vmem:[%s5 + $0xce0] sm:$0xf]
    %v7490 = vld [vmem:[%s5 + $0xce4] sm:$0xf]
    %v7491 = vld [vmem:[%s5 + $0xce8] sm:$0xf]
    %v7492 = vld [vmem:[%s5 + $0xcec] sm:$0xf]
    %v7493 = vld [vmem:[%s5 + $0xcf0] sm:$0xf]
    %v7494 = vld [vmem:[%s5 + $0xcf4] sm:$0xf]
    %v7495 = vld [vmem:[%s5 + $0xcf8] sm:$0xf]
    %v7496 = vld [vmem:[%s5 + $0xcfc] sm:$0xf]
    %v7497 = vld [vmem:[%s5 + $0xd00] sm:$0xf]
    %v7498 = vld [vmem:[%s5 + $0xd04] sm:$0xf]
    %v7499 = vld [vmem:[%s5 + $0xd08] sm:$0xf]
    %v7500 = vld [vmem:[%s5 + $0xd0c] sm:$0xf]
    %v7501 = vld [vmem:[%s5 + $0xd10] sm:$0xf]
    %v7502 = vld [vmem:[%s5 + $0xd14] sm:$0xf]
    %v7503 = vld [vmem:[%s5 + $0xd18] sm:$0xf]
    %v7504 = vld [vmem:[%s5 + $0xd1c] sm:$0xf]
    %v7505 = vld [vmem:[%s5 + $0xd20] sm:$0xf]
    %v7506 = vld [vmem:[%s5 + $0xd24] sm:$0xf]
    %v7507 = vld [vmem:[%s5 + $0xd28] sm:$0xf]
    %v7508 = vld [vmem:[%s5 + $0xd2c] sm:$0xf]
    %v7509 = vld [vmem:[%s5 + $0xd30] sm:$0xf]
    %v7510 = vld [vmem:[%s5 + $0xd34] sm:$0xf]
    %v7511 = vld [vmem:[%s5 + $0xd38] sm:$0xf]
    %v7512 = vld [vmem:[%s5 + $0xd3c] sm:$0xf]
    %v7513 = vld [vmem:[%s5 + $0xd40] sm:$0xf]
    %v7514 = vld [vmem:[%s5 + $0xd44] sm:$0xf]
    %v7515 = vld [vmem:[%s5 + $0xd48] sm:$0xf]
    %v7516 = vld [vmem:[%s5 + $0xd4c] sm:$0xf]
    %v7517 = vld [vmem:[%s5 + $0xd50] sm:$0xf]
    %v7518 = vld [vmem:[%s5 + $0xd54] sm:$0xf]
    %v7519 = vld [vmem:[%s5 + $0xd58] sm:$0xf]
    %v7520 = vld [vmem:[%s5 + $0xd5c] sm:$0xf]
    %v7521 = vld [vmem:[%s5 + $0xd60] sm:$0xf]
    %v7522 = vld [vmem:[%s5 + $0xd64] sm:$0xf]
    %v7523 = vld [vmem:[%s5 + $0xd68] sm:$0xf]
    %v7524 = vld [vmem:[%s5 + $0xd6c] sm:$0xf]
    %v7525 = vld [vmem:[%s5 + $0xd70] sm:$0xf]
    %v7526 = vld [vmem:[%s5 + $0xd74] sm:$0xf]
    %v7527 = vld [vmem:[%s5 + $0xd78] sm:$0xf]
    %v7528 = vld [vmem:[%s5 + $0xd7c] sm:$0xf]
    %v7529 = vld [vmem:[%s5 + $0xd80] sm:$0xf]
    %v7530 = vld [vmem:[%s5 + $0xd84] sm:$0xf]
    %v7531 = vld [vmem:[%s5 + $0xd88] sm:$0xf]
    %v7532 = vld [vmem:[%s5 + $0xd8c] sm:$0xf]
    %v7533 = vld [vmem:[%s5 + $0xd90] sm:$0xf]
    %v7534 = vld [vmem:[%s5 + $0xd94] sm:$0xf]
    %v7535 = vld [vmem:[%s5 + $0xd98] sm:$0xf]
    %v7536 = vld [vmem:[%s5 + $0xd9c] sm:$0xf]
    %v7537 = vld [vmem:[%s5 + $0xda0] sm:$0xf]
    %v7538 = vld [vmem:[%s5 + $0xda4] sm:$0xf]
    %v7539 = vld [vmem:[%s5 + $0xda8] sm:$0xf]
    %v7540 = vld [vmem:[%s5 + $0xdac] sm:$0xf]
    %v7541 = vld [vmem:[%s5 + $0xdb0] sm:$0xf]
    %v7542 = vld [vmem:[%s5 + $0xdb4] sm:$0xf]
    %v7543 = vld [vmem:[%s5 + $0xdb8] sm:$0xf]
    %v7544 = vld [vmem:[%s5 + $0xdbc] sm:$0xf]
    %v7545 = vld [vmem:[%s5 + $0xdc0] sm:$0xf]
    %v7546 = vld [vmem:[%s5 + $0xdc4] sm:$0xf]
    %v7547 = vld [vmem:[%s5 + $0xdc8] sm:$0xf]
    %v7548 = vld [vmem:[%s5 + $0xdcc] sm:$0xf]
    %v7549 = vld [vmem:[%s5 + $0xdd0] sm:$0xf]
    %v7550 = vld [vmem:[%s5 + $0xdd4] sm:$0xf]
    %v7551 = vld [vmem:[%s5 + $0xdd8] sm:$0xf]
    %v7552 = vld [vmem:[%s5 + $0xddc] sm:$0xf]
    %v7553 = vld [vmem:[%s5 + $0xde0] sm:$0xf]
    %v7554 = vld [vmem:[%s5 + $0xde4] sm:$0xf]
    %v7555 = vld [vmem:[%s5 + $0xde8] sm:$0xf]
    %v7556 = vld [vmem:[%s5 + $0xdec] sm:$0xf]
    %v7557 = vld [vmem:[%s5 + $0xdf0] sm:$0xf]
    %v7558 = vld [vmem:[%s5 + $0xdf4] sm:$0xf]
    %v7559 = vld [vmem:[%s5 + $0xdf8] sm:$0xf]
    %v7560 = vld [vmem:[%s5 + $0xdfc] sm:$0xf]
    %v7561 = vld [vmem:[%s5 + $0xe00] sm:$0xf]
    %v7562 = vld [vmem:[%s5 + $0xe04] sm:$0xf]
    %v7563 = vld [vmem:[%s5 + $0xe08] sm:$0xf]
    %v7564 = vld [vmem:[%s5 + $0xe0c] sm:$0xf]
    %v7565 = vld [vmem:[%s5 + $0xe10] sm:$0xf]
    %v7566 = vld [vmem:[%s5 + $0xe14] sm:$0xf]
    %v7567 = vld [vmem:[%s5 + $0xe18] sm:$0xf]
    %v7568 = vld [vmem:[%s5 + $0xe1c] sm:$0xf]
    %v7569 = vld [vmem:[%s5 + $0xe20] sm:$0xf]
    %v7570 = vld [vmem:[%s5 + $0xe24] sm:$0xf]
    %v7571 = vld [vmem:[%s5 + $0xe28] sm:$0xf]
    %v7572 = vld [vmem:[%s5 + $0xe2c] sm:$0xf]
    %v7573 = vld [vmem:[%s5 + $0xe30] sm:$0xf]
    %v7574 = vld [vmem:[%s5 + $0xe34] sm:$0xf]
    %v7575 = vld [vmem:[%s5 + $0xe38] sm:$0xf]
    %v7576 = vld [vmem:[%s5 + $0xe3c] sm:$0xf]
    %v7577 = vld [vmem:[%s5 + $0xe40] sm:$0xf]
    %v7578 = vld [vmem:[%s5 + $0xe44] sm:$0xf]
    %v7579 = vld [vmem:[%s5 + $0xe48] sm:$0xf]
    %v7580 = vld [vmem:[%s5 + $0xe4c] sm:$0xf]
    %v7581 = vld [vmem:[%s5 + $0xe50] sm:$0xf]
    %v7582 = vld [vmem:[%s5 + $0xe54] sm:$0xf]
    %v7583 = vld [vmem:[%s5 + $0xe58] sm:$0xf]
    %v7584 = vld [vmem:[%s5 + $0xe5c] sm:$0xf]
    %v7585 = vld [vmem:[%s5 + $0xe60] sm:$0xf]
    %v7586 = vld [vmem:[%s5 + $0xe64] sm:$0xf]
    %v7587 = vld [vmem:[%s5 + $0xe68] sm:$0xf]
    %v7588 = vld [vmem:[%s5 + $0xe6c] sm:$0xf]
    %v7589 = vld [vmem:[%s5 + $0xe70] sm:$0xf]
    %v7590 = vld [vmem:[%s5 + $0xe74] sm:$0xf]
    %v7591 = vld [vmem:[%s5 + $0xe78] sm:$0xf]
    %v7592 = vld [vmem:[%s5 + $0xe7c] sm:$0xf]
    %v7593 = vld [vmem:[%s5 + $0xe80] sm:$0xf]
    %v7594 = vld [vmem:[%s5 + $0xe84] sm:$0xf]
    %v7595 = vld [vmem:[%s5 + $0xe88] sm:$0xf]
    %v7596 = vld [vmem:[%s5 + $0xe8c] sm:$0xf]
    %v7597 = vld [vmem:[%s5 + $0xe90] sm:$0xf]
    %v7598 = vld [vmem:[%s5 + $0xe94] sm:$0xf]
    %v7599 = vld [vmem:[%s5 + $0xe98] sm:$0xf]
    %v7600 = vld [vmem:[%s5 + $0xe9c] sm:$0xf]
    %v7601 = vld [vmem:[%s5 + $0xea0] sm:$0xf]
    %v7602 = vld [vmem:[%s5 + $0xea4] sm:$0xf]
    %v7603 = vld [vmem:[%s5 + $0xea8] sm:$0xf]
    %v7604 = vld [vmem:[%s5 + $0xeac] sm:$0xf]
    %v7605 = vld [vmem:[%s5 + $0xeb0] sm:$0xf]
    %v7606 = vld [vmem:[%s5 + $0xeb4] sm:$0xf]
    %v7607 = vld [vmem:[%s5 + $0xeb8] sm:$0xf]
    %v7608 = vld [vmem:[%s5 + $0xebc] sm:$0xf]
    %v7609 = vld [vmem:[%s5 + $0xec0] sm:$0xf]
    %v7610 = vld [vmem:[%s5 + $0xec4] sm:$0xf]
    %v7611 = vld [vmem:[%s5 + $0xec8] sm:$0xf]
    %v7612 = vld [vmem:[%s5 + $0xecc] sm:$0xf]
    %v7613 = vld [vmem:[%s5 + $0xed0] sm:$0xf]
    %v7614 = vld [vmem:[%s5 + $0xed4] sm:$0xf]
    %v7615 = vld [vmem:[%s5 + $0xed8] sm:$0xf]
    %v7616 = vld [vmem:[%s5 + $0xedc] sm:$0xf]
    %v7617 = vld [vmem:[%s5 + $0xee0] sm:$0xf]
    %v7618 = vld [vmem:[%s5 + $0xee4] sm:$0xf]
    %v7619 = vld [vmem:[%s5 + $0xee8] sm:$0xf]
    %v7620 = vld [vmem:[%s5 + $0xeec] sm:$0xf]
    %v7621 = vld [vmem:[%s5 + $0xef0] sm:$0xf]
    %v7622 = vld [vmem:[%s5 + $0xef4] sm:$0xf]
    %v7623 = vld [vmem:[%s5 + $0xef8] sm:$0xf]
    %v7624 = vld [vmem:[%s5 + $0xefc] sm:$0xf]
    %v7625 = vld [vmem:[%s5 + $0xf00] sm:$0xf]
    %v7626 = vld [vmem:[%s5 + $0xf04] sm:$0xf]
    %v7627 = vld [vmem:[%s5 + $0xf08] sm:$0xf]
    %v7628 = vld [vmem:[%s5 + $0xf0c] sm:$0xf]
    %v7629 = vld [vmem:[%s5 + $0xf10] sm:$0xf]
    %v7630 = vld [vmem:[%s5 + $0xf14] sm:$0xf]
    %v7631 = vld [vmem:[%s5 + $0xf18] sm:$0xf]
    %v7632 = vld [vmem:[%s5 + $0xf1c] sm:$0xf]
    %v7633 = vld [vmem:[%s5 + $0xf20] sm:$0xf]
    %v7634 = vld [vmem:[%s5 + $0xf24] sm:$0xf]
    %v7635 = vld [vmem:[%s5 + $0xf28] sm:$0xf]
    %v7636 = vld [vmem:[%s5 + $0xf2c] sm:$0xf]
    %v7637 = vld [vmem:[%s5 + $0xf30] sm:$0xf]
    %v7638 = vld [vmem:[%s5 + $0xf34] sm:$0xf]
    %v7639 = vld [vmem:[%s5 + $0xf38] sm:$0xf]
    %v7640 = vld [vmem:[%s5 + $0xf3c] sm:$0xf]
    %v7641 = vld [vmem:[%s5 + $0xf40] sm:$0xf]
    %v7642 = vld [vmem:[%s5 + $0xf44] sm:$0xf]
    %v7643 = vld [vmem:[%s5 + $0xf48] sm:$0xf]
    %v7644 = vld [vmem:[%s5 + $0xf4c] sm:$0xf]
    %v7645 = vld [vmem:[%s5 + $0xf50] sm:$0xf]
    %v7646 = vld [vmem:[%s5 + $0xf54] sm:$0xf]
    %v7647 = vld [vmem:[%s5 + $0xf58] sm:$0xf]
    %v7648 = vld [vmem:[%s5 + $0xf5c] sm:$0xf]
    %v7649 = vld [vmem:[%s5 + $0xf60] sm:$0xf]
    %v7650 = vld [vmem:[%s5 + $0xf64] sm:$0xf]
    %v7651 = vld [vmem:[%s5 + $0xf68] sm:$0xf]
    %v7652 = vld [vmem:[%s5 + $0xf6c] sm:$0xf]
    %v7653 = vld [vmem:[%s5 + $0xf70] sm:$0xf]
    %v7654 = vld [vmem:[%s5 + $0xf74] sm:$0xf]
    %v7655 = vld [vmem:[%s5 + $0xf78] sm:$0xf]
    %v7656 = vld [vmem:[%s5 + $0xf7c] sm:$0xf]
    %v7657 = vld [vmem:[%s5 + $0xf80] sm:$0xf]
    %v7658 = vld [vmem:[%s5 + $0xf84] sm:$0xf]
    %v7659 = vld [vmem:[%s5 + $0xf88] sm:$0xf]
    %v7660 = vld [vmem:[%s5 + $0xf8c] sm:$0xf]
    %v7661 = vld [vmem:[%s5 + $0xf90] sm:$0xf]
    %v7662 = vld [vmem:[%s5 + $0xf94] sm:$0xf]
    %v7663 = vld [vmem:[%s5 + $0xf98] sm:$0xf]
    %v7664 = vld [vmem:[%s5 + $0xf9c] sm:$0xf]
    %v7665 = vld [vmem:[%s5 + $0xfa0] sm:$0xf]
    %v7666 = vld [vmem:[%s5 + $0xfa4] sm:$0xf]
    %v7667 = vld [vmem:[%s5 + $0xfa8] sm:$0xf]
    %v7668 = vld [vmem:[%s5 + $0xfac] sm:$0xf]
    %v7669 = vld [vmem:[%s5 + $0xfb0] sm:$0xf]
    %v7670 = vld [vmem:[%s5 + $0xfb4] sm:$0xf]
    %v7671 = vld [vmem:[%s5 + $0xfb8] sm:$0xf]
    %v7672 = vld [vmem:[%s5 + $0xfbc] sm:$0xf]
    %v7673 = vld [vmem:[%s5 + $0xfc0] sm:$0xf]
    %v7674 = vld [vmem:[%s5 + $0xfc4] sm:$0xf]
    %v7675 = vld [vmem:[%s5 + $0xfc8] sm:$0xf]
    %v7676 = vld [vmem:[%s5 + $0xfcc] sm:$0xf]
    %v7677 = vld [vmem:[%s5 + $0xfd0] sm:$0xf]
    %v7678 = vld [vmem:[%s5 + $0xfd4] sm:$0xf]
    %v7679 = vld [vmem:[%s5 + $0xfd8] sm:$0xf]
    %v7680 = vld [vmem:[%s5 + $0xfdc] sm:$0xf]
    %v7681 = vld [vmem:[%s5 + $0xfe0] sm:$0xf]
    %v7682 = vld [vmem:[%s5 + $0xfe4] sm:$0xf]
    %v7683 = vld [vmem:[%s5 + $0xfe8] sm:$0xf]
    %v7684 = vld [vmem:[%s5 + $0xfec] sm:$0xf]
    %v7685 = vld [vmem:[%s5 + $0xff0] sm:$0xf]
    %v7686 = vld [vmem:[%s5 + $0xff4] sm:$0xf]
    %v7687 = vld [vmem:[%s5 + $0xff8] sm:$0xf]
    %v7688 = vld [vmem:[%s5 + $0xffc] sm:$0xf]
    %v7689 = vld [vmem:[%s5 + $0x1000] sm:$0xf]
    %v7690 = vld [vmem:[%s5 + $0x1004] sm:$0xf]
    %v7691 = vld [vmem:[%s5 + $0x1008] sm:$0xf]
    %v7692 = vld [vmem:[%s5 + $0x100c] sm:$0xf]
    %v7693 = vld [vmem:[%s5 + $0x1010] sm:$0xf]
    %v7694 = vld [vmem:[%s5 + $0x1014] sm:$0xf]
    %v7695 = vld [vmem:[%s5 + $0x1018] sm:$0xf]
    %v7696 = vld [vmem:[%s5 + $0x101c] sm:$0xf]
    %v7697 = vld [vmem:[%s5 + $0x1020] sm:$0xf]
    %v7698 = vld [vmem:[%s5 + $0x1024] sm:$0xf]
    %v7699 = vld [vmem:[%s5 + $0x1028] sm:$0xf]
    %v7700 = vld [vmem:[%s5 + $0x102c] sm:$0xf]
    %v7701 = vld [vmem:[%s5 + $0x1030] sm:$0xf]
    %v7702 = vld [vmem:[%s5 + $0x1034] sm:$0xf]
    %v7703 = vld [vmem:[%s5 + $0x1038] sm:$0xf]
    %v7704 = vld [vmem:[%s5 + $0x103c] sm:$0xf]
    %v7705 = vld [vmem:[%s5 + $0x1040] sm:$0xf]
    %v7706 = vld [vmem:[%s5 + $0x1044] sm:$0xf]
    %v7707 = vld [vmem:[%s5 + $0x1048] sm:$0xf]
    %v7708 = vld [vmem:[%s5 + $0x104c] sm:$0xf]
    %v7709 = vld [vmem:[%s5 + $0x1050] sm:$0xf]
    %v7710 = vld [vmem:[%s5 + $0x1054] sm:$0xf]
    %v7711 = vld [vmem:[%s5 + $0x1058] sm:$0xf]
    %v7712 = vld [vmem:[%s5 + $0x105c] sm:$0xf]
    %v7713 = vld [vmem:[%s5 + $0x1060] sm:$0xf]
    %v7714 = vld [vmem:[%s5 + $0x1064] sm:$0xf]
    %v7715 = vld [vmem:[%s5 + $0x1068] sm:$0xf]
    %v7716 = vld [vmem:[%s5 + $0x106c] sm:$0xf]
    %v7717 = vld [vmem:[%s5 + $0x1070] sm:$0xf]
    %v7718 = vld [vmem:[%s5 + $0x1074] sm:$0xf]
    %v7719 = vld [vmem:[%s5 + $0x1078] sm:$0xf]
    %v7720 = vld [vmem:[%s5 + $0x107c] sm:$0xf]
    %v7721 = vld [vmem:[%s5 + $0x1080] sm:$0xf]
    %v7722 = vld [vmem:[%s5 + $0x1084] sm:$0xf]
    %v7723 = vld [vmem:[%s6] sm:$0x1]
    %v7725 = vlaneseq
    %v7726 = vshrl.u32 %v7725, 7
    %v7727 = vsub.s32 0, %v7726
    %v7728 = vrot.slane %v7723, %v7727
    %v8788 = vunpack.c.l.b16 %v6665
    %v8789 = vunpack.c.l.b16 %v6666
    %v8790 = vunpack.c.l.b16 %v6667
    %v8791 = vunpack.c.l.b16 %v6668
    %v8792 = vunpack.c.l.b16 %v6669
    %v8793 = vunpack.c.l.b16 %v6670
    %v8794 = vunpack.c.l.b16 %v6671
    %v8795 = vunpack.c.l.b16 %v6672
    %v8796 = vunpack.c.l.b16 %v6673
    %v8797 = vunpack.c.l.b16 %v6674
    %v8798 = vunpack.c.l.b16 %v6675
    %v8799 = vunpack.c.l.b16 %v6676
    %v8800 = vunpack.c.l.b16 %v6677
    %v8801 = vunpack.c.l.b16 %v6678
    %v8802 = vunpack.c.l.b16 %v6679
    %v8803 = vunpack.c.l.b16 %v6680
    %v8804 = vunpack.c.l.b16 %v6681
    %v8805 = vunpack.c.l.b16 %v6682
    %v8806 = vunpack.c.l.b16 %v6683
    %v8807 = vunpack.c.l.b16 %v6684
    %v8808 = vunpack.c.l.b16 %v6685
    %v8809 = vunpack.c.l.b16 %v6686
    %v8810 = vunpack.c.l.b16 %v6687
    %v8811 = vunpack.c.l.b16 %v6688
    %v8812 = vunpack.c.l.b16 %v6689
    %v8813 = vunpack.c.l.b16 %v6690
    %v8814 = vunpack.c.l.b16 %v6691
    %v8815 = vunpack.c.l.b16 %v6692
    %v8816 = vunpack.c.l.b16 %v6693
    %v8817 = vunpack.c.l.b16 %v6694
    %v8818 = vunpack.c.l.b16 %v6695
    %v8819 = vunpack.c.l.b16 %v6696
    %v8820 = vunpack.c.l.b16 %v6697
    %v8821 = vunpack.c.l.b16 %v6698
    %v8822 = vunpack.c.l.b16 %v6699
    %v8823 = vunpack.c.l.b16 %v6700
    %v8824 = vunpack.c.l.b16 %v6701
    %v8825 = vunpack.c.l.b16 %v6702
    %v8826 = vunpack.c.l.b16 %v6703
    %v8827 = vunpack.c.l.b16 %v6704
    %v8828 = vunpack.c.l.b16 %v6705
    %v8829 = vunpack.c.l.b16 %v6706
    %v8830 = vunpack.c.l.b16 %v6707
    %v8831 = vunpack.c.l.b16 %v6708
    %v8832 = vunpack.c.l.b16 %v6709
    %v8833 = vunpack.c.l.b16 %v6710
    %v8834 = vunpack.c.l.b16 %v6711
    %v8835 = vunpack.c.l.b16 %v6712
    %v8836 = vunpack.c.l.b16 %v6713
    %v8837 = vunpack.c.l.b16 %v6714
    %v8838 = vunpack.c.l.b16 %v6715
    %v8839 = vunpack.c.l.b16 %v6716
    %v8840 = vunpack.c.l.b16 %v6717
    %v8841 = vunpack.c.l.b16 %v6718
    %v8842 = vunpack.c.l.b16 %v6719
    %v8843 = vunpack.c.l.b16 %v6720
    %v8844 = vunpack.c.l.b16 %v6721
    %v8845 = vunpack.c.l.b16 %v6722
    %v8846 = vunpack.c.l.b16 %v6723
    %v8847 = vunpack.c.l.b16 %v6724
    %v8848 = vunpack.c.l.b16 %v6725
    %v8849 = vunpack.c.l.b16 %v6726
    %v8850 = vunpack.c.l.b16 %v6727
    %v8851 = vunpack.c.l.b16 %v6728
    %v8852 = vunpack.c.l.b16 %v6729
    %v8853 = vunpack.c.l.b16 %v6730
    %v8854 = vunpack.c.l.b16 %v6731
    %v8855 = vunpack.c.l.b16 %v6732
    %v8856 = vunpack.c.l.b16 %v6733
    %v8857 = vunpack.c.l.b16 %v6734
    %v8858 = vunpack.c.l.b16 %v6735
    %v8859 = vunpack.c.l.b16 %v6736
    %v8860 = vunpack.c.l.b16 %v6737
    %v8861 = vunpack.c.l.b16 %v6738
    %v8862 = vunpack.c.l.b16 %v6739
    %v8863 = vunpack.c.l.b16 %v6740
    %v8864 = vunpack.c.l.b16 %v6741
    %v8865 = vunpack.c.l.b16 %v6742
    %v8866 = vunpack.c.l.b16 %v6743
    %v8867 = vunpack.c.l.b16 %v6744
    %v8868 = vunpack.c.l.b16 %v6745
    %v8869 = vunpack.c.l.b16 %v6746
    %v8870 = vunpack.c.l.b16 %v6747
    %v8871 = vunpack.c.l.b16 %v6748
    %v8872 = vunpack.c.l.b16 %v6749
    %v8873 = vunpack.c.l.b16 %v6750
    %v8874 = vunpack.c.l.b16 %v6751
    %v8875 = vunpack.c.l.b16 %v6752
    %v8876 = vunpack.c.l.b16 %v6753
    %v8877 = vunpack.c.l.b16 %v6754
    %v8878 = vunpack.c.l.b16 %v6755
    %v8879 = vunpack.c.l.b16 %v6756
    %v8880 = vunpack.c.l.b16 %v6757
    %v8881 = vunpack.c.l.b16 %v6758
    %v8882 = vunpack.c.l.b16 %v6759
    %v8883 = vunpack.c.l.b16 %v6760
    %v8884 = vunpack.c.l.b16 %v6761
    %v8885 = vunpack.c.l.b16 %v6762
    %v8886 = vunpack.c.l.b16 %v6763
    %v8887 = vunpack.c.l.b16 %v6764
    %v8888 = vunpack.c.l.b16 %v6765
    %v8889 = vunpack.c.l.b16 %v6766
    %v8890 = vunpack.c.l.b16 %v6767
    %v8891 = vunpack.c.l.b16 %v6768
    %v8892 = vunpack.c.l.b16 %v6769
    %v8893 = vunpack.c.l.b16 %v6770
    %v8894 = vunpack.c.l.b16 %v6771
    %v8895 = vunpack.c.l.b16 %v6772
    %v8896 = vunpack.c.l.b16 %v6773
    %v8897 = vunpack.c.l.b16 %v6774
    %v8898 = vunpack.c.l.b16 %v6775
    %v8899 = vunpack.c.l.b16 %v6776
    %v8900 = vunpack.c.l.b16 %v6777
    %v8901 = vunpack.c.l.b16 %v6778
    %v8902 = vunpack.c.l.b16 %v6779
    %v8903 = vunpack.c.l.b16 %v6780
    %v8904 = vunpack.c.l.b16 %v6781
    %v8905 = vunpack.c.l.b16 %v6782
    %v8906 = vunpack.c.l.b16 %v6783
    %v8907 = vunpack.c.l.b16 %v6784
    %v8908 = vunpack.c.l.b16 %v6785
    %v8909 = vunpack.c.l.b16 %v6786
    %v8910 = vunpack.c.l.b16 %v6787
    %v8911 = vunpack.c.l.b16 %v6788
    %v8912 = vunpack.c.l.b16 %v6789
    %v8913 = vunpack.c.l.b16 %v6790
    %v8914 = vunpack.c.l.b16 %v6791
    %v8915 = vunpack.c.l.b16 %v6792
    %v8916 = vunpack.c.l.b16 %v6793
    %v8917 = vunpack.c.l.b16 %v6794
    %v8918 = vunpack.c.l.b16 %v6795
    %v8919 = vunpack.c.l.b16 %v6796
    %v8920 = vunpack.c.l.b16 %v6797
    %v8921 = vunpack.c.l.b16 %v6798
    %v8922 = vunpack.c.l.b16 %v6799
    %v8923 = vunpack.c.l.b16 %v6800
    %v8924 = vunpack.c.l.b16 %v6801
    %v8925 = vunpack.c.l.b16 %v6802
    %v8926 = vunpack.c.l.b16 %v6803
    %v8927 = vunpack.c.l.b16 %v6804
    %v8928 = vunpack.c.l.b16 %v6805
    %v8929 = vunpack.c.l.b16 %v6806
    %v8930 = vunpack.c.l.b16 %v6807
    %v8931 = vunpack.c.l.b16 %v6808
    %v8932 = vunpack.c.l.b16 %v6809
    %v8933 = vunpack.c.l.b16 %v6810
    %v8934 = vunpack.c.l.b16 %v6811
    %v8935 = vunpack.c.l.b16 %v6812
    %v8936 = vunpack.c.l.b16 %v6813
    %v8937 = vunpack.c.l.b16 %v6814
    %v8938 = vunpack.c.l.b16 %v6815
    %v8939 = vunpack.c.l.b16 %v6816
    %v8940 = vunpack.c.l.b16 %v6817
    %v8941 = vunpack.c.l.b16 %v6818
    %v8942 = vunpack.c.l.b16 %v6819
    %v8943 = vunpack.c.l.b16 %v6820
    %v8944 = vunpack.c.l.b16 %v6821
    %v8945 = vunpack.c.l.b16 %v6822
    %v8946 = vunpack.c.l.b16 %v6823
    %v8947 = vunpack.c.l.b16 %v6824
    %v8948 = vunpack.c.l.b16 %v6825
    %v8949 = vunpack.c.l.b16 %v6826
    %v8950 = vunpack.c.l.b16 %v6827
    %v8951 = vunpack.c.l.b16 %v6828
    %v8952 = vunpack.c.l.b16 %v6829
    %v8953 = vunpack.c.l.b16 %v6830
    %v8954 = vunpack.c.l.b16 %v6831
    %v8955 = vunpack.c.l.b16 %v6832
    %v8956 = vunpack.c.l.b16 %v6833
    %v8957 = vunpack.c.l.b16 %v6834
    %v8958 = vunpack.c.l.b16 %v6835
    %v8959 = vunpack.c.l.b16 %v6836
    %v8960 = vunpack.c.l.b16 %v6837
    %v8961 = vunpack.c.l.b16 %v6838
    %v8962 = vunpack.c.l.b16 %v6839
    %v8963 = vunpack.c.l.b16 %v6840
    %v8964 = vunpack.c.l.b16 %v6841
    %v8965 = vunpack.c.l.b16 %v6842
    %v8966 = vunpack.c.l.b16 %v6843
    %v8967 = vunpack.c.l.b16 %v6844
    %v8968 = vunpack.c.l.b16 %v6845
    %v8969 = vunpack.c.l.b16 %v6846
    %v8970 = vunpack.c.l.b16 %v6847
    %v8971 = vunpack.c.l.b16 %v6848
    %v8972 = vunpack.c.l.b16 %v6849
    %v8973 = vunpack.c.l.b16 %v6850
    %v8974 = vunpack.c.l.b16 %v6851
    %v8975 = vunpack.c.l.b16 %v6852
    %v8976 = vunpack.c.l.b16 %v6853
    %v8977 = vunpack.c.l.b16 %v6854
    %v8978 = vunpack.c.l.b16 %v6855
    %v8979 = vunpack.c.l.b16 %v6856
    %v8980 = vunpack.c.l.b16 %v6857
    %v8981 = vunpack.c.l.b16 %v6858
    %v8982 = vunpack.c.l.b16 %v6859
    %v8983 = vunpack.c.l.b16 %v6860
    %v8984 = vunpack.c.l.b16 %v6861
    %v8985 = vunpack.c.l.b16 %v6862
    %v8986 = vunpack.c.l.b16 %v6863
    %v8987 = vunpack.c.l.b16 %v6864
    %v8988 = vunpack.c.l.b16 %v6865
    %v8989 = vunpack.c.l.b16 %v6866
    %v8990 = vunpack.c.l.b16 %v6867
    %v8991 = vunpack.c.l.b16 %v6868
    %v8992 = vunpack.c.l.b16 %v6869
    %v8993 = vunpack.c.l.b16 %v6870
    %v8994 = vunpack.c.l.b16 %v6871
    %v8995 = vunpack.c.l.b16 %v6872
    %v8996 = vunpack.c.l.b16 %v6873
    %v8997 = vunpack.c.l.b16 %v6874
    %v8998 = vunpack.c.l.b16 %v6875
    %v8999 = vunpack.c.l.b16 %v6876
    %v9000 = vunpack.c.l.b16 %v6877
    %v9001 = vunpack.c.l.b16 %v6878
    %v9002 = vunpack.c.l.b16 %v6879
    %v9003 = vunpack.c.l.b16 %v6880
    %v9004 = vunpack.c.l.b16 %v6881
    %v9005 = vunpack.c.l.b16 %v6882
    %v9006 = vunpack.c.l.b16 %v6883
    %v9007 = vunpack.c.l.b16 %v6884
    %v9008 = vunpack.c.l.b16 %v6885
    %v9009 = vunpack.c.l.b16 %v6886
    %v9010 = vunpack.c.l.b16 %v6887
    %v9011 = vunpack.c.l.b16 %v6888
    %v9012 = vunpack.c.l.b16 %v6889
    %v9013 = vunpack.c.l.b16 %v6890
    %v9014 = vunpack.c.l.b16 %v6891
    %v9015 = vunpack.c.l.b16 %v6892
    %v9016 = vunpack.c.l.b16 %v6893
    %v9017 = vunpack.c.l.b16 %v6894
    %v9018 = vunpack.c.l.b16 %v6895
    %v9019 = vunpack.c.l.b16 %v6896
    %v9020 = vunpack.c.l.b16 %v6897
    %v9021 = vunpack.c.l.b16 %v6898
    %v9022 = vunpack.c.l.b16 %v6899
    %v9023 = vunpack.c.l.b16 %v6900
    %v9024 = vunpack.c.l.b16 %v6901
    %v9025 = vunpack.c.l.b16 %v6902
    %v9026 = vunpack.c.l.b16 %v6903
    %v9027 = vunpack.c.l.b16 %v6904
    %v9028 = vunpack.c.l.b16 %v6905
    %v9029 = vunpack.c.l.b16 %v6906
    %v9030 = vunpack.c.l.b16 %v6907
    %v9031 = vunpack.c.l.b16 %v6908
    %v9032 = vunpack.c.l.b16 %v6909
    %v9033 = vunpack.c.l.b16 %v6910
    %v9034 = vunpack.c.l.b16 %v6911
    %v9035 = vunpack.c.l.b16 %v6912
    %v9036 = vunpack.c.l.b16 %v6913
    %v9037 = vunpack.c.l.b16 %v6914
    %v9038 = vunpack.c.l.b16 %v6915
    %v9039 = vunpack.c.l.b16 %v6916
    %v9040 = vunpack.c.l.b16 %v6917
    %v9041 = vunpack.c.l.b16 %v6918
    %v9042 = vunpack.c.l.b16 %v6919
    %v9043 = vunpack.c.l.b16 %v6920
    %v9044 = vunpack.c.l.b16 %v6921
    %v9045 = vunpack.c.l.b16 %v6922
    %v9046 = vunpack.c.l.b16 %v6923
    %v9047 = vunpack.c.l.b16 %v6924
    %v9048 = vunpack.c.l.b16 %v6925
    %v9049 = vunpack.c.l.b16 %v6926
    %v9050 = vunpack.c.l.b16 %v6927
    %v9051 = vunpack.c.l.b16 %v6928
    %v9052 = vunpack.c.l.b16 %v6929
    %v9053 = vunpack.c.l.b16 %v6930
    %v9054 = vunpack.c.l.b16 %v6931
    %v9055 = vunpack.c.l.b16 %v6932
    %v9056 = vunpack.c.l.b16 %v6933
    %v9057 = vunpack.c.l.b16 %v6934
    %v9058 = vunpack.c.l.b16 %v6935
    %v9059 = vunpack.c.l.b16 %v6936
    %v9060 = vunpack.c.l.b16 %v6937
    %v9061 = vunpack.c.l.b16 %v6938
    %v9062 = vunpack.c.l.b16 %v6939
    %v9063 = vunpack.c.l.b16 %v6940
    %v9064 = vunpack.c.l.b16 %v6941
    %v9065 = vunpack.c.l.b16 %v6942
    %v9066 = vunpack.c.l.b16 %v6943
    %v9067 = vunpack.c.l.b16 %v6944
    %v9068 = vunpack.c.l.b16 %v6945
    %v9069 = vunpack.c.l.b16 %v6946
    %v9070 = vunpack.c.l.b16 %v6947
    %v9071 = vunpack.c.l.b16 %v6948
    %v9072 = vunpack.c.l.b16 %v6949
    %v9073 = vunpack.c.l.b16 %v6950
    %v9074 = vunpack.c.l.b16 %v6951
    %v9075 = vunpack.c.l.b16 %v6952
    %v9076 = vunpack.c.l.b16 %v6953
    %v9077 = vunpack.c.l.b16 %v6954
    %v9078 = vunpack.c.l.b16 %v6955
    %v9079 = vunpack.c.l.b16 %v6956
    %v9080 = vunpack.c.l.b16 %v6957
    %v9081 = vunpack.c.l.b16 %v6958
    %v9082 = vunpack.c.l.b16 %v6959
    %v9083 = vunpack.c.l.b16 %v6960
    %v9084 = vunpack.c.l.b16 %v6961
    %v9085 = vunpack.c.l.b16 %v6962
    %v9086 = vunpack.c.l.b16 %v6963
    %v9087 = vunpack.c.l.b16 %v6964
    %v9088 = vunpack.c.l.b16 %v6965
    %v9089 = vunpack.c.l.b16 %v6966
    %v9090 = vunpack.c.l.b16 %v6967
    %v9091 = vunpack.c.l.b16 %v6968
    %v9092 = vunpack.c.l.b16 %v6969
    %v9093 = vunpack.c.l.b16 %v6970
    %v9094 = vunpack.c.l.b16 %v6971
    %v9095 = vunpack.c.l.b16 %v6972
    %v9096 = vunpack.c.l.b16 %v6973
    %v9097 = vunpack.c.l.b16 %v6974
    %v9098 = vunpack.c.l.b16 %v6975
    %v9099 = vunpack.c.l.b16 %v6976
    %v9100 = vunpack.c.l.b16 %v6977
    %v9101 = vunpack.c.l.b16 %v6978
    %v9102 = vunpack.c.l.b16 %v6979
    %v9103 = vunpack.c.l.b16 %v6980
    %v9104 = vunpack.c.l.b16 %v6981
    %v9105 = vunpack.c.l.b16 %v6982
    %v9106 = vunpack.c.l.b16 %v6983
    %v9107 = vunpack.c.l.b16 %v6984
    %v9108 = vunpack.c.l.b16 %v6985
    %v9109 = vunpack.c.l.b16 %v6986
    %v9110 = vunpack.c.l.b16 %v6987
    %v9111 = vunpack.c.l.b16 %v6988
    %v9112 = vunpack.c.l.b16 %v6989
    %v9113 = vunpack.c.l.b16 %v6990
    %v9114 = vunpack.c.l.b16 %v6991
    %v9115 = vunpack.c.l.b16 %v6992
    %v9116 = vunpack.c.l.b16 %v6993
    %v9117 = vunpack.c.l.b16 %v6994
    %v9118 = vunpack.c.l.b16 %v6995
    %v9119 = vunpack.c.l.b16 %v6996
    %v9120 = vunpack.c.l.b16 %v6997
    %v9121 = vunpack.c.l.b16 %v6998
    %v9122 = vunpack.c.l.b16 %v6999
    %v9123 = vunpack.c.l.b16 %v7000
    %v9124 = vunpack.c.l.b16 %v7001
    %v9125 = vunpack.c.l.b16 %v7002
    %v9126 = vunpack.c.l.b16 %v7003
    %v9127 = vunpack.c.l.b16 %v7004
    %v9128 = vunpack.c.l.b16 %v7005
    %v9129 = vunpack.c.l.b16 %v7006
    %v9130 = vunpack.c.l.b16 %v7007
    %v9131 = vunpack.c.l.b16 %v7008
    %v9132 = vunpack.c.l.b16 %v7009
    %v9133 = vunpack.c.l.b16 %v7010
    %v9134 = vunpack.c.l.b16 %v7011
    %v9135 = vunpack.c.l.b16 %v7012
    %v9136 = vunpack.c.l.b16 %v7013
    %v9137 = vunpack.c.l.b16 %v7014
    %v9138 = vunpack.c.l.b16 %v7015
    %v9139 = vunpack.c.l.b16 %v7016
    %v9140 = vunpack.c.l.b16 %v7017
    %v9141 = vunpack.c.l.b16 %v7018
    %v9142 = vunpack.c.l.b16 %v7019
    %v9143 = vunpack.c.l.b16 %v7020
    %v9144 = vunpack.c.l.b16 %v7021
    %v9145 = vunpack.c.l.b16 %v7022
    %v9146 = vunpack.c.l.b16 %v7023
    %v9147 = vunpack.c.l.b16 %v7024
    %v9148 = vunpack.c.l.b16 %v7025
    %v9149 = vunpack.c.l.b16 %v7026
    %v9150 = vunpack.c.l.b16 %v7027
    %v9151 = vunpack.c.l.b16 %v7028
    %v9152 = vunpack.c.l.b16 %v7029
    %v9153 = vunpack.c.l.b16 %v7030
    %v9154 = vunpack.c.l.b16 %v7031
    %v9155 = vunpack.c.l.b16 %v7032
    %v9156 = vunpack.c.l.b16 %v7033
    %v9157 = vunpack.c.l.b16 %v7034
    %v9158 = vunpack.c.l.b16 %v7035
    %v9159 = vunpack.c.l.b16 %v7036
    %v9160 = vunpack.c.l.b16 %v7037
    %v9161 = vunpack.c.l.b16 %v7038
    %v9162 = vunpack.c.l.b16 %v7039
    %v9163 = vunpack.c.l.b16 %v7040
    %v9164 = vunpack.c.l.b16 %v7041
    %v9165 = vunpack.c.l.b16 %v7042
    %v9166 = vunpack.c.l.b16 %v7043
    %v9167 = vunpack.c.l.b16 %v7044
    %v9168 = vunpack.c.l.b16 %v7045
    %v9169 = vunpack.c.l.b16 %v7046
    %v9170 = vunpack.c.l.b16 %v7047
    %v9171 = vunpack.c.l.b16 %v7048
    %v9172 = vunpack.c.l.b16 %v7049
    %v9173 = vunpack.c.l.b16 %v7050
    %v9174 = vunpack.c.l.b16 %v7051
    %v9175 = vunpack.c.l.b16 %v7052
    %v9176 = vunpack.c.l.b16 %v7053
    %v9177 = vunpack.c.l.b16 %v7054
    %v9178 = vunpack.c.l.b16 %v7055
    %v9179 = vunpack.c.l.b16 %v7056
    %v9180 = vunpack.c.l.b16 %v7057
    %v9181 = vunpack.c.l.b16 %v7058
    %v9182 = vunpack.c.l.b16 %v7059
    %v9183 = vunpack.c.l.b16 %v7060
    %v9184 = vunpack.c.l.b16 %v7061
    %v9185 = vunpack.c.l.b16 %v7062
    %v9186 = vunpack.c.l.b16 %v7063
    %v9187 = vunpack.c.l.b16 %v7064
    %v9188 = vunpack.c.l.b16 %v7065
    %v9189 = vunpack.c.l.b16 %v7066
    %v9190 = vunpack.c.l.b16 %v7067
    %v9191 = vunpack.c.l.b16 %v7068
    %v9192 = vunpack.c.l.b16 %v7069
    %v9193 = vunpack.c.l.b16 %v7070
    %v9194 = vunpack.c.l.b16 %v7071
    %v9195 = vunpack.c.l.b16 %v7072
    %v9196 = vunpack.c.l.b16 %v7073
    %v9197 = vunpack.c.l.b16 %v7074
    %v9198 = vunpack.c.l.b16 %v7075
    %v9199 = vunpack.c.l.b16 %v7076
    %v9200 = vunpack.c.l.b16 %v7077
    %v9201 = vunpack.c.l.b16 %v7078
    %v9202 = vunpack.c.l.b16 %v7079
    %v9203 = vunpack.c.l.b16 %v7080
    %v9204 = vunpack.c.l.b16 %v7081
    %v9205 = vunpack.c.l.b16 %v7082
    %v9206 = vunpack.c.l.b16 %v7083
    %v9207 = vunpack.c.l.b16 %v7084
    %v9208 = vunpack.c.l.b16 %v7085
    %v9209 = vunpack.c.l.b16 %v7086
    %v9210 = vunpack.c.l.b16 %v7087
    %v9211 = vunpack.c.l.b16 %v7088
    %v9212 = vunpack.c.l.b16 %v7089
    %v9213 = vunpack.c.l.b16 %v7090
    %v9214 = vunpack.c.l.b16 %v7091
    %v9215 = vunpack.c.l.b16 %v7092
    %v9216 = vunpack.c.l.b16 %v7093
    %v9217 = vunpack.c.l.b16 %v7094
    %v9218 = vunpack.c.l.b16 %v7095
    %v9219 = vunpack.c.l.b16 %v7096
    %v9220 = vunpack.c.l.b16 %v7097
    %v9221 = vunpack.c.l.b16 %v7098
    %v9222 = vunpack.c.l.b16 %v7099
    %v9223 = vunpack.c.l.b16 %v7100
    %v9224 = vunpack.c.l.b16 %v7101
    %v9225 = vunpack.c.l.b16 %v7102
    %v9226 = vunpack.c.l.b16 %v7103
    %v9227 = vunpack.c.l.b16 %v7104
    %v9228 = vunpack.c.l.b16 %v7105
    %v9229 = vunpack.c.l.b16 %v7106
    %v9230 = vunpack.c.l.b16 %v7107
    %v9231 = vunpack.c.l.b16 %v7108
    %v9232 = vunpack.c.l.b16 %v7109
    %v9233 = vunpack.c.l.b16 %v7110
    %v9234 = vunpack.c.l.b16 %v7111
    %v9235 = vunpack.c.l.b16 %v7112
    %v9236 = vunpack.c.l.b16 %v7113
    %v9237 = vunpack.c.l.b16 %v7114
    %v9238 = vunpack.c.l.b16 %v7115
    %v9239 = vunpack.c.l.b16 %v7116
    %v9240 = vunpack.c.l.b16 %v7117
    %v9241 = vunpack.c.l.b16 %v7118
    %v9242 = vunpack.c.l.b16 %v7119
    %v9243 = vunpack.c.l.b16 %v7120
    %v9244 = vunpack.c.l.b16 %v7121
    %v9245 = vunpack.c.l.b16 %v7122
    %v9246 = vunpack.c.l.b16 %v7123
    %v9247 = vunpack.c.l.b16 %v7124
    %v9248 = vunpack.c.l.b16 %v7125
    %v9249 = vunpack.c.l.b16 %v7126
    %v9250 = vunpack.c.l.b16 %v7127
    %v9251 = vunpack.c.l.b16 %v7128
    %v9252 = vunpack.c.l.b16 %v7129
    %v9253 = vunpack.c.l.b16 %v7130
    %v9254 = vunpack.c.l.b16 %v7131
    %v9255 = vunpack.c.l.b16 %v7132
    %v9256 = vunpack.c.l.b16 %v7133
    %v9257 = vunpack.c.l.b16 %v7134
    %v9258 = vunpack.c.l.b16 %v7135
    %v9259 = vunpack.c.l.b16 %v7136
    %v9260 = vunpack.c.l.b16 %v7137
    %v9261 = vunpack.c.l.b16 %v7138
    %v9262 = vunpack.c.l.b16 %v7139
    %v9263 = vunpack.c.l.b16 %v7140
    %v9264 = vunpack.c.l.b16 %v7141
    %v9265 = vunpack.c.l.b16 %v7142
    %v9266 = vunpack.c.l.b16 %v7143
    %v9267 = vunpack.c.l.b16 %v7144
    %v9268 = vunpack.c.l.b16 %v7145
    %v9269 = vunpack.c.l.b16 %v7146
    %v9270 = vunpack.c.l.b16 %v7147
    %v9271 = vunpack.c.l.b16 %v7148
    %v9272 = vunpack.c.l.b16 %v7149
    %v9273 = vunpack.c.l.b16 %v7150
    %v9274 = vunpack.c.l.b16 %v7151
    %v9275 = vunpack.c.l.b16 %v7152
    %v9276 = vunpack.c.l.b16 %v7153
    %v9277 = vunpack.c.l.b16 %v7154
    %v9278 = vunpack.c.l.b16 %v7155
    %v9279 = vunpack.c.l.b16 %v7156
    %v9280 = vunpack.c.l.b16 %v7157
    %v9281 = vunpack.c.l.b16 %v7158
    %v9282 = vunpack.c.l.b16 %v7159
    %v9283 = vunpack.c.l.b16 %v7160
    %v9284 = vunpack.c.l.b16 %v7161
    %v9285 = vunpack.c.l.b16 %v7162
    %v9286 = vunpack.c.l.b16 %v7163
    %v9287 = vunpack.c.l.b16 %v7164
    %v9288 = vunpack.c.l.b16 %v7165
    %v9289 = vunpack.c.l.b16 %v7166
    %v9290 = vunpack.c.l.b16 %v7167
    %v9291 = vunpack.c.l.b16 %v7168
    %v9292 = vunpack.c.l.b16 %v7169
    %v9293 = vunpack.c.l.b16 %v7170
    %v9294 = vunpack.c.l.b16 %v7171
    %v9295 = vunpack.c.l.b16 %v7172
    %v9296 = vunpack.c.l.b16 %v7173
    %v9297 = vunpack.c.l.b16 %v7174
    %v9298 = vunpack.c.l.b16 %v7175
    %v9299 = vunpack.c.l.b16 %v7176
    %v9300 = vunpack.c.l.b16 %v7177
    %v9301 = vunpack.c.l.b16 %v7178
    %v9302 = vunpack.c.l.b16 %v7179
    %v9303 = vunpack.c.l.b16 %v7180
    %v9304 = vunpack.c.l.b16 %v7181
    %v9305 = vunpack.c.l.b16 %v7182
    %v9306 = vunpack.c.l.b16 %v7183
    %v9307 = vunpack.c.l.b16 %v7184
    %v9308 = vunpack.c.l.b16 %v7185
    %v9309 = vunpack.c.l.b16 %v7186
    %v9310 = vunpack.c.l.b16 %v7187
    %v9311 = vunpack.c.l.b16 %v7188
    %v9312 = vunpack.c.l.b16 %v7189
    %v9313 = vunpack.c.l.b16 %v7190
    %v9314 = vunpack.c.l.b16 %v7191
    %v9315 = vunpack.c.l.b16 %v7192
    %v9316 = vunpack.c.l.b16 %v7193
    %v9317 = vunpack.c.l.b16 %v7194
    %v9318 = vunpack.c.l.b16 %v7195
    %v9319 = vunpack.c.l.b16 %v7196
    %v9320 = vunpack.c.l.b16 %v7197
    %v9321 = vunpack.c.l.b16 %v7198
    %v9322 = vunpack.c.l.b16 %v7199
    %v9323 = vunpack.c.l.b16 %v7200
    %v9324 = vunpack.c.l.b16 %v7201
    %v9325 = vunpack.c.l.b16 %v7202
    %v9326 = vunpack.c.l.b16 %v7203
    %v9327 = vunpack.c.l.b16 %v7204
    %v9328 = vunpack.c.l.b16 %v7205
    %v9329 = vunpack.c.l.b16 %v7206
    %v9330 = vunpack.c.l.b16 %v7207
    %v9331 = vunpack.c.l.b16 %v7208
    %v9332 = vunpack.c.l.b16 %v7209
    %v9333 = vunpack.c.l.b16 %v7210
    %v9334 = vunpack.c.l.b16 %v7211
    %v9335 = vunpack.c.l.b16 %v7212
    %v9336 = vunpack.c.l.b16 %v7213
    %v9337 = vunpack.c.l.b16 %v7214
    %v9338 = vunpack.c.l.b16 %v7215
    %v9339 = vunpack.c.l.b16 %v7216
    %v9340 = vunpack.c.l.b16 %v7217
    %v9341 = vunpack.c.l.b16 %v7218
    %v9342 = vunpack.c.l.b16 %v7219
    %v9343 = vunpack.c.l.b16 %v7220
    %v9344 = vunpack.c.l.b16 %v7221
    %v9345 = vunpack.c.l.b16 %v7222
    %v9346 = vunpack.c.l.b16 %v7223
    %v9347 = vunpack.c.l.b16 %v7224
    %v9348 = vunpack.c.l.b16 %v7225
    %v9349 = vunpack.c.l.b16 %v7226
    %v9350 = vunpack.c.l.b16 %v7227
    %v9351 = vunpack.c.l.b16 %v7228
    %v9352 = vunpack.c.l.b16 %v7229
    %v9353 = vunpack.c.l.b16 %v7230
    %v9354 = vunpack.c.l.b16 %v7231
    %v9355 = vunpack.c.l.b16 %v7232
    %v9356 = vunpack.c.l.b16 %v7233
    %v9357 = vunpack.c.l.b16 %v7234
    %v9358 = vunpack.c.l.b16 %v7235
    %v9359 = vunpack.c.l.b16 %v7236
    %v9360 = vunpack.c.l.b16 %v7237
    %v9361 = vunpack.c.l.b16 %v7238
    %v9362 = vunpack.c.l.b16 %v7239
    %v9363 = vunpack.c.l.b16 %v7240
    %v9364 = vunpack.c.l.b16 %v7241
    %v9365 = vunpack.c.l.b16 %v7242
    %v9366 = vunpack.c.l.b16 %v7243
    %v9367 = vunpack.c.l.b16 %v7244
    %v9368 = vunpack.c.l.b16 %v7245
    %v9369 = vunpack.c.l.b16 %v7246
    %v9370 = vunpack.c.l.b16 %v7247
    %v9371 = vunpack.c.l.b16 %v7248
    %v9372 = vunpack.c.l.b16 %v7249
    %v9373 = vunpack.c.l.b16 %v7250
    %v9374 = vunpack.c.l.b16 %v7251
    %v9375 = vunpack.c.l.b16 %v7252
    %v9376 = vunpack.c.l.b16 %v7253
    %v9377 = vunpack.c.l.b16 %v7254
    %v9378 = vunpack.c.l.b16 %v7255
    %v9379 = vunpack.c.l.b16 %v7256
    %v9380 = vunpack.c.l.b16 %v7257
    %v9381 = vunpack.c.l.b16 %v7258
    %v9382 = vunpack.c.l.b16 %v7259
    %v9383 = vunpack.c.l.b16 %v7260
    %v9384 = vunpack.c.l.b16 %v7261
    %v9385 = vunpack.c.l.b16 %v7262
    %v9386 = vunpack.c.l.b16 %v7263
    %v9387 = vunpack.c.l.b16 %v7264
    %v9388 = vunpack.c.l.b16 %v7265
    %v9389 = vunpack.c.l.b16 %v7266
    %v9390 = vunpack.c.l.b16 %v7267
    %v9391 = vunpack.c.l.b16 %v7268
    %v9392 = vunpack.c.l.b16 %v7269
    %v9393 = vunpack.c.l.b16 %v7270
    %v9394 = vunpack.c.l.b16 %v7271
    %v9395 = vunpack.c.l.b16 %v7272
    %v9396 = vunpack.c.l.b16 %v7273
    %v9397 = vunpack.c.l.b16 %v7274
    %v9398 = vunpack.c.l.b16 %v7275
    %v9399 = vunpack.c.l.b16 %v7276
    %v9400 = vunpack.c.l.b16 %v7277
    %v9401 = vunpack.c.l.b16 %v7278
    %v9402 = vunpack.c.l.b16 %v7279
    %v9403 = vunpack.c.l.b16 %v7280
    %v9404 = vunpack.c.l.b16 %v7281
    %v9405 = vunpack.c.l.b16 %v7282
    %v9406 = vunpack.c.l.b16 %v7283
    %v9407 = vunpack.c.l.b16 %v7284
    %v9408 = vunpack.c.l.b16 %v7285
    %v9409 = vunpack.c.l.b16 %v7286
    %v9410 = vunpack.c.l.b16 %v7287
    %v9411 = vunpack.c.l.b16 %v7288
    %v9412 = vunpack.c.l.b16 %v7289
    %v9413 = vunpack.c.l.b16 %v7290
    %v9414 = vunpack.c.l.b16 %v7291
    %v9415 = vunpack.c.l.b16 %v7292
    %v9416 = vunpack.c.l.b16 %v7293
    %v9417 = vunpack.c.l.b16 %v7294
    %v9418 = vunpack.c.l.b16 %v7295
    %v9419 = vunpack.c.l.b16 %v7296
    %v9420 = vunpack.c.l.b16 %v7297
    %v9421 = vunpack.c.l.b16 %v7298
    %v9422 = vunpack.c.l.b16 %v7299
    %v9423 = vunpack.c.l.b16 %v7300
    %v9424 = vunpack.c.l.b16 %v7301
    %v9425 = vunpack.c.l.b16 %v7302
    %v9426 = vunpack.c.l.b16 %v7303
    %v9427 = vunpack.c.l.b16 %v7304
    %v9428 = vunpack.c.l.b16 %v7305
    %v9429 = vunpack.c.l.b16 %v7306
    %v9430 = vunpack.c.l.b16 %v7307
    %v9431 = vunpack.c.l.b16 %v7308
    %v9432 = vunpack.c.l.b16 %v7309
    %v9433 = vunpack.c.l.b16 %v7310
    %v9434 = vunpack.c.l.b16 %v7311
    %v9435 = vunpack.c.l.b16 %v7312
    %v9436 = vunpack.c.l.b16 %v7313
    %v9437 = vunpack.c.l.b16 %v7314
    %v9438 = vunpack.c.l.b16 %v7315
    %v9439 = vunpack.c.l.b16 %v7316
    %v9440 = vunpack.c.l.b16 %v7317
    %v9441 = vunpack.c.l.b16 %v7318
    %v9442 = vunpack.c.l.b16 %v7319
    %v9443 = vunpack.c.l.b16 %v7320
    %v9444 = vunpack.c.l.b16 %v7321
    %v9445 = vunpack.c.l.b16 %v7322
    %v9446 = vunpack.c.l.b16 %v7323
    %v9447 = vunpack.c.l.b16 %v7324
    %v9448 = vunpack.c.l.b16 %v7325
    %v9449 = vunpack.c.l.b16 %v7326
    %v9450 = vunpack.c.l.b16 %v7327
    %v9451 = vunpack.c.l.b16 %v7328
    %v9452 = vunpack.c.l.b16 %v7329
    %v9453 = vunpack.c.l.b16 %v7330
    %v9454 = vunpack.c.l.b16 %v7331
    %v9455 = vunpack.c.l.b16 %v7332
    %v9456 = vunpack.c.l.b16 %v7333
    %v9457 = vunpack.c.l.b16 %v7334
    %v9458 = vunpack.c.l.b16 %v7335
    %v9459 = vunpack.c.l.b16 %v7336
    %v9460 = vunpack.c.l.b16 %v7337
    %v9461 = vunpack.c.l.b16 %v7338
    %v9462 = vunpack.c.l.b16 %v7339
    %v9463 = vunpack.c.l.b16 %v7340
    %v9464 = vunpack.c.l.b16 %v7341
    %v9465 = vunpack.c.l.b16 %v7342
    %v9466 = vunpack.c.l.b16 %v7343
    %v9467 = vunpack.c.l.b16 %v7344
    %v9468 = vunpack.c.l.b16 %v7345
    %v9469 = vunpack.c.l.b16 %v7346
    %v9470 = vunpack.c.l.b16 %v7347
    %v9471 = vunpack.c.l.b16 %v7348
    %v9472 = vunpack.c.l.b16 %v7349
    %v9473 = vunpack.c.l.b16 %v7350
    %v9474 = vunpack.c.l.b16 %v7351
    %v9475 = vunpack.c.l.b16 %v7352
    %v9476 = vunpack.c.l.b16 %v7353
    %v9477 = vunpack.c.l.b16 %v7354
    %v9478 = vunpack.c.l.b16 %v7355
    %v9479 = vunpack.c.l.b16 %v7356
    %v9480 = vunpack.c.l.b16 %v7357
    %v9481 = vunpack.c.l.b16 %v7358
    %v9482 = vunpack.c.l.b16 %v7359
    %v9483 = vunpack.c.l.b16 %v7360
    %v9484 = vunpack.c.l.b16 %v7361
    %v9485 = vunpack.c.l.b16 %v7362
    %v9486 = vunpack.c.l.b16 %v7363
    %v9487 = vunpack.c.l.b16 %v7364
    %v9488 = vunpack.c.l.b16 %v7365
    %v9489 = vunpack.c.l.b16 %v7366
    %v9490 = vunpack.c.l.b16 %v7367
    %v9491 = vunpack.c.l.b16 %v7368
    %v9492 = vunpack.c.l.b16 %v7369
    %v9493 = vunpack.c.l.b16 %v7370
    %v9494 = vunpack.c.l.b16 %v7371
    %v9495 = vunpack.c.l.b16 %v7372
    %v9496 = vunpack.c.l.b16 %v7373
    %v9497 = vunpack.c.l.b16 %v7374
    %v9498 = vunpack.c.l.b16 %v7375
    %v9499 = vunpack.c.l.b16 %v7376
    %v9500 = vunpack.c.l.b16 %v7377
    %v9501 = vunpack.c.l.b16 %v7378
    %v9502 = vunpack.c.l.b16 %v7379
    %v9503 = vunpack.c.l.b16 %v7380
    %v9504 = vunpack.c.l.b16 %v7381
    %v9505 = vunpack.c.l.b16 %v7382
    %v9506 = vunpack.c.l.b16 %v7383
    %v9507 = vunpack.c.l.b16 %v7384
    %v9508 = vunpack.c.l.b16 %v7385
    %v9509 = vunpack.c.l.b16 %v7386
    %v9510 = vunpack.c.l.b16 %v7387
    %v9511 = vunpack.c.l.b16 %v7388
    %v9512 = vunpack.c.l.b16 %v7389
    %v9513 = vunpack.c.l.b16 %v7390
    %v9514 = vunpack.c.l.b16 %v7391
    %v9515 = vunpack.c.l.b16 %v7392
    %v9516 = vunpack.c.l.b16 %v7393
    %v9517 = vunpack.c.l.b16 %v7394
    %v9518 = vunpack.c.l.b16 %v7395
    %v9519 = vunpack.c.l.b16 %v7396
    %v9520 = vunpack.c.l.b16 %v7397
    %v9521 = vunpack.c.l.b16 %v7398
    %v9522 = vunpack.c.l.b16 %v7399
    %v9523 = vunpack.c.l.b16 %v7400
    %v9524 = vunpack.c.l.b16 %v7401
    %v9525 = vunpack.c.l.b16 %v7402
    %v9526 = vunpack.c.l.b16 %v7403
    %v9527 = vunpack.c.l.b16 %v7404
    %v9528 = vunpack.c.l.b16 %v7405
    %v9529 = vunpack.c.l.b16 %v7406
    %v9530 = vunpack.c.l.b16 %v7407
    %v9531 = vunpack.c.l.b16 %v7408
    %v9532 = vunpack.c.l.b16 %v7409
    %v9533 = vunpack.c.l.b16 %v7410
    %v9534 = vunpack.c.l.b16 %v7411
    %v9535 = vunpack.c.l.b16 %v7412
    %v9536 = vunpack.c.l.b16 %v7413
    %v9537 = vunpack.c.l.b16 %v7414
    %v9538 = vunpack.c.l.b16 %v7415
    %v9539 = vunpack.c.l.b16 %v7416
    %v9540 = vunpack.c.l.b16 %v7417
    %v9541 = vunpack.c.l.b16 %v7418
    %v9542 = vunpack.c.l.b16 %v7419
    %v9543 = vunpack.c.l.b16 %v7420
    %v9544 = vunpack.c.l.b16 %v7421
    %v9545 = vunpack.c.l.b16 %v7422
    %v9546 = vunpack.c.l.b16 %v7423
    %v9547 = vunpack.c.l.b16 %v7424
    %v9548 = vunpack.c.l.b16 %v7425
    %v9549 = vunpack.c.l.b16 %v7426
    %v9550 = vunpack.c.l.b16 %v7427
    %v9551 = vunpack.c.l.b16 %v7428
    %v9552 = vunpack.c.l.b16 %v7429
    %v9553 = vunpack.c.l.b16 %v7430
    %v9554 = vunpack.c.l.b16 %v7431
    %v9555 = vunpack.c.l.b16 %v7432
    %v9556 = vunpack.c.l.b16 %v7433
    %v9557 = vunpack.c.l.b16 %v7434
    %v9558 = vunpack.c.l.b16 %v7435
    %v9559 = vunpack.c.l.b16 %v7436
    %v9560 = vunpack.c.l.b16 %v7437
    %v9561 = vunpack.c.l.b16 %v7438
    %v9562 = vunpack.c.l.b16 %v7439
    %v9563 = vunpack.c.l.b16 %v7440
    %v9564 = vunpack.c.l.b16 %v7441
    %v9565 = vunpack.c.l.b16 %v7442
    %v9566 = vunpack.c.l.b16 %v7443
    %v9567 = vunpack.c.l.b16 %v7444
    %v9568 = vunpack.c.l.b16 %v7445
    %v9569 = vunpack.c.l.b16 %v7446
    %v9570 = vunpack.c.l.b16 %v7447
    %v9571 = vunpack.c.l.b16 %v7448
    %v9572 = vunpack.c.l.b16 %v7449
    %v9573 = vunpack.c.l.b16 %v7450
    %v9574 = vunpack.c.l.b16 %v7451
    %v9575 = vunpack.c.l.b16 %v7452
    %v9576 = vunpack.c.l.b16 %v7453
    %v9577 = vunpack.c.l.b16 %v7454
    %v9578 = vunpack.c.l.b16 %v7455
    %v9579 = vunpack.c.l.b16 %v7456
    %v9580 = vunpack.c.l.b16 %v7457
    %v9581 = vunpack.c.l.b16 %v7458
    %v9582 = vunpack.c.l.b16 %v7459
    %v9583 = vunpack.c.l.b16 %v7460
    %v9584 = vunpack.c.l.b16 %v7461
    %v9585 = vunpack.c.l.b16 %v7462
    %v9586 = vunpack.c.l.b16 %v7463
    %v9587 = vunpack.c.l.b16 %v7464
    %v9588 = vunpack.c.l.b16 %v7465
    %v9589 = vunpack.c.l.b16 %v7466
    %v9590 = vunpack.c.l.b16 %v7467
    %v9591 = vunpack.c.l.b16 %v7468
    %v9592 = vunpack.c.l.b16 %v7469
    %v9593 = vunpack.c.l.b16 %v7470
    %v9594 = vunpack.c.l.b16 %v7471
    %v9595 = vunpack.c.l.b16 %v7472
    %v9596 = vunpack.c.l.b16 %v7473
    %v9597 = vunpack.c.l.b16 %v7474
    %v9598 = vunpack.c.l.b16 %v7475
    %v9599 = vunpack.c.l.b16 %v7476
    %v9600 = vunpack.c.l.b16 %v7477
    %v9601 = vunpack.c.l.b16 %v7478
    %v9602 = vunpack.c.l.b16 %v7479
    %v9603 = vunpack.c.l.b16 %v7480
    %v9604 = vunpack.c.l.b16 %v7481
    %v9605 = vunpack.c.l.b16 %v7482
    %v9606 = vunpack.c.l.b16 %v7483
    %v9607 = vunpack.c.l.b16 %v7484
    %v9608 = vunpack.c.l.b16 %v7485
    %v9609 = vunpack.c.l.b16 %v7486
    %v9610 = vunpack.c.l.b16 %v7487
    %v9611 = vunpack.c.l.b16 %v7488
    %v9612 = vunpack.c.l.b16 %v7489
    %v9613 = vunpack.c.l.b16 %v7490
    %v9614 = vunpack.c.l.b16 %v7491
    %v9615 = vunpack.c.l.b16 %v7492
    %v9616 = vunpack.c.l.b16 %v7493
    %v9617 = vunpack.c.l.b16 %v7494
    %v9618 = vunpack.c.l.b16 %v7495
    %v9619 = vunpack.c.l.b16 %v7496
    %v9620 = vunpack.c.l.b16 %v7497
    %v9621 = vunpack.c.l.b16 %v7498
    %v9622 = vunpack.c.l.b16 %v7499
    %v9623 = vunpack.c.l.b16 %v7500
    %v9624 = vunpack.c.l.b16 %v7501
    %v9625 = vunpack.c.l.b16 %v7502
    %v9626 = vunpack.c.l.b16 %v7503
    %v9627 = vunpack.c.l.b16 %v7504
    %v9628 = vunpack.c.l.b16 %v7505
    %v9629 = vunpack.c.l.b16 %v7506
    %v9630 = vunpack.c.l.b16 %v7507
    %v9631 = vunpack.c.l.b16 %v7508
    %v9632 = vunpack.c.l.b16 %v7509
    %v9633 = vunpack.c.l.b16 %v7510
    %v9634 = vunpack.c.l.b16 %v7511
    %v9635 = vunpack.c.l.b16 %v7512
    %v9636 = vunpack.c.l.b16 %v7513
    %v9637 = vunpack.c.l.b16 %v7514
    %v9638 = vunpack.c.l.b16 %v7515
    %v9639 = vunpack.c.l.b16 %v7516
    %v9640 = vunpack.c.l.b16 %v7517
    %v9641 = vunpack.c.l.b16 %v7518
    %v9642 = vunpack.c.l.b16 %v7519
    %v9643 = vunpack.c.l.b16 %v7520
    %v9644 = vunpack.c.l.b16 %v7521
    %v9645 = vunpack.c.l.b16 %v7522
    %v9646 = vunpack.c.l.b16 %v7523
    %v9647 = vunpack.c.l.b16 %v7524
    %v9648 = vunpack.c.l.b16 %v7525
    %v9649 = vunpack.c.l.b16 %v7526
    %v9650 = vunpack.c.l.b16 %v7527
    %v9651 = vunpack.c.l.b16 %v7528
    %v9652 = vunpack.c.l.b16 %v7529
    %v9653 = vunpack.c.l.b16 %v7530
    %v9654 = vunpack.c.l.b16 %v7531
    %v9655 = vunpack.c.l.b16 %v7532
    %v9656 = vunpack.c.l.b16 %v7533
    %v9657 = vunpack.c.l.b16 %v7534
    %v9658 = vunpack.c.l.b16 %v7535
    %v9659 = vunpack.c.l.b16 %v7536
    %v9660 = vunpack.c.l.b16 %v7537
    %v9661 = vunpack.c.l.b16 %v7538
    %v9662 = vunpack.c.l.b16 %v7539
    %v9663 = vunpack.c.l.b16 %v7540
    %v9664 = vunpack.c.l.b16 %v7541
    %v9665 = vunpack.c.l.b16 %v7542
    %v9666 = vunpack.c.l.b16 %v7543
    %v9667 = vunpack.c.l.b16 %v7544
    %v9668 = vunpack.c.l.b16 %v7545
    %v9669 = vunpack.c.l.b16 %v7546
    %v9670 = vunpack.c.l.b16 %v7547
    %v9671 = vunpack.c.l.b16 %v7548
    %v9672 = vunpack.c.l.b16 %v7549
    %v9673 = vunpack.c.l.b16 %v7550
    %v9674 = vunpack.c.l.b16 %v7551
    %v9675 = vunpack.c.l.b16 %v7552
    %v9676 = vunpack.c.l.b16 %v7553
    %v9677 = vunpack.c.l.b16 %v7554
    %v9678 = vunpack.c.l.b16 %v7555
    %v9679 = vunpack.c.l.b16 %v7556
    %v9680 = vunpack.c.l.b16 %v7557
    %v9681 = vunpack.c.l.b16 %v7558
    %v9682 = vunpack.c.l.b16 %v7559
    %v9683 = vunpack.c.l.b16 %v7560
    %v9684 = vunpack.c.l.b16 %v7561
    %v9685 = vunpack.c.l.b16 %v7562
    %v9686 = vunpack.c.l.b16 %v7563
    %v9687 = vunpack.c.l.b16 %v7564
    %v9688 = vunpack.c.l.b16 %v7565
    %v9689 = vunpack.c.l.b16 %v7566
    %v9690 = vunpack.c.l.b16 %v7567
    %v9691 = vunpack.c.l.b16 %v7568
    %v9692 = vunpack.c.l.b16 %v7569
    %v9693 = vunpack.c.l.b16 %v7570
    %v9694 = vunpack.c.l.b16 %v7571
    %v9695 = vunpack.c.l.b16 %v7572
    %v9696 = vunpack.c.l.b16 %v7573
    %v9697 = vunpack.c.l.b16 %v7574
    %v9698 = vunpack.c.l.b16 %v7575
    %v9699 = vunpack.c.l.b16 %v7576
    %v9700 = vunpack.c.l.b16 %v7577
    %v9701 = vunpack.c.l.b16 %v7578
    %v9702 = vunpack.c.l.b16 %v7579
    %v9703 = vunpack.c.l.b16 %v7580
    %v9704 = vunpack.c.l.b16 %v7581
    %v9705 = vunpack.c.l.b16 %v7582
    %v9706 = vunpack.c.l.b16 %v7583
    %v9707 = vunpack.c.l.b16 %v7584
    %v9708 = vunpack.c.l.b16 %v7585
    %v9709 = vunpack.c.l.b16 %v7586
    %v9710 = vunpack.c.l.b16 %v7587
    %v9711 = vunpack.c.l.b16 %v7588
    %v9712 = vunpack.c.l.b16 %v7589
    %v9713 = vunpack.c.l.b16 %v7590
    %v9714 = vunpack.c.l.b16 %v7591
    %v9715 = vunpack.c.l.b16 %v7592
    %v9716 = vunpack.c.l.b16 %v7593
    %v9717 = vunpack.c.l.b16 %v7594
    %v9718 = vunpack.c.l.b16 %v7595
    %v9719 = vunpack.c.l.b16 %v7596
    %v9720 = vunpack.c.l.b16 %v7597
    %v9721 = vunpack.c.l.b16 %v7598
    %v9722 = vunpack.c.l.b16 %v7599
    %v9723 = vunpack.c.l.b16 %v7600
    %v9724 = vunpack.c.l.b16 %v7601
    %v9725 = vunpack.c.l.b16 %v7602
    %v9726 = vunpack.c.l.b16 %v7603
    %v9727 = vunpack.c.l.b16 %v7604
    %v9728 = vunpack.c.l.b16 %v7605
    %v9729 = vunpack.c.l.b16 %v7606
    %v9730 = vunpack.c.l.b16 %v7607
    %v9731 = vunpack.c.l.b16 %v7608
    %v9732 = vunpack.c.l.b16 %v7609
    %v9733 = vunpack.c.l.b16 %v7610
    %v9734 = vunpack.c.l.b16 %v7611
    %v9735 = vunpack.c.l.b16 %v7612
    %v9736 = vunpack.c.l.b16 %v7613
    %v9737 = vunpack.c.l.b16 %v7614
    %v9738 = vunpack.c.l.b16 %v7615
    %v9739 = vunpack.c.l.b16 %v7616
    %v9740 = vunpack.c.l.b16 %v7617
    %v9741 = vunpack.c.l.b16 %v7618
    %v9742 = vunpack.c.l.b16 %v7619
    %v9743 = vunpack.c.l.b16 %v7620
    %v9744 = vunpack.c.l.b16 %v7621
    %v9745 = vunpack.c.l.b16 %v7622
    %v9746 = vunpack.c.l.b16 %v7623
    %v9747 = vunpack.c.l.b16 %v7624
    %v9748 = vunpack.c.l.b16 %v7625
    %v9749 = vunpack.c.l.b16 %v7626
    %v9750 = vunpack.c.l.b16 %v7627
    %v9751 = vunpack.c.l.b16 %v7628
    %v9752 = vunpack.c.l.b16 %v7629
    %v9753 = vunpack.c.l.b16 %v7630
    %v9754 = vunpack.c.l.b16 %v7631
    %v9755 = vunpack.c.l.b16 %v7632
    %v9756 = vunpack.c.l.b16 %v7633
    %v9757 = vunpack.c.l.b16 %v7634
    %v9758 = vunpack.c.l.b16 %v7635
    %v9759 = vunpack.c.l.b16 %v7636
    %v9760 = vunpack.c.l.b16 %v7637
    %v9761 = vunpack.c.l.b16 %v7638
    %v9762 = vunpack.c.l.b16 %v7639
    %v9763 = vunpack.c.l.b16 %v7640
    %v9764 = vunpack.c.l.b16 %v7641
    %v9765 = vunpack.c.l.b16 %v7642
    %v9766 = vunpack.c.l.b16 %v7643
    %v9767 = vunpack.c.l.b16 %v7644
    %v9768 = vunpack.c.l.b16 %v7645
    %v9769 = vunpack.c.l.b16 %v7646
    %v9770 = vunpack.c.l.b16 %v7647
    %v9771 = vunpack.c.l.b16 %v7648
    %v9772 = vunpack.c.l.b16 %v7649
    %v9773 = vunpack.c.l.b16 %v7650
    %v9774 = vunpack.c.l.b16 %v7651
    %v9775 = vunpack.c.l.b16 %v7652
    %v9776 = vunpack.c.l.b16 %v7653
    %v9777 = vunpack.c.l.b16 %v7654
    %v9778 = vunpack.c.l.b16 %v7655
    %v9779 = vunpack.c.l.b16 %v7656
    %v9780 = vunpack.c.l.b16 %v7657
    %v9781 = vunpack.c.l.b16 %v7658
    %v9782 = vunpack.c.l.b16 %v7659
    %v9783 = vunpack.c.l.b16 %v7660
    %v9784 = vunpack.c.l.b16 %v7661
    %v9785 = vunpack.c.l.b16 %v7662
    %v9786 = vunpack.c.l.b16 %v7663
    %v9787 = vunpack.c.l.b16 %v7664
    %v9788 = vunpack.c.l.b16 %v7665
    %v9789 = vunpack.c.l.b16 %v7666
    %v9790 = vunpack.c.l.b16 %v7667
    %v9791 = vunpack.c.l.b16 %v7668
    %v9792 = vunpack.c.l.b16 %v7669
    %v9793 = vunpack.c.l.b16 %v7670
    %v9794 = vunpack.c.l.b16 %v7671
    %v9795 = vunpack.c.l.b16 %v7672
    %v9796 = vunpack.c.l.b16 %v7673
    %v9797 = vunpack.c.l.b16 %v7674
    %v9798 = vunpack.c.l.b16 %v7675
    %v9799 = vunpack.c.l.b16 %v7676
    %v9800 = vunpack.c.l.b16 %v7677
    %v9801 = vunpack.c.l.b16 %v7678
    %v9802 = vunpack.c.l.b16 %v7679
    %v9803 = vunpack.c.l.b16 %v7680
    %v9804 = vunpack.c.l.b16 %v7681
    %v9805 = vunpack.c.l.b16 %v7682
    %v9806 = vunpack.c.l.b16 %v7683
    %v9807 = vunpack.c.l.b16 %v7684
    %v9808 = vunpack.c.l.b16 %v7685
    %v9809 = vunpack.c.l.b16 %v7686
    %v9810 = vunpack.c.l.b16 %v7687
    %v9811 = vunpack.c.l.b16 %v7688
    %v9812 = vunpack.c.l.b16 %v7689
    %v9813 = vunpack.c.l.b16 %v7690
    %v9814 = vunpack.c.l.b16 %v7691
    %v9815 = vunpack.c.l.b16 %v7692
    %v9816 = vunpack.c.l.b16 %v7693
    %v9817 = vunpack.c.l.b16 %v7694
    %v9818 = vunpack.c.l.b16 %v7695
    %v9819 = vunpack.c.l.b16 %v7696
    %v9820 = vunpack.c.l.b16 %v7697
    %v9821 = vunpack.c.l.b16 %v7698
    %v9822 = vunpack.c.l.b16 %v7699
    %v9823 = vunpack.c.l.b16 %v7700
    %v9824 = vunpack.c.l.b16 %v7701
    %v9825 = vunpack.c.l.b16 %v7702
    %v9826 = vunpack.c.l.b16 %v7703
    %v9827 = vunpack.c.l.b16 %v7704
    %v9828 = vunpack.c.l.b16 %v7705
    %v9829 = vunpack.c.l.b16 %v7706
    %v9830 = vunpack.c.l.b16 %v7707
    %v9831 = vunpack.c.l.b16 %v7708
    %v9832 = vunpack.c.l.b16 %v7709
    %v9833 = vunpack.c.l.b16 %v7710
    %v9834 = vunpack.c.l.b16 %v7711
    %v9835 = vunpack.c.l.b16 %v7712
    %v9836 = vunpack.c.l.b16 %v7713
    %v9837 = vunpack.c.l.b16 %v7714
    %v9838 = vunpack.c.l.b16 %v7715
    %v9839 = vunpack.c.l.b16 %v7716
    %v9840 = vunpack.c.l.b16 %v7717
    %v9841 = vunpack.c.l.b16 %v7718
    %v9842 = vunpack.c.l.b16 %v7719
    %v9843 = vunpack.c.l.b16 %v7720
    %v9844 = vunpack.c.l.b16 %v7721
    %v9845 = vunpack.c.l.b16 %v7722
    %v9846 = vpack.c.b16 %v8789, %v8788
    %v9847 = vpack.c.b16 %v8791, %v8790
    %v9848 = vpack.c.b16 %v8793, %v8792
    %v9849 = vpack.c.b16 %v8795, %v8794
    %v9850 = vpack.c.b16 %v8797, %v8796
    %v9851 = vpack.c.b16 %v8799, %v8798
    %v9852 = vpack.c.b16 %v8801, %v8800
    %v9853 = vpack.c.b16 %v8803, %v8802
    %v9854 = vpack.c.b16 %v8805, %v8804
    %v9855 = vpack.c.b16 %v8807, %v8806
    %v9856 = vpack.c.b16 %v8809, %v8808
    %v9857 = vpack.c.b16 %v8811, %v8810
    %v9858 = vpack.c.b16 %v8813, %v8812
    %v9859 = vpack.c.b16 %v8815, %v8814
    %v9860 = vpack.c.b16 %v8817, %v8816
    %v9861 = vpack.c.b16 %v8819, %v8818
    %v9862 = vpack.c.b16 %v8821, %v8820
    %v9863 = vpack.c.b16 %v8823, %v8822
    %v9864 = vpack.c.b16 %v8825, %v8824
    %v9865 = vpack.c.b16 %v8827, %v8826
    %v9866 = vpack.c.b16 %v8829, %v8828
    %v9867 = vpack.c.b16 %v8831, %v8830
    %v9868 = vpack.c.b16 %v8833, %v8832
    %v9869 = vpack.c.b16 %v8835, %v8834
    %v9870 = vpack.c.b16 %v8837, %v8836
    %v9871 = vpack.c.b16 %v8839, %v8838
    %v9872 = vpack.c.b16 %v8841, %v8840
    %v9873 = vpack.c.b16 %v8843, %v8842
    %v9874 = vpack.c.b16 %v8845, %v8844
    %v9875 = vpack.c.b16 %v8847, %v8846
    %v9876 = vpack.c.b16 %v8849, %v8848
    %v9877 = vpack.c.b16 %v8851, %v8850
    %v9878 = vpack.c.b16 %v8853, %v8852
    %v9879 = vpack.c.b16 %v8855, %v8854
    %v9880 = vpack.c.b16 %v8857, %v8856
    %v9881 = vpack.c.b16 %v8859, %v8858
    %v9882 = vpack.c.b16 %v8861, %v8860
    %v9883 = vpack.c.b16 %v8863, %v8862
    %v9884 = vpack.c.b16 %v8865, %v8864
    %v9885 = vpack.c.b16 %v8867, %v8866
    %v9886 = vpack.c.b16 %v8869, %v8868
    %v9887 = vpack.c.b16 %v8871, %v8870
    %v9888 = vpack.c.b16 %v8873, %v8872
    %v9889 = vpack.c.b16 %v8875, %v8874
    %v9890 = vpack.c.b16 %v8877, %v8876
    %v9891 = vpack.c.b16 %v8879, %v8878
    %v9892 = vpack.c.b16 %v8881, %v8880
    %v9893 = vpack.c.b16 %v8883, %v8882
    %v9894 = vpack.c.b16 %v8885, %v8884
    %v9895 = vpack.c.b16 %v8887, %v8886
    %v9896 = vpack.c.b16 %v8889, %v8888
    %v9897 = vpack.c.b16 %v8891, %v8890
    %v9898 = vpack.c.b16 %v8893, %v8892
    %v9899 = vpack.c.b16 %v8895, %v8894
    %v9900 = vpack.c.b16 %v8897, %v8896
    %v9901 = vpack.c.b16 %v8899, %v8898
    %v9902 = vpack.c.b16 %v8901, %v8900
    %v9903 = vpack.c.b16 %v8903, %v8902
    %v9904 = vpack.c.b16 %v8905, %v8904
    %v9905 = vpack.c.b16 %v8907, %v8906
    %v9906 = vpack.c.b16 %v8909, %v8908
    %v9907 = vpack.c.b16 %v8911, %v8910
    %v9908 = vpack.c.b16 %v8913, %v8912
    %v9909 = vpack.c.b16 %v8915, %v8914
    %v9910 = vpack.c.b16 %v8917, %v8916
    %v9911 = vpack.c.b16 %v8919, %v8918
    %v9912 = vpack.c.b16 %v8921, %v8920
    %v9913 = vpack.c.b16 %v8923, %v8922
    %v9914 = vpack.c.b16 %v8925, %v8924
    %v9915 = vpack.c.b16 %v8927, %v8926
    %v9916 = vpack.c.b16 %v8929, %v8928
    %v9917 = vpack.c.b16 %v8931, %v8930
    %v9918 = vpack.c.b16 %v8933, %v8932
    %v9919 = vpack.c.b16 %v8935, %v8934
    %v9920 = vpack.c.b16 %v8937, %v8936
    %v9921 = vpack.c.b16 %v8939, %v8938
    %v9922 = vpack.c.b16 %v8941, %v8940
    %v9923 = vpack.c.b16 %v8943, %v8942
    %v9924 = vpack.c.b16 %v8945, %v8944
    %v9925 = vpack.c.b16 %v8947, %v8946
    %v9926 = vpack.c.b16 %v8949, %v8948
    %v9927 = vpack.c.b16 %v8951, %v8950
    %v9928 = vpack.c.b16 %v8953, %v8952
    %v9929 = vpack.c.b16 %v8955, %v8954
    %v9930 = vpack.c.b16 %v8957, %v8956
    %v9931 = vpack.c.b16 %v8959, %v8958
    %v9932 = vpack.c.b16 %v8961, %v8960
    %v9933 = vpack.c.b16 %v8963, %v8962
    %v9934 = vpack.c.b16 %v8965, %v8964
    %v9935 = vpack.c.b16 %v8967, %v8966
    %v9936 = vpack.c.b16 %v8969, %v8968
    %v9937 = vpack.c.b16 %v8971, %v8970
    %v9938 = vpack.c.b16 %v8973, %v8972
    %v9939 = vpack.c.b16 %v8975, %v8974
    %v9940 = vpack.c.b16 %v8977, %v8976
    %v9941 = vpack.c.b16 %v8979, %v8978
    %v9942 = vpack.c.b16 %v8981, %v8980
    %v9943 = vpack.c.b16 %v8983, %v8982
    %v9944 = vpack.c.b16 %v8985, %v8984
    %v9945 = vpack.c.b16 %v8987, %v8986
    %v9946 = vpack.c.b16 %v8989, %v8988
    %v9947 = vpack.c.b16 %v8991, %v8990
    %v9948 = vpack.c.b16 %v8993, %v8992
    %v9949 = vpack.c.b16 %v8995, %v8994
    %v9950 = vpack.c.b16 %v8997, %v8996
    %v9951 = vpack.c.b16 %v8999, %v8998
    %v9952 = vpack.c.b16 %v9001, %v9000
    %v9953 = vpack.c.b16 %v9003, %v9002
    %v9954 = vpack.c.b16 %v9005, %v9004
    %v9955 = vpack.c.b16 %v9007, %v9006
    %v9956 = vpack.c.b16 %v9009, %v9008
    %v9957 = vpack.c.b16 %v9011, %v9010
    %v9958 = vpack.c.b16 %v9013, %v9012
    %v9959 = vpack.c.b16 %v9015, %v9014
    %v9960 = vpack.c.b16 %v9017, %v9016
    %v9961 = vpack.c.b16 %v9019, %v9018
    %v9962 = vpack.c.b16 %v9021, %v9020
    %v9963 = vpack.c.b16 %v9023, %v9022
    %v9964 = vpack.c.b16 %v9025, %v9024
    %v9965 = vpack.c.b16 %v9027, %v9026
    %v9966 = vpack.c.b16 %v9029, %v9028
    %v9967 = vpack.c.b16 %v9031, %v9030
    %v9968 = vpack.c.b16 %v9033, %v9032
    %v9969 = vpack.c.b16 %v9035, %v9034
    %v9970 = vpack.c.b16 %v9037, %v9036
    %v9971 = vpack.c.b16 %v9039, %v9038
    %v9972 = vpack.c.b16 %v9041, %v9040
    %v9973 = vpack.c.b16 %v9043, %v9042
    %v9974 = vpack.c.b16 %v9045, %v9044
    %v9975 = vpack.c.b16 %v9047, %v9046
    %v9976 = vpack.c.b16 %v9049, %v9048
    %v9977 = vpack.c.b16 %v9051, %v9050
    %v9978 = vpack.c.b16 %v9053, %v9052
    %v9979 = vpack.c.b16 %v9055, %v9054
    %v9980 = vpack.c.b16 %v9057, %v9056
    %v9981 = vpack.c.b16 %v9059, %v9058
    %v9982 = vpack.c.b16 %v9061, %v9060
    %v9983 = vpack.c.b16 %v9063, %v9062
    %v9984 = vpack.c.b16 %v9065, %v9064
    %v9985 = vpack.c.b16 %v9067, %v9066
    %v9986 = vpack.c.b16 %v9069, %v9068
    %v9987 = vpack.c.b16 %v9071, %v9070
    %v9988 = vpack.c.b16 %v9073, %v9072
    %v9989 = vpack.c.b16 %v9075, %v9074
    %v9990 = vpack.c.b16 %v9077, %v9076
    %v9991 = vpack.c.b16 %v9079, %v9078
    %v9992 = vpack.c.b16 %v9081, %v9080
    %v9993 = vpack.c.b16 %v9083, %v9082
    %v9994 = vpack.c.b16 %v9085, %v9084
    %v9995 = vpack.c.b16 %v9087, %v9086
    %v9996 = vpack.c.b16 %v9089, %v9088
    %v9997 = vpack.c.b16 %v9091, %v9090
    %v9998 = vpack.c.b16 %v9093, %v9092
    %v9999 = vpack.c.b16 %v9095, %v9094
    %v10000 = vpack.c.b16 %v9097, %v9096
    %v10001 = vpack.c.b16 %v9099, %v9098
    %v10002 = vpack.c.b16 %v9101, %v9100
    %v10003 = vpack.c.b16 %v9103, %v9102
    %v10004 = vpack.c.b16 %v9105, %v9104
    %v10005 = vpack.c.b16 %v9107, %v9106
    %v10006 = vpack.c.b16 %v9109, %v9108
    %v10007 = vpack.c.b16 %v9111, %v9110
    %v10008 = vpack.c.b16 %v9113, %v9112
    %v10009 = vpack.c.b16 %v9115, %v9114
    %v10010 = vpack.c.b16 %v9117, %v9116
    %v10011 = vpack.c.b16 %v9119, %v9118
    %v10012 = vpack.c.b16 %v9121, %v9120
    %v10013 = vpack.c.b16 %v9123, %v9122
    %v10014 = vpack.c.b16 %v9125, %v9124
    %v10015 = vpack.c.b16 %v9127, %v9126
    %v10016 = vpack.c.b16 %v9129, %v9128
    %v10017 = vpack.c.b16 %v9131, %v9130
    %v10018 = vpack.c.b16 %v9133, %v9132
    %v10019 = vpack.c.b16 %v9135, %v9134
    %v10020 = vpack.c.b16 %v9137, %v9136
    %v10021 = vpack.c.b16 %v9139, %v9138
    %v10022 = vpack.c.b16 %v9141, %v9140
    %v10023 = vpack.c.b16 %v9143, %v9142
    %v10024 = vpack.c.b16 %v9145, %v9144
    %v10025 = vpack.c.b16 %v9147, %v9146
    %v10026 = vpack.c.b16 %v9149, %v9148
    %v10027 = vpack.c.b16 %v9151, %v9150
    %v10028 = vpack.c.b16 %v9153, %v9152
    %v10029 = vpack.c.b16 %v9155, %v9154
    %v10030 = vpack.c.b16 %v9157, %v9156
    %v10031 = vpack.c.b16 %v9159, %v9158
    %v10032 = vpack.c.b16 %v9161, %v9160
    %v10033 = vpack.c.b16 %v9163, %v9162
    %v10034 = vpack.c.b16 %v9165, %v9164
    %v10035 = vpack.c.b16 %v9167, %v9166
    %v10036 = vpack.c.b16 %v9169, %v9168
    %v10037 = vpack.c.b16 %v9171, %v9170
    %v10038 = vpack.c.b16 %v9173, %v9172
    %v10039 = vpack.c.b16 %v9175, %v9174
    %v10040 = vpack.c.b16 %v9177, %v9176
    %v10041 = vpack.c.b16 %v9179, %v9178
    %v10042 = vpack.c.b16 %v9181, %v9180
    %v10043 = vpack.c.b16 %v9183, %v9182
    %v10044 = vpack.c.b16 %v9185, %v9184
    %v10045 = vpack.c.b16 %v9187, %v9186
    %v10046 = vpack.c.b16 %v9189, %v9188
    %v10047 = vpack.c.b16 %v9191, %v9190
    %v10048 = vpack.c.b16 %v9193, %v9192
    %v10049 = vpack.c.b16 %v9195, %v9194
    %v10050 = vpack.c.b16 %v9197, %v9196
    %v10051 = vpack.c.b16 %v9199, %v9198
    %v10052 = vpack.c.b16 %v9201, %v9200
    %v10053 = vpack.c.b16 %v9203, %v9202
    %v10054 = vpack.c.b16 %v9205, %v9204
    %v10055 = vpack.c.b16 %v9207, %v9206
    %v10056 = vpack.c.b16 %v9209, %v9208
    %v10057 = vpack.c.b16 %v9211, %v9210
    %v10058 = vpack.c.b16 %v9213, %v9212
    %v10059 = vpack.c.b16 %v9215, %v9214
    %v10060 = vpack.c.b16 %v9217, %v9216
    %v10061 = vpack.c.b16 %v9219, %v9218
    %v10062 = vpack.c.b16 %v9221, %v9220
    %v10063 = vpack.c.b16 %v9223, %v9222
    %v10064 = vpack.c.b16 %v9225, %v9224
    %v10065 = vpack.c.b16 %v9227, %v9226
    %v10066 = vpack.c.b16 %v9229, %v9228
    %v10067 = vpack.c.b16 %v9231, %v9230
    %v10068 = vpack.c.b16 %v9233, %v9232
    %v10069 = vpack.c.b16 %v9235, %v9234
    %v10070 = vpack.c.b16 %v9237, %v9236
    %v10071 = vpack.c.b16 %v9239, %v9238
    %v10072 = vpack.c.b16 %v9241, %v9240
    %v10073 = vpack.c.b16 %v9243, %v9242
    %v10074 = vpack.c.b16 %v9245, %v9244
    %v10075 = vpack.c.b16 %v9247, %v9246
    %v10076 = vpack.c.b16 %v9249, %v9248
    %v10077 = vpack.c.b16 %v9251, %v9250
    %v10078 = vpack.c.b16 %v9253, %v9252
    %v10079 = vpack.c.b16 %v9255, %v9254
    %v10080 = vpack.c.b16 %v9257, %v9256
    %v10081 = vpack.c.b16 %v9259, %v9258
    %v10082 = vpack.c.b16 %v9261, %v9260
    %v10083 = vpack.c.b16 %v9263, %v9262
    %v10084 = vpack.c.b16 %v9265, %v9264
    %v10085 = vpack.c.b16 %v9267, %v9266
    %v10086 = vpack.c.b16 %v9269, %v9268
    %v10087 = vpack.c.b16 %v9271, %v9270
    %v10088 = vpack.c.b16 %v9273, %v9272
    %v10089 = vpack.c.b16 %v9275, %v9274
    %v10090 = vpack.c.b16 %v9277, %v9276
    %v10091 = vpack.c.b16 %v9279, %v9278
    %v10092 = vpack.c.b16 %v9281, %v9280
    %v10093 = vpack.c.b16 %v9283, %v9282
    %v10094 = vpack.c.b16 %v9285, %v9284
    %v10095 = vpack.c.b16 %v9287, %v9286
    %v10096 = vpack.c.b16 %v9289, %v9288
    %v10097 = vpack.c.b16 %v9291, %v9290
    %v10098 = vpack.c.b16 %v9293, %v9292
    %v10099 = vpack.c.b16 %v9295, %v9294
    %v10100 = vpack.c.b16 %v9297, %v9296
    %v10101 = vpack.c.b16 %v9299, %v9298
    %v10102 = vpack.c.b16 %v9301, %v9300
    %v10103 = vpack.c.b16 %v9303, %v9302
    %v10104 = vpack.c.b16 %v9305, %v9304
    %v10105 = vpack.c.b16 %v9307, %v9306
    %v10106 = vpack.c.b16 %v9309, %v9308
    %v10107 = vpack.c.b16 %v9311, %v9310
    %v10108 = vpack.c.b16 %v9313, %v9312
    %v10109 = vpack.c.b16 %v9315, %v9314
    %v10110 = vpack.c.b16 %v9317, %v9316
    %v10111 = vpack.c.b16 %v9319, %v9318
    %v10112 = vpack.c.b16 %v9321, %v9320
    %v10113 = vpack.c.b16 %v9323, %v9322
    %v10114 = vpack.c.b16 %v9325, %v9324
    %v10115 = vpack.c.b16 %v9327, %v9326
    %v10116 = vpack.c.b16 %v9329, %v9328
    %v10117 = vpack.c.b16 %v9331, %v9330
    %v10118 = vpack.c.b16 %v9333, %v9332
    %v10119 = vpack.c.b16 %v9335, %v9334
    %v10120 = vpack.c.b16 %v9337, %v9336
    %v10121 = vpack.c.b16 %v9339, %v9338
    %v10122 = vpack.c.b16 %v9341, %v9340
    %v10123 = vpack.c.b16 %v9343, %v9342
    %v10124 = vpack.c.b16 %v9345, %v9344
    %v10125 = vpack.c.b16 %v9347, %v9346
    %v10126 = vpack.c.b16 %v9349, %v9348
    %v10127 = vpack.c.b16 %v9351, %v9350
    %v10128 = vpack.c.b16 %v9353, %v9352
    %v10129 = vpack.c.b16 %v9355, %v9354
    %v10130 = vpack.c.b16 %v9357, %v9356
    %v10131 = vpack.c.b16 %v9359, %v9358
    %v10132 = vpack.c.b16 %v9361, %v9360
    %v10133 = vpack.c.b16 %v9363, %v9362
    %v10134 = vpack.c.b16 %v9365, %v9364
    %v10135 = vpack.c.b16 %v9367, %v9366
    %v10136 = vpack.c.b16 %v9369, %v9368
    %v10137 = vpack.c.b16 %v9371, %v9370
    %v10138 = vpack.c.b16 %v9373, %v9372
    %v10139 = vpack.c.b16 %v9375, %v9374
    %v10140 = vpack.c.b16 %v9377, %v9376
    %v10141 = vpack.c.b16 %v9379, %v9378
    %v10142 = vpack.c.b16 %v9381, %v9380
    %v10143 = vpack.c.b16 %v9383, %v9382
    %v10144 = vpack.c.b16 %v9385, %v9384
    %v10145 = vpack.c.b16 %v9387, %v9386
    %v10146 = vpack.c.b16 %v9389, %v9388
    %v10147 = vpack.c.b16 %v9391, %v9390
    %v10148 = vpack.c.b16 %v9393, %v9392
    %v10149 = vpack.c.b16 %v9395, %v9394
    %v10150 = vpack.c.b16 %v9397, %v9396
    %v10151 = vpack.c.b16 %v9399, %v9398
    %v10152 = vpack.c.b16 %v9401, %v9400
    %v10153 = vpack.c.b16 %v9403, %v9402
    %v10154 = vpack.c.b16 %v9405, %v9404
    %v10155 = vpack.c.b16 %v9407, %v9406
    %v10156 = vpack.c.b16 %v9409, %v9408
    %v10157 = vpack.c.b16 %v9411, %v9410
    %v10158 = vpack.c.b16 %v9413, %v9412
    %v10159 = vpack.c.b16 %v9415, %v9414
    %v10160 = vpack.c.b16 %v9417, %v9416
    %v10161 = vpack.c.b16 %v9419, %v9418
    %v10162 = vpack.c.b16 %v9421, %v9420
    %v10163 = vpack.c.b16 %v9423, %v9422
    %v10164 = vpack.c.b16 %v9425, %v9424
    %v10165 = vpack.c.b16 %v9427, %v9426
    %v10166 = vpack.c.b16 %v9429, %v9428
    %v10167 = vpack.c.b16 %v9431, %v9430
    %v10168 = vpack.c.b16 %v9433, %v9432
    %v10169 = vpack.c.b16 %v9435, %v9434
    %v10170 = vpack.c.b16 %v9437, %v9436
    %v10171 = vpack.c.b16 %v9439, %v9438
    %v10172 = vpack.c.b16 %v9441, %v9440
    %v10173 = vpack.c.b16 %v9443, %v9442
    %v10174 = vpack.c.b16 %v9445, %v9444
    %v10175 = vpack.c.b16 %v9447, %v9446
    %v10176 = vpack.c.b16 %v9449, %v9448
    %v10177 = vpack.c.b16 %v9451, %v9450
    %v10178 = vpack.c.b16 %v9453, %v9452
    %v10179 = vpack.c.b16 %v9455, %v9454
    %v10180 = vpack.c.b16 %v9457, %v9456
    %v10181 = vpack.c.b16 %v9459, %v9458
    %v10182 = vpack.c.b16 %v9461, %v9460
    %v10183 = vpack.c.b16 %v9463, %v9462
    %v10184 = vpack.c.b16 %v9465, %v9464
    %v10185 = vpack.c.b16 %v9467, %v9466
    %v10186 = vpack.c.b16 %v9469, %v9468
    %v10187 = vpack.c.b16 %v9471, %v9470
    %v10188 = vpack.c.b16 %v9473, %v9472
    %v10189 = vpack.c.b16 %v9475, %v9474
    %v10190 = vpack.c.b16 %v9477, %v9476
    %v10191 = vpack.c.b16 %v9479, %v9478
    %v10192 = vpack.c.b16 %v9481, %v9480
    %v10193 = vpack.c.b16 %v9483, %v9482
    %v10194 = vpack.c.b16 %v9485, %v9484
    %v10195 = vpack.c.b16 %v9487, %v9486
    %v10196 = vpack.c.b16 %v9489, %v9488
    %v10197 = vpack.c.b16 %v9491, %v9490
    %v10198 = vpack.c.b16 %v9493, %v9492
    %v10199 = vpack.c.b16 %v9495, %v9494
    %v10200 = vpack.c.b16 %v9497, %v9496
    %v10201 = vpack.c.b16 %v9499, %v9498
    %v10202 = vpack.c.b16 %v9501, %v9500
    %v10203 = vpack.c.b16 %v9503, %v9502
    %v10204 = vpack.c.b16 %v9505, %v9504
    %v10205 = vpack.c.b16 %v9507, %v9506
    %v10206 = vpack.c.b16 %v9509, %v9508
    %v10207 = vpack.c.b16 %v9511, %v9510
    %v10208 = vpack.c.b16 %v9513, %v9512
    %v10209 = vpack.c.b16 %v9515, %v9514
    %v10210 = vpack.c.b16 %v9517, %v9516
    %v10211 = vpack.c.b16 %v9519, %v9518
    %v10212 = vpack.c.b16 %v9521, %v9520
    %v10213 = vpack.c.b16 %v9523, %v9522
    %v10214 = vpack.c.b16 %v9525, %v9524
    %v10215 = vpack.c.b16 %v9527, %v9526
    %v10216 = vpack.c.b16 %v9529, %v9528
    %v10217 = vpack.c.b16 %v9531, %v9530
    %v10218 = vpack.c.b16 %v9533, %v9532
    %v10219 = vpack.c.b16 %v9535, %v9534
    %v10220 = vpack.c.b16 %v9537, %v9536
    %v10221 = vpack.c.b16 %v9539, %v9538
    %v10222 = vpack.c.b16 %v9541, %v9540
    %v10223 = vpack.c.b16 %v9543, %v9542
    %v10224 = vpack.c.b16 %v9545, %v9544
    %v10225 = vpack.c.b16 %v9547, %v9546
    %v10226 = vpack.c.b16 %v9549, %v9548
    %v10227 = vpack.c.b16 %v9551, %v9550
    %v10228 = vpack.c.b16 %v9553, %v9552
    %v10229 = vpack.c.b16 %v9555, %v9554
    %v10230 = vpack.c.b16 %v9557, %v9556
    %v10231 = vpack.c.b16 %v9559, %v9558
    %v10232 = vpack.c.b16 %v9561, %v9560
    %v10233 = vpack.c.b16 %v9563, %v9562
    %v10234 = vpack.c.b16 %v9565, %v9564
    %v10235 = vpack.c.b16 %v9567, %v9566
    %v10236 = vpack.c.b16 %v9569, %v9568
    %v10237 = vpack.c.b16 %v9571, %v9570
    %v10238 = vpack.c.b16 %v9573, %v9572
    %v10239 = vpack.c.b16 %v9575, %v9574
    %v10240 = vpack.c.b16 %v9577, %v9576
    %v10241 = vpack.c.b16 %v9579, %v9578
    %v10242 = vpack.c.b16 %v9581, %v9580
    %v10243 = vpack.c.b16 %v9583, %v9582
    %v10244 = vpack.c.b16 %v9585, %v9584
    %v10245 = vpack.c.b16 %v9587, %v9586
    %v10246 = vpack.c.b16 %v9589, %v9588
    %v10247 = vpack.c.b16 %v9591, %v9590
    %v10248 = vpack.c.b16 %v9593, %v9592
    %v10249 = vpack.c.b16 %v9595, %v9594
    %v10250 = vpack.c.b16 %v9597, %v9596
    %v10251 = vpack.c.b16 %v9599, %v9598
    %v10252 = vpack.c.b16 %v9601, %v9600
    %v10253 = vpack.c.b16 %v9603, %v9602
    %v10254 = vpack.c.b16 %v9605, %v9604
    %v10255 = vpack.c.b16 %v9607, %v9606
    %v10256 = vpack.c.b16 %v9609, %v9608
    %v10257 = vpack.c.b16 %v9611, %v9610
    %v10258 = vpack.c.b16 %v9613, %v9612
    %v10259 = vpack.c.b16 %v9615, %v9614
    %v10260 = vpack.c.b16 %v9617, %v9616
    %v10261 = vpack.c.b16 %v9619, %v9618
    %v10262 = vpack.c.b16 %v9621, %v9620
    %v10263 = vpack.c.b16 %v9623, %v9622
    %v10264 = vpack.c.b16 %v9625, %v9624
    %v10265 = vpack.c.b16 %v9627, %v9626
    %v10266 = vpack.c.b16 %v9629, %v9628
    %v10267 = vpack.c.b16 %v9631, %v9630
    %v10268 = vpack.c.b16 %v9633, %v9632
    %v10269 = vpack.c.b16 %v9635, %v9634
    %v10270 = vpack.c.b16 %v9637, %v9636
    %v10271 = vpack.c.b16 %v9639, %v9638
    %v10272 = vpack.c.b16 %v9641, %v9640
    %v10273 = vpack.c.b16 %v9643, %v9642
    %v10274 = vpack.c.b16 %v9645, %v9644
    %v10275 = vpack.c.b16 %v9647, %v9646
    %v10276 = vpack.c.b16 %v9649, %v9648
    %v10277 = vpack.c.b16 %v9651, %v9650
    %v10278 = vpack.c.b16 %v9653, %v9652
    %v10279 = vpack.c.b16 %v9655, %v9654
    %v10280 = vpack.c.b16 %v9657, %v9656
    %v10281 = vpack.c.b16 %v9659, %v9658
    %v10282 = vpack.c.b16 %v9661, %v9660
    %v10283 = vpack.c.b16 %v9663, %v9662
    %v10284 = vpack.c.b16 %v9665, %v9664
    %v10285 = vpack.c.b16 %v9667, %v9666
    %v10286 = vpack.c.b16 %v9669, %v9668
    %v10287 = vpack.c.b16 %v9671, %v9670
    %v10288 = vpack.c.b16 %v9673, %v9672
    %v10289 = vpack.c.b16 %v9675, %v9674
    %v10290 = vpack.c.b16 %v9677, %v9676
    %v10291 = vpack.c.b16 %v9679, %v9678
    %v10292 = vpack.c.b16 %v9681, %v9680
    %v10293 = vpack.c.b16 %v9683, %v9682
    %v10294 = vpack.c.b16 %v9685, %v9684
    %v10295 = vpack.c.b16 %v9687, %v9686
    %v10296 = vpack.c.b16 %v9689, %v9688
    %v10297 = vpack.c.b16 %v9691, %v9690
    %v10298 = vpack.c.b16 %v9693, %v9692
    %v10299 = vpack.c.b16 %v9695, %v9694
    %v10300 = vpack.c.b16 %v9697, %v9696
    %v10301 = vpack.c.b16 %v9699, %v9698
    %v10302 = vpack.c.b16 %v9701, %v9700
    %v10303 = vpack.c.b16 %v9703, %v9702
    %v10304 = vpack.c.b16 %v9705, %v9704
    %v10305 = vpack.c.b16 %v9707, %v9706
    %v10306 = vpack.c.b16 %v9709, %v9708
    %v10307 = vpack.c.b16 %v9711, %v9710
    %v10308 = vpack.c.b16 %v9713, %v9712
    %v10309 = vpack.c.b16 %v9715, %v9714
    %v10310 = vpack.c.b16 %v9717, %v9716
    %v10311 = vpack.c.b16 %v9719, %v9718
    %v10312 = vpack.c.b16 %v9721, %v9720
    %v10313 = vpack.c.b16 %v9723, %v9722
    %v10314 = vpack.c.b16 %v9725, %v9724
    %v10315 = vpack.c.b16 %v9727, %v9726
    %v10316 = vpack.c.b16 %v9729, %v9728
    %v10317 = vpack.c.b16 %v9731, %v9730
    %v10318 = vpack.c.b16 %v9733, %v9732
    %v10319 = vpack.c.b16 %v9735, %v9734
    %v10320 = vpack.c.b16 %v9737, %v9736
    %v10321 = vpack.c.b16 %v9739, %v9738
    %v10322 = vpack.c.b16 %v9741, %v9740
    %v10323 = vpack.c.b16 %v9743, %v9742
    %v10324 = vpack.c.b16 %v9745, %v9744
    %v10325 = vpack.c.b16 %v9747, %v9746
    %v10326 = vpack.c.b16 %v9749, %v9748
    %v10327 = vpack.c.b16 %v9751, %v9750
    %v10328 = vpack.c.b16 %v9753, %v9752
    %v10329 = vpack.c.b16 %v9755, %v9754
    %v10330 = vpack.c.b16 %v9757, %v9756
    %v10331 = vpack.c.b16 %v9759, %v9758
    %v10332 = vpack.c.b16 %v9761, %v9760
    %v10333 = vpack.c.b16 %v9763, %v9762
    %v10334 = vpack.c.b16 %v9765, %v9764
    %v10335 = vpack.c.b16 %v9767, %v9766
    %v10336 = vpack.c.b16 %v9769, %v9768
    %v10337 = vpack.c.b16 %v9771, %v9770
    %v10338 = vpack.c.b16 %v9773, %v9772
    %v10339 = vpack.c.b16 %v9775, %v9774
    %v10340 = vpack.c.b16 %v9777, %v9776
    %v10341 = vpack.c.b16 %v9779, %v9778
    %v10342 = vpack.c.b16 %v9781, %v9780
    %v10343 = vpack.c.b16 %v9783, %v9782
    %v10344 = vpack.c.b16 %v9785, %v9784
    %v10345 = vpack.c.b16 %v9787, %v9786
    %v10346 = vpack.c.b16 %v9789, %v9788
    %v10347 = vpack.c.b16 %v9791, %v9790
    %v10348 = vpack.c.b16 %v9793, %v9792
    %v10349 = vpack.c.b16 %v9795, %v9794
    %v10350 = vpack.c.b16 %v9797, %v9796
    %v10351 = vpack.c.b16 %v9799, %v9798
    %v10352 = vpack.c.b16 %v9801, %v9800
    %v10353 = vpack.c.b16 %v9803, %v9802
    %v10354 = vpack.c.b16 %v9805, %v9804
    %v10355 = vpack.c.b16 %v9807, %v9806
    %v10356 = vpack.c.b16 %v9809, %v9808
    %v10357 = vpack.c.b16 %v9811, %v9810
    %v10358 = vpack.c.b16 %v9813, %v9812
    %v10359 = vpack.c.b16 %v9815, %v9814
    %v10360 = vpack.c.b16 %v9817, %v9816
    %v10361 = vpack.c.b16 %v9819, %v9818
    %v10362 = vpack.c.b16 %v9821, %v9820
    %v10363 = vpack.c.b16 %v9823, %v9822
    %v10364 = vpack.c.b16 %v9825, %v9824
    %v10365 = vpack.c.b16 %v9827, %v9826
    %v10366 = vpack.c.b16 %v9829, %v9828
    %v10367 = vpack.c.b16 %v9831, %v9830
    %v10368 = vpack.c.b16 %v9833, %v9832
    %v10369 = vpack.c.b16 %v9835, %v9834
    %v10370 = vpack.c.b16 %v9837, %v9836
    %v10371 = vpack.c.b16 %v9839, %v9838
    %v10372 = vpack.c.b16 %v9841, %v9840
    %v10373 = vpack.c.b16 %v9843, %v9842
    %v10374 = vpack.c.b16 %v9845, %v9844
    %vm10904 = vcmask 130048
    %v10906 = vsel %vm10904, %v6664, 0
    %10908 = vmatprep.subr.bf16.mxu0 0
    %10909 = vmatpush1.bf16.msra.mxu0 %v9846
    %10910 = vmatprep.subr.bf16.mxu0 0
    %10911 = vmatpush1.bf16.msra.mxu0 %v9847
    %10912 = vmatprep.subr.bf16.mxu0 0
    %10913 = vmatpush1.bf16.msra.mxu0 %v9848
    %10914 = vmatprep.subr.bf16.mxu0 0
    %10915 = vmatpush1.bf16.msra.mxu0 %v9849
    %10916 = vmatprep.subr.bf16.mxu0 0
    %10917 = vmatpush1.bf16.msra.mxu0 %v9850
    %10918 = vmatprep.subr.bf16.mxu0 0
    %10919 = vmatpush1.bf16.msra.mxu0 %v9851
    %10920 = vmatprep.subr.bf16.mxu0 0
    %10921 = vmatpush1.bf16.msra.mxu0 %v9852
    %10922 = vmatprep.subr.bf16.mxu0 0
    %10923 = vmatpush1.bf16.msra.mxu0 %v9853
    %10924 = vmatprep.subr.bf16.mxu0 0
    %10925 = vmatpush1.bf16.msra.mxu0 %v9854
    %10926 = vmatprep.subr.bf16.mxu0 0
    %10927 = vmatpush1.bf16.msra.mxu0 %v9855
    %10928 = vmatprep.subr.bf16.mxu0 0
    %10929 = vmatpush1.bf16.msra.mxu0 %v9856
    %10930 = vmatprep.subr.bf16.mxu0 0
    %10931 = vmatpush1.bf16.msra.mxu0 %v9857
    %10932 = vmatprep.subr.bf16.mxu0 0
    %10933 = vmatpush1.bf16.msra.mxu0 %v9858
    %10934 = vmatprep.subr.bf16.mxu0 0
    %10935 = vmatpush1.bf16.msra.mxu0 %v9859
    %10936 = vmatprep.subr.bf16.mxu0 0
    %10937 = vmatpush1.bf16.msra.mxu0 %v9860
    %10938 = vmatprep.subr.bf16.mxu0 0
    %10939 = vmatpush1.bf16.msra.mxu0 %v9861
    %10940 = vmatprep.mubr.bf16.mxu0 %v6599
    %10941 = vmatmul.mubr.bf16.gmra.mrb[0].mxu0 %v6598
    %v10942 = vpop.f32.mrb[0].mxu0
    %v10943 = vadd.f32 %v7728, %v10942
    %v10944 = vpop.f32.mrb[0].mxu0
    %v10945 = vpop.f32.mrb[0].mxu0
    %v10946 = vpop.f32.mrb[0].mxu0
    %10947 = vdwg.mxu0
    %10948 = vmatprep.subr.bf16.mxu0 0
    %10949 = vmatpush1.bf16.msra.mxu0 %v9862
    %10950 = vmatprep.subr.bf16.mxu0 0
    %10951 = vmatpush1.bf16.msra.mxu0 %v9863
    %10952 = vmatprep.subr.bf16.mxu0 0
    %10953 = vmatpush1.bf16.msra.mxu0 %v9864
    %10954 = vmatprep.subr.bf16.mxu0 0
    %10955 = vmatpush1.bf16.msra.mxu0 %v9865
    %10956 = vmatprep.subr.bf16.mxu0 0
    %10957 = vmatpush1.bf16.msra.mxu0 %v9866
    %10958 = vmatprep.subr.bf16.mxu0 0
    %10959 = vmatpush1.bf16.msra.mxu0 %v9867
    %10960 = vmatprep.subr.bf16.mxu0 0
    %10961 = vmatpush1.bf16.msra.mxu0 %v9868
    %10962 = vmatprep.subr.bf16.mxu0 0
    %10963 = vmatpush1.bf16.msra.mxu0 %v9869
    %10964 = vmatprep.subr.bf16.mxu0 0
    %10965 = vmatpush1.bf16.msra.mxu0 %v9870
    %10966 = vmatprep.subr.bf16.mxu0 0
    %10967 = vmatpush1.bf16.msra.mxu0 %v9871
    %10968 = vmatprep.subr.bf16.mxu0 0
    %10969 = vmatpush1.bf16.msra.mxu0 %v9872
    %10970 = vmatprep.subr.bf16.mxu0 0
    %10971 = vmatpush1.bf16.msra.mxu0 %v9873
    %10972 = vmatprep.subr.bf16.mxu0 0
    %10973 = vmatpush1.bf16.msra.mxu0 %v9874
    %10974 = vmatprep.subr.bf16.mxu0 0
    %10975 = vmatpush1.bf16.msra.mxu0 %v9875
    %10976 = vmatprep.subr.bf16.mxu0 0
    %10977 = vmatpush1.bf16.msra.mxu0 %v9876
    %10978 = vmatprep.subr.bf16.mxu0 0
    %10979 = vmatpush1.bf16.msra.mxu0 %v9877
    %10980 = vmatprep.mubr.bf16.mxu0 %v6601
    %10981 = vmatmul.mubr.bf16.gmra.mrb[0].mxu0 %v6600
    %v10982 = vpop.f32.mrb[0].mxu0
    %v10983 = vadd.f32 %v10943, %v10982
    %v10984 = vpop.f32.mrb[0].mxu0
    %v10985 = vpop.f32.mrb[0].mxu0
    %v10986 = vpop.f32.mrb[0].mxu0
    %10987 = vdwg.mxu0
    %10988 = vmatprep.subr.bf16.mxu0 0
    %10989 = vmatpush1.bf16.msra.mxu0 %v9878
    %10990 = vmatprep.subr.bf16.mxu0 0
    %10991 = vmatpush1.bf16.msra.mxu0 %v9879
    %10992 = vmatprep.subr.bf16.mxu0 0
    %10993 = vmatpush1.bf16.msra.mxu0 %v9880
    %10994 = vmatprep.subr.bf16.mxu0 0
    %10995 = vmatpush1.bf16.msra.mxu0 %v9881
    %10996 = vmatprep.subr.bf16.mxu0 0
    %10997 = vmatpush1.bf16.msra.mxu0 %v9882
    %10998 = vmatprep.subr.bf16.mxu0 0
    %10999 = vmatpush1.bf16.msra.mxu0 %v9883
    %11000 = vmatprep.subr.bf16.mxu0 0
    %11001 = vmatpush1.bf16.msra.mxu0 %v9884
    %11002 = vmatprep.subr.bf16.mxu0 0
    %11003 = vmatpush1.bf16.msra.mxu0 %v9885
    %11004 = vmatprep.subr.bf16.mxu0 0
    %11005 = vmatpush1.bf16.msra.mxu0 %v9886
    %11006 = vmatprep.subr.bf16.mxu0 0
    %11007 = vmatpush1.bf16.msra.mxu0 %v9887
    %11008 = vmatprep.subr.bf16.mxu0 0
    %11009 = vmatpush1.bf16.msra.mxu0 %v9888
    %11010 = vmatprep.subr.bf16.mxu0 0
    %11011 = vmatpush1.bf16.msra.mxu0 %v9889
    %11012 = vmatprep.subr.bf16.mxu0 0
    %11013 = vmatpush1.bf16.msra.mxu0 %v9890
    %11014 = vmatprep.subr.bf16.mxu0 0
    %11015 = vmatpush1.bf16.msra.mxu0 %v9891
    %11016 = vmatprep.subr.bf16.mxu0 0
    %11017 = vmatpush1.bf16.msra.mxu0 %v9892
    %11018 = vmatprep.subr.bf16.mxu0 0
    %11019 = vmatpush1.bf16.msra.mxu0 %v9893
    %11020 = vmatprep.mubr.bf16.mxu0 %v6603
    %11021 = vmatmul.mubr.bf16.gmra.mrb[0].mxu0 %v6602
    %v11022 = vpop.f32.mrb[0].mxu0
    %v11023 = vadd.f32 %v10983, %v11022
    %v11024 = vpop.f32.mrb[0].mxu0
    %v11025 = vpop.f32.mrb[0].mxu0
    %v11026 = vpop.f32.mrb[0].mxu0
    %11027 = vdwg.mxu0
    %11028 = vmatprep.subr.bf16.mxu0 0
    %11029 = vmatpush1.bf16.msra.mxu0 %v9894
    %11030 = vmatprep.subr.bf16.mxu0 0
    %11031 = vmatpush1.bf16.msra.mxu0 %v9895
    %11032 = vmatprep.subr.bf16.mxu0 0
    %11033 = vmatpush1.bf16.msra.mxu0 %v9896
    %11034 = vmatprep.subr.bf16.mxu0 0
    %11035 = vmatpush1.bf16.msra.mxu0 %v9897
    %11036 = vmatprep.subr.bf16.mxu0 0
    %11037 = vmatpush1.bf16.msra.mxu0 %v9898
    %11038 = vmatprep.subr.bf16.mxu0 0
    %11039 = vmatpush1.bf16.msra.mxu0 %v9899
    %11040 = vmatprep.subr.bf16.mxu0 0
    %11041 = vmatpush1.bf16.msra.mxu0 %v9900
    %11042 = vmatprep.subr.bf16.mxu0 0
    %11043 = vmatpush1.bf16.msra.mxu0 %v9901
    %11044 = vmatprep.subr.bf16.mxu0 0
    %11045 = vmatpush1.bf16.msra.mxu0 %v9902
    %11046 = vmatprep.subr.bf16.mxu0 0
    %11047 = vmatpush1.bf16.msra.mxu0 %v9903
    %11048 = vmatprep.subr.bf16.mxu0 0
    %11049 = vmatpush1.bf16.msra.mxu0 %v9904
    %11050 = vmatprep.subr.bf16.mxu0 0
    %11051 = vmatpush1.bf16.msra.mxu0 %v9905
    %11052 = vmatprep.subr.bf16.mxu0 0
    %11053 = vmatpush1.bf16.msra.mxu0 %v9906
    %11054 = vmatprep.subr.bf16.mxu0 0
    %11055 = vmatpush1.bf16.msra.mxu0 %v9907
    %11056 = vmatprep.subr.bf16.mxu0 0
    %11057 = vmatpush1.bf16.msra.mxu0 %v9908
    %11058 = vmatprep.subr.bf16.mxu0 0
    %11059 = vmatpush1.bf16.msra.mxu0 %v9909
    %11060 = vmatprep.mubr.bf16.mxu0 %v6605
    %11061 = vmatmul.mubr.bf16.gmra.mrb[0].mxu0 %v6604
    %v11062 = vpop.f32.mrb[0].mxu0
    %v11063 = vadd.f32 %v11023, %v11062
    %v11064 = vpop.f32.mrb[0].mxu0
    %v11065 = vpop.f32.mrb[0].mxu0
    %v11066 = vpop.f32.mrb[0].mxu0
    %11067 = vdwg.mxu0
    %11068 = vmatprep.subr.bf16.mxu0 0
    %11069 = vmatpush1.bf16.msra.mxu0 %v9910
    %11070 = vmatprep.subr.bf16.mxu0 0
    %11071 = vmatpush1.bf16.msra.mxu0 %v9911
    %11072 = vmatprep.subr.bf16.mxu0 0
    %11073 = vmatpush1.bf16.msra.mxu0 %v9912
    %11074 = vmatprep.subr.bf16.mxu0 0
    %11075 = vmatpush1.bf16.msra.mxu0 %v9913
    %11076 = vmatprep.subr.bf16.mxu0 0
    %11077 = vmatpush1.bf16.msra.mxu0 %v9914
    %11078 = vmatprep.subr.bf16.mxu0 0
    %11079 = vmatpush1.bf16.msra.mxu0 %v9915
    %11080 = vmatprep.subr.bf16.mxu0 0
    %11081 = vmatpush1.bf16.msra.mxu0 %v9916
    %11082 = vmatprep.subr.bf16.mxu0 0
    %11083 = vmatpush1.bf16.msra.mxu0 %v9917
    %11084 = vmatprep.subr.bf16.mxu0 0
    %11085 = vmatpush1.bf16.msra.mxu0 %v9918
    %11086 = vmatprep.subr.bf16.mxu0 0
    %11087 = vmatpush1.bf16.msra.mxu0 %v9919
    %11088 = vmatprep.subr.bf16.mxu0 0
    %11089 = vmatpush1.bf16.msra.mxu0 %v9920
    %11090 = vmatprep.subr.bf16.mxu0 0
    %11091 = vmatpush1.bf16.msra.mxu0 %v9921
    %11092 = vmatprep.subr.bf16.mxu0 0
    %11093 = vmatpush1.bf16.msra.mxu0 %v9922
    %11094 = vmatprep.subr.bf16.mxu0 0
    %11095 = vmatpush1.bf16.msra.mxu0 %v9923
    %11096 = vmatprep.subr.bf16.mxu0 0
    %11097 = vmatpush1.bf16.msra.mxu0 %v9924
    %11098 = vmatprep.subr.bf16.mxu0 0
    %11099 = vmatpush1.bf16.msra.mxu0 %v9925
    %11100 = vmatprep.mubr.bf16.mxu0 %v6607
    %11101 = vmatmul.mubr.bf16.gmra.mrb[0].mxu0 %v6606
    %v11102 = vpop.f32.mrb[0].mxu0
    %v11103 = vadd.f32 %v11063, %v11102
    %v11104 = vpop.f32.mrb[0].mxu0
    %v11105 = vpop.f32.mrb[0].mxu0
    %v11106 = vpop.f32.mrb[0].mxu0
    %11107 = vdwg.mxu0
    %11108 = vmatprep.subr.bf16.mxu0 0
    %11109 = vmatpush1.bf16.msra.mxu0 %v9926
    %11110 = vmatprep.subr.bf16.mxu0 0
    %11111 = vmatpush1.bf16.msra.mxu0 %v9927
    %11112 = vmatprep.subr.bf16.mxu0 0
    %11113 = vmatpush1.bf16.msra.mxu0 %v9928
    %11114 = vmatprep.subr.bf16.mxu0 0
    %11115 = vmatpush1.bf16.msra.mxu0 %v9929
    %11116 = vmatprep.subr.bf16.mxu0 0
    %11117 = vmatpush1.bf16.msra.mxu0 %v9930
    %11118 = vmatprep.subr.bf16.mxu0 0
    %11119 = vmatpush1.bf16.msra.mxu0 %v9931
    %11120 = vmatprep.subr.bf16.mxu0 0
    %11121 = vmatpush1.bf16.msra.mxu0 %v9932
    %11122 = vmatprep.subr.bf16.mxu0 0
    %11123 = vmatpush1.bf16.msra.mxu0 %v9933
    %11124 = vmatprep.subr.bf16.mxu0 0
    %11125 = vmatpush1.bf16.msra.mxu0 %v9934
    %11126 = vmatprep.subr.bf16.mxu0 0
    %11127 = vmatpush1.bf16.msra.mxu0 %v9935
    %11128 = vmatprep.subr.bf16.mxu0 0
    %11129 = vmatpush1.bf16.msra.mxu0 %v9936
    %11130 = vmatprep.subr.bf16.mxu0 0
    %11131 = vmatpush1.bf16.msra.mxu0 %v9937
    %11132 = vmatprep.subr.bf16.mxu0 0
    %11133 = vmatpush1.bf16.msra.mxu0 %v9938
    %11134 = vmatprep.subr.bf16.mxu0 0
    %11135 = vmatpush1.bf16.msra.mxu0 %v9939
    %11136 = vmatprep.subr.bf16.mxu0 0
    %11137 = vmatpush1.bf16.msra.mxu0 %v9940
    %11138 = vmatprep.subr.bf16.mxu0 0
    %11139 = vmatpush1.bf16.msra.mxu0 %v9941
    %11140 = vmatprep.mubr.bf16.mxu0 %v6609
    %11141 = vmatmul.mubr.bf16.gmra.mrb[0].mxu0 %v6608
    %v11142 = vpop.f32.mrb[0].mxu0
    %v11143 = vadd.f32 %v11103, %v11142
    %v11144 = vpop.f32.mrb[0].mxu0
    %v11145 = vpop.f32.mrb[0].mxu0
    %v11146 = vpop.f32.mrb[0].mxu0
    %11147 = vdwg.mxu0
    %11148 = vmatprep.subr.bf16.mxu0 0
    %11149 = vmatpush1.bf16.msra.mxu0 %v9942
    %11150 = vmatprep.subr.bf16.mxu0 0
    %11151 = vmatpush1.bf16.msra.mxu0 %v9943
    %11152 = vmatprep.subr.bf16.mxu0 0
    %11153 = vmatpush1.bf16.msra.mxu0 %v9944
    %11154 = vmatprep.subr.bf16.mxu0 0
    %11155 = vmatpush1.bf16.msra.mxu0 %v9945
    %11156 = vmatprep.subr.bf16.mxu0 0
    %11157 = vmatpush1.bf16.msra.mxu0 %v9946
    %11158 = vmatprep.subr.bf16.mxu0 0
    %11159 = vmatpush1.bf16.msra.mxu0 %v9947
    %11160 = vmatprep.subr.bf16.mxu0 0
    %11161 = vmatpush1.bf16.msra.mxu0 %v9948
    %11162 = vmatprep.subr.bf16.mxu0 0
    %11163 = vmatpush1.bf16.msra.mxu0 %v9949
    %11164 = vmatprep.subr.bf16.mxu0 0
    %11165 = vmatpush1.bf16.msra.mxu0 %v9950
    %11166 = vmatprep.subr.bf16.mxu0 0
    %11167 = vmatpush1.bf16.msra.mxu0 %v9951
    %11168 = vmatprep.subr.bf16.mxu0 0
    %11169 = vmatpush1.bf16.msra.mxu0 %v9952
    %11170 = vmatprep.subr.bf16.mxu0 0
    %11171 = vmatpush1.bf16.msra.mxu0 %v9953
    %11172 = vmatprep.subr.bf16.mxu0 0
    %11173 = vmatpush1.bf16.msra.mxu0 %v9954
    %11174 = vmatprep.subr.bf16.mxu0 0
    %11175 = vmatpush1.bf16.msra.mxu0 %v9955
    %11176 = vmatprep.subr.bf16.mxu0 0
    %11177 = vmatpush1.bf16.msra.mxu0 %v9956
    %11178 = vmatprep.subr.bf16.mxu0 0
    %11179 = vmatpush1.bf16.msra.mxu0 %v9957
    %11180 = vmatprep.mubr.bf16.mxu0 %v6611
    %11181 = vmatmul.mubr.bf16.gmra.mrb[0].mxu0 %v6610
    %v11182 = vpop.f32.mrb[0].mxu0
    %v11183 = vadd.f32 %v11143, %v11182
    %v11184 = vpop.f32.mrb[0].mxu0
    %v11185 = vpop.f32.mrb[0].mxu0
    %v11186 = vpop.f32.mrb[0].mxu0
    %11187 = vdwg.mxu0
    %11188 = vmatprep.subr.bf16.mxu0 0
    %11189 = vmatpush1.bf16.msra.mxu0 %v9958
    %11190 = vmatprep.subr.bf16.mxu0 0
    %11191 = vmatpush1.bf16.msra.mxu0 %v9959
    %11192 = vmatprep.subr.bf16.mxu0 0
    %11193 = vmatpush1.bf16.msra.mxu0 %v9960
    %11194 = vmatprep.subr.bf16.mxu0 0
    %11195 = vmatpush1.bf16.msra.mxu0 %v9961
    %11196 = vmatprep.subr.bf16.mxu0 0
    %11197 = vmatpush1.bf16.msra.mxu0 %v9962
    %11198 = vmatprep.subr.bf16.mxu0 0
    %11199 = vmatpush1.bf16.msra.mxu0 %v9963
    %11200 = vmatprep.subr.bf16.mxu0 0
    %11201 = vmatpush1.bf16.msra.mxu0 %v9964
    %11202 = vmatprep.subr.bf16.mxu0 0
    %11203 = vmatpush1.bf16.msra.mxu0 %v9965
    %11204 = vmatprep.subr.bf16.mxu0 0
    %11205 = vmatpush1.bf16.msra.mxu0 %v9966
    %11206 = vmatprep.subr.bf16.mxu0 0
    %11207 = vmatpush1.bf16.msra.mxu0 %v9967
    %11208 = vmatprep.subr.bf16.mxu0 0
    %11209 = vmatpush1.bf16.msra.mxu0 %v9968
    %11210 = vmatprep.subr.bf16.mxu0 0
    %11211 = vmatpush1.bf16.msra.mxu0 %v9969
    %11212 = vmatprep.subr.bf16.mxu0 0
    %11213 = vmatpush1.bf16.msra.mxu0 %v9970
    %11214 = vmatprep.subr.bf16.mxu0 0
    %11215 = vmatpush1.bf16.msra.mxu0 %v9971
    %11216 = vmatprep.subr.bf16.mxu0 0
    %11217 = vmatpush1.bf16.msra.mxu0 %v9972
    %11218 = vmatprep.subr.bf16.mxu0 0
    %11219 = vmatpush1.bf16.msra.mxu0 %v9973
    %11220 = vmatprep.mubr.bf16.mxu0 %v6613
    %11221 = vmatmul.mubr.bf16.gmra.mrb[0].mxu0 %v6612
    %v11222 = vpop.f32.mrb[0].mxu0
    %v11223 = vadd.f32 %v11183, %v11222
    %v11224 = vpop.f32.mrb[0].mxu0
    %v11225 = vpop.f32.mrb[0].mxu0
    %v11226 = vpop.f32.mrb[0].mxu0
    %11227 = vdwg.mxu0
    %11228 = vmatprep.subr.bf16.mxu0 0
    %11229 = vmatpush1.bf16.msra.mxu0 %v9974
    %11230 = vmatprep.subr.bf16.mxu0 0
    %11231 = vmatpush1.bf16.msra.mxu0 %v9975
    %11232 = vmatprep.subr.bf16.mxu0 0
    %11233 = vmatpush1.bf16.msra.mxu0 %v9976
    %11234 = vmatprep.subr.bf16.mxu0 0
    %11235 = vmatpush1.bf16.msra.mxu0 %v9977
    %11236 = vmatprep.subr.bf16.mxu0 0
    %11237 = vmatpush1.bf16.msra.mxu0 %v9978
    %11238 = vmatprep.subr.bf16.mxu0 0
    %11239 = vmatpush1.bf16.msra.mxu0 %v9979
    %11240 = vmatprep.subr.bf16.mxu0 0
    %11241 = vmatpush1.bf16.msra.mxu0 %v9980
    %11242 = vmatprep.subr.bf16.mxu0 0
    %11243 = vmatpush1.bf16.msra.mxu0 %v9981
    %11244 = vmatprep.subr.bf16.mxu0 0
    %11245 = vmatpush1.bf16.msra.mxu0 %v9982
    %11246 = vmatprep.subr.bf16.mxu0 0
    %11247 = vmatpush1.bf16.msra.mxu0 %v9983
    %11248 = vmatprep.subr.bf16.mxu0 0
    %11249 = vmatpush1.bf16.msra.mxu0 %v9984
    %11250 = vmatprep.subr.bf16.mxu0 0
    %11251 = vmatpush1.bf16.msra.mxu0 %v9985
    %11252 = vmatprep.subr.bf16.mxu0 0
    %11253 = vmatpush1.bf16.msra.mxu0 %v9986
    %11254 = vmatprep.subr.bf16.mxu0 0
    %11255 = vmatpush1.bf16.msra.mxu0 %v9987
    %11256 = vmatprep.subr.bf16.mxu0 0
    %11257 = vmatpush1.bf16.msra.mxu0 %v9988
    %11258 = vmatprep.subr.bf16.mxu0 0
    %11259 = vmatpush1.bf16.msra.mxu0 %v9989
    %11260 = vmatprep.mubr.bf16.mxu0 %v6615
    %11261 = vmatmul.mubr.bf16.gmra.mrb[0].mxu0 %v6614
    %v11262 = vpop.f32.mrb[0].mxu0
    %v11263 = vadd.f32 %v11223, %v11262
    %v11264 = vpop.f32.mrb[0].mxu0
    %v11265 = vpop.f32.mrb[0].mxu0
    %v11266 = vpop.f32.mrb[0].mxu0
    %11267 = vdwg.mxu0
    %11268 = vmatprep.subr.bf16.mxu0 0
    %11269 = vmatpush1.bf16.msra.mxu0 %v9990
    %11270 = vmatprep.subr.bf16.mxu0 0
    %11271 = vmatpush1.bf16.msra.mxu0 %v9991
    %11272 = vmatprep.subr.bf16.mxu0 0
    %11273 = vmatpush1.bf16.msra.mxu0 %v9992
    %11274 = vmatprep.subr.bf16.mxu0 0
    %11275 = vmatpush1.bf16.msra.mxu0 %v9993
    %11276 = vmatprep.subr.bf16.mxu0 0
    %11277 = vmatpush1.bf16.msra.mxu0 %v9994
    %11278 = vmatprep.subr.bf16.mxu0 0
    %11279 = vmatpush1.bf16.msra.mxu0 %v9995
    %11280 = vmatprep.subr.bf16.mxu0 0
    %11281 = vmatpush1.bf16.msra.mxu0 %v9996
    %11282 = vmatprep.subr.bf16.mxu0 0
    %11283 = vmatpush1.bf16.msra.mxu0 %v9997
    %11284 = vmatprep.subr.bf16.mxu0 0
    %11285 = vmatpush1.bf16.msra.mxu0 %v9998
    %11286 = vmatprep.subr.bf16.mxu0 0
    %11287 = vmatpush1.bf16.msra.mxu0 %v9999
    %11288 = vmatprep.subr.bf16.mxu0 0
    %11289 = vmatpush1.bf16.msra.mxu0 %v10000
    %11290 = vmatprep.subr.bf16.mxu0 0
    %11291 = vmatpush1.bf16.msra.mxu0 %v10001
    %11292 = vmatprep.subr.bf16.mxu0 0
    %11293 = vmatpush1.bf16.msra.mxu0 %v10002
    %11294 = vmatprep.subr.bf16.mxu0 0
    %11295 = vmatpush1.bf16.msra.mxu0 %v10003
    %11296 = vmatprep.subr.bf16.mxu0 0
    %11297 = vmatpush1.bf16.msra.mxu0 %v10004
    %11298 = vmatprep.subr.bf16.mxu0 0
    %11299 = vmatpush1.bf16.msra.mxu0 %v10005
    %11300 = vmatprep.mubr.bf16.mxu0 %v6617
    %11301 = vmatmul.mubr.bf16.gmra.mrb[0].mxu0 %v6616
    %v11302 = vpop.f32.mrb[0].mxu0
    %v11303 = vadd.f32 %v11263, %v11302
    %v11304 = vpop.f32.mrb[0].mxu0
    %v11305 = vpop.f32.mrb[0].mxu0
    %v11306 = vpop.f32.mrb[0].mxu0
    %11307 = vdwg.mxu0
    %11308 = vmatprep.subr.bf16.mxu0 0
    %11309 = vmatpush1.bf16.msra.mxu0 %v10006
    %11310 = vmatprep.subr.bf16.mxu0 0
    %11311 = vmatpush1.bf16.msra.mxu0 %v10007
    %11312 = vmatprep.subr.bf16.mxu0 0
    %11313 = vmatpush1.bf16.msra.mxu0 %v10008
    %11314 = vmatprep.subr.bf16.mxu0 0
    %11315 = vmatpush1.bf16.msra.mxu0 %v10009
    %11316 = vmatprep.subr.bf16.mxu0 0
    %11317 = vmatpush1.bf16.msra.mxu0 %v10010
    %11318 = vmatprep.subr.bf16.mxu0 0
    %11319 = vmatpush1.bf16.msra.mxu0 %v10011
    %11320 = vmatprep.subr.bf16.mxu0 0
    %11321 = vmatpush1.bf16.msra.mxu0 %v10012
    %11322 = vmatprep.subr.bf16.mxu0 0
    %11323 = vmatpush1.bf16.msra.mxu0 %v10013
    %11324 = vmatprep.subr.bf16.mxu0 0
    %11325 = vmatpush1.bf16.msra.mxu0 %v10014
    %11326 = vmatprep.subr.bf16.mxu0 0
    %11327 = vmatpush1.bf16.msra.mxu0 %v10015
    %11328 = vmatprep.subr.bf16.mxu0 0
    %11329 = vmatpush1.bf16.msra.mxu0 %v10016
    %11330 = vmatprep.subr.bf16.mxu0 0
    %11331 = vmatpush1.bf16.msra.mxu0 %v10017
    %11332 = vmatprep.subr.bf16.mxu0 0
    %11333 = vmatpush1.bf16.msra.mxu0 %v10018
    %11334 = vmatprep.subr.bf16.mxu0 0
    %11335 = vmatpush1.bf16.msra.mxu0 %v10019
    %11336 = vmatprep.subr.bf16.mxu0 0
    %11337 = vmatpush1.bf16.msra.mxu0 %v10020
    %11338 = vmatprep.subr.bf16.mxu0 0
    %11339 = vmatpush1.bf16.msra.mxu0 %v10021
    %11340 = vmatprep.mubr.bf16.mxu0 %v6619
    %11341 = vmatmul.mubr.bf16.gmra.mrb[0].mxu0 %v6618
    %v11342 = vpop.f32.mrb[0].mxu0
    %v11343 = vadd.f32 %v11303, %v11342
    %v11344 = vpop.f32.mrb[0].mxu0
    %v11345 = vpop.f32.mrb[0].mxu0
    %v11346 = vpop.f32.mrb[0].mxu0
    %11347 = vdwg.mxu0
    %11348 = vmatprep.subr.bf16.mxu0 0
    %11349 = vmatpush1.bf16.msra.mxu0 %v10022
    %11350 = vmatprep.subr.bf16.mxu0 0
    %11351 = vmatpush1.bf16.msra.mxu0 %v10023
    %11352 = vmatprep.subr.bf16.mxu0 0
    %11353 = vmatpush1.bf16.msra.mxu0 %v10024
    %11354 = vmatprep.subr.bf16.mxu0 0
    %11355 = vmatpush1.bf16.msra.mxu0 %v10025
    %11356 = vmatprep.subr.bf16.mxu0 0
    %11357 = vmatpush1.bf16.msra.mxu0 %v10026
    %11358 = vmatprep.subr.bf16.mxu0 0
    %11359 = vmatpush1.bf16.msra.mxu0 %v10027
    %11360 = vmatprep.subr.bf16.mxu0 0
    %11361 = vmatpush1.bf16.msra.mxu0 %v10028
    %11362 = vmatprep.subr.bf16.mxu0 0
    %11363 = vmatpush1.bf16.msra.mxu0 %v10029
    %11364 = vmatprep.subr.bf16.mxu0 0
    %11365 = vmatpush1.bf16.msra.mxu0 %v10030
    %11366 = vmatprep.subr.bf16.mxu0 0
    %11367 = vmatpush1.bf16.msra.mxu0 %v10031
    %11368 = vmatprep.subr.bf16.mxu0 0
    %11369 = vmatpush1.bf16.msra.mxu0 %v10032
    %11370 = vmatprep.subr.bf16.mxu0 0
    %11371 = vmatpush1.bf16.msra.mxu0 %v10033
    %11372 = vmatprep.subr.bf16.mxu0 0
    %11373 = vmatpush1.bf16.msra.mxu0 %v10034
    %11374 = vmatprep.subr.bf16.mxu0 0
    %11375 = vmatpush1.bf16.msra.mxu0 %v10035
    %11376 = vmatprep.subr.bf16.mxu0 0
    %11377 = vmatpush1.bf16.msra.mxu0 %v10036
    %11378 = vmatprep.subr.bf16.mxu0 0
    %11379 = vmatpush1.bf16.msra.mxu0 %v10037
    %11380 = vmatprep.mubr.bf16.mxu0 %v6621
    %11381 = vmatmul.mubr.bf16.gmra.mrb[0].mxu0 %v6620
    %v11382 = vpop.f32.mrb[0].mxu0
    %v11383 = vadd.f32 %v11343, %v11382
    %v11384 = vpop.f32.mrb[0].mxu0
    %v11385 = vpop.f32.mrb[0].mxu0
    %v11386 = vpop.f32.mrb[0].mxu0
    %11387 = vdwg.mxu0
    %11388 = vmatprep.subr.bf16.mxu0 0
    %11389 = vmatpush1.bf16.msra.mxu0 %v10038
    %11390 = vmatprep.subr.bf16.mxu0 0
    %11391 = vmatpush1.bf16.msra.mxu0 %v10039
    %11392 = vmatprep.subr.bf16.mxu0 0
    %11393 = vmatpush1.bf16.msra.mxu0 %v10040
    %11394 = vmatprep.subr.bf16.mxu0 0
    %11395 = vmatpush1.bf16.msra.mxu0 %v10041
    %11396 = vmatprep.subr.bf16.mxu0 0
    %11397 = vmatpush1.bf16.msra.mxu0 %v10042
    %11398 = vmatprep.subr.bf16.mxu0 0
    %11399 = vmatpush1.bf16.msra.mxu0 %v10043
    %11400 = vmatprep.subr.bf16.mxu0 0
    %11401 = vmatpush1.bf16.msra.mxu0 %v10044
    %11402 = vmatprep.subr.bf16.mxu0 0
    %11403 = vmatpush1.bf16.msra.mxu0 %v10045
    %11404 = vmatprep.subr.bf16.mxu0 0
    %11405 = vmatpush1.bf16.msra.mxu0 %v10046
    %11406 = vmatprep.subr.bf16.mxu0 0
    %11407 = vmatpush1.bf16.msra.mxu0 %v10047
    %11408 = vmatprep.subr.bf16.mxu0 0
    %11409 = vmatpush1.bf16.msra.mxu0 %v10048
    %11410 = vmatprep.subr.bf16.mxu0 0
    %11411 = vmatpush1.bf16.msra.mxu0 %v10049
    %11412 = vmatprep.subr.bf16.mxu0 0
    %11413 = vmatpush1.bf16.msra.mxu0 %v10050
    %11414 = vmatprep.subr.bf16.mxu0 0
    %11415 = vmatpush1.bf16.msra.mxu0 %v10051
    %11416 = vmatprep.subr.bf16.mxu0 0
    %11417 = vmatpush1.bf16.msra.mxu0 %v10052
    %11418 = vmatprep.subr.bf16.mxu0 0
    %11419 = vmatpush1.bf16.msra.mxu0 %v10053
    %11420 = vmatprep.mubr.bf16.mxu0 %v6623
    %11421 = vmatmul.mubr.bf16.gmra.mrb[0].mxu0 %v6622
    %v11422 = vpop.f32.mrb[0].mxu0
    %v11423 = vadd.f32 %v11383, %v11422
    %v11424 = vpop.f32.mrb[0].mxu0
    %v11425 = vpop.f32.mrb[0].mxu0
    %v11426 = vpop.f32.mrb[0].mxu0
    %11427 = vdwg.mxu0
    %11428 = vmatprep.subr.bf16.mxu0 0
    %11429 = vmatpush1.bf16.msra.mxu0 %v10054
    %11430 = vmatprep.subr.bf16.mxu0 0
    %11431 = vmatpush1.bf16.msra.mxu0 %v10055
    %11432 = vmatprep.subr.bf16.mxu0 0
    %11433 = vmatpush1.bf16.msra.mxu0 %v10056
    %11434 = vmatprep.subr.bf16.mxu0 0
    %11435 = vmatpush1.bf16.msra.mxu0 %v10057
    %11436 = vmatprep.subr.bf16.mxu0 0
    %11437 = vmatpush1.bf16.msra.mxu0 %v10058
    %11438 = vmatprep.subr.bf16.mxu0 0
    %11439 = vmatpush1.bf16.msra.mxu0 %v10059
    %11440 = vmatprep.subr.bf16.mxu0 0
    %11441 = vmatpush1.bf16.msra.mxu0 %v10060
    %11442 = vmatprep.subr.bf16.mxu0 0
    %11443 = vmatpush1.bf16.msra.mxu0 %v10061
    %11444 = vmatprep.subr.bf16.mxu0 0
    %11445 = vmatpush1.bf16.msra.mxu0 %v10062
    %11446 = vmatprep.subr.bf16.mxu0 0
    %11447 = vmatpush1.bf16.msra.mxu0 %v10063
    %11448 = vmatprep.subr.bf16.mxu0 0
    %11449 = vmatpush1.bf16.msra.mxu0 %v10064
    %11450 = vmatprep.subr.bf16.mxu0 0
    %11451 = vmatpush1.bf16.msra.mxu0 %v10065
    %11452 = vmatprep.subr.bf16.mxu0 0
    %11453 = vmatpush1.bf16.msra.mxu0 %v10066
    %11454 = vmatprep.subr.bf16.mxu0 0
    %11455 = vmatpush1.bf16.msra.mxu0 %v10067
    %11456 = vmatprep.subr.bf16.mxu0 0
    %11457 = vmatpush1.bf16.msra.mxu0 %v10068
    %11458 = vmatprep.subr.bf16.mxu0 0
    %11459 = vmatpush1.bf16.msra.mxu0 %v10069
    %11460 = vmatprep.mubr.bf16.mxu0 %v6625
    %11461 = vmatmul.mubr.bf16.gmra.mrb[0].mxu0 %v6624
    %v11462 = vpop.f32.mrb[0].mxu0
    %v11463 = vadd.f32 %v11423, %v11462
    %v11464 = vpop.f32.mrb[0].mxu0
    %v11465 = vpop.f32.mrb[0].mxu0
    %v11466 = vpop.f32.mrb[0].mxu0
    %11467 = vdwg.mxu0
    %11468 = vmatprep.subr.bf16.mxu0 0
    %11469 = vmatpush1.bf16.msra.mxu0 %v10070
    %11470 = vmatprep.subr.bf16.mxu0 0
    %11471 = vmatpush1.bf16.msra.mxu0 %v10071
    %11472 = vmatprep.subr.bf16.mxu0 0
    %11473 = vmatpush1.bf16.msra.mxu0 %v10072
    %11474 = vmatprep.subr.bf16.mxu0 0
    %11475 = vmatpush1.bf16.msra.mxu0 %v10073
    %11476 = vmatprep.subr.bf16.mxu0 0
    %11477 = vmatpush1.bf16.msra.mxu0 %v10074
    %11478 = vmatprep.subr.bf16.mxu0 0
    %11479 = vmatpush1.bf16.msra.mxu0 %v10075
    %11480 = vmatprep.subr.bf16.mxu0 0
    %11481 = vmatpush1.bf16.msra.mxu0 %v10076
    %11482 = vmatprep.subr.bf16.mxu0 0
    %11483 = vmatpush1.bf16.msra.mxu0 %v10077
    %11484 = vmatprep.subr.bf16.mxu0 0
    %11485 = vmatpush1.bf16.msra.mxu0 %v10078
    %11486 = vmatprep.subr.bf16.mxu0 0
    %11487 = vmatpush1.bf16.msra.mxu0 %v10079
    %11488 = vmatprep.subr.bf16.mxu0 0
    %11489 = vmatpush1.bf16.msra.mxu0 %v10080
    %11490 = vmatprep.subr.bf16.mxu0 0
    %11491 = vmatpush1.bf16.msra.mxu0 %v10081
    %11492 = vmatprep.subr.bf16.mxu0 0
    %11493 = vmatpush1.bf16.msra.mxu0 %v10082
    %11494 = vmatprep.subr.bf16.mxu0 0
    %11495 = vmatpush1.bf16.msra.mxu0 %v10083
    %11496 = vmatprep.subr.bf16.mxu0 0
    %11497 = vmatpush1.bf16.msra.mxu0 %v10084
    %11498 = vmatprep.subr.bf16.mxu0 0
    %11499 = vmatpush1.bf16.msra.mxu0 %v10085
    %11500 = vmatprep.mubr.bf16.mxu0 %v6627
    %11501 = vmatmul.mubr.bf16.gmra.mrb[0].mxu0 %v6626
    %v11502 = vpop.f32.mrb[0].mxu0
    %v11503 = vadd.f32 %v11463, %v11502
    %v11504 = vpop.f32.mrb[0].mxu0
    %v11505 = vpop.f32.mrb[0].mxu0
    %v11506 = vpop.f32.mrb[0].mxu0
    %11507 = vdwg.mxu0
    %11508 = vmatprep.subr.bf16.mxu0 0
    %11509 = vmatpush1.bf16.msra.mxu0 %v10086
    %11510 = vmatprep.subr.bf16.mxu0 0
    %11511 = vmatpush1.bf16.msra.mxu0 %v10087
    %11512 = vmatprep.subr.bf16.mxu0 0
    %11513 = vmatpush1.bf16.msra.mxu0 %v10088
    %11514 = vmatprep.subr.bf16.mxu0 0
    %11515 = vmatpush1.bf16.msra.mxu0 %v10089
    %11516 = vmatprep.subr.bf16.mxu0 0
    %11517 = vmatpush1.bf16.msra.mxu0 %v10090
    %11518 = vmatprep.subr.bf16.mxu0 0
    %11519 = vmatpush1.bf16.msra.mxu0 %v10091
    %11520 = vmatprep.subr.bf16.mxu0 0
    %11521 = vmatpush1.bf16.msra.mxu0 %v10092
    %11522 = vmatprep.subr.bf16.mxu0 0
    %11523 = vmatpush1.bf16.msra.mxu0 %v10093
    %11524 = vmatprep.subr.bf16.mxu0 0
    %11525 = vmatpush1.bf16.msra.mxu0 %v10094
    %11526 = vmatprep.subr.bf16.mxu0 0
    %11527 = vmatpush1.bf16.msra.mxu0 %v10095
    %11528 = vmatprep.subr.bf16.mxu0 0
    %11529 = vmatpush1.bf16.msra.mxu0 %v10096
    %11530 = vmatprep.subr.bf16.mxu0 0
    %11531 = vmatpush1.bf16.msra.mxu0 %v10097
    %11532 = vmatprep.subr.bf16.mxu0 0
    %11533 = vmatpush1.bf16.msra.mxu0 %v10098
    %11534 = vmatprep.subr.bf16.mxu0 0
    %11535 = vmatpush1.bf16.msra.mxu0 %v10099
    %11536 = vmatprep.subr.bf16.mxu0 0
    %11537 = vmatpush1.bf16.msra.mxu0 %v10100
    %11538 = vmatprep.subr.bf16.mxu0 0
    %11539 = vmatpush1.bf16.msra.mxu0 %v10101
    %11540 = vmatprep.mubr.bf16.mxu0 %v6629
    %11541 = vmatmul.mubr.bf16.gmra.mrb[0].mxu0 %v6628
    %v11542 = vpop.f32.mrb[0].mxu0
    %v11543 = vadd.f32 %v11503, %v11542
    %v11544 = vpop.f32.mrb[0].mxu0
    %v11545 = vpop.f32.mrb[0].mxu0
    %v11546 = vpop.f32.mrb[0].mxu0
    %11547 = vdwg.mxu0
    %11548 = vmatprep.subr.bf16.mxu0 0
    %11549 = vmatpush1.bf16.msra.mxu0 %v10102
    %11550 = vmatprep.subr.bf16.mxu0 0
    %11551 = vmatpush1.bf16.msra.mxu0 %v10103
    %11552 = vmatprep.subr.bf16.mxu0 0
    %11553 = vmatpush1.bf16.msra.mxu0 %v10104
    %11554 = vmatprep.subr.bf16.mxu0 0
    %11555 = vmatpush1.bf16.msra.mxu0 %v10105
    %11556 = vmatprep.subr.bf16.mxu0 0
    %11557 = vmatpush1.bf16.msra.mxu0 %v10106
    %11558 = vmatprep.subr.bf16.mxu0 0
    %11559 = vmatpush1.bf16.msra.mxu0 %v10107
    %11560 = vmatprep.subr.bf16.mxu0 0
    %11561 = vmatpush1.bf16.msra.mxu0 %v10108
    %11562 = vmatprep.subr.bf16.mxu0 0
    %11563 = vmatpush1.bf16.msra.mxu0 %v10109
    %11564 = vmatprep.subr.bf16.mxu0 0
    %11565 = vmatpush1.bf16.msra.mxu0 %v10110
    %11566 = vmatprep.subr.bf16.mxu0 0
    %11567 = vmatpush1.bf16.msra.mxu0 %v10111
    %11568 = vmatprep.subr.bf16.mxu0 0
    %11569 = vmatpush1.bf16.msra.mxu0 %v10112
    %11570 = vmatprep.subr.bf16.mxu0 0
    %11571 = vmatpush1.bf16.msra.mxu0 %v10113
    %11572 = vmatprep.subr.bf16.mxu0 0
    %11573 = vmatpush1.bf16.msra.mxu0 %v10114
    %11574 = vmatprep.subr.bf16.mxu0 0
    %11575 = vmatpush1.bf16.msra.mxu0 %v10115
    %11576 = vmatprep.subr.bf16.mxu0 0
    %11577 = vmatpush1.bf16.msra.mxu0 %v10116
    %11578 = vmatprep.subr.bf16.mxu0 0
    %11579 = vmatpush1.bf16.msra.mxu0 %v10117
    %11580 = vmatprep.mubr.bf16.mxu0 %v6631
    %11581 = vmatmul.mubr.bf16.gmra.mrb[0].mxu0 %v6630
    %v11582 = vpop.f32.mrb[0].mxu0
    %v11583 = vadd.f32 %v11543, %v11582
    %v11584 = vpop.f32.mrb[0].mxu0
    %v11585 = vpop.f32.mrb[0].mxu0
    %v11586 = vpop.f32.mrb[0].mxu0
    %11587 = vdwg.mxu0
    %11588 = vmatprep.subr.bf16.mxu0 0
    %11589 = vmatpush1.bf16.msra.mxu0 %v10118
    %11590 = vmatprep.subr.bf16.mxu0 0
    %11591 = vmatpush1.bf16.msra.mxu0 %v10119
    %11592 = vmatprep.subr.bf16.mxu0 0
    %11593 = vmatpush1.bf16.msra.mxu0 %v10120
    %11594 = vmatprep.subr.bf16.mxu0 0
    %11595 = vmatpush1.bf16.msra.mxu0 %v10121
    %11596 = vmatprep.subr.bf16.mxu0 0
    %11597 = vmatpush1.bf16.msra.mxu0 %v10122
    %11598 = vmatprep.subr.bf16.mxu0 0
    %11599 = vmatpush1.bf16.msra.mxu0 %v10123
    %11600 = vmatprep.subr.bf16.mxu0 0
    %11601 = vmatpush1.bf16.msra.mxu0 %v10124
    %11602 = vmatprep.subr.bf16.mxu0 0
    %11603 = vmatpush1.bf16.msra.mxu0 %v10125
    %11604 = vmatprep.subr.bf16.mxu0 0
    %11605 = vmatpush1.bf16.msra.mxu0 %v10126
    %11606 = vmatprep.subr.bf16.mxu0 0
    %11607 = vmatpush1.bf16.msra.mxu0 %v10127
    %11608 = vmatprep.subr.bf16.mxu0 0
    %11609 = vmatpush1.bf16.msra.mxu0 %v10128
    %11610 = vmatprep.subr.bf16.mxu0 0
    %11611 = vmatpush1.bf16.msra.mxu0 %v10129
    %11612 = vmatprep.subr.bf16.mxu0 0
    %11613 = vmatpush1.bf16.msra.mxu0 %v10130
    %11614 = vmatprep.subr.bf16.mxu0 0
    %11615 = vmatpush1.bf16.msra.mxu0 %v10131
    %11616 = vmatprep.subr.bf16.mxu0 0
    %11617 = vmatpush1.bf16.msra.mxu0 %v10132
    %11618 = vmatprep.subr.bf16.mxu0 0
    %11619 = vmatpush1.bf16.msra.mxu0 %v10133
    %11620 = vmatprep.mubr.bf16.mxu0 %v6633
    %11621 = vmatmul.mubr.bf16.gmra.mrb[0].mxu0 %v6632
    %v11622 = vpop.f32.mrb[0].mxu0
    %v11623 = vadd.f32 %v11583, %v11622
    %v11624 = vpop.f32.mrb[0].mxu0
    %v11625 = vpop.f32.mrb[0].mxu0
    %v11626 = vpop.f32.mrb[0].mxu0
    %11627 = vdwg.mxu0
    %11628 = vmatprep.subr.bf16.mxu0 0
    %11629 = vmatpush1.bf16.msra.mxu0 %v10134
    %11630 = vmatprep.subr.bf16.mxu0 0
    %11631 = vmatpush1.bf16.msra.mxu0 %v10135
    %11632 = vmatprep.subr.bf16.mxu0 0
    %11633 = vmatpush1.bf16.msra.mxu0 %v10136
    %11634 = vmatprep.subr.bf16.mxu0 0
    %11635 = vmatpush1.bf16.msra.mxu0 %v10137
    %11636 = vmatprep.subr.bf16.mxu0 0
    %11637 = vmatpush1.bf16.msra.mxu0 %v10138
    %11638 = vmatprep.subr.bf16.mxu0 0
    %11639 = vmatpush1.bf16.msra.mxu0 %v10139
    %11640 = vmatprep.subr.bf16.mxu0 0
    %11641 = vmatpush1.bf16.msra.mxu0 %v10140
    %11642 = vmatprep.subr.bf16.mxu0 0
    %11643 = vmatpush1.bf16.msra.mxu0 %v10141
    %11644 = vmatprep.subr.bf16.mxu0 0
    %11645 = vmatpush1.bf16.msra.mxu0 %v10142
    %11646 = vmatprep.subr.bf16.mxu0 0
    %11647 = vmatpush1.bf16.msra.mxu0 %v10143
    %11648 = vmatprep.subr.bf16.mxu0 0
    %11649 = vmatpush1.bf16.msra.mxu0 %v10144
    %11650 = vmatprep.subr.bf16.mxu0 0
    %11651 = vmatpush1.bf16.msra.mxu0 %v10145
    %11652 = vmatprep.subr.bf16.mxu0 0
    %11653 = vmatpush1.bf16.msra.mxu0 %v10146
    %11654 = vmatprep.subr.bf16.mxu0 0
    %11655 = vmatpush1.bf16.msra.mxu0 %v10147
    %11656 = vmatprep.subr.bf16.mxu0 0
    %11657 = vmatpush1.bf16.msra.mxu0 %v10148
    %11658 = vmatprep.subr.bf16.mxu0 0
    %11659 = vmatpush1.bf16.msra.mxu0 %v10149
    %11660 = vmatprep.mubr.bf16.mxu0 %v6635
    %11661 = vmatmul.mubr.bf16.gmra.mrb[0].mxu0 %v6634
    %v11662 = vpop.f32.mrb[0].mxu0
    %v11663 = vadd.f32 %v11623, %v11662
    %v11664 = vpop.f32.mrb[0].mxu0
    %v11665 = vpop.f32.mrb[0].mxu0
    %v11666 = vpop.f32.mrb[0].mxu0
    %11667 = vdwg.mxu0
    %11668 = vmatprep.subr.bf16.mxu0 0
    %11669 = vmatpush1.bf16.msra.mxu0 %v10150
    %11670 = vmatprep.subr.bf16.mxu0 0
    %11671 = vmatpush1.bf16.msra.mxu0 %v10151
    %11672 = vmatprep.subr.bf16.mxu0 0
    %11673 = vmatpush1.bf16.msra.mxu0 %v10152
    %11674 = vmatprep.subr.bf16.mxu0 0
    %11675 = vmatpush1.bf16.msra.mxu0 %v10153
    %11676 = vmatprep.subr.bf16.mxu0 0
    %11677 = vmatpush1.bf16.msra.mxu0 %v10154
    %11678 = vmatprep.subr.bf16.mxu0 0
    %11679 = vmatpush1.bf16.msra.mxu0 %v10155
    %11680 = vmatprep.subr.bf16.mxu0 0
    %11681 = vmatpush1.bf16.msra.mxu0 %v10156
    %11682 = vmatprep.subr.bf16.mxu0 0
    %11683 = vmatpush1.bf16.msra.mxu0 %v10157
    %11684 = vmatprep.subr.bf16.mxu0 0
    %11685 = vmatpush1.bf16.msra.mxu0 %v10158
    %11686 = vmatprep.subr.bf16.mxu0 0
    %11687 = vmatpush1.bf16.msra.mxu0 %v10159
    %11688 = vmatprep.subr.bf16.mxu0 0
    %11689 = vmatpush1.bf16.msra.mxu0 %v10160
    %11690 = vmatprep.subr.bf16.mxu0 0
    %11691 = vmatpush1.bf16.msra.mxu0 %v10161
    %11692 = vmatprep.subr.bf16.mxu0 0
    %11693 = vmatpush1.bf16.msra.mxu0 %v10162
    %11694 = vmatprep.subr.bf16.mxu0 0
    %11695 = vmatpush1.bf16.msra.mxu0 %v10163
    %11696 = vmatprep.subr.bf16.mxu0 0
    %11697 = vmatpush1.bf16.msra.mxu0 %v10164
    %11698 = vmatprep.subr.bf16.mxu0 0
    %11699 = vmatpush1.bf16.msra.mxu0 %v10165
    %11700 = vmatprep.mubr.bf16.mxu0 %v6637
    %11701 = vmatmul.mubr.bf16.gmra.mrb[0].mxu0 %v6636
    %v11702 = vpop.f32.mrb[0].mxu0
    %v11703 = vadd.f32 %v11663, %v11702
    %v11704 = vpop.f32.mrb[0].mxu0
    %v11705 = vpop.f32.mrb[0].mxu0
    %v11706 = vpop.f32.mrb[0].mxu0
    %11707 = vdwg.mxu0
    %11708 = vmatprep.subr.bf16.mxu0 0
    %11709 = vmatpush1.bf16.msra.mxu0 %v10166
    %11710 = vmatprep.subr.bf16.mxu0 0
    %11711 = vmatpush1.bf16.msra.mxu0 %v10167
    %11712 = vmatprep.subr.bf16.mxu0 0
    %11713 = vmatpush1.bf16.msra.mxu0 %v10168
    %11714 = vmatprep.subr.bf16.mxu0 0
    %11715 = vmatpush1.bf16.msra.mxu0 %v10169
    %11716 = vmatprep.subr.bf16.mxu0 0
    %11717 = vmatpush1.bf16.msra.mxu0 %v10170
    %11718 = vmatprep.subr.bf16.mxu0 0
    %11719 = vmatpush1.bf16.msra.mxu0 %v10171
    %11720 = vmatprep.subr.bf16.mxu0 0
    %11721 = vmatpush1.bf16.msra.mxu0 %v10172
    %11722 = vmatprep.subr.bf16.mxu0 0
    %11723 = vmatpush1.bf16.msra.mxu0 %v10173
    %11724 = vmatprep.subr.bf16.mxu0 0
    %11725 = vmatpush1.bf16.msra.mxu0 %v10174
    %11726 = vmatprep.subr.bf16.mxu0 0
    %11727 = vmatpush1.bf16.msra.mxu0 %v10175
    %11728 = vmatprep.subr.bf16.mxu0 0
    %11729 = vmatpush1.bf16.msra.mxu0 %v10176
    %11730 = vmatprep.subr.bf16.mxu0 0
    %11731 = vmatpush1.bf16.msra.mxu0 %v10177
    %11732 = vmatprep.subr.bf16.mxu0 0
    %11733 = vmatpush1.bf16.msra.mxu0 %v10178
    %11734 = vmatprep.subr.bf16.mxu0 0
    %11735 = vmatpush1.bf16.msra.mxu0 %v10179
    %11736 = vmatprep.subr.bf16.mxu0 0
    %11737 = vmatpush1.bf16.msra.mxu0 %v10180
    %11738 = vmatprep.subr.bf16.mxu0 0
    %11739 = vmatpush1.bf16.msra.mxu0 %v10181
    %11740 = vmatprep.mubr.bf16.mxu0 %v6639
    %11741 = vmatmul.mubr.bf16.gmra.mrb[0].mxu0 %v6638
    %v11742 = vpop.f32.mrb[0].mxu0
    %v11743 = vadd.f32 %v11703, %v11742
    %v11744 = vpop.f32.mrb[0].mxu0
    %v11745 = vpop.f32.mrb[0].mxu0
    %v11746 = vpop.f32.mrb[0].mxu0
    %11747 = vdwg.mxu0
    %11748 = vmatprep.subr.bf16.mxu0 0
    %11749 = vmatpush1.bf16.msra.mxu0 %v10182
    %11750 = vmatprep.subr.bf16.mxu0 0
    %11751 = vmatpush1.bf16.msra.mxu0 %v10183
    %11752 = vmatprep.subr.bf16.mxu0 0
    %11753 = vmatpush1.bf16.msra.mxu0 %v10184
    %11754 = vmatprep.subr.bf16.mxu0 0
    %11755 = vmatpush1.bf16.msra.mxu0 %v10185
    %11756 = vmatprep.subr.bf16.mxu0 0
    %11757 = vmatpush1.bf16.msra.mxu0 %v10186
    %11758 = vmatprep.subr.bf16.mxu0 0
    %11759 = vmatpush1.bf16.msra.mxu0 %v10187
    %11760 = vmatprep.subr.bf16.mxu0 0
    %11761 = vmatpush1.bf16.msra.mxu0 %v10188
    %11762 = vmatprep.subr.bf16.mxu0 0
    %11763 = vmatpush1.bf16.msra.mxu0 %v10189
    %11764 = vmatprep.subr.bf16.mxu0 0
    %11765 = vmatpush1.bf16.msra.mxu0 %v10190
    %11766 = vmatprep.subr.bf16.mxu0 0
    %11767 = vmatpush1.bf16.msra.mxu0 %v10191
    %11768 = vmatprep.subr.bf16.mxu0 0
    %11769 = vmatpush1.bf16.msra.mxu0 %v10192
    %11770 = vmatprep.subr.bf16.mxu0 0
    %11771 = vmatpush1.bf16.msra.mxu0 %v10193
    %11772 = vmatprep.subr.bf16.mxu0 0
    %11773 = vmatpush1.bf16.msra.mxu0 %v10194
    %11774 = vmatprep.subr.bf16.mxu0 0
    %11775 = vmatpush1.bf16.msra.mxu0 %v10195
    %11776 = vmatprep.subr.bf16.mxu0 0
    %11777 = vmatpush1.bf16.msra.mxu0 %v10196
    %11778 = vmatprep.subr.bf16.mxu0 0
    %11779 = vmatpush1.bf16.msra.mxu0 %v10197
    %11780 = vmatprep.mubr.bf16.mxu0 %v6641
    %11781 = vmatmul.mubr.bf16.gmra.mrb[0].mxu0 %v6640
    %v11782 = vpop.f32.mrb[0].mxu0
    %v11783 = vadd.f32 %v11743, %v11782
    %v11784 = vpop.f32.mrb[0].mxu0
    %v11785 = vpop.f32.mrb[0].mxu0
    %v11786 = vpop.f32.mrb[0].mxu0
    %11787 = vdwg.mxu0
    %11788 = vmatprep.subr.bf16.mxu0 0
    %11789 = vmatpush1.bf16.msra.mxu0 %v10198
    %11790 = vmatprep.subr.bf16.mxu0 0
    %11791 = vmatpush1.bf16.msra.mxu0 %v10199
    %11792 = vmatprep.subr.bf16.mxu0 0
    %11793 = vmatpush1.bf16.msra.mxu0 %v10200
    %11794 = vmatprep.subr.bf16.mxu0 0
    %11795 = vmatpush1.bf16.msra.mxu0 %v10201
    %11796 = vmatprep.subr.bf16.mxu0 0
    %11797 = vmatpush1.bf16.msra.mxu0 %v10202
    %11798 = vmatprep.subr.bf16.mxu0 0
    %11799 = vmatpush1.bf16.msra.mxu0 %v10203
    %11800 = vmatprep.subr.bf16.mxu0 0
    %11801 = vmatpush1.bf16.msra.mxu0 %v10204
    %11802 = vmatprep.subr.bf16.mxu0 0
    %11803 = vmatpush1.bf16.msra.mxu0 %v10205
    %11804 = vmatprep.subr.bf16.mxu0 0
    %11805 = vmatpush1.bf16.msra.mxu0 %v10206
    %11806 = vmatprep.subr.bf16.mxu0 0
    %11807 = vmatpush1.bf16.msra.mxu0 %v10207
    %11808 = vmatprep.subr.bf16.mxu0 0
    %11809 = vmatpush1.bf16.msra.mxu0 %v10208
    %11810 = vmatprep.subr.bf16.mxu0 0
    %11811 = vmatpush1.bf16.msra.mxu0 %v10209
    %11812 = vmatprep.subr.bf16.mxu0 0
    %11813 = vmatpush1.bf16.msra.mxu0 %v10210
    %11814 = vmatprep.subr.bf16.mxu0 0
    %11815 = vmatpush1.bf16.msra.mxu0 %v10211
    %11816 = vmatprep.subr.bf16.mxu0 0
    %11817 = vmatpush1.bf16.msra.mxu0 %v10212
    %11818 = vmatprep.subr.bf16.mxu0 0
    %11819 = vmatpush1.bf16.msra.mxu0 %v10213
    %11820 = vmatprep.mubr.bf16.mxu0 %v6643
    %11821 = vmatmul.mubr.bf16.gmra.mrb[0].mxu0 %v6642
    %v11822 = vpop.f32.mrb[0].mxu0
    %v11823 = vadd.f32 %v11783, %v11822
    %v11824 = vpop.f32.mrb[0].mxu0
    %v11825 = vpop.f32.mrb[0].mxu0
    %v11826 = vpop.f32.mrb[0].mxu0
    %11827 = vdwg.mxu0
    %11828 = vmatprep.subr.bf16.mxu0 0
    %11829 = vmatpush1.bf16.msra.mxu0 %v10214
    %11830 = vmatprep.subr.bf16.mxu0 0
    %11831 = vmatpush1.bf16.msra.mxu0 %v10215
    %11832 = vmatprep.subr.bf16.mxu0 0
    %11833 = vmatpush1.bf16.msra.mxu0 %v10216
    %11834 = vmatprep.subr.bf16.mxu0 0
    %11835 = vmatpush1.bf16.msra.mxu0 %v10217
    %11836 = vmatprep.subr.bf16.mxu0 0
    %11837 = vmatpush1.bf16.msra.mxu0 %v10218
    %11838 = vmatprep.subr.bf16.mxu0 0
    %11839 = vmatpush1.bf16.msra.mxu0 %v10219
    %11840 = vmatprep.subr.bf16.mxu0 0
    %11841 = vmatpush1.bf16.msra.mxu0 %v10220
    %11842 = vmatprep.subr.bf16.mxu0 0
    %11843 = vmatpush1.bf16.msra.mxu0 %v10221
    %11844 = vmatprep.subr.bf16.mxu0 0
    %11845 = vmatpush1.bf16.msra.mxu0 %v10222
    %11846 = vmatprep.subr.bf16.mxu0 0
    %11847 = vmatpush1.bf16.msra.mxu0 %v10223
    %11848 = vmatprep.subr.bf16.mxu0 0
    %11849 = vmatpush1.bf16.msra.mxu0 %v10224
    %11850 = vmatprep.subr.bf16.mxu0 0
    %11851 = vmatpush1.bf16.msra.mxu0 %v10225
    %11852 = vmatprep.subr.bf16.mxu0 0
    %11853 = vmatpush1.bf16.msra.mxu0 %v10226
    %11854 = vmatprep.subr.bf16.mxu0 0
    %11855 = vmatpush1.bf16.msra.mxu0 %v10227
    %11856 = vmatprep.subr.bf16.mxu0 0
    %11857 = vmatpush1.bf16.msra.mxu0 %v10228
    %11858 = vmatprep.subr.bf16.mxu0 0
    %11859 = vmatpush1.bf16.msra.mxu0 %v10229
    %11860 = vmatprep.mubr.bf16.mxu0 %v6645
    %11861 = vmatmul.mubr.bf16.gmra.mrb[0].mxu0 %v6644
    %v11862 = vpop.f32.mrb[0].mxu0
    %v11863 = vadd.f32 %v11823, %v11862
    %v11864 = vpop.f32.mrb[0].mxu0
    %v11865 = vpop.f32.mrb[0].mxu0
    %v11866 = vpop.f32.mrb[0].mxu0
    %11867 = vdwg.mxu0
    %11868 = vmatprep.subr.bf16.mxu0 0
    %11869 = vmatpush1.bf16.msra.mxu0 %v10230
    %11870 = vmatprep.subr.bf16.mxu0 0
    %11871 = vmatpush1.bf16.msra.mxu0 %v10231
    %11872 = vmatprep.subr.bf16.mxu0 0
    %11873 = vmatpush1.bf16.msra.mxu0 %v10232
    %11874 = vmatprep.subr.bf16.mxu0 0
    %11875 = vmatpush1.bf16.msra.mxu0 %v10233
    %11876 = vmatprep.subr.bf16.mxu0 0
    %11877 = vmatpush1.bf16.msra.mxu0 %v10234
    %11878 = vmatprep.subr.bf16.mxu0 0
    %11879 = vmatpush1.bf16.msra.mxu0 %v10235
    %11880 = vmatprep.subr.bf16.mxu0 0
    %11881 = vmatpush1.bf16.msra.mxu0 %v10236
    %11882 = vmatprep.subr.bf16.mxu0 0
    %11883 = vmatpush1.bf16.msra.mxu0 %v10237
    %11884 = vmatprep.subr.bf16.mxu0 0
    %11885 = vmatpush1.bf16.msra.mxu0 %v10238
    %11886 = vmatprep.subr.bf16.mxu0 0
    %11887 = vmatpush1.bf16.msra.mxu0 %v10239
    %11888 = vmatprep.subr.bf16.mxu0 0
    %11889 = vmatpush1.bf16.msra.mxu0 %v10240
    %11890 = vmatprep.subr.bf16.mxu0 0
    %11891 = vmatpush1.bf16.msra.mxu0 %v10241
    %11892 = vmatprep.subr.bf16.mxu0 0
    %11893 = vmatpush1.bf16.msra.mxu0 %v10242
    %11894 = vmatprep.subr.bf16.mxu0 0
    %11895 = vmatpush1.bf16.msra.mxu0 %v10243
    %11896 = vmatprep.subr.bf16.mxu0 0
    %11897 = vmatpush1.bf16.msra.mxu0 %v10244
    %11898 = vmatprep.subr.bf16.mxu0 0
    %11899 = vmatpush1.bf16.msra.mxu0 %v10245
    %11900 = vmatprep.mubr.bf16.mxu0 %v6647
    %11901 = vmatmul.mubr.bf16.gmra.mrb[0].mxu0 %v6646
    %v11902 = vpop.f32.mrb[0].mxu0
    %v11903 = vadd.f32 %v11863, %v11902
    %v11904 = vpop.f32.mrb[0].mxu0
    %v11905 = vpop.f32.mrb[0].mxu0
    %v11906 = vpop.f32.mrb[0].mxu0
    %11907 = vdwg.mxu0
    %11908 = vmatprep.subr.bf16.mxu0 0
    %11909 = vmatpush1.bf16.msra.mxu0 %v10246
    %11910 = vmatprep.subr.bf16.mxu0 0
    %11911 = vmatpush1.bf16.msra.mxu0 %v10247
    %11912 = vmatprep.subr.bf16.mxu0 0
    %11913 = vmatpush1.bf16.msra.mxu0 %v10248
    %11914 = vmatprep.subr.bf16.mxu0 0
    %11915 = vmatpush1.bf16.msra.mxu0 %v10249
    %11916 = vmatprep.subr.bf16.mxu0 0
    %11917 = vmatpush1.bf16.msra.mxu0 %v10250
    %11918 = vmatprep.subr.bf16.mxu0 0
    %11919 = vmatpush1.bf16.msra.mxu0 %v10251
    %11920 = vmatprep.subr.bf16.mxu0 0
    %11921 = vmatpush1.bf16.msra.mxu0 %v10252
    %11922 = vmatprep.subr.bf16.mxu0 0
    %11923 = vmatpush1.bf16.msra.mxu0 %v10253
    %11924 = vmatprep.subr.bf16.mxu0 0
    %11925 = vmatpush1.bf16.msra.mxu0 %v10254
    %11926 = vmatprep.subr.bf16.mxu0 0
    %11927 = vmatpush1.bf16.msra.mxu0 %v10255
    %11928 = vmatprep.subr.bf16.mxu0 0
    %11929 = vmatpush1.bf16.msra.mxu0 %v10256
    %11930 = vmatprep.subr.bf16.mxu0 0
    %11931 = vmatpush1.bf16.msra.mxu0 %v10257
    %11932 = vmatprep.subr.bf16.mxu0 0
    %11933 = vmatpush1.bf16.msra.mxu0 %v10258
    %11934 = vmatprep.subr.bf16.mxu0 0
    %11935 = vmatpush1.bf16.msra.mxu0 %v10259
    %11936 = vmatprep.subr.bf16.mxu0 0
    %11937 = vmatpush1.bf16.msra.mxu0 %v10260
    %11938 = vmatprep.subr.bf16.mxu0 0
    %11939 = vmatpush1.bf16.msra.mxu0 %v10261
    %11940 = vmatprep.mubr.bf16.mxu0 %v6649
    %11941 = vmatmul.mubr.bf16.gmra.mrb[0].mxu0 %v6648
    %v11942 = vpop.f32.mrb[0].mxu0
    %v11943 = vadd.f32 %v11903, %v11942
    %v11944 = vpop.f32.mrb[0].mxu0
    %v11945 = vpop.f32.mrb[0].mxu0
    %v11946 = vpop.f32.mrb[0].mxu0
    %11947 = vdwg.mxu0
    %11948 = vmatprep.subr.bf16.mxu0 0
    %11949 = vmatpush1.bf16.msra.mxu0 %v10262
    %11950 = vmatprep.subr.bf16.mxu0 0
    %11951 = vmatpush1.bf16.msra.mxu0 %v10263
    %11952 = vmatprep.subr.bf16.mxu0 0
    %11953 = vmatpush1.bf16.msra.mxu0 %v10264
    %11954 = vmatprep.subr.bf16.mxu0 0
    %11955 = vmatpush1.bf16.msra.mxu0 %v10265
    %11956 = vmatprep.subr.bf16.mxu0 0
    %11957 = vmatpush1.bf16.msra.mxu0 %v10266
    %11958 = vmatprep.subr.bf16.mxu0 0
    %11959 = vmatpush1.bf16.msra.mxu0 %v10267
    %11960 = vmatprep.subr.bf16.mxu0 0
    %11961 = vmatpush1.bf16.msra.mxu0 %v10268
    %11962 = vmatprep.subr.bf16.mxu0 0
    %11963 = vmatpush1.bf16.msra.mxu0 %v10269
    %11964 = vmatprep.subr.bf16.mxu0 0
    %11965 = vmatpush1.bf16.msra.mxu0 %v10270
    %11966 = vmatprep.subr.bf16.mxu0 0
    %11967 = vmatpush1.bf16.msra.mxu0 %v10271
    %11968 = vmatprep.subr.bf16.mxu0 0
    %11969 = vmatpush1.bf16.msra.mxu0 %v10272
    %11970 = vmatprep.subr.bf16.mxu0 0
    %11971 = vmatpush1.bf16.msra.mxu0 %v10273
    %11972 = vmatprep.subr.bf16.mxu0 0
    %11973 = vmatpush1.bf16.msra.mxu0 %v10274
    %11974 = vmatprep.subr.bf16.mxu0 0
    %11975 = vmatpush1.bf16.msra.mxu0 %v10275
    %11976 = vmatprep.subr.bf16.mxu0 0
    %11977 = vmatpush1.bf16.msra.mxu0 %v10276
    %11978 = vmatprep.subr.bf16.mxu0 0
    %11979 = vmatpush1.bf16.msra.mxu0 %v10277
    %11980 = vmatprep.mubr.bf16.mxu0 %v6651
    %11981 = vmatmul.mubr.bf16.gmra.mrb[0].mxu0 %v6650
    %v11982 = vpop.f32.mrb[0].mxu0
    %v11983 = vadd.f32 %v11943, %v11982
    %v11984 = vpop.f32.mrb[0].mxu0
    %v11985 = vpop.f32.mrb[0].mxu0
    %v11986 = vpop.f32.mrb[0].mxu0
    %11987 = vdwg.mxu0
    %11988 = vmatprep.subr.bf16.mxu0 0
    %11989 = vmatpush1.bf16.msra.mxu0 %v10278
    %11990 = vmatprep.subr.bf16.mxu0 0
    %11991 = vmatpush1.bf16.msra.mxu0 %v10279
    %11992 = vmatprep.subr.bf16.mxu0 0
    %11993 = vmatpush1.bf16.msra.mxu0 %v10280
    %11994 = vmatprep.subr.bf16.mxu0 0
    %11995 = vmatpush1.bf16.msra.mxu0 %v10281
    %11996 = vmatprep.subr.bf16.mxu0 0
    %11997 = vmatpush1.bf16.msra.mxu0 %v10282
    %11998 = vmatprep.subr.bf16.mxu0 0
    %11999 = vmatpush1.bf16.msra.mxu0 %v10283
    %12000 = vmatprep.subr.bf16.mxu0 0
    %12001 = vmatpush1.bf16.msra.mxu0 %v10284
    %12002 = vmatprep.subr.bf16.mxu0 0
    %12003 = vmatpush1.bf16.msra.mxu0 %v10285
    %12004 = vmatprep.subr.bf16.mxu0 0
    %12005 = vmatpush1.bf16.msra.mxu0 %v10286
    %12006 = vmatprep.subr.bf16.mxu0 0
    %12007 = vmatpush1.bf16.msra.mxu0 %v10287
    %12008 = vmatprep.subr.bf16.mxu0 0
    %12009 = vmatpush1.bf16.msra.mxu0 %v10288
    %12010 = vmatprep.subr.bf16.mxu0 0
    %12011 = vmatpush1.bf16.msra.mxu0 %v10289
    %12012 = vmatprep.subr.bf16.mxu0 0
    %12013 = vmatpush1.bf16.msra.mxu0 %v10290
    %12014 = vmatprep.subr.bf16.mxu0 0
    %12015 = vmatpush1.bf16.msra.mxu0 %v10291
    %12016 = vmatprep.subr.bf16.mxu0 0
    %12017 = vmatpush1.bf16.msra.mxu0 %v10292
    %12018 = vmatprep.subr.bf16.mxu0 0
    %12019 = vmatpush1.bf16.msra.mxu0 %v10293
    %12020 = vmatprep.mubr.bf16.mxu0 %v6653
    %12021 = vmatmul.mubr.bf16.gmra.mrb[0].mxu0 %v6652
    %v12022 = vpop.f32.mrb[0].mxu0
    %v12023 = vadd.f32 %v11983, %v12022
    %v12024 = vpop.f32.mrb[0].mxu0
    %v12025 = vpop.f32.mrb[0].mxu0
    %v12026 = vpop.f32.mrb[0].mxu0
    %12027 = vdwg.mxu0
    %12028 = vmatprep.subr.bf16.mxu0 0
    %12029 = vmatpush1.bf16.msra.mxu0 %v10294
    %12030 = vmatprep.subr.bf16.mxu0 0
    %12031 = vmatpush1.bf16.msra.mxu0 %v10295
    %12032 = vmatprep.subr.bf16.mxu0 0
    %12033 = vmatpush1.bf16.msra.mxu0 %v10296
    %12034 = vmatprep.subr.bf16.mxu0 0
    %12035 = vmatpush1.bf16.msra.mxu0 %v10297
    %12036 = vmatprep.subr.bf16.mxu0 0
    %12037 = vmatpush1.bf16.msra.mxu0 %v10298
    %12038 = vmatprep.subr.bf16.mxu0 0
    %12039 = vmatpush1.bf16.msra.mxu0 %v10299
    %12040 = vmatprep.subr.bf16.mxu0 0
    %12041 = vmatpush1.bf16.msra.mxu0 %v10300
    %12042 = vmatprep.subr.bf16.mxu0 0
    %12043 = vmatpush1.bf16.msra.mxu0 %v10301
    %12044 = vmatprep.subr.bf16.mxu0 0
    %12045 = vmatpush1.bf16.msra.mxu0 %v10302
    %12046 = vmatprep.subr.bf16.mxu0 0
    %12047 = vmatpush1.bf16.msra.mxu0 %v10303
    %12048 = vmatprep.subr.bf16.mxu0 0
    %12049 = vmatpush1.bf16.msra.mxu0 %v10304
    %12050 = vmatprep.subr.bf16.mxu0 0
    %12051 = vmatpush1.bf16.msra.mxu0 %v10305
    %12052 = vmatprep.subr.bf16.mxu0 0
    %12053 = vmatpush1.bf16.msra.mxu0 %v10306
    %12054 = vmatprep.subr.bf16.mxu0 0
    %12055 = vmatpush1.bf16.msra.mxu0 %v10307
    %12056 = vmatprep.subr.bf16.mxu0 0
    %12057 = vmatpush1.bf16.msra.mxu0 %v10308
    %12058 = vmatprep.subr.bf16.mxu0 0
    %12059 = vmatpush1.bf16.msra.mxu0 %v10309
    %12060 = vmatprep.mubr.bf16.mxu0 %v6655
    %12061 = vmatmul.mubr.bf16.gmra.mrb[0].mxu0 %v6654
    %v12062 = vpop.f32.mrb[0].mxu0
    %v12063 = vadd.f32 %v12023, %v12062
    %v12064 = vpop.f32.mrb[0].mxu0
    %v12065 = vpop.f32.mrb[0].mxu0
    %v12066 = vpop.f32.mrb[0].mxu0
    %12067 = vdwg.mxu0
    %12068 = vmatprep.subr.bf16.mxu0 0
    %12069 = vmatpush1.bf16.msra.mxu0 %v10310
    %12070 = vmatprep.subr.bf16.mxu0 0
    %12071 = vmatpush1.bf16.msra.mxu0 %v10311
    %12072 = vmatprep.subr.bf16.mxu0 0
    %12073 = vmatpush1.bf16.msra.mxu0 %v10312
    %12074 = vmatprep.subr.bf16.mxu0 0
    %12075 = vmatpush1.bf16.msra.mxu0 %v10313
    %12076 = vmatprep.subr.bf16.mxu0 0
    %12077 = vmatpush1.bf16.msra.mxu0 %v10314
    %12078 = vmatprep.subr.bf16.mxu0 0
    %12079 = vmatpush1.bf16.msra.mxu0 %v10315
    %12080 = vmatprep.subr.bf16.mxu0 0
    %12081 = vmatpush1.bf16.msra.mxu0 %v10316
    %12082 = vmatprep.subr.bf16.mxu0 0
    %12083 = vmatpush1.bf16.msra.mxu0 %v10317
    %12084 = vmatprep.subr.bf16.mxu0 0
    %12085 = vmatpush1.bf16.msra.mxu0 %v10318
    %12086 = vmatprep.subr.bf16.mxu0 0
    %12087 = vmatpush1.bf16.msra.mxu0 %v10319
    %12088 = vmatprep.subr.bf16.mxu0 0
    %12089 = vmatpush1.bf16.msra.mxu0 %v10320
    %12090 = vmatprep.subr.bf16.mxu0 0
    %12091 = vmatpush1.bf16.msra.mxu0 %v10321
    %12092 = vmatprep.subr.bf16.mxu0 0
    %12093 = vmatpush1.bf16.msra.mxu0 %v10322
    %12094 = vmatprep.subr.bf16.mxu0 0
    %12095 = vmatpush1.bf16.msra.mxu0 %v10323
    %12096 = vmatprep.subr.bf16.mxu0 0
    %12097 = vmatpush1.bf16.msra.mxu0 %v10324
    %12098 = vmatprep.subr.bf16.mxu0 0
    %12099 = vmatpush1.bf16.msra.mxu0 %v10325
    %12100 = vmatprep.mubr.bf16.mxu0 %v6657
    %12101 = vmatmul.mubr.bf16.gmra.mrb[0].mxu0 %v6656
    %v12102 = vpop.f32.mrb[0].mxu0
    %v12103 = vadd.f32 %v12063, %v12102
    %v12104 = vpop.f32.mrb[0].mxu0
    %v12105 = vpop.f32.mrb[0].mxu0
    %v12106 = vpop.f32.mrb[0].mxu0
    %12107 = vdwg.mxu0
    %12108 = vmatprep.subr.bf16.mxu0 0
    %12109 = vmatpush1.bf16.msra.mxu0 %v10326
    %12110 = vmatprep.subr.bf16.mxu0 0
    %12111 = vmatpush1.bf16.msra.mxu0 %v10327
    %12112 = vmatprep.subr.bf16.mxu0 0
    %12113 = vmatpush1.bf16.msra.mxu0 %v10328
    %12114 = vmatprep.subr.bf16.mxu0 0
    %12115 = vmatpush1.bf16.msra.mxu0 %v10329
    %12116 = vmatprep.subr.bf16.mxu0 0
    %12117 = vmatpush1.bf16.msra.mxu0 %v10330
    %12118 = vmatprep.subr.bf16.mxu0 0
    %12119 = vmatpush1.bf16.msra.mxu0 %v10331
    %12120 = vmatprep.subr.bf16.mxu0 0
    %12121 = vmatpush1.bf16.msra.mxu0 %v10332
    %12122 = vmatprep.subr.bf16.mxu0 0
    %12123 = vmatpush1.bf16.msra.mxu0 %v10333
    %12124 = vmatprep.subr.bf16.mxu0 0
    %12125 = vmatpush1.bf16.msra.mxu0 %v10334
    %12126 = vmatprep.subr.bf16.mxu0 0
    %12127 = vmatpush1.bf16.msra.mxu0 %v10335
    %12128 = vmatprep.subr.bf16.mxu0 0
    %12129 = vmatpush1.bf16.msra.mxu0 %v10336
    %12130 = vmatprep.subr.bf16.mxu0 0
    %12131 = vmatpush1.bf16.msra.mxu0 %v10337
    %12132 = vmatprep.subr.bf16.mxu0 0
    %12133 = vmatpush1.bf16.msra.mxu0 %v10338
    %12134 = vmatprep.subr.bf16.mxu0 0
    %12135 = vmatpush1.bf16.msra.mxu0 %v10339
    %12136 = vmatprep.subr.bf16.mxu0 0
    %12137 = vmatpush1.bf16.msra.mxu0 %v10340
    %12138 = vmatprep.subr.bf16.mxu0 0
    %12139 = vmatpush1.bf16.msra.mxu0 %v10341
    %12140 = vmatprep.mubr.bf16.mxu0 %v6659
    %12141 = vmatmul.mubr.bf16.gmra.mrb[0].mxu0 %v6658
    %v12142 = vpop.f32.mrb[0].mxu0
    %v12143 = vadd.f32 %v12103, %v12142
    %v12144 = vpop.f32.mrb[0].mxu0
    %v12145 = vpop.f32.mrb[0].mxu0
    %v12146 = vpop.f32.mrb[0].mxu0
    %12147 = vdwg.mxu0
    %12148 = vmatprep.subr.bf16.mxu0 0
    %12149 = vmatpush1.bf16.msra.mxu0 %v10342
    %12150 = vmatprep.subr.bf16.mxu0 0
    %12151 = vmatpush1.bf16.msra.mxu0 %v10343
    %12152 = vmatprep.subr.bf16.mxu0 0
    %12153 = vmatpush1.bf16.msra.mxu0 %v10344
    %12154 = vmatprep.subr.bf16.mxu0 0
    %12155 = vmatpush1.bf16.msra.mxu0 %v10345
    %12156 = vmatprep.subr.bf16.mxu0 0
    %12157 = vmatpush1.bf16.msra.mxu0 %v10346
    %12158 = vmatprep.subr.bf16.mxu0 0
    %12159 = vmatpush1.bf16.msra.mxu0 %v10347
    %12160 = vmatprep.subr.bf16.mxu0 0
    %12161 = vmatpush1.bf16.msra.mxu0 %v10348
    %12162 = vmatprep.subr.bf16.mxu0 0
    %12163 = vmatpush1.bf16.msra.mxu0 %v10349
    %12164 = vmatprep.subr.bf16.mxu0 0
    %12165 = vmatpush1.bf16.msra.mxu0 %v10350
    %12166 = vmatprep.subr.bf16.mxu0 0
    %12167 = vmatpush1.bf16.msra.mxu0 %v10351
    %12168 = vmatprep.subr.bf16.mxu0 0
    %12169 = vmatpush1.bf16.msra.mxu0 %v10352
    %12170 = vmatprep.subr.bf16.mxu0 0
    %12171 = vmatpush1.bf16.msra.mxu0 %v10353
    %12172 = vmatprep.subr.bf16.mxu0 0
    %12173 = vmatpush1.bf16.msra.mxu0 %v10354
    %12174 = vmatprep.subr.bf16.mxu0 0
    %12175 = vmatpush1.bf16.msra.mxu0 %v10355
    %12176 = vmatprep.subr.bf16.mxu0 0
    %12177 = vmatpush1.bf16.msra.mxu0 %v10356
    %12178 = vmatprep.subr.bf16.mxu0 0
    %12179 = vmatpush1.bf16.msra.mxu0 %v10357
    %12180 = vmatprep.mubr.bf16.mxu0 %v6661
    %12181 = vmatmul.mubr.bf16.gmra.mrb[0].mxu0 %v6660
    %v12182 = vpop.f32.mrb[0].mxu0
    %v12183 = vadd.f32 %v12143, %v12182
    %v12184 = vpop.f32.mrb[0].mxu0
    %v12185 = vpop.f32.mrb[0].mxu0
    %v12186 = vpop.f32.mrb[0].mxu0
    %12187 = vdwg.mxu0
    %12188 = vmatprep.subr.bf16.mxu0 0
    %12189 = vmatpush1.bf16.msra.mxu0 %v10358
    %12190 = vmatprep.subr.bf16.mxu0 0
    %12191 = vmatpush1.bf16.msra.mxu0 %v10359
    %12192 = vmatprep.subr.bf16.mxu0 0
    %12193 = vmatpush1.bf16.msra.mxu0 %v10360
    %12194 = vmatprep.subr.bf16.mxu0 0
    %12195 = vmatpush1.bf16.msra.mxu0 %v10361
    %12196 = vmatprep.subr.bf16.mxu0 0
    %12197 = vmatpush1.bf16.msra.mxu0 %v10362
    %12198 = vmatprep.subr.bf16.mxu0 0
    %12199 = vmatpush1.bf16.msra.mxu0 %v10363
    %12200 = vmatprep.subr.bf16.mxu0 0
    %12201 = vmatpush1.bf16.msra.mxu0 %v10364
    %12202 = vmatprep.subr.bf16.mxu0 0
    %12203 = vmatpush1.bf16.msra.mxu0 %v10365
    %12204 = vmatprep.subr.bf16.mxu0 0
    %12205 = vmatpush1.bf16.msra.mxu0 %v10366
    %12206 = vmatprep.subr.bf16.mxu0 0
    %12207 = vmatpush1.bf16.msra.mxu0 %v10367
    %12208 = vmatprep.subr.bf16.mxu0 0
    %12209 = vmatpush1.bf16.msra.mxu0 %v10368
    %12210 = vmatprep.subr.bf16.mxu0 0
    %12211 = vmatpush1.bf16.msra.mxu0 %v10369
    %12212 = vmatprep.subr.bf16.mxu0 0
    %12213 = vmatpush1.bf16.msra.mxu0 %v10370
    %12214 = vmatprep.subr.bf16.mxu0 0
    %12215 = vmatpush1.bf16.msra.mxu0 %v10371
    %12216 = vmatprep.subr.bf16.mxu0 0
    %12217 = vmatpush1.bf16.msra.mxu0 %v10372
    %12218 = vmatprep.subr.bf16.mxu0 0
    %12219 = vmatpush1.bf16.msra.mxu0 %v10373
    %12220 = vmatprep.mubr.bf16.mxu0 %v6663
    %12221 = vmatmul.mubr.bf16.gmra.mrb[0].mxu0 %v6662
    %v12222 = vpop.f32.mrb[0].mxu0
    %v12223 = vadd.f32 %v12183, %v12222
    %v12224 = vpop.f32.mrb[0].mxu0
    %v12225 = vpop.f32.mrb[0].mxu0
    %v12226 = vpop.f32.mrb[0].mxu0
    %12227 = vdwg.mxu0
    %12228 = vmatprep.subr.bf16.mxu0 0
    %12229 = vmatpush1.bf16.msra.mxu0 %v10374
    %12230 = vmatprep.subr.bf16.mxu0 0
    %12231 = vmatpush1.bf16.msra.mxu0 0
    %12232 = vmatprep.subr.bf16.mxu0 0
    %12233 = vmatpush1.bf16.msra.mxu0 0
    %12234 = vmatprep.subr.bf16.mxu0 0
    %12235 = vmatpush1.bf16.msra.mxu0 0
    %12236 = vmatprep.subr.bf16.mxu0 0
    %12237 = vmatpush1.bf16.msra.mxu0 0
    %12238 = vmatprep.subr.bf16.mxu0 0
    %12239 = vmatpush1.bf16.msra.mxu0 0
    %12240 = vmatprep.subr.bf16.mxu0 0
    %12241 = vmatpush1.bf16.msra.mxu0 0
    %12242 = vmatprep.subr.bf16.mxu0 0
    %12243 = vmatpush1.bf16.msra.mxu0 0
    %12244 = vmatprep.subr.bf16.mxu0 0
    %12245 = vmatpush1.bf16.msra.mxu0 0
    %12246 = vmatprep.subr.bf16.mxu0 0
    %12247 = vmatpush1.bf16.msra.mxu0 0
    %12248 = vmatprep.subr.bf16.mxu0 0
    %12249 = vmatpush1.bf16.msra.mxu0 0
    %12250 = vmatprep.subr.bf16.mxu0 0
    %12251 = vmatpush1.bf16.msra.mxu0 0
    %12252 = vmatprep.subr.bf16.mxu0 0
    %12253 = vmatpush1.bf16.msra.mxu0 0
    %12254 = vmatprep.subr.bf16.mxu0 0
    %12255 = vmatpush1.bf16.msra.mxu0 0
    %12256 = vmatprep.subr.bf16.mxu0 0
    %12257 = vmatpush1.bf16.msra.mxu0 0
    %12258 = vmatprep.subr.bf16.mxu0 0
    %12259 = vmatpush1.bf16.msra.mxu0 0
    %12260 = vmatprep.mubr.bf16.mxu0 0
    %12261 = vmatmul.mubr.bf16.gmra.mrb[0].mxu0 %v10906
    %v12262 = vpop.f32.mrb[0].mxu0
    %v12263 = vadd.f32 %v12223, %v12262
    %v12264 = vpop.f32.mrb[0].mxu0
    %v12265 = vpop.f32.mrb[0].mxu0
    %v12266 = vpop.f32.mrb[0].mxu0
    %12267 = vdwg.mxu0
    %v12268 = vmax.f32 %v12263, 0.0
    %v12269 = vpack.c.bf16 %v12268, %v12268
    %v12270 = vld [vmem:[%s7] sm:$0xf]
    %v12271 = vld [vmem:[%s7 + $0x4] sm:$0xf]
    %v12272 = vld [vmem:[%s7 + $0x8] sm:$0xf]
    %v12273 = vld [vmem:[%s7 + $0xc] sm:$0xf]
    %v12274 = vld [vmem:[%s7 + $0x10] sm:$0xf]
    %v12275 = vld [vmem:[%s7 + $0x14] sm:$0xf]
    %v12276 = vld [vmem:[%s7 + $0x18] sm:$0xf]
    %v12277 = vld [vmem:[%s7 + $0x1c] sm:$0xf]
    %v12278 = vld [vmem:[%s7 + $0x20] sm:$0xf]
    %v12279 = vld [vmem:[%s7 + $0x24] sm:$0xf]
    %v12280 = vld [vmem:[%s7 + $0x28] sm:$0xf]
    %v12281 = vld [vmem:[%s7 + $0x2c] sm:$0xf]
    %v12282 = vld [vmem:[%s7 + $0x30] sm:$0xf]
    %v12283 = vld [vmem:[%s7 + $0x34] sm:$0xf]
    %v12284 = vld [vmem:[%s7 + $0x38] sm:$0xf]
    %v12285 = vld [vmem:[%s8] sm:$0x1]
    %v12287 = vlaneseq
    %v12288 = vshrl.u32 %v12287, 7
    %v12289 = vsub.s32 0, %v12288
    %v12290 = vrot.slane %v12285, %v12289
    %v12307 = vunpack.c.l.b16 %v12270
    %v12308 = vunpack.c.l.b16 %v12271
    %v12309 = vunpack.c.l.b16 %v12272
    %v12310 = vunpack.c.l.b16 %v12273
    %v12311 = vunpack.c.l.b16 %v12274
    %v12312 = vunpack.c.l.b16 %v12275
    %v12313 = vunpack.c.l.b16 %v12276
    %v12314 = vunpack.c.l.b16 %v12277
    %v12315 = vunpack.c.l.b16 %v12278
    %v12316 = vunpack.c.l.b16 %v12279
    %v12317 = vunpack.c.l.b16 %v12280
    %v12318 = vunpack.c.l.b16 %v12281
    %v12319 = vunpack.c.l.b16 %v12282
    %v12320 = vunpack.c.l.b16 %v12283
    %v12321 = vunpack.c.l.b16 %v12284
    %v12322 = vpack.c.b16 %v12308, %v12307
    %v12323 = vpack.c.b16 %v12310, %v12309
    %v12324 = vpack.c.b16 %v12312, %v12311
    %v12325 = vpack.c.b16 %v12314, %v12313
    %v12326 = vpack.c.b16 %v12316, %v12315
    %v12327 = vpack.c.b16 %v12318, %v12317
    %v12328 = vpack.c.b16 %v12320, %v12319
    %v12329 = vpack.c.b16 %v12321, %v12321
    %v12338 = vsel %vm3187, %v12269, 0
    %vm12340 = vcmask 1043456
    %v12342 = vsel %vm12340, %v12329, 0
    %12344 = vmatprep.subr.bf16.mxu0 0
    %12345 = vmatpush1.bf16.msra.mxu0 %v12322
    %12346 = vmatprep.subr.bf16.mxu0 0
    %12347 = vmatpush1.bf16.msra.mxu0 %v12323
    %12348 = vmatprep.subr.bf16.mxu0 0
    %12349 = vmatpush1.bf16.msra.mxu0 %v12324
    %12350 = vmatprep.subr.bf16.mxu0 0
    %12351 = vmatpush1.bf16.msra.mxu0 %v12325
    %12352 = vmatprep.subr.bf16.mxu0 0
    %12353 = vmatpush1.bf16.msra.mxu0 %v12326
    %12354 = vmatprep.subr.bf16.mxu0 0
    %12355 = vmatpush1.bf16.msra.mxu0 %v12327
    %12356 = vmatprep.subr.bf16.mxu0 0
    %12357 = vmatpush1.bf16.msra.mxu0 %v12328
    %12358 = vmatprep.subr.bf16.mxu0 0
    %12359 = vmatpush1.bf16.msra.mxu0 %v12342
    %12360 = vmatprep.subr.bf16.mxu0 0
    %12361 = vmatpush1.bf16.msra.mxu0 0
    %12362 = vmatprep.subr.bf16.mxu0 0
    %12363 = vmatpush1.bf16.msra.mxu0 0
    %12364 = vmatprep.subr.bf16.mxu0 0
    %12365 = vmatpush1.bf16.msra.mxu0 0
    %12366 = vmatprep.subr.bf16.mxu0 0
    %12367 = vmatpush1.bf16.msra.mxu0 0
    %12368 = vmatprep.subr.bf16.mxu0 0
    %12369 = vmatpush1.bf16.msra.mxu0 0
    %12370 = vmatprep.subr.bf16.mxu0 0
    %12371 = vmatpush1.bf16.msra.mxu0 0
    %12372 = vmatprep.subr.bf16.mxu0 0
    %12373 = vmatpush1.bf16.msra.mxu0 0
    %12374 = vmatprep.subr.bf16.mxu0 0
    %12375 = vmatpush1.bf16.msra.mxu0 0
    %12376 = vmatprep.mubr.bf16.mxu0 0
    %12377 = vmatmul.mubr.bf16.gmra.mrb[0].mxu0 %v12338
    %v12378 = vpop.f32.mrb[0].mxu0
    %v12379 = vadd.f32 %v12290, %v12378
    %v12380 = vpop.f32.mrb[0].mxu0
    %v12381 = vpop.f32.mrb[0].mxu0
    %v12382 = vpop.f32.mrb[0].mxu0
    %12383 = vdwg.mxu0
    %v12384 = vmax.f32 %v12379, 0.0
    %v12385 = vpack.c.bf16 %v12384, %v12384
    %v12386 = vld [vmem:[%s9] sm:$0xf]
    %v12387 = vld [vmem:[%s9 + $0x4] sm:$0xf]
    %v12388 = vld [vmem:[%s9 + $0x8] sm:$0xf]
    %v12389 = vld [vmem:[%s9 + $0xc] sm:$0xf]
    %v12390 = vld [vmem:[%s9 + $0x10] sm:$0xf]
    %v12391 = vld [vmem:[%s9 + $0x14] sm:$0xf]
    %v12392 = vld [vmem:[%s9 + $0x18] sm:$0xf]
    %v12393 = vld [vmem:[%s9 + $0x1c] sm:$0xf]
    %v12394 = vld [vmem:[%s9 + $0x20] sm:$0xf]
    %v12395 = vld [vmem:[%s9 + $0x24] sm:$0xf]
    %v12396 = vld [vmem:[%s9 + $0x28] sm:$0x3]
    %v12397 = vld [vmem:[%s10] sm:$0x1]
    %v12399 = vlaneseq
    %v12400 = vshrl.u32 %v12399, 7
    %v12401 = vsub.s32 0, %v12400
    %v12402 = vrot.slane %v12397, %v12401
    %v12415 = vunpack.c.l.b16 %v12386
    %v12416 = vunpack.c.l.b16 %v12387
    %v12417 = vunpack.c.l.b16 %v12388
    %v12418 = vunpack.c.l.b16 %v12389
    %v12419 = vunpack.c.l.b16 %v12390
    %v12420 = vunpack.c.l.b16 %v12391
    %v12421 = vunpack.c.l.b16 %v12392
    %v12422 = vunpack.c.l.b16 %v12393
    %v12423 = vunpack.c.l.b16 %v12394
    %v12424 = vunpack.c.l.b16 %v12395
    %v12425 = vunpack.c.l.b16 %v12396
    %v12426 = vpack.c.b16 %v12416, %v12415
    %v12427 = vpack.c.b16 %v12418, %v12417
    %v12428 = vpack.c.b16 %v12420, %v12419
    %v12429 = vpack.c.b16 %v12422, %v12421
    %v12430 = vpack.c.b16 %v12424, %v12423
    %v12431 = vpack.c.b16 %v12425, %v12425
    %vm12437 = vcmask 687104
    %v12439 = vsel %vm12437, %v12385, 0
    %vm12441 = vcmask 1041408
    %v12443 = vsel %vm12441, %v12431, 0
    %12445 = vmatprep.subr.bf16.mxu0 0
    %12446 = vmatpush1.bf16.msra.mxu0 %v12426
    %12447 = vmatprep.subr.bf16.mxu0 0
    %12448 = vmatpush1.bf16.msra.mxu0 %v12427
    %12449 = vmatprep.subr.bf16.mxu0 0
    %12450 = vmatpush1.bf16.msra.mxu0 %v12428
    %12451 = vmatprep.subr.bf16.mxu0 0
    %12452 = vmatpush1.bf16.msra.mxu0 %v12429
    %12453 = vmatprep.subr.bf16.mxu0 0
    %12454 = vmatpush1.bf16.msra.mxu0 %v12430
    %12455 = vmatprep.subr.bf16.mxu0 0
    %12456 = vmatpush1.bf16.msra.mxu0 %v12443
    %12457 = vmatprep.subr.bf16.mxu0 0
    %12458 = vmatpush1.bf16.msra.mxu0 0
    %12459 = vmatprep.subr.bf16.mxu0 0
    %12460 = vmatpush1.bf16.msra.mxu0 0
    %12461 = vmatprep.subr.bf16.mxu0 0
    %12462 = vmatpush1.bf16.msra.mxu0 0
    %12463 = vmatprep.subr.bf16.mxu0 0
    %12464 = vmatpush1.bf16.msra.mxu0 0
    %12465 = vmatprep.subr.bf16.mxu0 0
    %12466 = vmatpush1.bf16.msra.mxu0 0
    %12467 = vmatprep.subr.bf16.mxu0 0
    %12468 = vmatpush1.bf16.msra.mxu0 0
    %12469 = vmatprep.subr.bf16.mxu0 0
    %12470 = vmatpush1.bf16.msra.mxu0 0
    %12471 = vmatprep.subr.bf16.mxu0 0
    %12472 = vmatpush1.bf16.msra.mxu0 0
    %12473 = vmatprep.subr.bf16.mxu0 0
    %12474 = vmatpush1.bf16.msra.mxu0 0
    %12475 = vmatprep.subr.bf16.mxu0 0
    %12476 = vmatpush1.bf16.msra.mxu0 0
    %12477 = vmatprep.mubr.bf16.mxu0 0
    %12478 = vmatmul.mubr.bf16.gmra.mrb[0].mxu0 %v12439
    %v12479 = vpop.f32.mrb[0].mxu0
    %v12480 = vadd.f32 %v12402, %v12479
    %v12481 = vpop.f32.mrb[0].mxu0
    %v12482 = vpop.f32.mrb[0].mxu0
    %v12483 = vpop.f32.mrb[0].mxu0
    %12484 = vdwg.mxu0
    %vm12485 = vcmask 74752
    %12486 = vst.msk [vmem:[#allocation5] sm:$0x3] %vm12485, %v12480
    // Predicated region
    $region46: #{net_forward.1} parent=1 // pred_check
      _
    $region47: #{net_forward.1} parent=1 // pred_check_branch
      %12488 = sbr.rel (0) target = $region49
    $region48: #{net_forward.1} parent=1 // pred_region
      %s12490 = ssub.s32 32, 32
      %12491 = vsyncadd [#allocation6], %s12490
      %s12493 = sshll.u32 [#allocation5], 4
      %s12494 = int_to_ptr.vmem [resolvable:$true] %s12493
      %12496 = dma.vmem_to_hbm [thread:$0]  %s12494, 32, %s11, [#allocation6]
    $region49: #{net_forward.1} parent=1 // pred_fallthru
      _
    // Predicated region
    $region50: #{net_forward.1} parent=1 // pred_check
      _
    $region51: #{net_forward.1} parent=1 // pred_check_branch
      %12498 = sbr.rel (0) target = $region53
    $region52: #{net_forward.1} parent=1 // pred_region
      %12499 = dma.done [#allocation6], 32
    $region53: #{net_forward.1} parent=1 // pred_fallthru
      _
    %12500 = vsyncpa [#allocation6], 1

</llo_original>
